<compile_context>
chip_gen: v7x
topology: tpu7x:2x2x1
jax: 0.10.0
libtpu: 0.0.40
codegen_flags: <defaults>
</compile_context>

<pallas_src>
import numpy as np
import jax
import jax.numpy as jnp
from jax.experimental import pallas as pl
from jax.experimental.pallas import tpu as pltpu

POS_DIM = 3
DIR_DIM = 3
RAW = POS_DIM + DIR_DIM                 # 6 raw pass-through features [x | d]
HIDDEN = 256
POS_L = 10                              # positional_encoding(x, 10) -> 3*(1+2*10) = 63
DIR_L = 4                               # positional_encoding(d, 4)  -> 3*(1+2*4)  = 27
ENC_POS = POS_DIM * (1 + 2 * POS_L)     # 63
ENC_DIR = DIR_DIM * (1 + 2 * DIR_L)     # 27
SC_POS = 2 * POS_DIM * POS_L            # 60 sin/cos features from x
SC_DIR = 2 * DIR_DIM * DIR_L            # 24 sin/cos features from d
FEAT = 96                               # 6 raw + 60 + 24 = 90, padded to 96
OUT_LANES = 8                           # packed output: color in lanes 0..2, density in 3


# ----------------------------------------------------------------------------
# Static tables.
# Kernel feature column layout (width 96):
#   cols 0..5            : raw x0,x1,x2,d0,d1,d2 (identity pass-through, no sin)
#   cols 6  + j*20 + 2i  : sin(2^i pi x_j)    (+1 -> cos via sin(x+pi/2))
#   cols 66 + j*8  + 2i  : sin(2^i pi d_j)    (+1 -> cos)
#   cols 90..95          : zero padding
# Row tables map kernel feature columns onto the PyTorch-layout weight rows of
# the (90,256) first layer and the (283,128) color hidden layer.
# ----------------------------------------------------------------------------
def _build_tables():
    freq = np.zeros((RAW, FEAT), np.float32)
    off = np.zeros((1, FEAT), np.float32)
    rows_w1 = np.zeros(FEAT, np.int64)
    mask_w1 = np.zeros((FEAT, 1), np.float32)
    rows_wc1 = np.zeros(FEAT, np.int64)
    mask_wc1 = np.zeros((FEAT, 1), np.float32)

    # Identity pass-through columns (raw coordinates).
    for j in range(RAW):
        freq[j, j] = 1.0
    for j in range(POS_DIM):                       # raw x_j -> w1 row j
        rows_w1[j] = j
        mask_w1[j, 0] = 1.0
    for j in range(DIR_DIM):                       # raw d_j -> w1 row 63+j, wc1 row 256+j
        c = POS_DIM + j
        rows_w1[c] = ENC_POS + j
        mask_w1[c, 0] = 1.0
        rows_wc1[c] = HIDDEN + j
        mask_wc1[c, 0] = 1.0

    # Positional sin/cos columns for x.
    for j in range(POS_DIM):
        for i in range(POS_L):
            c = RAW + j * 2 * POS_L + 2 * i
            f = (2.0 ** i) * np.pi
            freq[j, c] = freq[j, c + 1] = f
            off[0, c + 1] = np.pi / 2.0            # cos(p) = sin(p + pi/2)
            rows_w1[c] = 3 + 6 * i + j             # sin(2^i pi x_j)
            rows_w1[c + 1] = 6 + 6 * i + j         # cos(2^i pi x_j)
            mask_w1[c, 0] = mask_w1[c + 1, 0] = 1.0

    # Positional sin/cos columns for d.
    base = RAW + SC_POS                            # 66
    for j in range(DIR_DIM):
        for i in range(DIR_L):
            c = base + j * 2 * DIR_L + 2 * i
            f = (2.0 ** i) * np.pi
            freq[POS_DIM + j, c] = freq[POS_DIM + j, c + 1] = f
            off[0, c + 1] = np.pi / 2.0
            rows_w1[c] = ENC_POS + 3 + 6 * i + j
            rows_w1[c + 1] = ENC_POS + 6 + 6 * i + j
            mask_w1[c, 0] = mask_w1[c + 1, 0] = 1.0
            rows_wc1[c] = HIDDEN + 3 + 6 * i + j
            rows_wc1[c + 1] = HIDDEN + 6 + 6 * i + j
            mask_wc1[c, 0] = mask_wc1[c + 1, 0] = 1.0

    return freq, off, rows_w1, mask_w1, rows_wc1, mask_wc1


_FREQ, _OFFSET, _ROWS_W1, _MASK_W1, _ROWS_WC1, _MASK_WC1 = _build_tables()


# ----------------------------------------------------------------------------
# Kernel
# ----------------------------------------------------------------------------
def nerf_kernel(xd_ref, freq_ref, off_ref,
                w1f_ref, b1_ref, w2_ref, b2_ref, w3_ref, b3_ref,
                wc1f_ref, wc1h_ref, bc1_ref,
                wd_ref, wc2t_ref, ob_ref,
                out_ref):
    xd = xd_ref[...]                                     # (TM, 6) f32 rays [x | d]
    freq = freq_ref[...]                                 # (6, 96) f32

    # --- encoding: exact-f32 phases; identity columns pass the raw coords ----
    phases = xd[:, 0:1] * freq[0:1, :]
    for j in range(1, RAW):
        phases = phases + xd[:, j:j + 1] * freq[j:j + 1, :]          # (TM, 96)
    col = jax.lax.broadcasted_iota(jnp.int32, phases.shape, 1)
    # cos baked in as sin(p + pi/2); columns < RAW pass raw coordinates through.
    feat = jnp.where(col < RAW, phases, jnp.sin(phases + off_ref[...]))
    feat_b = feat.astype(jnp.bfloat16)

    # --- pos_net: 3 x (Linear + ReLU); single K=96 feature matmul ------------
    h = jnp.dot(feat_b, w1f_ref[...], preferred_element_type=jnp.float32)
    h = jnp.maximum(h + b1_ref[...], 0.0)                             # (TM, 256)
    h = jnp.maximum(jnp.dot(h.astype(jnp.bfloat16), w2_ref[...],
                            preferred_element_type=jnp.float32) + b2_ref[...], 0.0)
    h = jnp.maximum(jnp.dot(h.astype(jnp.bfloat16), w3_ref[...],
                            preferred_element_type=jnp.float32) + b3_ref[...], 0.0)
    h_b = h.astype(jnp.bfloat16)

    # --- color_net hidden layer: cat([h, dir_enc]) -> two split dots ---------
    c = jnp.dot(h_b, wc1h_ref[...], preferred_element_type=jnp.float32)
    c = c + jnp.dot(feat_b, wc1f_ref[...], preferred_element_type=jnp.float32)
    c = jnp.maximum(c + bc1_ref[...], 0.0)                            # (TM, 128)

    # --- output heads off the MXU (only 4 real columns): VPU mul + XLU reduce
    wc2t = wc2t_ref[...]                                              # (3, 128) f32
    dens = jnp.sum(h * wd_ref[...], axis=-1, keepdims=True)           # (TM, 1)
    r0 = jnp.sum(c * wc2t[0:1, :], axis=-1, keepdims=True)
    r1 = jnp.sum(c * wc2t[1:2, :], axis=-1, keepdims=True)
    r2 = jnp.sum(c * wc2t[2:3, :], axis=-1, keepdims=True)

    lane = jax.lax.broadcasted_iota(jnp.int32, (xd.shape[0], OUT_LANES), 1)
    pre = jnp.where(lane == 0, r0,
          jnp.where(lane == 1, r1,
          jnp.where(lane == 2, r2,
          jnp.where(lane == 3, dens, 0.0))))
    pre = pre + ob_ref[...]                                           # biases (1, 8)
    out_ref[...] = jnp.where(lane < 3, jax.nn.sigmoid(pre), pre)


# ----------------------------------------------------------------------------
# Wrapper: weight re-layout (merge / permute / mask / bf16) + tiled pallas_call
# ----------------------------------------------------------------------------
def _prepare_kernel_params(params):
    w1, b1, w2, b2, w3, b3, wd, bd, wc1, bc1, wc2, bc2 = params
    bf = jnp.bfloat16
    w1f = (w1[_ROWS_W1] * _MASK_W1).astype(bf)                 # (96, 256) merged layer-1
    wc1f = (wc1[_ROWS_WC1] * _MASK_WC1).astype(bf)             # (96, 128) dir-enc part
    wc1h = wc1[:HIDDEN].astype(bf)                             # (256, 128) h part
    wd_row = wd.reshape(1, HIDDEN).astype(jnp.float32)         # (1, 256) density row
    wc2t = wc2.T.astype(jnp.float32)                           # (3, 128) color rows
    ob = (jnp.zeros((1, OUT_LANES), jnp.float32)
          .at[:, 0:3].set(bc2).at[:, 3:4].set(bd))             # packed output bias
    return (jnp.asarray(_FREQ), jnp.asarray(_OFFSET),
            w1f, b1, w2.astype(bf), b2, w3.astype(bf), b3,
            wc1f, wc1h, bc1, wd_row, wc2t, ob)


def nerf_forward(x, d, params, *, tm=2048):
    n = x.shape[0]
    # Clamp tile for small batches so we don't burn MXU work on padded rows; the
    # default 2048 amortizes the ~0.35 us per-grid-step cost at large ray counts.
    tm = min(tm, max(256, pl.next_power_of_2(max(n, 1))))
    assert tm % 8 == 0
    n_pad = tm * pl.cdiv(n, tm)
    xd = jnp.concatenate([x, d], axis=-1).astype(jnp.float32)          # (N, 6)
    if n_pad != n:
        xd = jnp.pad(xd, ((0, n_pad - n), (0, 0)))
    kparams = _prepare_kernel_params(params)

    in_specs = [pl.BlockSpec((tm, RAW), lambda i: (i, 0))]
    # Weights/biases/tables: full-array blocks with a constant index_map -> DMA'd
    # once, stay VMEM-resident across all ray tiles (all are 2-D).
    in_specs += [pl.BlockSpec(p.shape, lambda i: (0, 0)) for p in kparams]

    out = pl.pallas_call(
        nerf_kernel,
        out_shape=jax.ShapeDtypeStruct((n_pad, OUT_LANES), jnp.float32),
        grid_spec=pltpu.PrefetchScalarGridSpec(
            num_scalar_prefetch=0,
            grid=(n_pad // tm,),
            in_specs=in_specs,
            out_specs=pl.BlockSpec((tm, OUT_LANES), lambda i: (i, 0)),
        ),
        compiler_params=pltpu.CompilerParams(
            dimension_semantics=("parallel",),
            # Big tiles need more than v5e's 16 MiB default scoped VMEM; stay well
            # under v7x's 64 MiB physical per-TC VMEM.
            vmem_limit_bytes=48 * 1024 * 1024),
    )(xd, *kparams)

    color = out[:n, 0:3]
    density = out[:n, 3:4]
    return color, density


# ----------------------------------------------------------------------------
# PyTorch-style init and pure-JAX reference (mirrors the nn.Module forward)
# ----------------------------------------------------------------------------
def init_params(key):
    """uniform(-1/sqrt(fan_in), +1/sqrt(fan_in)); weights stored as (in, out)."""
    def linear(k, fan_in, fan_out):
        kw, kb = jax.random.split(k)
        bound = 1.0 / np.sqrt(fan_in)
        w = jax.random.uniform(kw, (fan_in, fan_out), jnp.float32, -bound, bound)
        b = jax.random.uniform(kb, (1, fan_out), jnp.float32, -bound, bound)
        return w, b

    ks = jax.random.split(key, 6)
    w1, b1 = linear(ks[0], ENC_POS + ENC_DIR, HIDDEN)
    w2, b2 = linear(ks[1], HIDDEN, HIDDEN)
    w3, b3 = linear(ks[2], HIDDEN, HIDDEN)
    wd, bd = linear(ks[3], HIDDEN, 1)
    wc1, bc1 = linear(ks[4], HIDDEN + ENC_DIR, HIDDEN // 2)
    wc2, bc2 = linear(ks[5], HIDDEN // 2, 3)
    return (w1, b1, w2, b2, w3, b3, wd, bd, wc1, bc1, wc2, bc2)


def _posenc(v, L):
    encs = [v]
    for i in range(L):
        f = (2.0 ** i) * np.pi
        encs.append(jnp.sin(f * v))
        encs.append(jnp.cos(f * v))
    return jnp.concatenate(encs, axis=-1)


def reference_forward(x, d, params, matmul_dtype=jnp.float32):
    """Mirrors the PyTorch forward; matmul_dtype=bf16 reproduces the kernel's
    MXU precision (bf16 operands, f32 accumulation). Raw-coordinate precision in
    the kernel is bf16 for the first layer (documented choice, within 2e-2)."""
    w1, b1, w2, b2, w3, b3, wd, bd, wc1, bc1, wc2, bc2 = params

    def lin(a, w, b):
        return jnp.dot(a.astype(matmul_dtype), w.astype(matmul_dtype),
                       preferred_element_type=jnp.float32) + b

    pe = _posenc(x, POS_L)
    de = _posenc(d, DIR_L)
    h = jnp.concatenate([pe, de], axis=-1)
    h = jax.nn.relu(lin(h, w1, b1))
    h = jax.nn.relu(lin(h, w2, b2))
    h = jax.nn.relu(lin(h, w3, b3))
    density = lin(h, wd, bd)
    c = jax.nn.relu(lin(jnp.concatenate([h, de], axis=-1), wc1, bc1))
    color = jax.nn.sigmoid(lin(c, wc2, bc2))
    return color, density


if __name__ == "__main__":
    key = jax.random.PRNGKey(0)
    k_params, k_x, k_d = jax.random.split(key, 3)

    N = 1000   # rays; tm=256 here gives a 4-tile grid to exercise the pipeline
    x = jax.random.uniform(k_x, (N, POS_DIM), jnp.float32, -1.0, 1.0)
    d_raw = jax.random.normal(k_d, (N, DIR_DIM), jnp.float32)
    d = d_raw / jnp.linalg.norm(d_raw, axis=-1, keepdims=True)

    params = init_params(k_params)

    color, density = jax.block_until_ready(nerf_forward(x, d, params, tm=256))

    # Compare against a reference mirroring the kernel's mixed precision
    # (bf16 matmul operands, f32 accumulation, f32 positional encoding).
    color_ref, density_ref = reference_forward(x, d, params, matmul_dtype=jnp.bfloat16)

    assert color.shape == (N, 3) and density.shape == (N, 1)
    np.testing.assert_allclose(np.asarray(color), np.asarray(color_ref),
                               rtol=2e-2, atol=2e-2)
    np.testing.assert_allclose(np.asarray(density), np.asarray(density_ref),
                               rtol=2e-2, atol=2e-2)

    print("KERNEL_OK")
</pallas_src>

<mosaic_0001>
module attributes {stable_mosaic.version = 11 : i64} {
  func.func @nerf_kernel(%arg0: i32, %arg1: memref<256x6xf32, #tpu.memory_space<vmem>>, %arg2: memref<6x96xf32, #tpu.memory_space<vmem>>, %arg3: memref<1x96xf32, #tpu.memory_space<vmem>>, %arg4: memref<96x256xbf16, #tpu.memory_space<vmem>>, %arg5: memref<1x256xf32, #tpu.memory_space<vmem>>, %arg6: memref<256x256xbf16, #tpu.memory_space<vmem>>, %arg7: memref<1x256xf32, #tpu.memory_space<vmem>>, %arg8: memref<256x256xbf16, #tpu.memory_space<vmem>>, %arg9: memref<1x256xf32, #tpu.memory_space<vmem>>, %arg10: memref<96x128xbf16, #tpu.memory_space<vmem>>, %arg11: memref<256x128xbf16, #tpu.memory_space<vmem>>, %arg12: memref<1x128xf32, #tpu.memory_space<vmem>>, %arg13: memref<1x256xf32, #tpu.memory_space<vmem>>, %arg14: memref<3x128xf32, #tpu.memory_space<vmem>>, %arg15: memref<1x8xf32, #tpu.memory_space<vmem>>, %arg16: memref<256x8xf32, #tpu.memory_space<vmem>>) attributes {dimension_semantics = [#tpu.dimension_semantics<parallel>], iteration_bounds = array<i64: 4>, scalar_prefetch = 0 : i64, scratch_operands = 0 : i64, tpu.core_type = #tpu.core_type<tc>, window_params = [{transform_indices = @transform_0, window_bounds = array<i64: 256, 6>}, {pipeline_mode = #tpu.pipeline_mode<synchronous>, transform_indices = @transform_1, window_bounds = array<i64: 6, 96>}, {pipeline_mode = #tpu.pipeline_mode<synchronous>, transform_indices = @transform_2, window_bounds = array<i64: 1, 96>}, {pipeline_mode = #tpu.pipeline_mode<synchronous>, transform_indices = @transform_3, window_bounds = array<i64: 96, 256>}, {pipeline_mode = #tpu.pipeline_mode<synchronous>, transform_indices = @transform_4, window_bounds = array<i64: 1, 256>}, {pipeline_mode = #tpu.pipeline_mode<synchronous>, transform_indices = @transform_5, window_bounds = array<i64: 256, 256>}, {pipeline_mode = #tpu.pipeline_mode<synchronous>, transform_indices = @transform_6, window_bounds = array<i64: 1, 256>}, {pipeline_mode = #tpu.pipeline_mode<synchronous>, transform_indices = @transform_7, window_bounds = array<i64: 256, 256>}, {pipeline_mode = #tpu.pipeline_mode<synchronous>, transform_indices = @transform_8, window_bounds = array<i64: 1, 256>}, {pipeline_mode = #tpu.pipeline_mode<synchronous>, transform_indices = @transform_9, window_bounds = array<i64: 96, 128>}, {pipeline_mode = #tpu.pipeline_mode<synchronous>, transform_indices = @transform_10, window_bounds = array<i64: 256, 128>}, {pipeline_mode = #tpu.pipeline_mode<synchronous>, transform_indices = @transform_11, window_bounds = array<i64: 1, 128>}, {pipeline_mode = #tpu.pipeline_mode<synchronous>, transform_indices = @transform_12, window_bounds = array<i64: 1, 256>}, {pipeline_mode = #tpu.pipeline_mode<synchronous>, transform_indices = @transform_13, window_bounds = array<i64: 3, 128>}, {pipeline_mode = #tpu.pipeline_mode<synchronous>, transform_indices = @transform_14, window_bounds = array<i64: 1, 8>}, {transform_indices = @transform_15, window_bounds = array<i64: 256, 8>}]} {
    %c0 = arith.constant 0 : index
    %c0_0 = arith.constant 0 : index
    %0 = vector.load %arg1[%c0, %c0_0] : memref<256x6xf32, #tpu.memory_space<vmem>>, vector<256x6xf32>
    %c0_1 = arith.constant 0 : index
    %c0_2 = arith.constant 0 : index
    %1 = vector.load %arg2[%c0_1, %c0_2] : memref<6x96xf32, #tpu.memory_space<vmem>>, vector<6x96xf32>
    %2 = vector.extract_strided_slice %0 {offsets = [0, 0], sizes = [256, 1], strides = [1, 1]} : vector<256x6xf32> to vector<256x1xf32>
    %3 = vector.extract_strided_slice %1 {offsets = [0, 0], sizes = [1, 96], strides = [1, 1]} : vector<6x96xf32> to vector<1x96xf32>
    %4 = vector.broadcast %2 : vector<256x1xf32> to vector<256x96xf32>
    %5 = vector.broadcast %3 : vector<1x96xf32> to vector<256x96xf32>
    %6 = arith.mulf %4, %5 : vector<256x96xf32>
    %7 = vector.extract_strided_slice %0 {offsets = [0, 1], sizes = [256, 1], strides = [1, 1]} : vector<256x6xf32> to vector<256x1xf32>
    %8 = vector.extract_strided_slice %1 {offsets = [1, 0], sizes = [1, 96], strides = [1, 1]} : vector<6x96xf32> to vector<1x96xf32>
    %9 = vector.broadcast %7 : vector<256x1xf32> to vector<256x96xf32>
    %10 = vector.broadcast %8 : vector<1x96xf32> to vector<256x96xf32>
    %11 = arith.mulf %9, %10 : vector<256x96xf32>
    %12 = arith.addf %6, %11 : vector<256x96xf32>
    %13 = vector.extract_strided_slice %0 {offsets = [0, 2], sizes = [256, 1], strides = [1, 1]} : vector<256x6xf32> to vector<256x1xf32>
    %14 = vector.extract_strided_slice %1 {offsets = [2, 0], sizes = [1, 96], strides = [1, 1]} : vector<6x96xf32> to vector<1x96xf32>
    %15 = vector.broadcast %13 : vector<256x1xf32> to vector<256x96xf32>
    %16 = vector.broadcast %14 : vector<1x96xf32> to vector<256x96xf32>
    %17 = arith.mulf %15, %16 : vector<256x96xf32>
    %18 = arith.addf %12, %17 : vector<256x96xf32>
    %19 = vector.extract_strided_slice %0 {offsets = [0, 3], sizes = [256, 1], strides = [1, 1]} : vector<256x6xf32> to vector<256x1xf32>
    %20 = vector.extract_strided_slice %1 {offsets = [3, 0], sizes = [1, 96], strides = [1, 1]} : vector<6x96xf32> to vector<1x96xf32>
    %21 = vector.broadcast %19 : vector<256x1xf32> to vector<256x96xf32>
    %22 = vector.broadcast %20 : vector<1x96xf32> to vector<256x96xf32>
    %23 = arith.mulf %21, %22 : vector<256x96xf32>
    %24 = arith.addf %18, %23 : vector<256x96xf32>
    %25 = vector.extract_strided_slice %0 {offsets = [0, 4], sizes = [256, 1], strides = [1, 1]} : vector<256x6xf32> to vector<256x1xf32>
    %26 = vector.extract_strided_slice %1 {offsets = [4, 0], sizes = [1, 96], strides = [1, 1]} : vector<6x96xf32> to vector<1x96xf32>
    %27 = vector.broadcast %25 : vector<256x1xf32> to vector<256x96xf32>
    %28 = vector.broadcast %26 : vector<1x96xf32> to vector<256x96xf32>
    %29 = arith.mulf %27, %28 : vector<256x96xf32>
    %30 = arith.addf %24, %29 : vector<256x96xf32>
    %31 = vector.extract_strided_slice %0 {offsets = [0, 5], sizes = [256, 1], strides = [1, 1]} : vector<256x6xf32> to vector<256x1xf32>
    %32 = vector.extract_strided_slice %1 {offsets = [5, 0], sizes = [1, 96], strides = [1, 1]} : vector<6x96xf32> to vector<1x96xf32>
    %33 = vector.broadcast %31 : vector<256x1xf32> to vector<256x96xf32>
    %34 = vector.broadcast %32 : vector<1x96xf32> to vector<256x96xf32>
    %35 = arith.mulf %33, %34 : vector<256x96xf32>
    %36 = arith.addf %30, %35 : vector<256x96xf32>
    %37 = tpu.iota {dimensions = array<i32: 1>} : vector<256x96xi32>
    %c6_i32 = arith.constant 6 : i32
    %38 = vector.broadcast %c6_i32 : i32 to vector<256x96xi32>
    %39 = arith.cmpi slt, %37, %38 : vector<256x96xi32>
    %c0_3 = arith.constant 0 : index
    %c0_4 = arith.constant 0 : index
    %40 = vector.load %arg3[%c0_3, %c0_4] : memref<1x96xf32, #tpu.memory_space<vmem>>, vector<1x96xf32>
    %41 = vector.broadcast %40 : vector<1x96xf32> to vector<256x96xf32>
    %42 = arith.addf %36, %41 : vector<256x96xf32>
    %43 = math.sin %42 : vector<256x96xf32>
    %44 = arith.select %39, %36, %43 : vector<256x96xi1>, vector<256x96xf32>
    %45 = arith.truncf %44 : vector<256x96xf32> to vector<256x96xbf16>
    %c0_5 = arith.constant 0 : index
    %c0_6 = arith.constant 0 : index
    %46 = vector.load %arg4[%c0_5, %c0_6] : memref<96x256xbf16, #tpu.memory_space<vmem>>, vector<96x256xbf16>
    %cst = arith.constant dense<0.000000e+00> : vector<256x256xf32>
    %47 = tpu.matmul %45, %46, %cst {dimension_numbers = #tpu.dot_dimension_numbers<[1], [0], [0], [1], [0, 0, 1, 1], [], []>} : vector<256x96xbf16>, vector<96x256xbf16>, vector<256x256xf32> -> vector<256x256xf32>
    %c0_7 = arith.constant 0 : index
    %c0_8 = arith.constant 0 : index
    %48 = vector.load %arg5[%c0_7, %c0_8] : memref<1x256xf32, #tpu.memory_space<vmem>>, vector<1x256xf32>
    %49 = vector.broadcast %48 : vector<1x256xf32> to vector<256x256xf32>
    %50 = arith.addf %47, %49 : vector<256x256xf32>
    %cst_9 = arith.constant 0.000000e+00 : f32
    %51 = vector.broadcast %cst_9 : f32 to vector<256x256xf32>
    %52 = arith.maximumf %50, %51 : vector<256x256xf32>
    %53 = arith.truncf %52 : vector<256x256xf32> to vector<256x256xbf16>
    %c0_10 = arith.constant 0 : index
    %c0_11 = arith.constant 0 : index
    %54 = vector.load %arg6[%c0_10, %c0_11] : memref<256x256xbf16, #tpu.memory_space<vmem>>, vector<256x256xbf16>
    %cst_12 = arith.constant dense<0.000000e+00> : vector<256x256xf32>
    %55 = tpu.matmul %53, %54, %cst_12 {dimension_numbers = #tpu.dot_dimension_numbers<[1], [0], [0], [1], [0, 0, 1, 1], [], []>} : vector<256x256xbf16>, vector<256x256xbf16>, vector<256x256xf32> -> vector<256x256xf32>
    %c0_13 = arith.constant 0 : index
    %c0_14 = arith.constant 0 : index
    %56 = vector.load %arg7[%c0_13, %c0_14] : memref<1x256xf32, #tpu.memory_space<vmem>>, vector<1x256xf32>
    %57 = vector.broadcast %56 : vector<1x256xf32> to vector<256x256xf32>
    %58 = arith.addf %55, %57 : vector<256x256xf32>
    %cst_15 = arith.constant 0.000000e+00 : f32
    %59 = vector.broadcast %cst_15 : f32 to vector<256x256xf32>
    %60 = arith.maximumf %58, %59 : vector<256x256xf32>
    %61 = arith.truncf %60 : vector<256x256xf32> to vector<256x256xbf16>
    %c0_16 = arith.constant 0 : index
    %c0_17 = arith.constant 0 : index
    %62 = vector.load %arg8[%c0_16, %c0_17] : memref<256x256xbf16, #tpu.memory_space<vmem>>, vector<256x256xbf16>
    %cst_18 = arith.constant dense<0.000000e+00> : vector<256x256xf32>
    %63 = tpu.matmul %61, %62, %cst_18 {dimension_numbers = #tpu.dot_dimension_numbers<[1], [0], [0], [1], [0, 0, 1, 1], [], []>} : vector<256x256xbf16>, vector<256x256xbf16>, vector<256x256xf32> -> vector<256x256xf32>
    %c0_19 = arith.constant 0 : index
    %c0_20 = arith.constant 0 : index
    %64 = vector.load %arg9[%c0_19, %c0_20] : memref<1x256xf32, #tpu.memory_space<vmem>>, vector<1x256xf32>
    %65 = vector.broadcast %64 : vector<1x256xf32> to vector<256x256xf32>
    %66 = arith.addf %63, %65 : vector<256x256xf32>
    %cst_21 = arith.constant 0.000000e+00 : f32
    %67 = vector.broadcast %cst_21 : f32 to vector<256x256xf32>
    %68 = arith.maximumf %66, %67 : vector<256x256xf32>
    %69 = arith.truncf %68 : vector<256x256xf32> to vector<256x256xbf16>
    %c0_22 = arith.constant 0 : index
    %c0_23 = arith.constant 0 : index
    %70 = vector.load %arg11[%c0_22, %c0_23] : memref<256x128xbf16, #tpu.memory_space<vmem>>, vector<256x128xbf16>
    %cst_24 = arith.constant dense<0.000000e+00> : vector<256x128xf32>
    %71 = tpu.matmul %69, %70, %cst_24 {dimension_numbers = #tpu.dot_dimension_numbers<[1], [0], [0], [1], [0, 0, 1, 1], [], []>} : vector<256x256xbf16>, vector<256x128xbf16>, vector<256x128xf32> -> vector<256x128xf32>
    %c0_25 = arith.constant 0 : index
    %c0_26 = arith.constant 0 : index
    %72 = vector.load %arg10[%c0_25, %c0_26] : memref<96x128xbf16, #tpu.memory_space<vmem>>, vector<96x128xbf16>
    %cst_27 = arith.constant dense<0.000000e+00> : vector<256x128xf32>
    %73 = tpu.matmul %45, %72, %cst_27 {dimension_numbers = #tpu.dot_dimension_numbers<[1], [0], [0], [1], [0, 0, 1, 1], [], []>} : vector<256x96xbf16>, vector<96x128xbf16>, vector<256x128xf32> -> vector<256x128xf32>
    %74 = arith.addf %71, %73 : vector<256x128xf32>
    %c0_28 = arith.constant 0 : index
    %c0_29 = arith.constant 0 : index
    %75 = vector.load %arg12[%c0_28, %c0_29] : memref<1x128xf32, #tpu.memory_space<vmem>>, vector<1x128xf32>
    %76 = vector.broadcast %75 : vector<1x128xf32> to vector<256x128xf32>
    %77 = arith.addf %74, %76 : vector<256x128xf32>
    %cst_30 = arith.constant 0.000000e+00 : f32
    %78 = vector.broadcast %cst_30 : f32 to vector<256x128xf32>
    %79 = arith.maximumf %77, %78 : vector<256x128xf32>
    %c0_31 = arith.constant 0 : index
    %c0_32 = arith.constant 0 : index
    %80 = vector.load %arg14[%c0_31, %c0_32] : memref<3x128xf32, #tpu.memory_space<vmem>>, vector<3x128xf32>
    %c0_33 = arith.constant 0 : index
    %c0_34 = arith.constant 0 : index
    %81 = vector.load %arg13[%c0_33, %c0_34] : memref<1x256xf32, #tpu.memory_space<vmem>>, vector<1x256xf32>
    %82 = vector.broadcast %81 : vector<1x256xf32> to vector<256x256xf32>
    %83 = arith.mulf %68, %82 : vector<256x256xf32>
    %cst_35 = arith.constant dense<0.000000e+00> : vector<256xf32>
    %84 = vector.multi_reduction <add>, %83, %cst_35 [1] : vector<256x256xf32> to vector<256xf32>
    %85 = vector.shape_cast %84 : vector<256xf32> to vector<256x1xf32>
    %86 = vector.extract_strided_slice %80 {offsets = [0, 0], sizes = [1, 128], strides = [1, 1]} : vector<3x128xf32> to vector<1x128xf32>
    %87 = vector.broadcast %86 : vector<1x128xf32> to vector<256x128xf32>
    %88 = arith.mulf %79, %87 : vector<256x128xf32>
    %cst_36 = arith.constant dense<0.000000e+00> : vector<256xf32>
    %89 = vector.multi_reduction <add>, %88, %cst_36 [1] : vector<256x128xf32> to vector<256xf32>
    %90 = vector.shape_cast %89 : vector<256xf32> to vector<256x1xf32>
    %91 = vector.extract_strided_slice %80 {offsets = [1, 0], sizes = [1, 128], strides = [1, 1]} : vector<3x128xf32> to vector<1x128xf32>
    %92 = vector.broadcast %91 : vector<1x128xf32> to vector<256x128xf32>
    %93 = arith.mulf %79, %92 : vector<256x128xf32>
    %cst_37 = arith.constant dense<0.000000e+00> : vector<256xf32>
    %94 = vector.multi_reduction <add>, %93, %cst_37 [1] : vector<256x128xf32> to vector<256xf32>
    %95 = vector.shape_cast %94 : vector<256xf32> to vector<256x1xf32>
    %96 = vector.extract_strided_slice %80 {offsets = [2, 0], sizes = [1, 128], strides = [1, 1]} : vector<3x128xf32> to vector<1x128xf32>
    %97 = vector.broadcast %96 : vector<1x128xf32> to vector<256x128xf32>
    %98 = arith.mulf %79, %97 : vector<256x128xf32>
    %cst_38 = arith.constant dense<0.000000e+00> : vector<256xf32>
    %99 = vector.multi_reduction <add>, %98, %cst_38 [1] : vector<256x128xf32> to vector<256xf32>
    %100 = vector.shape_cast %99 : vector<256xf32> to vector<256x1xf32>
    %101 = tpu.iota {dimensions = array<i32: 1>} : vector<256x8xi32>
    %c0_i32 = arith.constant 0 : i32
    %102 = vector.broadcast %c0_i32 : i32 to vector<256x8xi32>
    %103 = arith.cmpi eq, %101, %102 : vector<256x8xi32>
    %c1_i32 = arith.constant 1 : i32
    %104 = vector.broadcast %c1_i32 : i32 to vector<256x8xi32>
    %105 = arith.cmpi eq, %101, %104 : vector<256x8xi32>
    %c2_i32 = arith.constant 2 : i32
    %106 = vector.broadcast %c2_i32 : i32 to vector<256x8xi32>
    %107 = arith.cmpi eq, %101, %106 : vector<256x8xi32>
    %c3_i32 = arith.constant 3 : i32
    %108 = vector.broadcast %c3_i32 : i32 to vector<256x8xi32>
    %109 = arith.cmpi eq, %101, %108 : vector<256x8xi32>
    %cst_39 = arith.constant 0.000000e+00 : f32
    %110 = vector.shape_cast %85 : vector<256x1xf32> to vector<256x1xf32>
    %111 = vector.broadcast %110 : vector<256x1xf32> to vector<256x8xf32>
    %112 = vector.broadcast %cst_39 : f32 to vector<256x8xf32>
    %113 = arith.select %109, %111, %112 : vector<256x8xi1>, vector<256x8xf32>
    %114 = vector.shape_cast %100 : vector<256x1xf32> to vector<256x1xf32>
    %115 = vector.broadcast %114 : vector<256x1xf32> to vector<256x8xf32>
    %116 = arith.select %107, %115, %113 : vector<256x8xi1>, vector<256x8xf32>
    %117 = vector.shape_cast %95 : vector<256x1xf32> to vector<256x1xf32>
    %118 = vector.broadcast %117 : vector<256x1xf32> to vector<256x8xf32>
    %119 = arith.select %105, %118, %116 : vector<256x8xi1>, vector<256x8xf32>
    %120 = vector.shape_cast %90 : vector<256x1xf32> to vector<256x1xf32>
    %121 = vector.broadcast %120 : vector<256x1xf32> to vector<256x8xf32>
    %122 = arith.select %103, %121, %119 : vector<256x8xi1>, vector<256x8xf32>
    %c0_40 = arith.constant 0 : index
    %c0_41 = arith.constant 0 : index
    %123 = vector.load %arg15[%c0_40, %c0_41] : memref<1x8xf32, #tpu.memory_space<vmem>>, vector<1x8xf32>
    %124 = vector.broadcast %123 : vector<1x8xf32> to vector<256x8xf32>
    %125 = arith.addf %122, %124 : vector<256x8xf32>
    %c3_i32_42 = arith.constant 3 : i32
    %126 = vector.broadcast %c3_i32_42 : i32 to vector<256x8xi32>
    %127 = arith.cmpi slt, %101, %126 : vector<256x8xi32>
    %128 = arith.negf %125 : vector<256x8xf32>
    %129 = math.exp %128 : vector<256x8xf32>
    %cst_43 = arith.constant 1.000000e+00 : f32
    %130 = vector.broadcast %cst_43 : f32 to vector<256x8xf32>
    %131 = arith.addf %130, %129 : vector<256x8xf32>
    %132 = arith.divf %130, %131 : vector<256x8xf32>
    %133 = arith.select %127, %132, %125 : vector<256x8xi1>, vector<256x8xf32>
    %c0_44 = arith.constant 0 : index
    %c0_45 = arith.constant 0 : index
    %134 = vector.load %arg16[%c0_44, %c0_45] : memref<256x8xf32, #tpu.memory_space<vmem>>, vector<256x8xf32>
    tpu.vector_store %arg16[%c0_44, %c0_45], %133 {strides = array<i32>} : memref<256x8xf32, #tpu.memory_space<vmem>>, vector<256x8xf32>,
    return
  }
  func.func @transform_0(%arg0: i32) -> (i32, i32) {
    %c0_i32 = arith.constant 0 : i32
    %c0_i32_0 = arith.constant 0 : i32
    return %arg0, %c0_i32 : i32, i32
  }
  func.func @transform_1(%arg0: i32) -> (i32, i32) {
    %c0_i32 = arith.constant 0 : i32
    %c0_i32_0 = arith.constant 0 : i32
    %c0_i32_1 = arith.constant 0 : i32
    return %c0_i32, %c0_i32_0 : i32, i32
  }
  func.func @transform_2(%arg0: i32) -> (i32, i32) {
    %c0_i32 = arith.constant 0 : i32
    %c0_i32_0 = arith.constant 0 : i32
    %c0_i32_1 = arith.constant 0 : i32
    return %c0_i32, %c0_i32_0 : i32, i32
  }
  func.func @transform_3(%arg0: i32) -> (i32, i32) {
    %c0_i32 = arith.constant 0 : i32
    %c0_i32_0 = arith.constant 0 : i32
    %c0_i32_1 = arith.constant 0 : i32
    return %c0_i32, %c0_i32_0 : i32, i32
  }
  func.func @transform_4(%arg0: i32) -> (i32, i32) {
    %c0_i32 = arith.constant 0 : i32
    %c0_i32_0 = arith.constant 0 : i32
    %c0_i32_1 = arith.constant 0 : i32
    return %c0_i32, %c0_i32_0 : i32, i32
  }
  func.func @transform_5(%arg0: i32) -> (i32, i32) {
    %c0_i32 = arith.constant 0 : i32
    %c0_i32_0 = arith.constant 0 : i32
    %c0_i32_1 = arith.constant 0 : i32
    return %c0_i32, %c0_i32_0 : i32, i32
  }
  func.func @transform_6(%arg0: i32) -> (i32, i32) {
    %c0_i32 = arith.constant 0 : i32
    %c0_i32_0 = arith.constant 0 : i32
    %c0_i32_1 = arith.constant 0 : i32
    return %c0_i32, %c0_i32_0 : i32, i32
  }
  func.func @transform_7(%arg0: i32) -> (i32, i32) {
    %c0_i32 = arith.constant 0 : i32
    %c0_i32_0 = arith.constant 0 : i32
    %c0_i32_1 = arith.constant 0 : i32
    return %c0_i32, %c0_i32_0 : i32, i32
  }
  func.func @transform_8(%arg0: i32) -> (i32, i32) {
    %c0_i32 = arith.constant 0 : i32
    %c0_i32_0 = arith.constant 0 : i32
    %c0_i32_1 = arith.constant 0 : i32
    return %c0_i32, %c0_i32_0 : i32, i32
  }
  func.func @transform_9(%arg0: i32) -> (i32, i32) {
    %c0_i32 = arith.constant 0 : i32
    %c0_i32_0 = arith.constant 0 : i32
    %c0_i32_1 = arith.constant 0 : i32
    return %c0_i32, %c0_i32_0 : i32, i32
  }
  func.func @transform_10(%arg0: i32) -> (i32, i32) {
    %c0_i32 = arith.constant 0 : i32
    %c0_i32_0 = arith.constant 0 : i32
    %c0_i32_1 = arith.constant 0 : i32
    return %c0_i32, %c0_i32_0 : i32, i32
  }
  func.func @transform_11(%arg0: i32) -> (i32, i32) {
    %c0_i32 = arith.constant 0 : i32
    %c0_i32_0 = arith.constant 0 : i32
    %c0_i32_1 = arith.constant 0 : i32
    return %c0_i32, %c0_i32_0 : i32, i32
  }
  func.func @transform_12(%arg0: i32) -> (i32, i32) {
    %c0_i32 = arith.constant 0 : i32
    %c0_i32_0 = arith.constant 0 : i32
    %c0_i32_1 = arith.constant 0 : i32
    return %c0_i32, %c0_i32_0 : i32, i32
  }
  func.func @transform_13(%arg0: i32) -> (i32, i32) {
    %c0_i32 = arith.constant 0 : i32
    %c0_i32_0 = arith.constant 0 : i32
    %c0_i32_1 = arith.constant 0 : i32
    return %c0_i32, %c0_i32_0 : i32, i32
  }
  func.func @transform_14(%arg0: i32) -> (i32, i32) {
    %c0_i32 = arith.constant 0 : i32
    %c0_i32_0 = arith.constant 0 : i32
    %c0_i32_1 = arith.constant 0 : i32
    return %c0_i32, %c0_i32_0 : i32, i32
  }
  func.func @transform_15(%arg0: i32) -> (i32, i32) {
    %c0_i32 = arith.constant 0 : i32
    %c0_i32_0 = arith.constant 0 : i32
    return %arg0, %c0_i32 : i32, i32
  }
}

</mosaic_0001>

<llo_original>
// kernel: tpu_custom_call.1
$region0: #{tpu_custom_call.1}
  #allocation0 [shape = 'u32[]', space=smem, size = 0x4, offset = 0x4, fixed_abs, tag = 'smem constant byte address 0x4 - core index']
  #allocation1 [shape = 'u32[144,128]{1,0:T(1,128)}', space=vmem, size = 0x12000, scoped, tag = 'internal scratch']
  %s0 = inlined_call_operand.vmem [shape: f32[1024,6], index: 0, kind: input, shape index: {}]
  %s1 = inlined_call_operand.vmem [shape: f32[6,96], index: 1, kind: input, shape index: {}]
  %s2 = inlined_call_operand.vmem [shape: f32[1,96], index: 2, kind: input, shape index: {}]
  %s3 = inlined_call_operand.vmem [shape: bf16[96,256], index: 3, kind: input, shape index: {}]
  %s4 = inlined_call_operand.vmem [shape: f32[1,256], index: 4, kind: input, shape index: {}]
  %s5 = inlined_call_operand.vmem [shape: bf16[256,256], index: 5, kind: input, shape index: {}]
  %s6 = inlined_call_operand.vmem [shape: f32[1,256], index: 6, kind: input, shape index: {}]
  %s7 = inlined_call_operand.vmem [shape: bf16[256,256], index: 7, kind: input, shape index: {}]
  %s8 = inlined_call_operand.vmem [shape: f32[1,256], index: 8, kind: input, shape index: {}]
  %s9 = inlined_call_operand.vmem [shape: bf16[96,128], index: 9, kind: input, shape index: {}]
  %s10 = inlined_call_operand.vmem [shape: bf16[256,128], index: 10, kind: input, shape index: {}]
  %s11 = inlined_call_operand.vmem [shape: f32[1,128], index: 11, kind: input, shape index: {}]
  %s12 = inlined_call_operand.vmem [shape: f32[1,256], index: 12, kind: input, shape index: {}]
  %s13 = inlined_call_operand.vmem [shape: f32[3,128], index: 13, kind: input, shape index: {}]
  %s14 = inlined_call_operand.vmem [shape: f32[1,8], index: 14, kind: input, shape index: {}]
  %s15 = inlined_call_operand.vmem [shape: f32[1024,8], index: 15, kind: output, shape index: {}]
  %s16 = sld [smem:[#allocation0]]
  $region93: #{tpu_custom_call.1} parent=0
    _
  %s18 = ssub.s32 1, %s16
  %s19 = scalar_select 0, %s18, %s16
  loop: start=0, step=1, limit=6
  $region2: #{tpu_custom_call.1} parent=0 // loop_pre_header
    _
  $region3: #{tpu_custom_call.1} parent=0 // loop_header
    %s21 = sphi 0, %s25
    %p22 = scmp.ge.s32.totalorder %s21, 6
    %s31 = sphi 0, %s33
    %s34 = sphi 0, %s31
    %s35 = sphi 0, %s34
    %s51 = sphi 0, %s35
    %s55 = sphi 0, %s55
    %s57 = sphi 0, %s55
    %s58 = sphi 0, %s57
    %s72 = sphi 0, %s58
    %s76 = sphi 0, %s76
    %s78 = sphi 0, %s76
    %s79 = sphi 0, %s78
    %s93 = sphi 0, %s79
    %s97 = sphi 0, %s97
    %s99 = sphi 0, %s97
    %s100 = sphi 0, %s99
    %s114 = sphi 0, %s100
    %s118 = sphi 0, %s118
    %s120 = sphi 0, %s118
    %s121 = sphi 0, %s120
    %s135 = sphi 0, %s121
    %s139 = sphi 0, %s139
    %s141 = sphi 0, %s139
    %s142 = sphi 0, %s141
    %s156 = sphi 0, %s142
    %s160 = sphi 0, %s160
    %s162 = sphi 0, %s160
    %s163 = sphi 0, %s162
    %s177 = sphi 0, %s163
    %s181 = sphi 0, %s181
    %s183 = sphi 0, %s181
    %s184 = sphi 0, %s183
    %s198 = sphi 0, %s184
    %s202 = sphi 0, %s202
    %s204 = sphi 0, %s202
    %s205 = sphi 0, %s204
    %s219 = sphi 0, %s205
    %s223 = sphi 0, %s223
    %s225 = sphi 0, %s223
    %s226 = sphi 0, %s225
    %s240 = sphi 0, %s226
    %s244 = sphi 0, %s244
    %s246 = sphi 0, %s244
    %s247 = sphi 0, %s246
    %s261 = sphi 0, %s247
    %s265 = sphi 0, %s265
    %s267 = sphi 0, %s265
    %s268 = sphi 0, %s267
    %s282 = sphi 0, %s268
    %s286 = sphi 0, %s286
    %s288 = sphi 0, %s286
    %s289 = sphi 0, %s288
    %s303 = sphi 0, %s289
    %s307 = sphi 0, %s307
    %s309 = sphi 0, %s307
    %s310 = sphi 0, %s309
    %s324 = sphi 0, %s310
    %s328 = sphi 0, %s328
    %s330 = sphi 0, %s328
    %s331 = sphi 0, %s330
    %s345 = sphi 0, %s331
    %s351 = sphi 0, %s353
    %s354 = sphi 0, %s351
    %s355 = sphi 0, %s354
    %s371 = sphi 0, %s355
  $region4: #{tpu_custom_call.1} parent=0 // loop_header_branch
    %24 = sbr.rel (%p22) target = $region8
  $region5: #{tpu_custom_call.1} parent=0 // loop_body
    %s26 = ssub.s32 %s21, 1
    %s27 = ssub.s32 %s21, 2
    %s28 = sadd.s32 %s21, 1
    %s29 = ssub.s32 %s21, %s28
    %p30 = scmp.eq.s32.totalorder %s29, 0
    %s32 = sadd.s32 %s31, 1
    %s33 = scalar_select %p30, %s31, %s32
    %p36 = pneg %p30
    %p37 = scmp.eq.s32.totalorder %s21, 3
    %p38 = por %p36, %p37
    %p39 = scmp.ne.s32.totalorder %s31, %s34
    %p40 = scmp.eq.s32.totalorder %s21, 0
    %p41 = por %p39, %p40
    %p42 = scmp.ne.s32.totalorder %s31, %s34
    %p43 = scmp.eq.s32.totalorder %s26, 3
    %p44 = por %p42, %p43
    %p45 = scmp.ne.s32.totalorder %s34, %s35
    %p46 = scmp.eq.s32.totalorder %s26, 0
    %p47 = por %p45, %p46
    %p48 = scmp.ne.s32.totalorder %s34, %s35
    %p49 = scmp.eq.s32.totalorder %s27, 3
    %p50 = por %p48, %p49
    %p52 = scmp.ne.s32.totalorder %s35, %s51
    %p53 = scmp.eq.s32.totalorder %s27, 0
    %p54 = por %p52, %p53
    %s56 = sadd.s32 %s55, 1
    %p59 = scmp.eq.s32.totalorder %s21, 3
    %p60 = scmp.ne.s32.totalorder %s55, %s57
    %p61 = scmp.eq.s32.totalorder %s21, 0
    %p62 = por %p60, %p61
    %p63 = scmp.ne.s32.totalorder %s55, %s57
    %p64 = scmp.eq.s32.totalorder %s26, 3
    %p65 = por %p63, %p64
    %p66 = scmp.ne.s32.totalorder %s57, %s58
    %p67 = scmp.eq.s32.totalorder %s26, 0
    %p68 = por %p66, %p67
    %p69 = scmp.ne.s32.totalorder %s57, %s58
    %p70 = scmp.eq.s32.totalorder %s27, 3
    %p71 = por %p69, %p70
    %p73 = scmp.ne.s32.totalorder %s58, %s72
    %p74 = scmp.eq.s32.totalorder %s27, 0
    %p75 = por %p73, %p74
    %s77 = sadd.s32 %s76, 1
    %p80 = scmp.eq.s32.totalorder %s21, 3
    %p81 = scmp.ne.s32.totalorder %s76, %s78
    %p82 = scmp.eq.s32.totalorder %s21, 0
    %p83 = por %p81, %p82
    %p84 = scmp.ne.s32.totalorder %s76, %s78
    %p85 = scmp.eq.s32.totalorder %s26, 3
    %p86 = por %p84, %p85
    %p87 = scmp.ne.s32.totalorder %s78, %s79
    %p88 = scmp.eq.s32.totalorder %s26, 0
    %p89 = por %p87, %p88
    %p90 = scmp.ne.s32.totalorder %s78, %s79
    %p91 = scmp.eq.s32.totalorder %s27, 3
    %p92 = por %p90, %p91
    %p94 = scmp.ne.s32.totalorder %s79, %s93
    %p95 = scmp.eq.s32.totalorder %s27, 0
    %p96 = por %p94, %p95
    %s98 = sadd.s32 %s97, 1
    %p101 = scmp.eq.s32.totalorder %s21, 3
    %p102 = scmp.ne.s32.totalorder %s97, %s99
    %p103 = scmp.eq.s32.totalorder %s21, 0
    %p104 = por %p102, %p103
    %p105 = scmp.ne.s32.totalorder %s97, %s99
    %p106 = scmp.eq.s32.totalorder %s26, 3
    %p107 = por %p105, %p106
    %p108 = scmp.ne.s32.totalorder %s99, %s100
    %p109 = scmp.eq.s32.totalorder %s26, 0
    %p110 = por %p108, %p109
    %p111 = scmp.ne.s32.totalorder %s99, %s100
    %p112 = scmp.eq.s32.totalorder %s27, 3
    %p113 = por %p111, %p112
    %p115 = scmp.ne.s32.totalorder %s100, %s114
    %p116 = scmp.eq.s32.totalorder %s27, 0
    %p117 = por %p115, %p116
    %s119 = sadd.s32 %s118, 1
    %p122 = scmp.eq.s32.totalorder %s21, 3
    %p123 = scmp.ne.s32.totalorder %s118, %s120
    %p124 = scmp.eq.s32.totalorder %s21, 0
    %p125 = por %p123, %p124
    %p126 = scmp.ne.s32.totalorder %s118, %s120
    %p127 = scmp.eq.s32.totalorder %s26, 3
    %p128 = por %p126, %p127
    %p129 = scmp.ne.s32.totalorder %s120, %s121
    %p130 = scmp.eq.s32.totalorder %s26, 0
    %p131 = por %p129, %p130
    %p132 = scmp.ne.s32.totalorder %s120, %s121
    %p133 = scmp.eq.s32.totalorder %s27, 3
    %p134 = por %p132, %p133
    %p136 = scmp.ne.s32.totalorder %s121, %s135
    %p137 = scmp.eq.s32.totalorder %s27, 0
    %p138 = por %p136, %p137
    %s140 = sadd.s32 %s139, 1
    %p143 = scmp.eq.s32.totalorder %s21, 3
    %p144 = scmp.ne.s32.totalorder %s139, %s141
    %p145 = scmp.eq.s32.totalorder %s21, 0
    %p146 = por %p144, %p145
    %p147 = scmp.ne.s32.totalorder %s139, %s141
    %p148 = scmp.eq.s32.totalorder %s26, 3
    %p149 = por %p147, %p148
    %p150 = scmp.ne.s32.totalorder %s141, %s142
    %p151 = scmp.eq.s32.totalorder %s26, 0
    %p152 = por %p150, %p151
    %p153 = scmp.ne.s32.totalorder %s141, %s142
    %p154 = scmp.eq.s32.totalorder %s27, 3
    %p155 = por %p153, %p154
    %p157 = scmp.ne.s32.totalorder %s142, %s156
    %p158 = scmp.eq.s32.totalorder %s27, 0
    %p159 = por %p157, %p158
    %s161 = sadd.s32 %s160, 1
    %p164 = scmp.eq.s32.totalorder %s21, 3
    %p165 = scmp.ne.s32.totalorder %s160, %s162
    %p166 = scmp.eq.s32.totalorder %s21, 0
    %p167 = por %p165, %p166
    %p168 = scmp.ne.s32.totalorder %s160, %s162
    %p169 = scmp.eq.s32.totalorder %s26, 3
    %p170 = por %p168, %p169
    %p171 = scmp.ne.s32.totalorder %s162, %s163
    %p172 = scmp.eq.s32.totalorder %s26, 0
    %p173 = por %p171, %p172
    %p174 = scmp.ne.s32.totalorder %s162, %s163
    %p175 = scmp.eq.s32.totalorder %s27, 3
    %p176 = por %p174, %p175
    %p178 = scmp.ne.s32.totalorder %s163, %s177
    %p179 = scmp.eq.s32.totalorder %s27, 0
    %p180 = por %p178, %p179
    %s182 = sadd.s32 %s181, 1
    %p185 = scmp.eq.s32.totalorder %s21, 3
    %p186 = scmp.ne.s32.totalorder %s181, %s183
    %p187 = scmp.eq.s32.totalorder %s21, 0
    %p188 = por %p186, %p187
    %p189 = scmp.ne.s32.totalorder %s181, %s183
    %p190 = scmp.eq.s32.totalorder %s26, 3
    %p191 = por %p189, %p190
    %p192 = scmp.ne.s32.totalorder %s183, %s184
    %p193 = scmp.eq.s32.totalorder %s26, 0
    %p194 = por %p192, %p193
    %p195 = scmp.ne.s32.totalorder %s183, %s184
    %p196 = scmp.eq.s32.totalorder %s27, 3
    %p197 = por %p195, %p196
    %p199 = scmp.ne.s32.totalorder %s184, %s198
    %p200 = scmp.eq.s32.totalorder %s27, 0
    %p201 = por %p199, %p200
    %s203 = sadd.s32 %s202, 1
    %p206 = scmp.eq.s32.totalorder %s21, 3
    %p207 = scmp.ne.s32.totalorder %s202, %s204
    %p208 = scmp.eq.s32.totalorder %s21, 0
    %p209 = por %p207, %p208
    %p210 = scmp.ne.s32.totalorder %s202, %s204
    %p211 = scmp.eq.s32.totalorder %s26, 3
    %p212 = por %p210, %p211
    %p213 = scmp.ne.s32.totalorder %s204, %s205
    %p214 = scmp.eq.s32.totalorder %s26, 0
    %p215 = por %p213, %p214
    %p216 = scmp.ne.s32.totalorder %s204, %s205
    %p217 = scmp.eq.s32.totalorder %s27, 3
    %p218 = por %p216, %p217
    %p220 = scmp.ne.s32.totalorder %s205, %s219
    %p221 = scmp.eq.s32.totalorder %s27, 0
    %p222 = por %p220, %p221
    %s224 = sadd.s32 %s223, 1
    %p227 = scmp.eq.s32.totalorder %s21, 3
    %p228 = scmp.ne.s32.totalorder %s223, %s225
    %p229 = scmp.eq.s32.totalorder %s21, 0
    %p230 = por %p228, %p229
    %p231 = scmp.ne.s32.totalorder %s223, %s225
    %p232 = scmp.eq.s32.totalorder %s26, 3
    %p233 = por %p231, %p232
    %p234 = scmp.ne.s32.totalorder %s225, %s226
    %p235 = scmp.eq.s32.totalorder %s26, 0
    %p236 = por %p234, %p235
    %p237 = scmp.ne.s32.totalorder %s225, %s226
    %p238 = scmp.eq.s32.totalorder %s27, 3
    %p239 = por %p237, %p238
    %p241 = scmp.ne.s32.totalorder %s226, %s240
    %p242 = scmp.eq.s32.totalorder %s27, 0
    %p243 = por %p241, %p242
    %s245 = sadd.s32 %s244, 1
    %p248 = scmp.eq.s32.totalorder %s21, 3
    %p249 = scmp.ne.s32.totalorder %s244, %s246
    %p250 = scmp.eq.s32.totalorder %s21, 0
    %p251 = por %p249, %p250
    %p252 = scmp.ne.s32.totalorder %s244, %s246
    %p253 = scmp.eq.s32.totalorder %s26, 3
    %p254 = por %p252, %p253
    %p255 = scmp.ne.s32.totalorder %s246, %s247
    %p256 = scmp.eq.s32.totalorder %s26, 0
    %p257 = por %p255, %p256
    %p258 = scmp.ne.s32.totalorder %s246, %s247
    %p259 = scmp.eq.s32.totalorder %s27, 3
    %p260 = por %p258, %p259
    %p262 = scmp.ne.s32.totalorder %s247, %s261
    %p263 = scmp.eq.s32.totalorder %s27, 0
    %p264 = por %p262, %p263
    %s266 = sadd.s32 %s265, 1
    %p269 = scmp.eq.s32.totalorder %s21, 3
    %p270 = scmp.ne.s32.totalorder %s265, %s267
    %p271 = scmp.eq.s32.totalorder %s21, 0
    %p272 = por %p270, %p271
    %p273 = scmp.ne.s32.totalorder %s265, %s267
    %p274 = scmp.eq.s32.totalorder %s26, 3
    %p275 = por %p273, %p274
    %p276 = scmp.ne.s32.totalorder %s267, %s268
    %p277 = scmp.eq.s32.totalorder %s26, 0
    %p278 = por %p276, %p277
    %p279 = scmp.ne.s32.totalorder %s267, %s268
    %p280 = scmp.eq.s32.totalorder %s27, 3
    %p281 = por %p279, %p280
    %p283 = scmp.ne.s32.totalorder %s268, %s282
    %p284 = scmp.eq.s32.totalorder %s27, 0
    %p285 = por %p283, %p284
    %s287 = sadd.s32 %s286, 1
    %p290 = scmp.eq.s32.totalorder %s21, 3
    %p291 = scmp.ne.s32.totalorder %s286, %s288
    %p292 = scmp.eq.s32.totalorder %s21, 0
    %p293 = por %p291, %p292
    %p294 = scmp.ne.s32.totalorder %s286, %s288
    %p295 = scmp.eq.s32.totalorder %s26, 3
    %p296 = por %p294, %p295
    %p297 = scmp.ne.s32.totalorder %s288, %s289
    %p298 = scmp.eq.s32.totalorder %s26, 0
    %p299 = por %p297, %p298
    %p300 = scmp.ne.s32.totalorder %s288, %s289
    %p301 = scmp.eq.s32.totalorder %s27, 3
    %p302 = por %p300, %p301
    %p304 = scmp.ne.s32.totalorder %s289, %s303
    %p305 = scmp.eq.s32.totalorder %s27, 0
    %p306 = por %p304, %p305
    %s308 = sadd.s32 %s307, 1
    %p311 = scmp.eq.s32.totalorder %s21, 3
    %p312 = scmp.ne.s32.totalorder %s307, %s309
    %p313 = scmp.eq.s32.totalorder %s21, 0
    %p314 = por %p312, %p313
    %p315 = scmp.ne.s32.totalorder %s307, %s309
    %p316 = scmp.eq.s32.totalorder %s26, 3
    %p317 = por %p315, %p316
    %p318 = scmp.ne.s32.totalorder %s309, %s310
    %p319 = scmp.eq.s32.totalorder %s26, 0
    %p320 = por %p318, %p319
    %p321 = scmp.ne.s32.totalorder %s309, %s310
    %p322 = scmp.eq.s32.totalorder %s27, 3
    %p323 = por %p321, %p322
    %p325 = scmp.ne.s32.totalorder %s310, %s324
    %p326 = scmp.eq.s32.totalorder %s27, 0
    %p327 = por %p325, %p326
    %s329 = sadd.s32 %s328, 1
    %p332 = scmp.eq.s32.totalorder %s21, 3
    %p333 = scmp.ne.s32.totalorder %s328, %s330
    %p334 = scmp.eq.s32.totalorder %s21, 0
    %p335 = por %p333, %p334
    %p336 = scmp.ne.s32.totalorder %s328, %s330
    %p337 = scmp.eq.s32.totalorder %s26, 3
    %p338 = por %p336, %p337
    %p339 = scmp.ne.s32.totalorder %s330, %s331
    %p340 = scmp.eq.s32.totalorder %s26, 0
    %p341 = por %p339, %p340
    %p342 = scmp.ne.s32.totalorder %s330, %s331
    %p343 = scmp.eq.s32.totalorder %s27, 3
    %p344 = por %p342, %p343
    %p346 = scmp.ne.s32.totalorder %s331, %s345
    %p347 = scmp.eq.s32.totalorder %s27, 0
    %p348 = por %p346, %p347
    %s349 = ssub.s32 %s21, %s28
    %p350 = scmp.eq.s32.totalorder %s349, 0
    %s352 = sadd.s32 %s351, 1
    %s353 = scalar_select %p350, %s351, %s352
    %p356 = pneg %p350
    %p357 = scmp.eq.s32.totalorder %s21, 3
    %p358 = por %p356, %p357
    %p359 = scmp.ne.s32.totalorder %s351, %s354
    %p360 = scmp.eq.s32.totalorder %s21, 0
    %p361 = por %p359, %p360
    %p362 = scmp.ne.s32.totalorder %s351, %s354
    %p363 = scmp.eq.s32.totalorder %s26, 3
    %p364 = por %p362, %p363
    %p365 = scmp.ne.s32.totalorder %s354, %s355
    %p366 = scmp.eq.s32.totalorder %s26, 0
    %p367 = por %p365, %p366
    %p368 = scmp.ne.s32.totalorder %s354, %s355
    %p369 = scmp.eq.s32.totalorder %s27, 3
    %p370 = por %p368, %p369
    %p372 = scmp.ne.s32.totalorder %s355, %s371
    %p373 = scmp.eq.s32.totalorder %s27, 0
    %p374 = por %p372, %p373
    %p375 = scmp.le.s32.totalorder 1, %s21
    %p376 = scmp.lt.s32.totalorder %s21, 5
    %p377 = pnand %p375, %p376
    %p378 = pneg %p377
    // Predicated region
    $region9: #{tpu_custom_call.1} parent=5 // pred_check
      _
    $region10: #{tpu_custom_call.1} parent=5 // pred_check_branch
      %380 = sbr.rel (%p377) target = $region12
    $region11: #{tpu_custom_call.1} parent=5 // pred_region
      %s381 = ssub.s32 %s21, 1
      // Predicated region
      $region13: #{tpu_custom_call.1} parent=11 // pred_check
        %p382 = pneg %p68
      $region14: #{tpu_custom_call.1} parent=11 // pred_check_branch
        %384 = sbr.rel (%p382) target = $region16
      $region15: #{tpu_custom_call.1} parent=11 // pred_region
        _
      $region16: #{tpu_custom_call.1} parent=11 // pred_fallthru
        _
      // Predicated region
      $region17: #{tpu_custom_call.1} parent=11 // pred_check
        %p385 = pneg %p89
      $region18: #{tpu_custom_call.1} parent=11 // pred_check_branch
        %387 = sbr.rel (%p385) target = $region20
      $region19: #{tpu_custom_call.1} parent=11 // pred_region
        _
      $region20: #{tpu_custom_call.1} parent=11 // pred_fallthru
        _
      // Predicated region
      $region21: #{tpu_custom_call.1} parent=11 // pred_check
        %p388 = pneg %p110
      $region22: #{tpu_custom_call.1} parent=11 // pred_check_branch
        %390 = sbr.rel (%p388) target = $region24
      $region23: #{tpu_custom_call.1} parent=11 // pred_region
        _
      $region24: #{tpu_custom_call.1} parent=11 // pred_fallthru
        _
      // Predicated region
      $region25: #{tpu_custom_call.1} parent=11 // pred_check
        %p391 = pneg %p131
      $region26: #{tpu_custom_call.1} parent=11 // pred_check_branch
        %393 = sbr.rel (%p391) target = $region28
      $region27: #{tpu_custom_call.1} parent=11 // pred_region
        _
      $region28: #{tpu_custom_call.1} parent=11 // pred_fallthru
        _
      // Predicated region
      $region29: #{tpu_custom_call.1} parent=11 // pred_check
        %p394 = pneg %p152
      $region30: #{tpu_custom_call.1} parent=11 // pred_check_branch
        %396 = sbr.rel (%p394) target = $region32
      $region31: #{tpu_custom_call.1} parent=11 // pred_region
        _
      $region32: #{tpu_custom_call.1} parent=11 // pred_fallthru
        _
      // Predicated region
      $region33: #{tpu_custom_call.1} parent=11 // pred_check
        %p397 = pneg %p173
      $region34: #{tpu_custom_call.1} parent=11 // pred_check_branch
        %399 = sbr.rel (%p397) target = $region36
      $region35: #{tpu_custom_call.1} parent=11 // pred_region
        _
      $region36: #{tpu_custom_call.1} parent=11 // pred_fallthru
        _
      // Predicated region
      $region37: #{tpu_custom_call.1} parent=11 // pred_check
        %p400 = pneg %p194
      $region38: #{tpu_custom_call.1} parent=11 // pred_check_branch
        %402 = sbr.rel (%p400) target = $region40
      $region39: #{tpu_custom_call.1} parent=11 // pred_region
        _
      $region40: #{tpu_custom_call.1} parent=11 // pred_fallthru
        _
      // Predicated region
      $region41: #{tpu_custom_call.1} parent=11 // pred_check
        %p403 = pneg %p215
      $region42: #{tpu_custom_call.1} parent=11 // pred_check_branch
        %405 = sbr.rel (%p403) target = $region44
      $region43: #{tpu_custom_call.1} parent=11 // pred_region
        _
      $region44: #{tpu_custom_call.1} parent=11 // pred_fallthru
        _
      // Predicated region
      $region45: #{tpu_custom_call.1} parent=11 // pred_check
        %p406 = pneg %p236
      $region46: #{tpu_custom_call.1} parent=11 // pred_check_branch
        %408 = sbr.rel (%p406) target = $region48
      $region47: #{tpu_custom_call.1} parent=11 // pred_region
        _
      $region48: #{tpu_custom_call.1} parent=11 // pred_fallthru
        _
      // Predicated region
      $region49: #{tpu_custom_call.1} parent=11 // pred_check
        %p409 = pneg %p257
      $region50: #{tpu_custom_call.1} parent=11 // pred_check_branch
        %411 = sbr.rel (%p409) target = $region52
      $region51: #{tpu_custom_call.1} parent=11 // pred_region
        _
      $region52: #{tpu_custom_call.1} parent=11 // pred_fallthru
        _
      // Predicated region
      $region53: #{tpu_custom_call.1} parent=11 // pred_check
        %p412 = pneg %p278
      $region54: #{tpu_custom_call.1} parent=11 // pred_check_branch
        %414 = sbr.rel (%p412) target = $region56
      $region55: #{tpu_custom_call.1} parent=11 // pred_region
        _
      $region56: #{tpu_custom_call.1} parent=11 // pred_fallthru
        _
      // Predicated region
      $region57: #{tpu_custom_call.1} parent=11 // pred_check
        %p415 = pneg %p299
      $region58: #{tpu_custom_call.1} parent=11 // pred_check_branch
        %417 = sbr.rel (%p415) target = $region60
      $region59: #{tpu_custom_call.1} parent=11 // pred_region
        _
      $region60: #{tpu_custom_call.1} parent=11 // pred_fallthru
        _
      // Predicated region
      $region61: #{tpu_custom_call.1} parent=11 // pred_check
        %p418 = pneg %p320
      $region62: #{tpu_custom_call.1} parent=11 // pred_check_branch
        %420 = sbr.rel (%p418) target = $region64
      $region63: #{tpu_custom_call.1} parent=11 // pred_region
        _
      $region64: #{tpu_custom_call.1} parent=11 // pred_fallthru
        _
      // Predicated region
      $region65: #{tpu_custom_call.1} parent=11 // pred_check
        %p421 = pneg %p341
      $region66: #{tpu_custom_call.1} parent=11 // pred_check_branch
        %423 = sbr.rel (%p421) target = $region68
      $region67: #{tpu_custom_call.1} parent=11 // pred_region
        _
      $region68: #{tpu_custom_call.1} parent=11 // pred_fallthru
        _
    $region12: #{tpu_custom_call.1} parent=5 // pred_fallthru
      _
    %p424 = scmp.lt.s32.totalorder %s21, 4
    // Predicated region
    $region69: #{tpu_custom_call.1} parent=5 // pred_check
      %p425 = pneg %p424
    $region70: #{tpu_custom_call.1} parent=5 // pred_check_branch
      %427 = sbr.rel (%p425) target = $region72
    $region71: #{tpu_custom_call.1} parent=5 // pred_region
      // Predicated region
      $region73: #{tpu_custom_call.1} parent=71 // pred_check
        %p428 = pneg %p41
      $region74: #{tpu_custom_call.1} parent=71 // pred_check_branch
        %430 = sbr.rel (%p428) target = $region76
      $region75: #{tpu_custom_call.1} parent=71 // pred_region
        %s431 = smul.u32 32, %s21
        %p432 = scmp.lt.s32.totalorder %s431, 127
        %s433 = scalar_select %p432, %s431, 127
        %s434 = smul.addr %s433, 8
        %s435 = scalar_lea.vmem %s0, %s434
        %s436 = smul.u32 32, %s21
      $region76: #{tpu_custom_call.1} parent=71 // pred_fallthru
        _
    $region72: #{tpu_custom_call.1} parent=5 // pred_fallthru
      _
    %p437 = scmp.le.s32.totalorder 1, %s21
    %p438 = scmp.lt.s32.totalorder %s21, 5
    %p439 = pnand %p437, %p438
    %p440 = pneg %p439
    // Predicated region
    $region77: #{tpu_custom_call.1} parent=5 // pred_check
      _
    $region78: #{tpu_custom_call.1} parent=5 // pred_check_branch
      %442 = sbr.rel (%p439) target = $region80
    $region79: #{tpu_custom_call.1} parent=5 // pred_region
      %s443 = ssub.s32 %s21, 1
      %s444 = smul.u32 32, %s26
      %p445 = scmp.lt.s32.totalorder %s444, 127
      %s446 = scalar_select %p445, %s444, 127
      %s447 = smul.addr %s446, 8
      %s448 = scalar_lea.vmem %s0, %s447
      %p449 = pneg %p47
      %p450 = pneg %p44
      %p451 = pneg %p68
      %p452 = pneg %p65
      %p453 = pneg %p89
      %p454 = pneg %p86
      %p455 = pneg %p110
      %p456 = pneg %p107
      %p457 = pneg %p131
      %p458 = pneg %p128
      %p459 = pneg %p152
      %p460 = pneg %p149
      %p461 = pneg %p173
      %p462 = pneg %p170
      %p463 = pneg %p194
      %p464 = pneg %p191
      %p465 = pneg %p215
      %p466 = pneg %p212
      %p467 = pneg %p236
      %p468 = pneg %p233
      %p469 = pneg %p257
      %p470 = pneg %p254
      %p471 = pneg %p278
      %p472 = pneg %p275
      %p473 = pneg %p299
      %p474 = pneg %p296
      %p475 = pneg %p320
      %p476 = pneg %p317
      %p477 = pneg %p341
      %p478 = pneg %p338
      %p479 = pneg %p367
      %p480 = pneg %p364
      %s481 = smul.u32 32, %s26
      %p482 = scmp.lt.s32.totalorder %s481, 127
      %s483 = scalar_select %p482, %s481, 127
      %s484 = smul.addr %s483, 8
      %s485 = scalar_lea.vmem %s15, %s484
      %s486 = smul.u32 32, %s26
      %p487 = scmp.lt.s32.totalorder %s486, 127
      %s488 = scalar_select %p487, %s486, 127
      %s489 = smul.addr %s488, 8
      %s490 = scalar_lea.vmem %s0, %s489
      %s491 = smul.u32 32, %s26
      %s492 = smul.u32 32, %s26
      %p493 = scmp.lt.s32.totalorder %s492, 127
      %s494 = scalar_select %p493, %s492, 127
      %s495 = smul.addr %s494, 8
      %s496 = scalar_lea.vmem %s15, %s495
      %s497 = smul.u32 32, %s26
      %v499 = vld [vmem:[%s490] sm:$0xff]
      %v500 = vld [vmem:[%s490 + $0x8] sm:$0xff]
      %v501 = vld [vmem:[%s490 + $0x10] sm:$0xff]
      %v502 = vld [vmem:[%s490 + $0x18] sm:$0xff]
      %v503 = vld [vmem:[%s490 + $0x20] sm:$0xff]
      %v504 = vld [vmem:[%s490 + $0x28] sm:$0xff]
      %v505 = vld [vmem:[%s490 + $0x30] sm:$0xff]
      %v506 = vld [vmem:[%s490 + $0x38] sm:$0xff]
      %v507 = vld [vmem:[%s490 + $0x40] sm:$0xff]
      %v508 = vld [vmem:[%s490 + $0x48] sm:$0xff]
      %v509 = vld [vmem:[%s490 + $0x50] sm:$0xff]
      %v510 = vld [vmem:[%s490 + $0x58] sm:$0xff]
      %v511 = vld [vmem:[%s490 + $0x60] sm:$0xff]
      %v512 = vld [vmem:[%s490 + $0x68] sm:$0xff]
      %v513 = vld [vmem:[%s490 + $0x70] sm:$0xff]
      %v514 = vld [vmem:[%s490 + $0x78] sm:$0xff]
      %v515 = vld [vmem:[%s490 + $0x80] sm:$0xff]
      %v516 = vld [vmem:[%s490 + $0x88] sm:$0xff]
      %v517 = vld [vmem:[%s490 + $0x90] sm:$0xff]
      %v518 = vld [vmem:[%s490 + $0x98] sm:$0xff]
      %v519 = vld [vmem:[%s490 + $0xa0] sm:$0xff]
      %v520 = vld [vmem:[%s490 + $0xa8] sm:$0xff]
      %v521 = vld [vmem:[%s490 + $0xb0] sm:$0xff]
      %v522 = vld [vmem:[%s490 + $0xb8] sm:$0xff]
      %v523 = vld [vmem:[%s490 + $0xc0] sm:$0xff]
      %v524 = vld [vmem:[%s490 + $0xc8] sm:$0xff]
      %v525 = vld [vmem:[%s490 + $0xd0] sm:$0xff]
      %v526 = vld [vmem:[%s490 + $0xd8] sm:$0xff]
      %v527 = vld [vmem:[%s490 + $0xe0] sm:$0xff]
      %v528 = vld [vmem:[%s490 + $0xe8] sm:$0xff]
      %v529 = vld [vmem:[%s490 + $0xf0] sm:$0xff]
      %v530 = vld [vmem:[%s490 + $0xf8] sm:$0xff]
      %v531 = vld [vmem:[%s1] sm:$0x3f]
      %533 = vset.pattern.permute.xlu0 0
      %534 = vperm.xlu0 %533, %v499
      %v535 = vpop.permute.xlu0 %534
      %538 = vset.pattern.permute.xlu0 0
      %539 = vperm.xlu0 %538, %v500
      %v540 = vpop.permute.xlu0 %539
      %543 = vset.pattern.permute.xlu0 0
      %544 = vperm.xlu0 %543, %v501
      %v545 = vpop.permute.xlu0 %544
      %548 = vset.pattern.permute.xlu0 0
      %549 = vperm.xlu0 %548, %v502
      %v550 = vpop.permute.xlu0 %549
      %553 = vset.pattern.permute.xlu0 0
      %554 = vperm.xlu0 %553, %v503
      %v555 = vpop.permute.xlu0 %554
      %558 = vset.pattern.permute.xlu0 0
      %559 = vperm.xlu0 %558, %v504
      %v560 = vpop.permute.xlu0 %559
      %563 = vset.pattern.permute.xlu0 0
      %564 = vperm.xlu0 %563, %v505
      %v565 = vpop.permute.xlu0 %564
      %568 = vset.pattern.permute.xlu0 0
      %569 = vperm.xlu0 %568, %v506
      %v570 = vpop.permute.xlu0 %569
      %573 = vset.pattern.permute.xlu0 0
      %574 = vperm.xlu0 %573, %v507
      %v575 = vpop.permute.xlu0 %574
      %578 = vset.pattern.permute.xlu0 0
      %579 = vperm.xlu0 %578, %v508
      %v580 = vpop.permute.xlu0 %579
      %583 = vset.pattern.permute.xlu0 0
      %584 = vperm.xlu0 %583, %v509
      %v585 = vpop.permute.xlu0 %584
      %588 = vset.pattern.permute.xlu0 0
      %589 = vperm.xlu0 %588, %v510
      %v590 = vpop.permute.xlu0 %589
      %593 = vset.pattern.permute.xlu0 0
      %594 = vperm.xlu0 %593, %v511
      %v595 = vpop.permute.xlu0 %594
      %598 = vset.pattern.permute.xlu0 0
      %599 = vperm.xlu0 %598, %v512
      %v600 = vpop.permute.xlu0 %599
      %603 = vset.pattern.permute.xlu0 0
      %604 = vperm.xlu0 %603, %v513
      %v605 = vpop.permute.xlu0 %604
      %608 = vset.pattern.permute.xlu0 0
      %609 = vperm.xlu0 %608, %v514
      %v610 = vpop.permute.xlu0 %609
      %613 = vset.pattern.permute.xlu0 0
      %614 = vperm.xlu0 %613, %v515
      %v615 = vpop.permute.xlu0 %614
      %618 = vset.pattern.permute.xlu0 0
      %619 = vperm.xlu0 %618, %v516
      %v620 = vpop.permute.xlu0 %619
      %623 = vset.pattern.permute.xlu0 0
      %624 = vperm.xlu0 %623, %v517
      %v625 = vpop.permute.xlu0 %624
      %628 = vset.pattern.permute.xlu0 0
      %629 = vperm.xlu0 %628, %v518
      %v630 = vpop.permute.xlu0 %629
      %633 = vset.pattern.permute.xlu0 0
      %634 = vperm.xlu0 %633, %v519
      %v635 = vpop.permute.xlu0 %634
      %638 = vset.pattern.permute.xlu0 0
      %639 = vperm.xlu0 %638, %v520
      %v640 = vpop.permute.xlu0 %639
      %643 = vset.pattern.permute.xlu0 0
      %644 = vperm.xlu0 %643, %v521
      %v645 = vpop.permute.xlu0 %644
      %648 = vset.pattern.permute.xlu0 0
      %649 = vperm.xlu0 %648, %v522
      %v650 = vpop.permute.xlu0 %649
      %653 = vset.pattern.permute.xlu0 0
      %654 = vperm.xlu0 %653, %v523
      %v655 = vpop.permute.xlu0 %654
      %658 = vset.pattern.permute.xlu0 0
      %659 = vperm.xlu0 %658, %v524
      %v660 = vpop.permute.xlu0 %659
      %663 = vset.pattern.permute.xlu0 0
      %664 = vperm.xlu0 %663, %v525
      %v665 = vpop.permute.xlu0 %664
      %668 = vset.pattern.permute.xlu0 0
      %669 = vperm.xlu0 %668, %v526
      %v670 = vpop.permute.xlu0 %669
      %673 = vset.pattern.permute.xlu0 0
      %674 = vperm.xlu0 %673, %v527
      %v675 = vpop.permute.xlu0 %674
      %678 = vset.pattern.permute.xlu0 0
      %679 = vperm.xlu0 %678, %v528
      %v680 = vpop.permute.xlu0 %679
      %683 = vset.pattern.permute.xlu0 0
      %684 = vperm.xlu0 %683, %v529
      %v685 = vpop.permute.xlu0 %684
      %688 = vset.pattern.permute.xlu0 0
      %689 = vperm.xlu0 %688, %v530
      %v690 = vpop.permute.xlu0 %689
      %v692 = vlaneseq
      %v693 = vshrl.u32 %v692, 7
      %v694 = vsub.s32 0, %v693
      %v695 = vrot.slane %v531, %v694
      %v696 = vmul.f32 %v535, %v695
      %v697 = vmul.f32 %v540, %v695
      %v698 = vmul.f32 %v545, %v695
      %v699 = vmul.f32 %v550, %v695
      %v700 = vmul.f32 %v555, %v695
      %v701 = vmul.f32 %v560, %v695
      %v702 = vmul.f32 %v565, %v695
      %v703 = vmul.f32 %v570, %v695
      %v704 = vmul.f32 %v575, %v695
      %v705 = vmul.f32 %v580, %v695
      %v706 = vmul.f32 %v585, %v695
      %v707 = vmul.f32 %v590, %v695
      %v708 = vmul.f32 %v595, %v695
      %v709 = vmul.f32 %v600, %v695
      %v710 = vmul.f32 %v605, %v695
      %v711 = vmul.f32 %v610, %v695
      %v712 = vmul.f32 %v615, %v695
      %v713 = vmul.f32 %v620, %v695
      %v714 = vmul.f32 %v625, %v695
      %v715 = vmul.f32 %v630, %v695
      %v716 = vmul.f32 %v635, %v695
      %v717 = vmul.f32 %v640, %v695
      %v718 = vmul.f32 %v645, %v695
      %v719 = vmul.f32 %v650, %v695
      %v720 = vmul.f32 %v655, %v695
      %v721 = vmul.f32 %v660, %v695
      %v722 = vmul.f32 %v665, %v695
      %v723 = vmul.f32 %v670, %v695
      %v724 = vmul.f32 %v675, %v695
      %v725 = vmul.f32 %v680, %v695
      %v726 = vmul.f32 %v685, %v695
      %v727 = vmul.f32 %v690, %v695
      %728 = vset.pattern.permute.xlu0 1
      %729 = vperm.xlu0 %728, %v499
      %v730 = vpop.permute.xlu0 %729
      %732 = vset.pattern.permute.xlu0 1
      %733 = vperm.xlu0 %732, %v500
      %v734 = vpop.permute.xlu0 %733
      %736 = vset.pattern.permute.xlu0 1
      %737 = vperm.xlu0 %736, %v501
      %v738 = vpop.permute.xlu0 %737
      %740 = vset.pattern.permute.xlu0 1
      %741 = vperm.xlu0 %740, %v502
      %v742 = vpop.permute.xlu0 %741
      %744 = vset.pattern.permute.xlu0 1
      %745 = vperm.xlu0 %744, %v503
      %v746 = vpop.permute.xlu0 %745
      %748 = vset.pattern.permute.xlu0 1
      %749 = vperm.xlu0 %748, %v504
      %v750 = vpop.permute.xlu0 %749
      %752 = vset.pattern.permute.xlu0 1
      %753 = vperm.xlu0 %752, %v505
      %v754 = vpop.permute.xlu0 %753
      %756 = vset.pattern.permute.xlu0 1
      %757 = vperm.xlu0 %756, %v506
      %v758 = vpop.permute.xlu0 %757
      %760 = vset.pattern.permute.xlu0 1
      %761 = vperm.xlu0 %760, %v507
      %v762 = vpop.permute.xlu0 %761
      %764 = vset.pattern.permute.xlu0 1
      %765 = vperm.xlu0 %764, %v508
      %v766 = vpop.permute.xlu0 %765
      %768 = vset.pattern.permute.xlu0 1
      %769 = vperm.xlu0 %768, %v509
      %v770 = vpop.permute.xlu0 %769
      %772 = vset.pattern.permute.xlu0 1
      %773 = vperm.xlu0 %772, %v510
      %v774 = vpop.permute.xlu0 %773
      %776 = vset.pattern.permute.xlu0 1
      %777 = vperm.xlu0 %776, %v511
      %v778 = vpop.permute.xlu0 %777
      %780 = vset.pattern.permute.xlu0 1
      %781 = vperm.xlu0 %780, %v512
      %v782 = vpop.permute.xlu0 %781
      %784 = vset.pattern.permute.xlu0 1
      %785 = vperm.xlu0 %784, %v513
      %v786 = vpop.permute.xlu0 %785
      %788 = vset.pattern.permute.xlu0 1
      %789 = vperm.xlu0 %788, %v514
      %v790 = vpop.permute.xlu0 %789
      %792 = vset.pattern.permute.xlu0 1
      %793 = vperm.xlu0 %792, %v515
      %v794 = vpop.permute.xlu0 %793
      %796 = vset.pattern.permute.xlu0 1
      %797 = vperm.xlu0 %796, %v516
      %v798 = vpop.permute.xlu0 %797
      %800 = vset.pattern.permute.xlu0 1
      %801 = vperm.xlu0 %800, %v517
      %v802 = vpop.permute.xlu0 %801
      %804 = vset.pattern.permute.xlu0 1
      %805 = vperm.xlu0 %804, %v518
      %v806 = vpop.permute.xlu0 %805
      %808 = vset.pattern.permute.xlu0 1
      %809 = vperm.xlu0 %808, %v519
      %v810 = vpop.permute.xlu0 %809
      %812 = vset.pattern.permute.xlu0 1
      %813 = vperm.xlu0 %812, %v520
      %v814 = vpop.permute.xlu0 %813
      %816 = vset.pattern.permute.xlu0 1
      %817 = vperm.xlu0 %816, %v521
      %v818 = vpop.permute.xlu0 %817
      %820 = vset.pattern.permute.xlu0 1
      %821 = vperm.xlu0 %820, %v522
      %v822 = vpop.permute.xlu0 %821
      %824 = vset.pattern.permute.xlu0 1
      %825 = vperm.xlu0 %824, %v523
      %v826 = vpop.permute.xlu0 %825
      %828 = vset.pattern.permute.xlu0 1
      %829 = vperm.xlu0 %828, %v524
      %v830 = vpop.permute.xlu0 %829
      %832 = vset.pattern.permute.xlu0 1
      %833 = vperm.xlu0 %832, %v525
      %v834 = vpop.permute.xlu0 %833
      %836 = vset.pattern.permute.xlu0 1
      %837 = vperm.xlu0 %836, %v526
      %v838 = vpop.permute.xlu0 %837
      %840 = vset.pattern.permute.xlu0 1
      %841 = vperm.xlu0 %840, %v527
      %v842 = vpop.permute.xlu0 %841
      %844 = vset.pattern.permute.xlu0 1
      %845 = vperm.xlu0 %844, %v528
      %v846 = vpop.permute.xlu0 %845
      %848 = vset.pattern.permute.xlu0 1
      %849 = vperm.xlu0 %848, %v529
      %v850 = vpop.permute.xlu0 %849
      %852 = vset.pattern.permute.xlu0 1
      %853 = vperm.xlu0 %852, %v530
      %v854 = vpop.permute.xlu0 %853
      %v856 = vlaneseq
      %v857 = vshrl.u32 %v856, 7
      %v858 = vsub.s32 1, %v857
      %v859 = vrot.slane %v531, %v858
      %v860 = vmul.f32 %v730, %v859
      %v861 = vmul.f32 %v734, %v859
      %v862 = vmul.f32 %v738, %v859
      %v863 = vmul.f32 %v742, %v859
      %v864 = vmul.f32 %v746, %v859
      %v865 = vmul.f32 %v750, %v859
      %v866 = vmul.f32 %v754, %v859
      %v867 = vmul.f32 %v758, %v859
      %v868 = vmul.f32 %v762, %v859
      %v869 = vmul.f32 %v766, %v859
      %v870 = vmul.f32 %v770, %v859
      %v871 = vmul.f32 %v774, %v859
      %v872 = vmul.f32 %v778, %v859
      %v873 = vmul.f32 %v782, %v859
      %v874 = vmul.f32 %v786, %v859
      %v875 = vmul.f32 %v790, %v859
      %v876 = vmul.f32 %v794, %v859
      %v877 = vmul.f32 %v798, %v859
      %v878 = vmul.f32 %v802, %v859
      %v879 = vmul.f32 %v806, %v859
      %v880 = vmul.f32 %v810, %v859
      %v881 = vmul.f32 %v814, %v859
      %v882 = vmul.f32 %v818, %v859
      %v883 = vmul.f32 %v822, %v859
      %v884 = vmul.f32 %v826, %v859
      %v885 = vmul.f32 %v830, %v859
      %v886 = vmul.f32 %v834, %v859
      %v887 = vmul.f32 %v838, %v859
      %v888 = vmul.f32 %v842, %v859
      %v889 = vmul.f32 %v846, %v859
      %v890 = vmul.f32 %v850, %v859
      %v891 = vmul.f32 %v854, %v859
      %v892 = vadd.f32 %v696, %v860
      %v893 = vadd.f32 %v697, %v861
      %v894 = vadd.f32 %v698, %v862
      %v895 = vadd.f32 %v699, %v863
      %v896 = vadd.f32 %v700, %v864
      %v897 = vadd.f32 %v701, %v865
      %v898 = vadd.f32 %v702, %v866
      %v899 = vadd.f32 %v703, %v867
      %v900 = vadd.f32 %v704, %v868
      %v901 = vadd.f32 %v705, %v869
      %v902 = vadd.f32 %v706, %v870
      %v903 = vadd.f32 %v707, %v871
      %v904 = vadd.f32 %v708, %v872
      %v905 = vadd.f32 %v709, %v873
      %v906 = vadd.f32 %v710, %v874
      %v907 = vadd.f32 %v711, %v875
      %v908 = vadd.f32 %v712, %v876
      %v909 = vadd.f32 %v713, %v877
      %v910 = vadd.f32 %v714, %v878
      %v911 = vadd.f32 %v715, %v879
      %v912 = vadd.f32 %v716, %v880
      %v913 = vadd.f32 %v717, %v881
      %v914 = vadd.f32 %v718, %v882
      %v915 = vadd.f32 %v719, %v883
      %v916 = vadd.f32 %v720, %v884
      %v917 = vadd.f32 %v721, %v885
      %v918 = vadd.f32 %v722, %v886
      %v919 = vadd.f32 %v723, %v887
      %v920 = vadd.f32 %v724, %v888
      %v921 = vadd.f32 %v725, %v889
      %v922 = vadd.f32 %v726, %v890
      %v923 = vadd.f32 %v727, %v891
      %924 = vset.pattern.permute.xlu0 2
      %925 = vperm.xlu0 %924, %v499
      %v926 = vpop.permute.xlu0 %925
      %928 = vset.pattern.permute.xlu0 2
      %929 = vperm.xlu0 %928, %v500
      %v930 = vpop.permute.xlu0 %929
      %932 = vset.pattern.permute.xlu0 2
      %933 = vperm.xlu0 %932, %v501
      %v934 = vpop.permute.xlu0 %933
      %936 = vset.pattern.permute.xlu0 2
      %937 = vperm.xlu0 %936, %v502
      %v938 = vpop.permute.xlu0 %937
      %940 = vset.pattern.permute.xlu0 2
      %941 = vperm.xlu0 %940, %v503
      %v942 = vpop.permute.xlu0 %941
      %944 = vset.pattern.permute.xlu0 2
      %945 = vperm.xlu0 %944, %v504
      %v946 = vpop.permute.xlu0 %945
      %948 = vset.pattern.permute.xlu0 2
      %949 = vperm.xlu0 %948, %v505
      %v950 = vpop.permute.xlu0 %949
      %952 = vset.pattern.permute.xlu0 2
      %953 = vperm.xlu0 %952, %v506
      %v954 = vpop.permute.xlu0 %953
      %956 = vset.pattern.permute.xlu0 2
      %957 = vperm.xlu0 %956, %v507
      %v958 = vpop.permute.xlu0 %957
      %960 = vset.pattern.permute.xlu0 2
      %961 = vperm.xlu0 %960, %v508
      %v962 = vpop.permute.xlu0 %961
      %964 = vset.pattern.permute.xlu0 2
      %965 = vperm.xlu0 %964, %v509
      %v966 = vpop.permute.xlu0 %965
      %968 = vset.pattern.permute.xlu0 2
      %969 = vperm.xlu0 %968, %v510
      %v970 = vpop.permute.xlu0 %969
      %972 = vset.pattern.permute.xlu0 2
      %973 = vperm.xlu0 %972, %v511
      %v974 = vpop.permute.xlu0 %973
      %976 = vset.pattern.permute.xlu0 2
      %977 = vperm.xlu0 %976, %v512
      %v978 = vpop.permute.xlu0 %977
      %980 = vset.pattern.permute.xlu0 2
      %981 = vperm.xlu0 %980, %v513
      %v982 = vpop.permute.xlu0 %981
      %984 = vset.pattern.permute.xlu0 2
      %985 = vperm.xlu0 %984, %v514
      %v986 = vpop.permute.xlu0 %985
      %988 = vset.pattern.permute.xlu0 2
      %989 = vperm.xlu0 %988, %v515
      %v990 = vpop.permute.xlu0 %989
      %992 = vset.pattern.permute.xlu0 2
      %993 = vperm.xlu0 %992, %v516
      %v994 = vpop.permute.xlu0 %993
      %996 = vset.pattern.permute.xlu0 2
      %997 = vperm.xlu0 %996, %v517
      %v998 = vpop.permute.xlu0 %997
      %1000 = vset.pattern.permute.xlu0 2
      %1001 = vperm.xlu0 %1000, %v518
      %v1002 = vpop.permute.xlu0 %1001
      %1004 = vset.pattern.permute.xlu0 2
      %1005 = vperm.xlu0 %1004, %v519
      %v1006 = vpop.permute.xlu0 %1005
      %1008 = vset.pattern.permute.xlu0 2
      %1009 = vperm.xlu0 %1008, %v520
      %v1010 = vpop.permute.xlu0 %1009
      %1012 = vset.pattern.permute.xlu0 2
      %1013 = vperm.xlu0 %1012, %v521
      %v1014 = vpop.permute.xlu0 %1013
      %1016 = vset.pattern.permute.xlu0 2
      %1017 = vperm.xlu0 %1016, %v522
      %v1018 = vpop.permute.xlu0 %1017
      %1020 = vset.pattern.permute.xlu0 2
      %1021 = vperm.xlu0 %1020, %v523
      %v1022 = vpop.permute.xlu0 %1021
      %1024 = vset.pattern.permute.xlu0 2
      %1025 = vperm.xlu0 %1024, %v524
      %v1026 = vpop.permute.xlu0 %1025
      %1028 = vset.pattern.permute.xlu0 2
      %1029 = vperm.xlu0 %1028, %v525
      %v1030 = vpop.permute.xlu0 %1029
      %1032 = vset.pattern.permute.xlu0 2
      %1033 = vperm.xlu0 %1032, %v526
      %v1034 = vpop.permute.xlu0 %1033
      %1036 = vset.pattern.permute.xlu0 2
      %1037 = vperm.xlu0 %1036, %v527
      %v1038 = vpop.permute.xlu0 %1037
      %1040 = vset.pattern.permute.xlu0 2
      %1041 = vperm.xlu0 %1040, %v528
      %v1042 = vpop.permute.xlu0 %1041
      %1044 = vset.pattern.permute.xlu0 2
      %1045 = vperm.xlu0 %1044, %v529
      %v1046 = vpop.permute.xlu0 %1045
      %1048 = vset.pattern.permute.xlu0 2
      %1049 = vperm.xlu0 %1048, %v530
      %v1050 = vpop.permute.xlu0 %1049
      %v1052 = vlaneseq
      %v1053 = vshrl.u32 %v1052, 7
      %v1054 = vsub.s32 2, %v1053
      %v1055 = vrot.slane %v531, %v1054
      %v1056 = vmul.f32 %v926, %v1055
      %v1057 = vmul.f32 %v930, %v1055
      %v1058 = vmul.f32 %v934, %v1055
      %v1059 = vmul.f32 %v938, %v1055
      %v1060 = vmul.f32 %v942, %v1055
      %v1061 = vmul.f32 %v946, %v1055
      %v1062 = vmul.f32 %v950, %v1055
      %v1063 = vmul.f32 %v954, %v1055
      %v1064 = vmul.f32 %v958, %v1055
      %v1065 = vmul.f32 %v962, %v1055
      %v1066 = vmul.f32 %v966, %v1055
      %v1067 = vmul.f32 %v970, %v1055
      %v1068 = vmul.f32 %v974, %v1055
      %v1069 = vmul.f32 %v978, %v1055
      %v1070 = vmul.f32 %v982, %v1055
      %v1071 = vmul.f32 %v986, %v1055
      %v1072 = vmul.f32 %v990, %v1055
      %v1073 = vmul.f32 %v994, %v1055
      %v1074 = vmul.f32 %v998, %v1055
      %v1075 = vmul.f32 %v1002, %v1055
      %v1076 = vmul.f32 %v1006, %v1055
      %v1077 = vmul.f32 %v1010, %v1055
      %v1078 = vmul.f32 %v1014, %v1055
      %v1079 = vmul.f32 %v1018, %v1055
      %v1080 = vmul.f32 %v1022, %v1055
      %v1081 = vmul.f32 %v1026, %v1055
      %v1082 = vmul.f32 %v1030, %v1055
      %v1083 = vmul.f32 %v1034, %v1055
      %v1084 = vmul.f32 %v1038, %v1055
      %v1085 = vmul.f32 %v1042, %v1055
      %v1086 = vmul.f32 %v1046, %v1055
      %v1087 = vmul.f32 %v1050, %v1055
      %v1088 = vadd.f32 %v892, %v1056
      %v1089 = vadd.f32 %v893, %v1057
      %v1090 = vadd.f32 %v894, %v1058
      %v1091 = vadd.f32 %v895, %v1059
      %v1092 = vadd.f32 %v896, %v1060
      %v1093 = vadd.f32 %v897, %v1061
      %v1094 = vadd.f32 %v898, %v1062
      %v1095 = vadd.f32 %v899, %v1063
      %v1096 = vadd.f32 %v900, %v1064
      %v1097 = vadd.f32 %v901, %v1065
      %v1098 = vadd.f32 %v902, %v1066
      %v1099 = vadd.f32 %v903, %v1067
      %v1100 = vadd.f32 %v904, %v1068
      %v1101 = vadd.f32 %v905, %v1069
      %v1102 = vadd.f32 %v906, %v1070
      %v1103 = vadd.f32 %v907, %v1071
      %v1104 = vadd.f32 %v908, %v1072
      %v1105 = vadd.f32 %v909, %v1073
      %v1106 = vadd.f32 %v910, %v1074
      %v1107 = vadd.f32 %v911, %v1075
      %v1108 = vadd.f32 %v912, %v1076
      %v1109 = vadd.f32 %v913, %v1077
      %v1110 = vadd.f32 %v914, %v1078
      %v1111 = vadd.f32 %v915, %v1079
      %v1112 = vadd.f32 %v916, %v1080
      %v1113 = vadd.f32 %v917, %v1081
      %v1114 = vadd.f32 %v918, %v1082
      %v1115 = vadd.f32 %v919, %v1083
      %v1116 = vadd.f32 %v920, %v1084
      %v1117 = vadd.f32 %v921, %v1085
      %v1118 = vadd.f32 %v922, %v1086
      %v1119 = vadd.f32 %v923, %v1087
      %1120 = vset.pattern.permute.xlu0 3
      %1121 = vperm.xlu0 %1120, %v499
      %v1122 = vpop.permute.xlu0 %1121
      %1124 = vset.pattern.permute.xlu0 3
      %1125 = vperm.xlu0 %1124, %v500
      %v1126 = vpop.permute.xlu0 %1125
      %1128 = vset.pattern.permute.xlu0 3
      %1129 = vperm.xlu0 %1128, %v501
      %v1130 = vpop.permute.xlu0 %1129
      %1132 = vset.pattern.permute.xlu0 3
      %1133 = vperm.xlu0 %1132, %v502
      %v1134 = vpop.permute.xlu0 %1133
      %1136 = vset.pattern.permute.xlu0 3
      %1137 = vperm.xlu0 %1136, %v503
      %v1138 = vpop.permute.xlu0 %1137
      %1140 = vset.pattern.permute.xlu0 3
      %1141 = vperm.xlu0 %1140, %v504
      %v1142 = vpop.permute.xlu0 %1141
      %1144 = vset.pattern.permute.xlu0 3
      %1145 = vperm.xlu0 %1144, %v505
      %v1146 = vpop.permute.xlu0 %1145
      %1148 = vset.pattern.permute.xlu0 3
      %1149 = vperm.xlu0 %1148, %v506
      %v1150 = vpop.permute.xlu0 %1149
      %1152 = vset.pattern.permute.xlu0 3
      %1153 = vperm.xlu0 %1152, %v507
      %v1154 = vpop.permute.xlu0 %1153
      %1156 = vset.pattern.permute.xlu0 3
      %1157 = vperm.xlu0 %1156, %v508
      %v1158 = vpop.permute.xlu0 %1157
      %1160 = vset.pattern.permute.xlu0 3
      %1161 = vperm.xlu0 %1160, %v509
      %v1162 = vpop.permute.xlu0 %1161
      %1164 = vset.pattern.permute.xlu0 3
      %1165 = vperm.xlu0 %1164, %v510
      %v1166 = vpop.permute.xlu0 %1165
      %1168 = vset.pattern.permute.xlu0 3
      %1169 = vperm.xlu0 %1168, %v511
      %v1170 = vpop.permute.xlu0 %1169
      %1172 = vset.pattern.permute.xlu0 3
      %1173 = vperm.xlu0 %1172, %v512
      %v1174 = vpop.permute.xlu0 %1173
      %1176 = vset.pattern.permute.xlu0 3
      %1177 = vperm.xlu0 %1176, %v513
      %v1178 = vpop.permute.xlu0 %1177
      %1180 = vset.pattern.permute.xlu0 3
      %1181 = vperm.xlu0 %1180, %v514
      %v1182 = vpop.permute.xlu0 %1181
      %1184 = vset.pattern.permute.xlu0 3
      %1185 = vperm.xlu0 %1184, %v515
      %v1186 = vpop.permute.xlu0 %1185
      %1188 = vset.pattern.permute.xlu0 3
      %1189 = vperm.xlu0 %1188, %v516
      %v1190 = vpop.permute.xlu0 %1189
      %1192 = vset.pattern.permute.xlu0 3
      %1193 = vperm.xlu0 %1192, %v517
      %v1194 = vpop.permute.xlu0 %1193
      %1196 = vset.pattern.permute.xlu0 3
      %1197 = vperm.xlu0 %1196, %v518
      %v1198 = vpop.permute.xlu0 %1197
      %1200 = vset.pattern.permute.xlu0 3
      %1201 = vperm.xlu0 %1200, %v519
      %v1202 = vpop.permute.xlu0 %1201
      %1204 = vset.pattern.permute.xlu0 3
      %1205 = vperm.xlu0 %1204, %v520
      %v1206 = vpop.permute.xlu0 %1205
      %1208 = vset.pattern.permute.xlu0 3
      %1209 = vperm.xlu0 %1208, %v521
      %v1210 = vpop.permute.xlu0 %1209
      %1212 = vset.pattern.permute.xlu0 3
      %1213 = vperm.xlu0 %1212, %v522
      %v1214 = vpop.permute.xlu0 %1213
      %1216 = vset.pattern.permute.xlu0 3
      %1217 = vperm.xlu0 %1216, %v523
      %v1218 = vpop.permute.xlu0 %1217
      %1220 = vset.pattern.permute.xlu0 3
      %1221 = vperm.xlu0 %1220, %v524
      %v1222 = vpop.permute.xlu0 %1221
      %1224 = vset.pattern.permute.xlu0 3
      %1225 = vperm.xlu0 %1224, %v525
      %v1226 = vpop.permute.xlu0 %1225
      %1228 = vset.pattern.permute.xlu0 3
      %1229 = vperm.xlu0 %1228, %v526
      %v1230 = vpop.permute.xlu0 %1229
      %1232 = vset.pattern.permute.xlu0 3
      %1233 = vperm.xlu0 %1232, %v527
      %v1234 = vpop.permute.xlu0 %1233
      %1236 = vset.pattern.permute.xlu0 3
      %1237 = vperm.xlu0 %1236, %v528
      %v1238 = vpop.permute.xlu0 %1237
      %1240 = vset.pattern.permute.xlu0 3
      %1241 = vperm.xlu0 %1240, %v529
      %v1242 = vpop.permute.xlu0 %1241
      %1244 = vset.pattern.permute.xlu0 3
      %1245 = vperm.xlu0 %1244, %v530
      %v1246 = vpop.permute.xlu0 %1245
      %v1248 = vlaneseq
      %v1249 = vshrl.u32 %v1248, 7
      %v1250 = vsub.s32 3, %v1249
      %v1251 = vrot.slane %v531, %v1250
      %v1252 = vmul.f32 %v1122, %v1251
      %v1253 = vmul.f32 %v1126, %v1251
      %v1254 = vmul.f32 %v1130, %v1251
      %v1255 = vmul.f32 %v1134, %v1251
      %v1256 = vmul.f32 %v1138, %v1251
      %v1257 = vmul.f32 %v1142, %v1251
      %v1258 = vmul.f32 %v1146, %v1251
      %v1259 = vmul.f32 %v1150, %v1251
      %v1260 = vmul.f32 %v1154, %v1251
      %v1261 = vmul.f32 %v1158, %v1251
      %v1262 = vmul.f32 %v1162, %v1251
      %v1263 = vmul.f32 %v1166, %v1251
      %v1264 = vmul.f32 %v1170, %v1251
      %v1265 = vmul.f32 %v1174, %v1251
      %v1266 = vmul.f32 %v1178, %v1251
      %v1267 = vmul.f32 %v1182, %v1251
      %v1268 = vmul.f32 %v1186, %v1251
      %v1269 = vmul.f32 %v1190, %v1251
      %v1270 = vmul.f32 %v1194, %v1251
      %v1271 = vmul.f32 %v1198, %v1251
      %v1272 = vmul.f32 %v1202, %v1251
      %v1273 = vmul.f32 %v1206, %v1251
      %v1274 = vmul.f32 %v1210, %v1251
      %v1275 = vmul.f32 %v1214, %v1251
      %v1276 = vmul.f32 %v1218, %v1251
      %v1277 = vmul.f32 %v1222, %v1251
      %v1278 = vmul.f32 %v1226, %v1251
      %v1279 = vmul.f32 %v1230, %v1251
      %v1280 = vmul.f32 %v1234, %v1251
      %v1281 = vmul.f32 %v1238, %v1251
      %v1282 = vmul.f32 %v1242, %v1251
      %v1283 = vmul.f32 %v1246, %v1251
      %v1284 = vadd.f32 %v1088, %v1252
      %v1285 = vadd.f32 %v1089, %v1253
      %v1286 = vadd.f32 %v1090, %v1254
      %v1287 = vadd.f32 %v1091, %v1255
      %v1288 = vadd.f32 %v1092, %v1256
      %v1289 = vadd.f32 %v1093, %v1257
      %v1290 = vadd.f32 %v1094, %v1258
      %v1291 = vadd.f32 %v1095, %v1259
      %v1292 = vadd.f32 %v1096, %v1260
      %v1293 = vadd.f32 %v1097, %v1261
      %v1294 = vadd.f32 %v1098, %v1262
      %v1295 = vadd.f32 %v1099, %v1263
      %v1296 = vadd.f32 %v1100, %v1264
      %v1297 = vadd.f32 %v1101, %v1265
      %v1298 = vadd.f32 %v1102, %v1266
      %v1299 = vadd.f32 %v1103, %v1267
      %v1300 = vadd.f32 %v1104, %v1268
      %v1301 = vadd.f32 %v1105, %v1269
      %v1302 = vadd.f32 %v1106, %v1270
      %v1303 = vadd.f32 %v1107, %v1271
      %v1304 = vadd.f32 %v1108, %v1272
      %v1305 = vadd.f32 %v1109, %v1273
      %v1306 = vadd.f32 %v1110, %v1274
      %v1307 = vadd.f32 %v1111, %v1275
      %v1308 = vadd.f32 %v1112, %v1276
      %v1309 = vadd.f32 %v1113, %v1277
      %v1310 = vadd.f32 %v1114, %v1278
      %v1311 = vadd.f32 %v1115, %v1279
      %v1312 = vadd.f32 %v1116, %v1280
      %v1313 = vadd.f32 %v1117, %v1281
      %v1314 = vadd.f32 %v1118, %v1282
      %v1315 = vadd.f32 %v1119, %v1283
      %1316 = vset.pattern.permute.xlu0 4
      %1317 = vperm.xlu0 %1316, %v499
      %v1318 = vpop.permute.xlu0 %1317
      %1320 = vset.pattern.permute.xlu0 4
      %1321 = vperm.xlu0 %1320, %v500
      %v1322 = vpop.permute.xlu0 %1321
      %1324 = vset.pattern.permute.xlu0 4
      %1325 = vperm.xlu0 %1324, %v501
      %v1326 = vpop.permute.xlu0 %1325
      %1328 = vset.pattern.permute.xlu0 4
      %1329 = vperm.xlu0 %1328, %v502
      %v1330 = vpop.permute.xlu0 %1329
      %1332 = vset.pattern.permute.xlu0 4
      %1333 = vperm.xlu0 %1332, %v503
      %v1334 = vpop.permute.xlu0 %1333
      %1336 = vset.pattern.permute.xlu0 4
      %1337 = vperm.xlu0 %1336, %v504
      %v1338 = vpop.permute.xlu0 %1337
      %1340 = vset.pattern.permute.xlu0 4
      %1341 = vperm.xlu0 %1340, %v505
      %v1342 = vpop.permute.xlu0 %1341
      %1344 = vset.pattern.permute.xlu0 4
      %1345 = vperm.xlu0 %1344, %v506
      %v1346 = vpop.permute.xlu0 %1345
      %1348 = vset.pattern.permute.xlu0 4
      %1349 = vperm.xlu0 %1348, %v507
      %v1350 = vpop.permute.xlu0 %1349
      %1352 = vset.pattern.permute.xlu0 4
      %1353 = vperm.xlu0 %1352, %v508
      %v1354 = vpop.permute.xlu0 %1353
      %1356 = vset.pattern.permute.xlu0 4
      %1357 = vperm.xlu0 %1356, %v509
      %v1358 = vpop.permute.xlu0 %1357
      %1360 = vset.pattern.permute.xlu0 4
      %1361 = vperm.xlu0 %1360, %v510
      %v1362 = vpop.permute.xlu0 %1361
      %1364 = vset.pattern.permute.xlu0 4
      %1365 = vperm.xlu0 %1364, %v511
      %v1366 = vpop.permute.xlu0 %1365
      %1368 = vset.pattern.permute.xlu0 4
      %1369 = vperm.xlu0 %1368, %v512
      %v1370 = vpop.permute.xlu0 %1369
      %1372 = vset.pattern.permute.xlu0 4
      %1373 = vperm.xlu0 %1372, %v513
      %v1374 = vpop.permute.xlu0 %1373
      %1376 = vset.pattern.permute.xlu0 4
      %1377 = vperm.xlu0 %1376, %v514
      %v1378 = vpop.permute.xlu0 %1377
      %1380 = vset.pattern.permute.xlu0 4
      %1381 = vperm.xlu0 %1380, %v515
      %v1382 = vpop.permute.xlu0 %1381
      %1384 = vset.pattern.permute.xlu0 4
      %1385 = vperm.xlu0 %1384, %v516
      %v1386 = vpop.permute.xlu0 %1385
      %1388 = vset.pattern.permute.xlu0 4
      %1389 = vperm.xlu0 %1388, %v517
      %v1390 = vpop.permute.xlu0 %1389
      %1392 = vset.pattern.permute.xlu0 4
      %1393 = vperm.xlu0 %1392, %v518
      %v1394 = vpop.permute.xlu0 %1393
      %1396 = vset.pattern.permute.xlu0 4
      %1397 = vperm.xlu0 %1396, %v519
      %v1398 = vpop.permute.xlu0 %1397
      %1400 = vset.pattern.permute.xlu0 4
      %1401 = vperm.xlu0 %1400, %v520
      %v1402 = vpop.permute.xlu0 %1401
      %1404 = vset.pattern.permute.xlu0 4
      %1405 = vperm.xlu0 %1404, %v521
      %v1406 = vpop.permute.xlu0 %1405
      %1408 = vset.pattern.permute.xlu0 4
      %1409 = vperm.xlu0 %1408, %v522
      %v1410 = vpop.permute.xlu0 %1409
      %1412 = vset.pattern.permute.xlu0 4
      %1413 = vperm.xlu0 %1412, %v523
      %v1414 = vpop.permute.xlu0 %1413
      %1416 = vset.pattern.permute.xlu0 4
      %1417 = vperm.xlu0 %1416, %v524
      %v1418 = vpop.permute.xlu0 %1417
      %1420 = vset.pattern.permute.xlu0 4
      %1421 = vperm.xlu0 %1420, %v525
      %v1422 = vpop.permute.xlu0 %1421
      %1424 = vset.pattern.permute.xlu0 4
      %1425 = vperm.xlu0 %1424, %v526
      %v1426 = vpop.permute.xlu0 %1425
      %1428 = vset.pattern.permute.xlu0 4
      %1429 = vperm.xlu0 %1428, %v527
      %v1430 = vpop.permute.xlu0 %1429
      %1432 = vset.pattern.permute.xlu0 4
      %1433 = vperm.xlu0 %1432, %v528
      %v1434 = vpop.permute.xlu0 %1433
      %1436 = vset.pattern.permute.xlu0 4
      %1437 = vperm.xlu0 %1436, %v529
      %v1438 = vpop.permute.xlu0 %1437
      %1440 = vset.pattern.permute.xlu0 4
      %1441 = vperm.xlu0 %1440, %v530
      %v1442 = vpop.permute.xlu0 %1441
      %v1444 = vlaneseq
      %v1445 = vshrl.u32 %v1444, 7
      %v1446 = vsub.s32 4, %v1445
      %v1447 = vrot.slane %v531, %v1446
      %v1448 = vmul.f32 %v1318, %v1447
      %v1449 = vmul.f32 %v1322, %v1447
      %v1450 = vmul.f32 %v1326, %v1447
      %v1451 = vmul.f32 %v1330, %v1447
      %v1452 = vmul.f32 %v1334, %v1447
      %v1453 = vmul.f32 %v1338, %v1447
      %v1454 = vmul.f32 %v1342, %v1447
      %v1455 = vmul.f32 %v1346, %v1447
      %v1456 = vmul.f32 %v1350, %v1447
      %v1457 = vmul.f32 %v1354, %v1447
      %v1458 = vmul.f32 %v1358, %v1447
      %v1459 = vmul.f32 %v1362, %v1447
      %v1460 = vmul.f32 %v1366, %v1447
      %v1461 = vmul.f32 %v1370, %v1447
      %v1462 = vmul.f32 %v1374, %v1447
      %v1463 = vmul.f32 %v1378, %v1447
      %v1464 = vmul.f32 %v1382, %v1447
      %v1465 = vmul.f32 %v1386, %v1447
      %v1466 = vmul.f32 %v1390, %v1447
      %v1467 = vmul.f32 %v1394, %v1447
      %v1468 = vmul.f32 %v1398, %v1447
      %v1469 = vmul.f32 %v1402, %v1447
      %v1470 = vmul.f32 %v1406, %v1447
      %v1471 = vmul.f32 %v1410, %v1447
      %v1472 = vmul.f32 %v1414, %v1447
      %v1473 = vmul.f32 %v1418, %v1447
      %v1474 = vmul.f32 %v1422, %v1447
      %v1475 = vmul.f32 %v1426, %v1447
      %v1476 = vmul.f32 %v1430, %v1447
      %v1477 = vmul.f32 %v1434, %v1447
      %v1478 = vmul.f32 %v1438, %v1447
      %v1479 = vmul.f32 %v1442, %v1447
      %v1480 = vadd.f32 %v1284, %v1448
      %v1481 = vadd.f32 %v1285, %v1449
      %v1482 = vadd.f32 %v1286, %v1450
      %v1483 = vadd.f32 %v1287, %v1451
      %v1484 = vadd.f32 %v1288, %v1452
      %v1485 = vadd.f32 %v1289, %v1453
      %v1486 = vadd.f32 %v1290, %v1454
      %v1487 = vadd.f32 %v1291, %v1455
      %v1488 = vadd.f32 %v1292, %v1456
      %v1489 = vadd.f32 %v1293, %v1457
      %v1490 = vadd.f32 %v1294, %v1458
      %v1491 = vadd.f32 %v1295, %v1459
      %v1492 = vadd.f32 %v1296, %v1460
      %v1493 = vadd.f32 %v1297, %v1461
      %v1494 = vadd.f32 %v1298, %v1462
      %v1495 = vadd.f32 %v1299, %v1463
      %v1496 = vadd.f32 %v1300, %v1464
      %v1497 = vadd.f32 %v1301, %v1465
      %v1498 = vadd.f32 %v1302, %v1466
      %v1499 = vadd.f32 %v1303, %v1467
      %v1500 = vadd.f32 %v1304, %v1468
      %v1501 = vadd.f32 %v1305, %v1469
      %v1502 = vadd.f32 %v1306, %v1470
      %v1503 = vadd.f32 %v1307, %v1471
      %v1504 = vadd.f32 %v1308, %v1472
      %v1505 = vadd.f32 %v1309, %v1473
      %v1506 = vadd.f32 %v1310, %v1474
      %v1507 = vadd.f32 %v1311, %v1475
      %v1508 = vadd.f32 %v1312, %v1476
      %v1509 = vadd.f32 %v1313, %v1477
      %v1510 = vadd.f32 %v1314, %v1478
      %v1511 = vadd.f32 %v1315, %v1479
      %1512 = vset.pattern.permute.xlu0 5
      %1513 = vperm.xlu0 %1512, %v499
      %v1514 = vpop.permute.xlu0 %1513
      %1516 = vset.pattern.permute.xlu0 5
      %1517 = vperm.xlu0 %1516, %v500
      %v1518 = vpop.permute.xlu0 %1517
      %1520 = vset.pattern.permute.xlu0 5
      %1521 = vperm.xlu0 %1520, %v501
      %v1522 = vpop.permute.xlu0 %1521
      %1524 = vset.pattern.permute.xlu0 5
      %1525 = vperm.xlu0 %1524, %v502
      %v1526 = vpop.permute.xlu0 %1525
      %1528 = vset.pattern.permute.xlu0 5
      %1529 = vperm.xlu0 %1528, %v503
      %v1530 = vpop.permute.xlu0 %1529
      %1532 = vset.pattern.permute.xlu0 5
      %1533 = vperm.xlu0 %1532, %v504
      %v1534 = vpop.permute.xlu0 %1533
      %1536 = vset.pattern.permute.xlu0 5
      %1537 = vperm.xlu0 %1536, %v505
      %v1538 = vpop.permute.xlu0 %1537
      %1540 = vset.pattern.permute.xlu0 5
      %1541 = vperm.xlu0 %1540, %v506
      %v1542 = vpop.permute.xlu0 %1541
      %1544 = vset.pattern.permute.xlu0 5
      %1545 = vperm.xlu0 %1544, %v507
      %v1546 = vpop.permute.xlu0 %1545
      %1548 = vset.pattern.permute.xlu0 5
      %1549 = vperm.xlu0 %1548, %v508
      %v1550 = vpop.permute.xlu0 %1549
      %1552 = vset.pattern.permute.xlu0 5
      %1553 = vperm.xlu0 %1552, %v509
      %v1554 = vpop.permute.xlu0 %1553
      %1556 = vset.pattern.permute.xlu0 5
      %1557 = vperm.xlu0 %1556, %v510
      %v1558 = vpop.permute.xlu0 %1557
      %1560 = vset.pattern.permute.xlu0 5
      %1561 = vperm.xlu0 %1560, %v511
      %v1562 = vpop.permute.xlu0 %1561
      %1564 = vset.pattern.permute.xlu0 5
      %1565 = vperm.xlu0 %1564, %v512
      %v1566 = vpop.permute.xlu0 %1565
      %1568 = vset.pattern.permute.xlu0 5
      %1569 = vperm.xlu0 %1568, %v513
      %v1570 = vpop.permute.xlu0 %1569
      %1572 = vset.pattern.permute.xlu0 5
      %1573 = vperm.xlu0 %1572, %v514
      %v1574 = vpop.permute.xlu0 %1573
      %1576 = vset.pattern.permute.xlu0 5
      %1577 = vperm.xlu0 %1576, %v515
      %v1578 = vpop.permute.xlu0 %1577
      %1580 = vset.pattern.permute.xlu0 5
      %1581 = vperm.xlu0 %1580, %v516
      %v1582 = vpop.permute.xlu0 %1581
      %1584 = vset.pattern.permute.xlu0 5
      %1585 = vperm.xlu0 %1584, %v517
      %v1586 = vpop.permute.xlu0 %1585
      %1588 = vset.pattern.permute.xlu0 5
      %1589 = vperm.xlu0 %1588, %v518
      %v1590 = vpop.permute.xlu0 %1589
      %1592 = vset.pattern.permute.xlu0 5
      %1593 = vperm.xlu0 %1592, %v519
      %v1594 = vpop.permute.xlu0 %1593
      %1596 = vset.pattern.permute.xlu0 5
      %1597 = vperm.xlu0 %1596, %v520
      %v1598 = vpop.permute.xlu0 %1597
      %1600 = vset.pattern.permute.xlu0 5
      %1601 = vperm.xlu0 %1600, %v521
      %v1602 = vpop.permute.xlu0 %1601
      %1604 = vset.pattern.permute.xlu0 5
      %1605 = vperm.xlu0 %1604, %v522
      %v1606 = vpop.permute.xlu0 %1605
      %1608 = vset.pattern.permute.xlu0 5
      %1609 = vperm.xlu0 %1608, %v523
      %v1610 = vpop.permute.xlu0 %1609
      %1612 = vset.pattern.permute.xlu0 5
      %1613 = vperm.xlu0 %1612, %v524
      %v1614 = vpop.permute.xlu0 %1613
      %1616 = vset.pattern.permute.xlu0 5
      %1617 = vperm.xlu0 %1616, %v525
      %v1618 = vpop.permute.xlu0 %1617
      %1620 = vset.pattern.permute.xlu0 5
      %1621 = vperm.xlu0 %1620, %v526
      %v1622 = vpop.permute.xlu0 %1621
      %1624 = vset.pattern.permute.xlu0 5
      %1625 = vperm.xlu0 %1624, %v527
      %v1626 = vpop.permute.xlu0 %1625
      %1628 = vset.pattern.permute.xlu0 5
      %1629 = vperm.xlu0 %1628, %v528
      %v1630 = vpop.permute.xlu0 %1629
      %1632 = vset.pattern.permute.xlu0 5
      %1633 = vperm.xlu0 %1632, %v529
      %v1634 = vpop.permute.xlu0 %1633
      %1636 = vset.pattern.permute.xlu0 5
      %1637 = vperm.xlu0 %1636, %v530
      %v1638 = vpop.permute.xlu0 %1637
      %v1640 = vlaneseq
      %v1641 = vshrl.u32 %v1640, 7
      %v1642 = vsub.s32 5, %v1641
      %v1643 = vrot.slane %v531, %v1642
      %v1644 = vmul.f32 %v1514, %v1643
      %v1645 = vmul.f32 %v1518, %v1643
      %v1646 = vmul.f32 %v1522, %v1643
      %v1647 = vmul.f32 %v1526, %v1643
      %v1648 = vmul.f32 %v1530, %v1643
      %v1649 = vmul.f32 %v1534, %v1643
      %v1650 = vmul.f32 %v1538, %v1643
      %v1651 = vmul.f32 %v1542, %v1643
      %v1652 = vmul.f32 %v1546, %v1643
      %v1653 = vmul.f32 %v1550, %v1643
      %v1654 = vmul.f32 %v1554, %v1643
      %v1655 = vmul.f32 %v1558, %v1643
      %v1656 = vmul.f32 %v1562, %v1643
      %v1657 = vmul.f32 %v1566, %v1643
      %v1658 = vmul.f32 %v1570, %v1643
      %v1659 = vmul.f32 %v1574, %v1643
      %v1660 = vmul.f32 %v1578, %v1643
      %v1661 = vmul.f32 %v1582, %v1643
      %v1662 = vmul.f32 %v1586, %v1643
      %v1663 = vmul.f32 %v1590, %v1643
      %v1664 = vmul.f32 %v1594, %v1643
      %v1665 = vmul.f32 %v1598, %v1643
      %v1666 = vmul.f32 %v1602, %v1643
      %v1667 = vmul.f32 %v1606, %v1643
      %v1668 = vmul.f32 %v1610, %v1643
      %v1669 = vmul.f32 %v1614, %v1643
      %v1670 = vmul.f32 %v1618, %v1643
      %v1671 = vmul.f32 %v1622, %v1643
      %v1672 = vmul.f32 %v1626, %v1643
      %v1673 = vmul.f32 %v1630, %v1643
      %v1674 = vmul.f32 %v1634, %v1643
      %v1675 = vmul.f32 %v1638, %v1643
      %v1676 = vadd.f32 %v1480, %v1644
      %v1677 = vadd.f32 %v1481, %v1645
      %v1678 = vadd.f32 %v1482, %v1646
      %v1679 = vadd.f32 %v1483, %v1647
      %v1680 = vadd.f32 %v1484, %v1648
      %v1681 = vadd.f32 %v1485, %v1649
      %v1682 = vadd.f32 %v1486, %v1650
      %v1683 = vadd.f32 %v1487, %v1651
      %v1684 = vadd.f32 %v1488, %v1652
      %v1685 = vadd.f32 %v1489, %v1653
      %v1686 = vadd.f32 %v1490, %v1654
      %v1687 = vadd.f32 %v1491, %v1655
      %v1688 = vadd.f32 %v1492, %v1656
      %v1689 = vadd.f32 %v1493, %v1657
      %v1690 = vadd.f32 %v1494, %v1658
      %v1691 = vadd.f32 %v1495, %v1659
      %v1692 = vadd.f32 %v1496, %v1660
      %v1693 = vadd.f32 %v1497, %v1661
      %v1694 = vadd.f32 %v1498, %v1662
      %v1695 = vadd.f32 %v1499, %v1663
      %v1696 = vadd.f32 %v1500, %v1664
      %v1697 = vadd.f32 %v1501, %v1665
      %v1698 = vadd.f32 %v1502, %v1666
      %v1699 = vadd.f32 %v1503, %v1667
      %v1700 = vadd.f32 %v1504, %v1668
      %v1701 = vadd.f32 %v1505, %v1669
      %v1702 = vadd.f32 %v1506, %v1670
      %v1703 = vadd.f32 %v1507, %v1671
      %v1704 = vadd.f32 %v1508, %v1672
      %v1705 = vadd.f32 %v1509, %v1673
      %v1706 = vadd.f32 %v1510, %v1674
      %v1707 = vadd.f32 %v1511, %v1675
      %v1708 = vlaneseq
      %v1709 = vand.u32 %v1708, 127
      %vm1710 = vcmp.lt.s32.totalorder %v1709, 6
      %v1711 = vld [vmem:[%s2] sm:$0x1]
      %v1713 = vlaneseq
      %v1714 = vshrl.u32 %v1713, 7
      %v1715 = vsub.s32 0, %v1714
      %v1716 = vrot.slane %v1711, %v1715
      %v1718 = vadd.f32 %v1676, %v1716
      %v1719 = vadd.f32 %v1677, %v1716
      %v1720 = vadd.f32 %v1678, %v1716
      %v1721 = vadd.f32 %v1679, %v1716
      %v1722 = vadd.f32 %v1680, %v1716
      %v1723 = vadd.f32 %v1681, %v1716
      %v1724 = vadd.f32 %v1682, %v1716
      %v1725 = vadd.f32 %v1683, %v1716
      %v1726 = vadd.f32 %v1684, %v1716
      %v1727 = vadd.f32 %v1685, %v1716
      %v1728 = vadd.f32 %v1686, %v1716
      %v1729 = vadd.f32 %v1687, %v1716
      %v1730 = vadd.f32 %v1688, %v1716
      %v1731 = vadd.f32 %v1689, %v1716
      %v1732 = vadd.f32 %v1690, %v1716
      %v1733 = vadd.f32 %v1691, %v1716
      %v1734 = vadd.f32 %v1692, %v1716
      %v1735 = vadd.f32 %v1693, %v1716
      %v1736 = vadd.f32 %v1694, %v1716
      %v1737 = vadd.f32 %v1695, %v1716
      %v1738 = vadd.f32 %v1696, %v1716
      %v1739 = vadd.f32 %v1697, %v1716
      %v1740 = vadd.f32 %v1698, %v1716
      %v1741 = vadd.f32 %v1699, %v1716
      %v1742 = vadd.f32 %v1700, %v1716
      %v1743 = vadd.f32 %v1701, %v1716
      %v1744 = vadd.f32 %v1702, %v1716
      %v1745 = vadd.f32 %v1703, %v1716
      %v1746 = vadd.f32 %v1704, %v1716
      %v1747 = vadd.f32 %v1705, %v1716
      %v1748 = vadd.f32 %v1706, %v1716
      %v1749 = vadd.f32 %v1707, %v1716
      %v1750 = vand.u32 2147483647, %v1718
      %vm1751 = vcmp.le.f32.partialorder %v1750, 0.7853982
      %vm1752 = vcmp.lt.s32.totalorder %v1718, 0
      %v1753 = vand.u32 %v1718, 2139095040
      %v1754 = vshrl.u32 %v1753, 23
      %v1755 = vsub.s32 %v1754, 127
      %v1756 = vand.u32 2147483647, %v1718
      %v1757 = vand.u32 %v1756, 8388607
      %v1758 = vor.u32 %v1757, 8388608
      %v1759 = vsub.s32 0, %v1758
      %v1760 = vadd.s32 %v1755, 1
      %vm1761 = vcmp.gt.s32.totalorder %v1760, 0
      %v1762 = vsel %vm1761, %v1760, 0
      %v1763 = vshrl.u32 %v1762, 5
      %v1764 = vand.u32 %v1762, 31
      %v1765 = vsub.s32 32, %v1764
      %v1766 = vshrl.u32 683565275, %v1765
      %v1767 = vshll.u32 683565275, %v1764
      %v1768 = vshrl.u32 2475754826, %v1765
      %v1769 = vor.u32 %v1767, %v1768
      %v1770 = vshll.u32 2475754826, %v1764
      %v1771 = vshrl.u32 2131351028, %v1765
      %v1772 = vor.u32 %v1770, %v1771
      %v1773 = vshll.u32 2131351028, %v1764
      %v1774 = vshrl.u32 2102212464, %v1765
      %v1775 = vor.u32 %v1773, %v1774
      %v1776 = vshll.u32 2102212464, %v1764
      %v1777 = vshrl.u32 920167782, %v1765
      %v1778 = vor.u32 %v1776, %v1777
      %v1779 = vshll.u32 920167782, %v1764
      %v1780 = vshrl.u32 1326507024, %v1765
      %v1781 = vor.u32 %v1779, %v1780
      %vm1782 = vcmp.lt.s32.totalorder %v1763, 1
      %vm1783 = vcmp.lt.s32.totalorder %v1763, 2
      %vm1784 = vcmp.lt.s32.totalorder %v1763, 3
      %vm1785 = vcmp.lt.s32.totalorder %v1763, 4
      %v1786 = vsel %vm1782, %v1766, %v1769
      %v1787 = vsel %vm1785, %v1775, 2102212464
      %v1788 = vsel %vm1784, %v1772, %v1787
      %v1789 = vsel %vm1783, %v1786, %v1788
      %v1790 = vsel %vm1782, %v1769, %v1772
      %v1791 = vsel %vm1785, %v1778, 920167782
      %v1792 = vsel %vm1784, %v1775, %v1791
      %v1793 = vsel %vm1783, %v1790, %v1792
      %v1794 = vsel %vm1782, %v1772, %v1775
      %v1795 = vsel %vm1785, %v1781, 1326507024
      %v1796 = vsel %vm1784, %v1778, %v1795
      %v1797 = vsel %vm1783, %v1794, %v1796
      %v1798 = vshll.u32 %v1758, 8
      %v1799 = vmul.u32.u64.compose %v1798, %v1797
      %v1800 = vextract.low.u32 %v1799
      %v1801 = vextract.high.u32 %v1799
      %v1802 = vmul.u32.u64.compose %v1798, %v1793
      %v1803 = vextract.low.u32 %v1802
      %v1804 = vextract.high.u32 %v1802
      %v1805 = vmul.u32 %v1798, %v1789
      %v1806 = vadd.s32 %v1801, %v1803
      %vm1807 = vc.u32 %v1801, %v1803
      %v1808 = vadd.s32 %v1804, 1
      %v1809 = vsel %vm1807, %v1808, %v1804
      %v1810 = vadd.s32 %v1805, %v1809
      %v1811 = vadd.s32 %v1810, 536870912
      %v1812 = vshrl.u32 %v1811, 30
      %v1813 = vshll.u32 %v1812, 30
      %v1814 = vsub.s32 %v1810, %v1813
      %vm1815 = vcmp.lt.s32.totalorder %v1814, 0
      %v1816 = vsub.s32 0, %v1814
      %v1817 = vsel %vm1815, %v1816, %v1814
      %v1818 = vclz %v1817
      %v1819 = vsub.s32 %v1818, 2
      %vm1820 = vcmp.gt.s32.totalorder 0, %v1819
      %v1821 = vsel %vm1820, 0, %v1819
      %v1822 = vsub.s32 32, %v1821
      %v1823 = vshll.u32 %v1814, %v1821
      %v1824 = vshrl.u32 %v1806, %v1822
      %v1825 = vor.u32 %v1823, %v1824
      %v1826 = vsub.s32 4294967266, %v1821
      %v1827 = vadd.s32 %v1826, 127
      %v1828 = vshll.u32 %v1827, 23
      %v1829 = vor.u32 4788187, %v1828
      %v1830 = vand.u32 2147483647, %v1829
      %v1832 = vcvt.s32.f32 %v1825
      %v1833 = vmul.f32 %v1832, %v1830
      %v1834 = vxor.u32 %v1833, 2147483648
      %v1835 = vsel %vm1752, %v1834, %v1833
      %v1836 = vsub.s32 4, %v1812
      %v1837 = vsel %vm1752, %v1836, %v1812
      %v1838 = vsel %vm1751, %v1718, %v1835
      %v1839 = vsel %vm1751, 0, %v1837
      %v1840 = vcosq.f32.pop %v1838
      %v1841 = vsinq.f32.pop %v1838
      %vm1842 = vweird.f32 %v1718
      %v1843 = vadd.s32 %v1839, 3
      %v1844 = vand.u32 %v1843, 3
      %vm1845 = vcmp.lt.s32.totalorder %v1844, 2
      %vm1846 = vcmp.eq.s32.totalorder %v1844, 0
      %v1847 = vxor.u32 %v1841, 2147483648
      %v1848 = vsel %vm1846, %v1840, %v1847
      %vm1849 = vcmp.eq.s32.totalorder %v1844, 2
      %v1850 = vxor.u32 %v1840, 2147483648
      %v1851 = vsel %vm1849, %v1850, %v1841
      %v1852 = vsel %vm1845, %v1848, %v1851
      %v1853 = vsel %vm1842, nan, %v1852
      %v1854 = vand.u32 2147483647, %v1719
      %vm1855 = vcmp.le.f32.partialorder %v1854, 0.7853982
      %vm1856 = vcmp.lt.s32.totalorder %v1719, 0
      %v1857 = vand.u32 %v1719, 2139095040
      %v1858 = vshrl.u32 %v1857, 23
      %v1859 = vsub.s32 %v1858, 127
      %v1860 = vand.u32 2147483647, %v1719
      %v1861 = vand.u32 %v1860, 8388607
      %v1862 = vor.u32 %v1861, 8388608
      %v1863 = vsub.s32 0, %v1862
      %v1864 = vadd.s32 %v1859, 1
      %vm1865 = vcmp.gt.s32.totalorder %v1864, 0
      %v1866 = vsel %vm1865, %v1864, 0
      %v1867 = vshrl.u32 %v1866, 5
      %v1868 = vand.u32 %v1866, 31
      %v1869 = vsub.s32 32, %v1868
      %v1870 = vshrl.u32 683565275, %v1869
      %v1871 = vshll.u32 683565275, %v1868
      %v1872 = vshrl.u32 2475754826, %v1869
      %v1873 = vor.u32 %v1871, %v1872
      %v1874 = vshll.u32 2475754826, %v1868
      %v1875 = vshrl.u32 2131351028, %v1869
      %v1876 = vor.u32 %v1874, %v1875
      %v1877 = vshll.u32 2131351028, %v1868
      %v1878 = vshrl.u32 2102212464, %v1869
      %v1879 = vor.u32 %v1877, %v1878
      %v1880 = vshll.u32 2102212464, %v1868
      %v1881 = vshrl.u32 920167782, %v1869
      %v1882 = vor.u32 %v1880, %v1881
      %v1883 = vshll.u32 920167782, %v1868
      %v1884 = vshrl.u32 1326507024, %v1869
      %v1885 = vor.u32 %v1883, %v1884
      %vm1886 = vcmp.lt.s32.totalorder %v1867, 1
      %vm1887 = vcmp.lt.s32.totalorder %v1867, 2
      %vm1888 = vcmp.lt.s32.totalorder %v1867, 3
      %vm1889 = vcmp.lt.s32.totalorder %v1867, 4
      %v1890 = vsel %vm1886, %v1870, %v1873
      %v1891 = vsel %vm1889, %v1879, 2102212464
      %v1892 = vsel %vm1888, %v1876, %v1891
      %v1893 = vsel %vm1887, %v1890, %v1892
      %v1894 = vsel %vm1886, %v1873, %v1876
      %v1895 = vsel %vm1889, %v1882, 920167782
      %v1896 = vsel %vm1888, %v1879, %v1895
      %v1897 = vsel %vm1887, %v1894, %v1896
      %v1898 = vsel %vm1886, %v1876, %v1879
      %v1899 = vsel %vm1889, %v1885, 1326507024
      %v1900 = vsel %vm1888, %v1882, %v1899
      %v1901 = vsel %vm1887, %v1898, %v1900
      %v1902 = vshll.u32 %v1862, 8
      %v1903 = vmul.u32.u64.compose %v1902, %v1901
      %v1904 = vextract.low.u32 %v1903
      %v1905 = vextract.high.u32 %v1903
      %v1906 = vmul.u32.u64.compose %v1902, %v1897
      %v1907 = vextract.low.u32 %v1906
      %v1908 = vextract.high.u32 %v1906
      %v1909 = vmul.u32 %v1902, %v1893
      %v1910 = vadd.s32 %v1905, %v1907
      %vm1911 = vc.u32 %v1905, %v1907
      %v1912 = vadd.s32 %v1908, 1
      %v1913 = vsel %vm1911, %v1912, %v1908
      %v1914 = vadd.s32 %v1909, %v1913
      %v1915 = vadd.s32 %v1914, 536870912
      %v1916 = vshrl.u32 %v1915, 30
      %v1917 = vshll.u32 %v1916, 30
      %v1918 = vsub.s32 %v1914, %v1917
      %vm1919 = vcmp.lt.s32.totalorder %v1918, 0
      %v1920 = vsub.s32 0, %v1918
      %v1921 = vsel %vm1919, %v1920, %v1918
      %v1922 = vclz %v1921
      %v1923 = vsub.s32 %v1922, 2
      %vm1924 = vcmp.gt.s32.totalorder 0, %v1923
      %v1925 = vsel %vm1924, 0, %v1923
      %v1926 = vsub.s32 32, %v1925
      %v1927 = vshll.u32 %v1918, %v1925
      %v1928 = vshrl.u32 %v1910, %v1926
      %v1929 = vor.u32 %v1927, %v1928
      %v1930 = vsub.s32 4294967266, %v1925
      %v1931 = vadd.s32 %v1930, 127
      %v1932 = vshll.u32 %v1931, 23
      %v1933 = vor.u32 4788187, %v1932
      %v1934 = vand.u32 2147483647, %v1933
      %v1936 = vcvt.s32.f32 %v1929
      %v1937 = vmul.f32 %v1936, %v1934
      %v1938 = vxor.u32 %v1937, 2147483648
      %v1939 = vsel %vm1856, %v1938, %v1937
      %v1940 = vsub.s32 4, %v1916
      %v1941 = vsel %vm1856, %v1940, %v1916
      %v1942 = vsel %vm1855, %v1719, %v1939
      %v1943 = vsel %vm1855, 0, %v1941
      %v1944 = vcosq.f32.pop %v1942
      %v1945 = vsinq.f32.pop %v1942
      %vm1946 = vweird.f32 %v1719
      %v1947 = vadd.s32 %v1943, 3
      %v1948 = vand.u32 %v1947, 3
      %vm1949 = vcmp.lt.s32.totalorder %v1948, 2
      %vm1950 = vcmp.eq.s32.totalorder %v1948, 0
      %v1951 = vxor.u32 %v1945, 2147483648
      %v1952 = vsel %vm1950, %v1944, %v1951
      %vm1953 = vcmp.eq.s32.totalorder %v1948, 2
      %v1954 = vxor.u32 %v1944, 2147483648
      %v1955 = vsel %vm1953, %v1954, %v1945
      %v1956 = vsel %vm1949, %v1952, %v1955
      %v1957 = vsel %vm1946, nan, %v1956
      %v1958 = vand.u32 2147483647, %v1720
      %vm1959 = vcmp.le.f32.partialorder %v1958, 0.7853982
      %vm1960 = vcmp.lt.s32.totalorder %v1720, 0
      %v1961 = vand.u32 %v1720, 2139095040
      %v1962 = vshrl.u32 %v1961, 23
      %v1963 = vsub.s32 %v1962, 127
      %v1964 = vand.u32 2147483647, %v1720
      %v1965 = vand.u32 %v1964, 8388607
      %v1966 = vor.u32 %v1965, 8388608
      %v1967 = vsub.s32 0, %v1966
      %v1968 = vadd.s32 %v1963, 1
      %vm1969 = vcmp.gt.s32.totalorder %v1968, 0
      %v1970 = vsel %vm1969, %v1968, 0
      %v1971 = vshrl.u32 %v1970, 5
      %v1972 = vand.u32 %v1970, 31
      %v1973 = vsub.s32 32, %v1972
      %v1974 = vshrl.u32 683565275, %v1973
      %v1975 = vshll.u32 683565275, %v1972
      %v1976 = vshrl.u32 2475754826, %v1973
      %v1977 = vor.u32 %v1975, %v1976
      %v1978 = vshll.u32 2475754826, %v1972
      %v1979 = vshrl.u32 2131351028, %v1973
      %v1980 = vor.u32 %v1978, %v1979
      %v1981 = vshll.u32 2131351028, %v1972
      %v1982 = vshrl.u32 2102212464, %v1973
      %v1983 = vor.u32 %v1981, %v1982
      %v1984 = vshll.u32 2102212464, %v1972
      %v1985 = vshrl.u32 920167782, %v1973
      %v1986 = vor.u32 %v1984, %v1985
      %v1987 = vshll.u32 920167782, %v1972
      %v1988 = vshrl.u32 1326507024, %v1973
      %v1989 = vor.u32 %v1987, %v1988
      %vm1990 = vcmp.lt.s32.totalorder %v1971, 1
      %vm1991 = vcmp.lt.s32.totalorder %v1971, 2
      %vm1992 = vcmp.lt.s32.totalorder %v1971, 3
      %vm1993 = vcmp.lt.s32.totalorder %v1971, 4
      %v1994 = vsel %vm1990, %v1974, %v1977
      %v1995 = vsel %vm1993, %v1983, 2102212464
      %v1996 = vsel %vm1992, %v1980, %v1995
      %v1997 = vsel %vm1991, %v1994, %v1996
      %v1998 = vsel %vm1990, %v1977, %v1980
      %v1999 = vsel %vm1993, %v1986, 920167782
      %v2000 = vsel %vm1992, %v1983, %v1999
      %v2001 = vsel %vm1991, %v1998, %v2000
      %v2002 = vsel %vm1990, %v1980, %v1983
      %v2003 = vsel %vm1993, %v1989, 1326507024
      %v2004 = vsel %vm1992, %v1986, %v2003
      %v2005 = vsel %vm1991, %v2002, %v2004
      %v2006 = vshll.u32 %v1966, 8
      %v2007 = vmul.u32.u64.compose %v2006, %v2005
      %v2008 = vextract.low.u32 %v2007
      %v2009 = vextract.high.u32 %v2007
      %v2010 = vmul.u32.u64.compose %v2006, %v2001
      %v2011 = vextract.low.u32 %v2010
      %v2012 = vextract.high.u32 %v2010
      %v2013 = vmul.u32 %v2006, %v1997
      %v2014 = vadd.s32 %v2009, %v2011
      %vm2015 = vc.u32 %v2009, %v2011
      %v2016 = vadd.s32 %v2012, 1
      %v2017 = vsel %vm2015, %v2016, %v2012
      %v2018 = vadd.s32 %v2013, %v2017
      %v2019 = vadd.s32 %v2018, 536870912
      %v2020 = vshrl.u32 %v2019, 30
      %v2021 = vshll.u32 %v2020, 30
      %v2022 = vsub.s32 %v2018, %v2021
      %vm2023 = vcmp.lt.s32.totalorder %v2022, 0
      %v2024 = vsub.s32 0, %v2022
      %v2025 = vsel %vm2023, %v2024, %v2022
      %v2026 = vclz %v2025
      %v2027 = vsub.s32 %v2026, 2
      %vm2028 = vcmp.gt.s32.totalorder 0, %v2027
      %v2029 = vsel %vm2028, 0, %v2027
      %v2030 = vsub.s32 32, %v2029
      %v2031 = vshll.u32 %v2022, %v2029
      %v2032 = vshrl.u32 %v2014, %v2030
      %v2033 = vor.u32 %v2031, %v2032
      %v2034 = vsub.s32 4294967266, %v2029
      %v2035 = vadd.s32 %v2034, 127
      %v2036 = vshll.u32 %v2035, 23
      %v2037 = vor.u32 4788187, %v2036
      %v2038 = vand.u32 2147483647, %v2037
      %v2040 = vcvt.s32.f32 %v2033
      %v2041 = vmul.f32 %v2040, %v2038
      %v2042 = vxor.u32 %v2041, 2147483648
      %v2043 = vsel %vm1960, %v2042, %v2041
      %v2044 = vsub.s32 4, %v2020
      %v2045 = vsel %vm1960, %v2044, %v2020
      %v2046 = vsel %vm1959, %v1720, %v2043
      %v2047 = vsel %vm1959, 0, %v2045
      %v2048 = vcosq.f32.pop %v2046
      %v2049 = vsinq.f32.pop %v2046
      %vm2050 = vweird.f32 %v1720
      %v2051 = vadd.s32 %v2047, 3
      %v2052 = vand.u32 %v2051, 3
      %vm2053 = vcmp.lt.s32.totalorder %v2052, 2
      %vm2054 = vcmp.eq.s32.totalorder %v2052, 0
      %v2055 = vxor.u32 %v2049, 2147483648
      %v2056 = vsel %vm2054, %v2048, %v2055
      %vm2057 = vcmp.eq.s32.totalorder %v2052, 2
      %v2058 = vxor.u32 %v2048, 2147483648
      %v2059 = vsel %vm2057, %v2058, %v2049
      %v2060 = vsel %vm2053, %v2056, %v2059
      %v2061 = vsel %vm2050, nan, %v2060
      %v2062 = vand.u32 2147483647, %v1721
      %vm2063 = vcmp.le.f32.partialorder %v2062, 0.7853982
      %vm2064 = vcmp.lt.s32.totalorder %v1721, 0
      %v2065 = vand.u32 %v1721, 2139095040
      %v2066 = vshrl.u32 %v2065, 23
      %v2067 = vsub.s32 %v2066, 127
      %v2068 = vand.u32 2147483647, %v1721
      %v2069 = vand.u32 %v2068, 8388607
      %v2070 = vor.u32 %v2069, 8388608
      %v2071 = vsub.s32 0, %v2070
      %v2072 = vadd.s32 %v2067, 1
      %vm2073 = vcmp.gt.s32.totalorder %v2072, 0
      %v2074 = vsel %vm2073, %v2072, 0
      %v2075 = vshrl.u32 %v2074, 5
      %v2076 = vand.u32 %v2074, 31
      %v2077 = vsub.s32 32, %v2076
      %v2078 = vshrl.u32 683565275, %v2077
      %v2079 = vshll.u32 683565275, %v2076
      %v2080 = vshrl.u32 2475754826, %v2077
      %v2081 = vor.u32 %v2079, %v2080
      %v2082 = vshll.u32 2475754826, %v2076
      %v2083 = vshrl.u32 2131351028, %v2077
      %v2084 = vor.u32 %v2082, %v2083
      %v2085 = vshll.u32 2131351028, %v2076
      %v2086 = vshrl.u32 2102212464, %v2077
      %v2087 = vor.u32 %v2085, %v2086
      %v2088 = vshll.u32 2102212464, %v2076
      %v2089 = vshrl.u32 920167782, %v2077
      %v2090 = vor.u32 %v2088, %v2089
      %v2091 = vshll.u32 920167782, %v2076
      %v2092 = vshrl.u32 1326507024, %v2077
      %v2093 = vor.u32 %v2091, %v2092
      %vm2094 = vcmp.lt.s32.totalorder %v2075, 1
      %vm2095 = vcmp.lt.s32.totalorder %v2075, 2
      %vm2096 = vcmp.lt.s32.totalorder %v2075, 3
      %vm2097 = vcmp.lt.s32.totalorder %v2075, 4
      %v2098 = vsel %vm2094, %v2078, %v2081
      %v2099 = vsel %vm2097, %v2087, 2102212464
      %v2100 = vsel %vm2096, %v2084, %v2099
      %v2101 = vsel %vm2095, %v2098, %v2100
      %v2102 = vsel %vm2094, %v2081, %v2084
      %v2103 = vsel %vm2097, %v2090, 920167782
      %v2104 = vsel %vm2096, %v2087, %v2103
      %v2105 = vsel %vm2095, %v2102, %v2104
      %v2106 = vsel %vm2094, %v2084, %v2087
      %v2107 = vsel %vm2097, %v2093, 1326507024
      %v2108 = vsel %vm2096, %v2090, %v2107
      %v2109 = vsel %vm2095, %v2106, %v2108
      %v2110 = vshll.u32 %v2070, 8
      %v2111 = vmul.u32.u64.compose %v2110, %v2109
      %v2112 = vextract.low.u32 %v2111
      %v2113 = vextract.high.u32 %v2111
      %v2114 = vmul.u32.u64.compose %v2110, %v2105
      %v2115 = vextract.low.u32 %v2114
      %v2116 = vextract.high.u32 %v2114
      %v2117 = vmul.u32 %v2110, %v2101
      %v2118 = vadd.s32 %v2113, %v2115
      %vm2119 = vc.u32 %v2113, %v2115
      %v2120 = vadd.s32 %v2116, 1
      %v2121 = vsel %vm2119, %v2120, %v2116
      %v2122 = vadd.s32 %v2117, %v2121
      %v2123 = vadd.s32 %v2122, 536870912
      %v2124 = vshrl.u32 %v2123, 30
      %v2125 = vshll.u32 %v2124, 30
      %v2126 = vsub.s32 %v2122, %v2125
      %vm2127 = vcmp.lt.s32.totalorder %v2126, 0
      %v2128 = vsub.s32 0, %v2126
      %v2129 = vsel %vm2127, %v2128, %v2126
      %v2130 = vclz %v2129
      %v2131 = vsub.s32 %v2130, 2
      %vm2132 = vcmp.gt.s32.totalorder 0, %v2131
      %v2133 = vsel %vm2132, 0, %v2131
      %v2134 = vsub.s32 32, %v2133
      %v2135 = vshll.u32 %v2126, %v2133
      %v2136 = vshrl.u32 %v2118, %v2134
      %v2137 = vor.u32 %v2135, %v2136
      %v2138 = vsub.s32 4294967266, %v2133
      %v2139 = vadd.s32 %v2138, 127
      %v2140 = vshll.u32 %v2139, 23
      %v2141 = vor.u32 4788187, %v2140
      %v2142 = vand.u32 2147483647, %v2141
      %v2144 = vcvt.s32.f32 %v2137
      %v2145 = vmul.f32 %v2144, %v2142
      %v2146 = vxor.u32 %v2145, 2147483648
      %v2147 = vsel %vm2064, %v2146, %v2145
      %v2148 = vsub.s32 4, %v2124
      %v2149 = vsel %vm2064, %v2148, %v2124
      %v2150 = vsel %vm2063, %v1721, %v2147
      %v2151 = vsel %vm2063, 0, %v2149
      %v2152 = vcosq.f32.pop %v2150
      %v2153 = vsinq.f32.pop %v2150
      %vm2154 = vweird.f32 %v1721
      %v2155 = vadd.s32 %v2151, 3
      %v2156 = vand.u32 %v2155, 3
      %vm2157 = vcmp.lt.s32.totalorder %v2156, 2
      %vm2158 = vcmp.eq.s32.totalorder %v2156, 0
      %v2159 = vxor.u32 %v2153, 2147483648
      %v2160 = vsel %vm2158, %v2152, %v2159
      %vm2161 = vcmp.eq.s32.totalorder %v2156, 2
      %v2162 = vxor.u32 %v2152, 2147483648
      %v2163 = vsel %vm2161, %v2162, %v2153
      %v2164 = vsel %vm2157, %v2160, %v2163
      %v2165 = vsel %vm2154, nan, %v2164
      %v2166 = vand.u32 2147483647, %v1722
      %vm2167 = vcmp.le.f32.partialorder %v2166, 0.7853982
      %vm2168 = vcmp.lt.s32.totalorder %v1722, 0
      %v2169 = vand.u32 %v1722, 2139095040
      %v2170 = vshrl.u32 %v2169, 23
      %v2171 = vsub.s32 %v2170, 127
      %v2172 = vand.u32 2147483647, %v1722
      %v2173 = vand.u32 %v2172, 8388607
      %v2174 = vor.u32 %v2173, 8388608
      %v2175 = vsub.s32 0, %v2174
      %v2176 = vadd.s32 %v2171, 1
      %vm2177 = vcmp.gt.s32.totalorder %v2176, 0
      %v2178 = vsel %vm2177, %v2176, 0
      %v2179 = vshrl.u32 %v2178, 5
      %v2180 = vand.u32 %v2178, 31
      %v2181 = vsub.s32 32, %v2180
      %v2182 = vshrl.u32 683565275, %v2181
      %v2183 = vshll.u32 683565275, %v2180
      %v2184 = vshrl.u32 2475754826, %v2181
      %v2185 = vor.u32 %v2183, %v2184
      %v2186 = vshll.u32 2475754826, %v2180
      %v2187 = vshrl.u32 2131351028, %v2181
      %v2188 = vor.u32 %v2186, %v2187
      %v2189 = vshll.u32 2131351028, %v2180
      %v2190 = vshrl.u32 2102212464, %v2181
      %v2191 = vor.u32 %v2189, %v2190
      %v2192 = vshll.u32 2102212464, %v2180
      %v2193 = vshrl.u32 920167782, %v2181
      %v2194 = vor.u32 %v2192, %v2193
      %v2195 = vshll.u32 920167782, %v2180
      %v2196 = vshrl.u32 1326507024, %v2181
      %v2197 = vor.u32 %v2195, %v2196
      %vm2198 = vcmp.lt.s32.totalorder %v2179, 1
      %vm2199 = vcmp.lt.s32.totalorder %v2179, 2
      %vm2200 = vcmp.lt.s32.totalorder %v2179, 3
      %vm2201 = vcmp.lt.s32.totalorder %v2179, 4
      %v2202 = vsel %vm2198, %v2182, %v2185
      %v2203 = vsel %vm2201, %v2191, 2102212464
      %v2204 = vsel %vm2200, %v2188, %v2203
      %v2205 = vsel %vm2199, %v2202, %v2204
      %v2206 = vsel %vm2198, %v2185, %v2188
      %v2207 = vsel %vm2201, %v2194, 920167782
      %v2208 = vsel %vm2200, %v2191, %v2207
      %v2209 = vsel %vm2199, %v2206, %v2208
      %v2210 = vsel %vm2198, %v2188, %v2191
      %v2211 = vsel %vm2201, %v2197, 1326507024
      %v2212 = vsel %vm2200, %v2194, %v2211
      %v2213 = vsel %vm2199, %v2210, %v2212
      %v2214 = vshll.u32 %v2174, 8
      %v2215 = vmul.u32.u64.compose %v2214, %v2213
      %v2216 = vextract.low.u32 %v2215
      %v2217 = vextract.high.u32 %v2215
      %v2218 = vmul.u32.u64.compose %v2214, %v2209
      %v2219 = vextract.low.u32 %v2218
      %v2220 = vextract.high.u32 %v2218
      %v2221 = vmul.u32 %v2214, %v2205
      %v2222 = vadd.s32 %v2217, %v2219
      %vm2223 = vc.u32 %v2217, %v2219
      %v2224 = vadd.s32 %v2220, 1
      %v2225 = vsel %vm2223, %v2224, %v2220
      %v2226 = vadd.s32 %v2221, %v2225
      %v2227 = vadd.s32 %v2226, 536870912
      %v2228 = vshrl.u32 %v2227, 30
      %v2229 = vshll.u32 %v2228, 30
      %v2230 = vsub.s32 %v2226, %v2229
      %vm2231 = vcmp.lt.s32.totalorder %v2230, 0
      %v2232 = vsub.s32 0, %v2230
      %v2233 = vsel %vm2231, %v2232, %v2230
      %v2234 = vclz %v2233
      %v2235 = vsub.s32 %v2234, 2
      %vm2236 = vcmp.gt.s32.totalorder 0, %v2235
      %v2237 = vsel %vm2236, 0, %v2235
      %v2238 = vsub.s32 32, %v2237
      %v2239 = vshll.u32 %v2230, %v2237
      %v2240 = vshrl.u32 %v2222, %v2238
      %v2241 = vor.u32 %v2239, %v2240
      %v2242 = vsub.s32 4294967266, %v2237
      %v2243 = vadd.s32 %v2242, 127
      %v2244 = vshll.u32 %v2243, 23
      %v2245 = vor.u32 4788187, %v2244
      %v2246 = vand.u32 2147483647, %v2245
      %v2248 = vcvt.s32.f32 %v2241
      %v2249 = vmul.f32 %v2248, %v2246
      %v2250 = vxor.u32 %v2249, 2147483648
      %v2251 = vsel %vm2168, %v2250, %v2249
      %v2252 = vsub.s32 4, %v2228
      %v2253 = vsel %vm2168, %v2252, %v2228
      %v2254 = vsel %vm2167, %v1722, %v2251
      %v2255 = vsel %vm2167, 0, %v2253
      %v2256 = vcosq.f32.pop %v2254
      %v2257 = vsinq.f32.pop %v2254
      %vm2258 = vweird.f32 %v1722
      %v2259 = vadd.s32 %v2255, 3
      %v2260 = vand.u32 %v2259, 3
      %vm2261 = vcmp.lt.s32.totalorder %v2260, 2
      %vm2262 = vcmp.eq.s32.totalorder %v2260, 0
      %v2263 = vxor.u32 %v2257, 2147483648
      %v2264 = vsel %vm2262, %v2256, %v2263
      %vm2265 = vcmp.eq.s32.totalorder %v2260, 2
      %v2266 = vxor.u32 %v2256, 2147483648
      %v2267 = vsel %vm2265, %v2266, %v2257
      %v2268 = vsel %vm2261, %v2264, %v2267
      %v2269 = vsel %vm2258, nan, %v2268
      %v2270 = vand.u32 2147483647, %v1723
      %vm2271 = vcmp.le.f32.partialorder %v2270, 0.7853982
      %vm2272 = vcmp.lt.s32.totalorder %v1723, 0
      %v2273 = vand.u32 %v1723, 2139095040
      %v2274 = vshrl.u32 %v2273, 23
      %v2275 = vsub.s32 %v2274, 127
      %v2276 = vand.u32 2147483647, %v1723
      %v2277 = vand.u32 %v2276, 8388607
      %v2278 = vor.u32 %v2277, 8388608
      %v2279 = vsub.s32 0, %v2278
      %v2280 = vadd.s32 %v2275, 1
      %vm2281 = vcmp.gt.s32.totalorder %v2280, 0
      %v2282 = vsel %vm2281, %v2280, 0
      %v2283 = vshrl.u32 %v2282, 5
      %v2284 = vand.u32 %v2282, 31
      %v2285 = vsub.s32 32, %v2284
      %v2286 = vshrl.u32 683565275, %v2285
      %v2287 = vshll.u32 683565275, %v2284
      %v2288 = vshrl.u32 2475754826, %v2285
      %v2289 = vor.u32 %v2287, %v2288
      %v2290 = vshll.u32 2475754826, %v2284
      %v2291 = vshrl.u32 2131351028, %v2285
      %v2292 = vor.u32 %v2290, %v2291
      %v2293 = vshll.u32 2131351028, %v2284
      %v2294 = vshrl.u32 2102212464, %v2285
      %v2295 = vor.u32 %v2293, %v2294
      %v2296 = vshll.u32 2102212464, %v2284
      %v2297 = vshrl.u32 920167782, %v2285
      %v2298 = vor.u32 %v2296, %v2297
      %v2299 = vshll.u32 920167782, %v2284
      %v2300 = vshrl.u32 1326507024, %v2285
      %v2301 = vor.u32 %v2299, %v2300
      %vm2302 = vcmp.lt.s32.totalorder %v2283, 1
      %vm2303 = vcmp.lt.s32.totalorder %v2283, 2
      %vm2304 = vcmp.lt.s32.totalorder %v2283, 3
      %vm2305 = vcmp.lt.s32.totalorder %v2283, 4
      %v2306 = vsel %vm2302, %v2286, %v2289
      %v2307 = vsel %vm2305, %v2295, 2102212464
      %v2308 = vsel %vm2304, %v2292, %v2307
      %v2309 = vsel %vm2303, %v2306, %v2308
      %v2310 = vsel %vm2302, %v2289, %v2292
      %v2311 = vsel %vm2305, %v2298, 920167782
      %v2312 = vsel %vm2304, %v2295, %v2311
      %v2313 = vsel %vm2303, %v2310, %v2312
      %v2314 = vsel %vm2302, %v2292, %v2295
      %v2315 = vsel %vm2305, %v2301, 1326507024
      %v2316 = vsel %vm2304, %v2298, %v2315
      %v2317 = vsel %vm2303, %v2314, %v2316
      %v2318 = vshll.u32 %v2278, 8
      %v2319 = vmul.u32.u64.compose %v2318, %v2317
      %v2320 = vextract.low.u32 %v2319
      %v2321 = vextract.high.u32 %v2319
      %v2322 = vmul.u32.u64.compose %v2318, %v2313
      %v2323 = vextract.low.u32 %v2322
      %v2324 = vextract.high.u32 %v2322
      %v2325 = vmul.u32 %v2318, %v2309
      %v2326 = vadd.s32 %v2321, %v2323
      %vm2327 = vc.u32 %v2321, %v2323
      %v2328 = vadd.s32 %v2324, 1
      %v2329 = vsel %vm2327, %v2328, %v2324
      %v2330 = vadd.s32 %v2325, %v2329
      %v2331 = vadd.s32 %v2330, 536870912
      %v2332 = vshrl.u32 %v2331, 30
      %v2333 = vshll.u32 %v2332, 30
      %v2334 = vsub.s32 %v2330, %v2333
      %vm2335 = vcmp.lt.s32.totalorder %v2334, 0
      %v2336 = vsub.s32 0, %v2334
      %v2337 = vsel %vm2335, %v2336, %v2334
      %v2338 = vclz %v2337
      %v2339 = vsub.s32 %v2338, 2
      %vm2340 = vcmp.gt.s32.totalorder 0, %v2339
      %v2341 = vsel %vm2340, 0, %v2339
      %v2342 = vsub.s32 32, %v2341
      %v2343 = vshll.u32 %v2334, %v2341
      %v2344 = vshrl.u32 %v2326, %v2342
      %v2345 = vor.u32 %v2343, %v2344
      %v2346 = vsub.s32 4294967266, %v2341
      %v2347 = vadd.s32 %v2346, 127
      %v2348 = vshll.u32 %v2347, 23
      %v2349 = vor.u32 4788187, %v2348
      %v2350 = vand.u32 2147483647, %v2349
      %v2352 = vcvt.s32.f32 %v2345
      %v2353 = vmul.f32 %v2352, %v2350
      %v2354 = vxor.u32 %v2353, 2147483648
      %v2355 = vsel %vm2272, %v2354, %v2353
      %v2356 = vsub.s32 4, %v2332
      %v2357 = vsel %vm2272, %v2356, %v2332
      %v2358 = vsel %vm2271, %v1723, %v2355
      %v2359 = vsel %vm2271, 0, %v2357
      %v2360 = vcosq.f32.pop %v2358
      %v2361 = vsinq.f32.pop %v2358
      %vm2362 = vweird.f32 %v1723
      %v2363 = vadd.s32 %v2359, 3
      %v2364 = vand.u32 %v2363, 3
      %vm2365 = vcmp.lt.s32.totalorder %v2364, 2
      %vm2366 = vcmp.eq.s32.totalorder %v2364, 0
      %v2367 = vxor.u32 %v2361, 2147483648
      %v2368 = vsel %vm2366, %v2360, %v2367
      %vm2369 = vcmp.eq.s32.totalorder %v2364, 2
      %v2370 = vxor.u32 %v2360, 2147483648
      %v2371 = vsel %vm2369, %v2370, %v2361
      %v2372 = vsel %vm2365, %v2368, %v2371
      %v2373 = vsel %vm2362, nan, %v2372
      %v2374 = vand.u32 2147483647, %v1724
      %vm2375 = vcmp.le.f32.partialorder %v2374, 0.7853982
      %vm2376 = vcmp.lt.s32.totalorder %v1724, 0
      %v2377 = vand.u32 %v1724, 2139095040
      %v2378 = vshrl.u32 %v2377, 23
      %v2379 = vsub.s32 %v2378, 127
      %v2380 = vand.u32 2147483647, %v1724
      %v2381 = vand.u32 %v2380, 8388607
      %v2382 = vor.u32 %v2381, 8388608
      %v2383 = vsub.s32 0, %v2382
      %v2384 = vadd.s32 %v2379, 1
      %vm2385 = vcmp.gt.s32.totalorder %v2384, 0
      %v2386 = vsel %vm2385, %v2384, 0
      %v2387 = vshrl.u32 %v2386, 5
      %v2388 = vand.u32 %v2386, 31
      %v2389 = vsub.s32 32, %v2388
      %v2390 = vshrl.u32 683565275, %v2389
      %v2391 = vshll.u32 683565275, %v2388
      %v2392 = vshrl.u32 2475754826, %v2389
      %v2393 = vor.u32 %v2391, %v2392
      %v2394 = vshll.u32 2475754826, %v2388
      %v2395 = vshrl.u32 2131351028, %v2389
      %v2396 = vor.u32 %v2394, %v2395
      %v2397 = vshll.u32 2131351028, %v2388
      %v2398 = vshrl.u32 2102212464, %v2389
      %v2399 = vor.u32 %v2397, %v2398
      %v2400 = vshll.u32 2102212464, %v2388
      %v2401 = vshrl.u32 920167782, %v2389
      %v2402 = vor.u32 %v2400, %v2401
      %v2403 = vshll.u32 920167782, %v2388
      %v2404 = vshrl.u32 1326507024, %v2389
      %v2405 = vor.u32 %v2403, %v2404
      %vm2406 = vcmp.lt.s32.totalorder %v2387, 1
      %vm2407 = vcmp.lt.s32.totalorder %v2387, 2
      %vm2408 = vcmp.lt.s32.totalorder %v2387, 3
      %vm2409 = vcmp.lt.s32.totalorder %v2387, 4
      %v2410 = vsel %vm2406, %v2390, %v2393
      %v2411 = vsel %vm2409, %v2399, 2102212464
      %v2412 = vsel %vm2408, %v2396, %v2411
      %v2413 = vsel %vm2407, %v2410, %v2412
      %v2414 = vsel %vm2406, %v2393, %v2396
      %v2415 = vsel %vm2409, %v2402, 920167782
      %v2416 = vsel %vm2408, %v2399, %v2415
      %v2417 = vsel %vm2407, %v2414, %v2416
      %v2418 = vsel %vm2406, %v2396, %v2399
      %v2419 = vsel %vm2409, %v2405, 1326507024
      %v2420 = vsel %vm2408, %v2402, %v2419
      %v2421 = vsel %vm2407, %v2418, %v2420
      %v2422 = vshll.u32 %v2382, 8
      %v2423 = vmul.u32.u64.compose %v2422, %v2421
      %v2424 = vextract.low.u32 %v2423
      %v2425 = vextract.high.u32 %v2423
      %v2426 = vmul.u32.u64.compose %v2422, %v2417
      %v2427 = vextract.low.u32 %v2426
      %v2428 = vextract.high.u32 %v2426
      %v2429 = vmul.u32 %v2422, %v2413
      %v2430 = vadd.s32 %v2425, %v2427
      %vm2431 = vc.u32 %v2425, %v2427
      %v2432 = vadd.s32 %v2428, 1
      %v2433 = vsel %vm2431, %v2432, %v2428
      %v2434 = vadd.s32 %v2429, %v2433
      %v2435 = vadd.s32 %v2434, 536870912
      %v2436 = vshrl.u32 %v2435, 30
      %v2437 = vshll.u32 %v2436, 30
      %v2438 = vsub.s32 %v2434, %v2437
      %vm2439 = vcmp.lt.s32.totalorder %v2438, 0
      %v2440 = vsub.s32 0, %v2438
      %v2441 = vsel %vm2439, %v2440, %v2438
      %v2442 = vclz %v2441
      %v2443 = vsub.s32 %v2442, 2
      %vm2444 = vcmp.gt.s32.totalorder 0, %v2443
      %v2445 = vsel %vm2444, 0, %v2443
      %v2446 = vsub.s32 32, %v2445
      %v2447 = vshll.u32 %v2438, %v2445
      %v2448 = vshrl.u32 %v2430, %v2446
      %v2449 = vor.u32 %v2447, %v2448
      %v2450 = vsub.s32 4294967266, %v2445
      %v2451 = vadd.s32 %v2450, 127
      %v2452 = vshll.u32 %v2451, 23
      %v2453 = vor.u32 4788187, %v2452
      %v2454 = vand.u32 2147483647, %v2453
      %v2456 = vcvt.s32.f32 %v2449
      %v2457 = vmul.f32 %v2456, %v2454
      %v2458 = vxor.u32 %v2457, 2147483648
      %v2459 = vsel %vm2376, %v2458, %v2457
      %v2460 = vsub.s32 4, %v2436
      %v2461 = vsel %vm2376, %v2460, %v2436
      %v2462 = vsel %vm2375, %v1724, %v2459
      %v2463 = vsel %vm2375, 0, %v2461
      %v2464 = vcosq.f32.pop %v2462
      %v2465 = vsinq.f32.pop %v2462
      %vm2466 = vweird.f32 %v1724
      %v2467 = vadd.s32 %v2463, 3
      %v2468 = vand.u32 %v2467, 3
      %vm2469 = vcmp.lt.s32.totalorder %v2468, 2
      %vm2470 = vcmp.eq.s32.totalorder %v2468, 0
      %v2471 = vxor.u32 %v2465, 2147483648
      %v2472 = vsel %vm2470, %v2464, %v2471
      %vm2473 = vcmp.eq.s32.totalorder %v2468, 2
      %v2474 = vxor.u32 %v2464, 2147483648
      %v2475 = vsel %vm2473, %v2474, %v2465
      %v2476 = vsel %vm2469, %v2472, %v2475
      %v2477 = vsel %vm2466, nan, %v2476
      %v2478 = vand.u32 2147483647, %v1725
      %vm2479 = vcmp.le.f32.partialorder %v2478, 0.7853982
      %vm2480 = vcmp.lt.s32.totalorder %v1725, 0
      %v2481 = vand.u32 %v1725, 2139095040
      %v2482 = vshrl.u32 %v2481, 23
      %v2483 = vsub.s32 %v2482, 127
      %v2484 = vand.u32 2147483647, %v1725
      %v2485 = vand.u32 %v2484, 8388607
      %v2486 = vor.u32 %v2485, 8388608
      %v2487 = vsub.s32 0, %v2486
      %v2488 = vadd.s32 %v2483, 1
      %vm2489 = vcmp.gt.s32.totalorder %v2488, 0
      %v2490 = vsel %vm2489, %v2488, 0
      %v2491 = vshrl.u32 %v2490, 5
      %v2492 = vand.u32 %v2490, 31
      %v2493 = vsub.s32 32, %v2492
      %v2494 = vshrl.u32 683565275, %v2493
      %v2495 = vshll.u32 683565275, %v2492
      %v2496 = vshrl.u32 2475754826, %v2493
      %v2497 = vor.u32 %v2495, %v2496
      %v2498 = vshll.u32 2475754826, %v2492
      %v2499 = vshrl.u32 2131351028, %v2493
      %v2500 = vor.u32 %v2498, %v2499
      %v2501 = vshll.u32 2131351028, %v2492
      %v2502 = vshrl.u32 2102212464, %v2493
      %v2503 = vor.u32 %v2501, %v2502
      %v2504 = vshll.u32 2102212464, %v2492
      %v2505 = vshrl.u32 920167782, %v2493
      %v2506 = vor.u32 %v2504, %v2505
      %v2507 = vshll.u32 920167782, %v2492
      %v2508 = vshrl.u32 1326507024, %v2493
      %v2509 = vor.u32 %v2507, %v2508
      %vm2510 = vcmp.lt.s32.totalorder %v2491, 1
      %vm2511 = vcmp.lt.s32.totalorder %v2491, 2
      %vm2512 = vcmp.lt.s32.totalorder %v2491, 3
      %vm2513 = vcmp.lt.s32.totalorder %v2491, 4
      %v2514 = vsel %vm2510, %v2494, %v2497
      %v2515 = vsel %vm2513, %v2503, 2102212464
      %v2516 = vsel %vm2512, %v2500, %v2515
      %v2517 = vsel %vm2511, %v2514, %v2516
      %v2518 = vsel %vm2510, %v2497, %v2500
      %v2519 = vsel %vm2513, %v2506, 920167782
      %v2520 = vsel %vm2512, %v2503, %v2519
      %v2521 = vsel %vm2511, %v2518, %v2520
      %v2522 = vsel %vm2510, %v2500, %v2503
      %v2523 = vsel %vm2513, %v2509, 1326507024
      %v2524 = vsel %vm2512, %v2506, %v2523
      %v2525 = vsel %vm2511, %v2522, %v2524
      %v2526 = vshll.u32 %v2486, 8
      %v2527 = vmul.u32.u64.compose %v2526, %v2525
      %v2528 = vextract.low.u32 %v2527
      %v2529 = vextract.high.u32 %v2527
      %v2530 = vmul.u32.u64.compose %v2526, %v2521
      %v2531 = vextract.low.u32 %v2530
      %v2532 = vextract.high.u32 %v2530
      %v2533 = vmul.u32 %v2526, %v2517
      %v2534 = vadd.s32 %v2529, %v2531
      %vm2535 = vc.u32 %v2529, %v2531
      %v2536 = vadd.s32 %v2532, 1
      %v2537 = vsel %vm2535, %v2536, %v2532
      %v2538 = vadd.s32 %v2533, %v2537
      %v2539 = vadd.s32 %v2538, 536870912
      %v2540 = vshrl.u32 %v2539, 30
      %v2541 = vshll.u32 %v2540, 30
      %v2542 = vsub.s32 %v2538, %v2541
      %vm2543 = vcmp.lt.s32.totalorder %v2542, 0
      %v2544 = vsub.s32 0, %v2542
      %v2545 = vsel %vm2543, %v2544, %v2542
      %v2546 = vclz %v2545
      %v2547 = vsub.s32 %v2546, 2
      %vm2548 = vcmp.gt.s32.totalorder 0, %v2547
      %v2549 = vsel %vm2548, 0, %v2547
      %v2550 = vsub.s32 32, %v2549
      %v2551 = vshll.u32 %v2542, %v2549
      %v2552 = vshrl.u32 %v2534, %v2550
      %v2553 = vor.u32 %v2551, %v2552
      %v2554 = vsub.s32 4294967266, %v2549
      %v2555 = vadd.s32 %v2554, 127
      %v2556 = vshll.u32 %v2555, 23
      %v2557 = vor.u32 4788187, %v2556
      %v2558 = vand.u32 2147483647, %v2557
      %v2560 = vcvt.s32.f32 %v2553
      %v2561 = vmul.f32 %v2560, %v2558
      %v2562 = vxor.u32 %v2561, 2147483648
      %v2563 = vsel %vm2480, %v2562, %v2561
      %v2564 = vsub.s32 4, %v2540
      %v2565 = vsel %vm2480, %v2564, %v2540
      %v2566 = vsel %vm2479, %v1725, %v2563
      %v2567 = vsel %vm2479, 0, %v2565
      %v2568 = vcosq.f32.pop %v2566
      %v2569 = vsinq.f32.pop %v2566
      %vm2570 = vweird.f32 %v1725
      %v2571 = vadd.s32 %v2567, 3
      %v2572 = vand.u32 %v2571, 3
      %vm2573 = vcmp.lt.s32.totalorder %v2572, 2
      %vm2574 = vcmp.eq.s32.totalorder %v2572, 0
      %v2575 = vxor.u32 %v2569, 2147483648
      %v2576 = vsel %vm2574, %v2568, %v2575
      %vm2577 = vcmp.eq.s32.totalorder %v2572, 2
      %v2578 = vxor.u32 %v2568, 2147483648
      %v2579 = vsel %vm2577, %v2578, %v2569
      %v2580 = vsel %vm2573, %v2576, %v2579
      %v2581 = vsel %vm2570, nan, %v2580
      %v2582 = vand.u32 2147483647, %v1726
      %vm2583 = vcmp.le.f32.partialorder %v2582, 0.7853982
      %vm2584 = vcmp.lt.s32.totalorder %v1726, 0
      %v2585 = vand.u32 %v1726, 2139095040
      %v2586 = vshrl.u32 %v2585, 23
      %v2587 = vsub.s32 %v2586, 127
      %v2588 = vand.u32 2147483647, %v1726
      %v2589 = vand.u32 %v2588, 8388607
      %v2590 = vor.u32 %v2589, 8388608
      %v2591 = vsub.s32 0, %v2590
      %v2592 = vadd.s32 %v2587, 1
      %vm2593 = vcmp.gt.s32.totalorder %v2592, 0
      %v2594 = vsel %vm2593, %v2592, 0
      %v2595 = vshrl.u32 %v2594, 5
      %v2596 = vand.u32 %v2594, 31
      %v2597 = vsub.s32 32, %v2596
      %v2598 = vshrl.u32 683565275, %v2597
      %v2599 = vshll.u32 683565275, %v2596
      %v2600 = vshrl.u32 2475754826, %v2597
      %v2601 = vor.u32 %v2599, %v2600
      %v2602 = vshll.u32 2475754826, %v2596
      %v2603 = vshrl.u32 2131351028, %v2597
      %v2604 = vor.u32 %v2602, %v2603
      %v2605 = vshll.u32 2131351028, %v2596
      %v2606 = vshrl.u32 2102212464, %v2597
      %v2607 = vor.u32 %v2605, %v2606
      %v2608 = vshll.u32 2102212464, %v2596
      %v2609 = vshrl.u32 920167782, %v2597
      %v2610 = vor.u32 %v2608, %v2609
      %v2611 = vshll.u32 920167782, %v2596
      %v2612 = vshrl.u32 1326507024, %v2597
      %v2613 = vor.u32 %v2611, %v2612
      %vm2614 = vcmp.lt.s32.totalorder %v2595, 1
      %vm2615 = vcmp.lt.s32.totalorder %v2595, 2
      %vm2616 = vcmp.lt.s32.totalorder %v2595, 3
      %vm2617 = vcmp.lt.s32.totalorder %v2595, 4
      %v2618 = vsel %vm2614, %v2598, %v2601
      %v2619 = vsel %vm2617, %v2607, 2102212464
      %v2620 = vsel %vm2616, %v2604, %v2619
      %v2621 = vsel %vm2615, %v2618, %v2620
      %v2622 = vsel %vm2614, %v2601, %v2604
      %v2623 = vsel %vm2617, %v2610, 920167782
      %v2624 = vsel %vm2616, %v2607, %v2623
      %v2625 = vsel %vm2615, %v2622, %v2624
      %v2626 = vsel %vm2614, %v2604, %v2607
      %v2627 = vsel %vm2617, %v2613, 1326507024
      %v2628 = vsel %vm2616, %v2610, %v2627
      %v2629 = vsel %vm2615, %v2626, %v2628
      %v2630 = vshll.u32 %v2590, 8
      %v2631 = vmul.u32.u64.compose %v2630, %v2629
      %v2632 = vextract.low.u32 %v2631
      %v2633 = vextract.high.u32 %v2631
      %v2634 = vmul.u32.u64.compose %v2630, %v2625
      %v2635 = vextract.low.u32 %v2634
      %v2636 = vextract.high.u32 %v2634
      %v2637 = vmul.u32 %v2630, %v2621
      %v2638 = vadd.s32 %v2633, %v2635
      %vm2639 = vc.u32 %v2633, %v2635
      %v2640 = vadd.s32 %v2636, 1
      %v2641 = vsel %vm2639, %v2640, %v2636
      %v2642 = vadd.s32 %v2637, %v2641
      %v2643 = vadd.s32 %v2642, 536870912
      %v2644 = vshrl.u32 %v2643, 30
      %v2645 = vshll.u32 %v2644, 30
      %v2646 = vsub.s32 %v2642, %v2645
      %vm2647 = vcmp.lt.s32.totalorder %v2646, 0
      %v2648 = vsub.s32 0, %v2646
      %v2649 = vsel %vm2647, %v2648, %v2646
      %v2650 = vclz %v2649
      %v2651 = vsub.s32 %v2650, 2
      %vm2652 = vcmp.gt.s32.totalorder 0, %v2651
      %v2653 = vsel %vm2652, 0, %v2651
      %v2654 = vsub.s32 32, %v2653
      %v2655 = vshll.u32 %v2646, %v2653
      %v2656 = vshrl.u32 %v2638, %v2654
      %v2657 = vor.u32 %v2655, %v2656
      %v2658 = vsub.s32 4294967266, %v2653
      %v2659 = vadd.s32 %v2658, 127
      %v2660 = vshll.u32 %v2659, 23
      %v2661 = vor.u32 4788187, %v2660
      %v2662 = vand.u32 2147483647, %v2661
      %v2664 = vcvt.s32.f32 %v2657
      %v2665 = vmul.f32 %v2664, %v2662
      %v2666 = vxor.u32 %v2665, 2147483648
      %v2667 = vsel %vm2584, %v2666, %v2665
      %v2668 = vsub.s32 4, %v2644
      %v2669 = vsel %vm2584, %v2668, %v2644
      %v2670 = vsel %vm2583, %v1726, %v2667
      %v2671 = vsel %vm2583, 0, %v2669
      %v2672 = vcosq.f32.pop %v2670
      %v2673 = vsinq.f32.pop %v2670
      %vm2674 = vweird.f32 %v1726
      %v2675 = vadd.s32 %v2671, 3
      %v2676 = vand.u32 %v2675, 3
      %vm2677 = vcmp.lt.s32.totalorder %v2676, 2
      %vm2678 = vcmp.eq.s32.totalorder %v2676, 0
      %v2679 = vxor.u32 %v2673, 2147483648
      %v2680 = vsel %vm2678, %v2672, %v2679
      %vm2681 = vcmp.eq.s32.totalorder %v2676, 2
      %v2682 = vxor.u32 %v2672, 2147483648
      %v2683 = vsel %vm2681, %v2682, %v2673
      %v2684 = vsel %vm2677, %v2680, %v2683
      %v2685 = vsel %vm2674, nan, %v2684
      %v2686 = vand.u32 2147483647, %v1727
      %vm2687 = vcmp.le.f32.partialorder %v2686, 0.7853982
      %vm2688 = vcmp.lt.s32.totalorder %v1727, 0
      %v2689 = vand.u32 %v1727, 2139095040
      %v2690 = vshrl.u32 %v2689, 23
      %v2691 = vsub.s32 %v2690, 127
      %v2692 = vand.u32 2147483647, %v1727
      %v2693 = vand.u32 %v2692, 8388607
      %v2694 = vor.u32 %v2693, 8388608
      %v2695 = vsub.s32 0, %v2694
      %v2696 = vadd.s32 %v2691, 1
      %vm2697 = vcmp.gt.s32.totalorder %v2696, 0
      %v2698 = vsel %vm2697, %v2696, 0
      %v2699 = vshrl.u32 %v2698, 5
      %v2700 = vand.u32 %v2698, 31
      %v2701 = vsub.s32 32, %v2700
      %v2702 = vshrl.u32 683565275, %v2701
      %v2703 = vshll.u32 683565275, %v2700
      %v2704 = vshrl.u32 2475754826, %v2701
      %v2705 = vor.u32 %v2703, %v2704
      %v2706 = vshll.u32 2475754826, %v2700
      %v2707 = vshrl.u32 2131351028, %v2701
      %v2708 = vor.u32 %v2706, %v2707
      %v2709 = vshll.u32 2131351028, %v2700
      %v2710 = vshrl.u32 2102212464, %v2701
      %v2711 = vor.u32 %v2709, %v2710
      %v2712 = vshll.u32 2102212464, %v2700
      %v2713 = vshrl.u32 920167782, %v2701
      %v2714 = vor.u32 %v2712, %v2713
      %v2715 = vshll.u32 920167782, %v2700
      %v2716 = vshrl.u32 1326507024, %v2701
      %v2717 = vor.u32 %v2715, %v2716
      %vm2718 = vcmp.lt.s32.totalorder %v2699, 1
      %vm2719 = vcmp.lt.s32.totalorder %v2699, 2
      %vm2720 = vcmp.lt.s32.totalorder %v2699, 3
      %vm2721 = vcmp.lt.s32.totalorder %v2699, 4
      %v2722 = vsel %vm2718, %v2702, %v2705
      %v2723 = vsel %vm2721, %v2711, 2102212464
      %v2724 = vsel %vm2720, %v2708, %v2723
      %v2725 = vsel %vm2719, %v2722, %v2724
      %v2726 = vsel %vm2718, %v2705, %v2708
      %v2727 = vsel %vm2721, %v2714, 920167782
      %v2728 = vsel %vm2720, %v2711, %v2727
      %v2729 = vsel %vm2719, %v2726, %v2728
      %v2730 = vsel %vm2718, %v2708, %v2711
      %v2731 = vsel %vm2721, %v2717, 1326507024
      %v2732 = vsel %vm2720, %v2714, %v2731
      %v2733 = vsel %vm2719, %v2730, %v2732
      %v2734 = vshll.u32 %v2694, 8
      %v2735 = vmul.u32.u64.compose %v2734, %v2733
      %v2736 = vextract.low.u32 %v2735
      %v2737 = vextract.high.u32 %v2735
      %v2738 = vmul.u32.u64.compose %v2734, %v2729
      %v2739 = vextract.low.u32 %v2738
      %v2740 = vextract.high.u32 %v2738
      %v2741 = vmul.u32 %v2734, %v2725
      %v2742 = vadd.s32 %v2737, %v2739
      %vm2743 = vc.u32 %v2737, %v2739
      %v2744 = vadd.s32 %v2740, 1
      %v2745 = vsel %vm2743, %v2744, %v2740
      %v2746 = vadd.s32 %v2741, %v2745
      %v2747 = vadd.s32 %v2746, 536870912
      %v2748 = vshrl.u32 %v2747, 30
      %v2749 = vshll.u32 %v2748, 30
      %v2750 = vsub.s32 %v2746, %v2749
      %vm2751 = vcmp.lt.s32.totalorder %v2750, 0
      %v2752 = vsub.s32 0, %v2750
      %v2753 = vsel %vm2751, %v2752, %v2750
      %v2754 = vclz %v2753
      %v2755 = vsub.s32 %v2754, 2
      %vm2756 = vcmp.gt.s32.totalorder 0, %v2755
      %v2757 = vsel %vm2756, 0, %v2755
      %v2758 = vsub.s32 32, %v2757
      %v2759 = vshll.u32 %v2750, %v2757
      %v2760 = vshrl.u32 %v2742, %v2758
      %v2761 = vor.u32 %v2759, %v2760
      %v2762 = vsub.s32 4294967266, %v2757
      %v2763 = vadd.s32 %v2762, 127
      %v2764 = vshll.u32 %v2763, 23
      %v2765 = vor.u32 4788187, %v2764
      %v2766 = vand.u32 2147483647, %v2765
      %v2768 = vcvt.s32.f32 %v2761
      %v2769 = vmul.f32 %v2768, %v2766
      %v2770 = vxor.u32 %v2769, 2147483648
      %v2771 = vsel %vm2688, %v2770, %v2769
      %v2772 = vsub.s32 4, %v2748
      %v2773 = vsel %vm2688, %v2772, %v2748
      %v2774 = vsel %vm2687, %v1727, %v2771
      %v2775 = vsel %vm2687, 0, %v2773
      %v2776 = vcosq.f32.pop %v2774
      %v2777 = vsinq.f32.pop %v2774
      %vm2778 = vweird.f32 %v1727
      %v2779 = vadd.s32 %v2775, 3
      %v2780 = vand.u32 %v2779, 3
      %vm2781 = vcmp.lt.s32.totalorder %v2780, 2
      %vm2782 = vcmp.eq.s32.totalorder %v2780, 0
      %v2783 = vxor.u32 %v2777, 2147483648
      %v2784 = vsel %vm2782, %v2776, %v2783
      %vm2785 = vcmp.eq.s32.totalorder %v2780, 2
      %v2786 = vxor.u32 %v2776, 2147483648
      %v2787 = vsel %vm2785, %v2786, %v2777
      %v2788 = vsel %vm2781, %v2784, %v2787
      %v2789 = vsel %vm2778, nan, %v2788
      %v2790 = vand.u32 2147483647, %v1728
      %vm2791 = vcmp.le.f32.partialorder %v2790, 0.7853982
      %vm2792 = vcmp.lt.s32.totalorder %v1728, 0
      %v2793 = vand.u32 %v1728, 2139095040
      %v2794 = vshrl.u32 %v2793, 23
      %v2795 = vsub.s32 %v2794, 127
      %v2796 = vand.u32 2147483647, %v1728
      %v2797 = vand.u32 %v2796, 8388607
      %v2798 = vor.u32 %v2797, 8388608
      %v2799 = vsub.s32 0, %v2798
      %v2800 = vadd.s32 %v2795, 1
      %vm2801 = vcmp.gt.s32.totalorder %v2800, 0
      %v2802 = vsel %vm2801, %v2800, 0
      %v2803 = vshrl.u32 %v2802, 5
      %v2804 = vand.u32 %v2802, 31
      %v2805 = vsub.s32 32, %v2804
      %v2806 = vshrl.u32 683565275, %v2805
      %v2807 = vshll.u32 683565275, %v2804
      %v2808 = vshrl.u32 2475754826, %v2805
      %v2809 = vor.u32 %v2807, %v2808
      %v2810 = vshll.u32 2475754826, %v2804
      %v2811 = vshrl.u32 2131351028, %v2805
      %v2812 = vor.u32 %v2810, %v2811
      %v2813 = vshll.u32 2131351028, %v2804
      %v2814 = vshrl.u32 2102212464, %v2805
      %v2815 = vor.u32 %v2813, %v2814
      %v2816 = vshll.u32 2102212464, %v2804
      %v2817 = vshrl.u32 920167782, %v2805
      %v2818 = vor.u32 %v2816, %v2817
      %v2819 = vshll.u32 920167782, %v2804
      %v2820 = vshrl.u32 1326507024, %v2805
      %v2821 = vor.u32 %v2819, %v2820
      %vm2822 = vcmp.lt.s32.totalorder %v2803, 1
      %vm2823 = vcmp.lt.s32.totalorder %v2803, 2
      %vm2824 = vcmp.lt.s32.totalorder %v2803, 3
      %vm2825 = vcmp.lt.s32.totalorder %v2803, 4
      %v2826 = vsel %vm2822, %v2806, %v2809
      %v2827 = vsel %vm2825, %v2815, 2102212464
      %v2828 = vsel %vm2824, %v2812, %v2827
      %v2829 = vsel %vm2823, %v2826, %v2828
      %v2830 = vsel %vm2822, %v2809, %v2812
      %v2831 = vsel %vm2825, %v2818, 920167782
      %v2832 = vsel %vm2824, %v2815, %v2831
      %v2833 = vsel %vm2823, %v2830, %v2832
      %v2834 = vsel %vm2822, %v2812, %v2815
      %v2835 = vsel %vm2825, %v2821, 1326507024
      %v2836 = vsel %vm2824, %v2818, %v2835
      %v2837 = vsel %vm2823, %v2834, %v2836
      %v2838 = vshll.u32 %v2798, 8
      %v2839 = vmul.u32.u64.compose %v2838, %v2837
      %v2840 = vextract.low.u32 %v2839
      %v2841 = vextract.high.u32 %v2839
      %v2842 = vmul.u32.u64.compose %v2838, %v2833
      %v2843 = vextract.low.u32 %v2842
      %v2844 = vextract.high.u32 %v2842
      %v2845 = vmul.u32 %v2838, %v2829
      %v2846 = vadd.s32 %v2841, %v2843
      %vm2847 = vc.u32 %v2841, %v2843
      %v2848 = vadd.s32 %v2844, 1
      %v2849 = vsel %vm2847, %v2848, %v2844
      %v2850 = vadd.s32 %v2845, %v2849
      %v2851 = vadd.s32 %v2850, 536870912
      %v2852 = vshrl.u32 %v2851, 30
      %v2853 = vshll.u32 %v2852, 30
      %v2854 = vsub.s32 %v2850, %v2853
      %vm2855 = vcmp.lt.s32.totalorder %v2854, 0
      %v2856 = vsub.s32 0, %v2854
      %v2857 = vsel %vm2855, %v2856, %v2854
      %v2858 = vclz %v2857
      %v2859 = vsub.s32 %v2858, 2
      %vm2860 = vcmp.gt.s32.totalorder 0, %v2859
      %v2861 = vsel %vm2860, 0, %v2859
      %v2862 = vsub.s32 32, %v2861
      %v2863 = vshll.u32 %v2854, %v2861
      %v2864 = vshrl.u32 %v2846, %v2862
      %v2865 = vor.u32 %v2863, %v2864
      %v2866 = vsub.s32 4294967266, %v2861
      %v2867 = vadd.s32 %v2866, 127
      %v2868 = vshll.u32 %v2867, 23
      %v2869 = vor.u32 4788187, %v2868
      %v2870 = vand.u32 2147483647, %v2869
      %v2872 = vcvt.s32.f32 %v2865
      %v2873 = vmul.f32 %v2872, %v2870
      %v2874 = vxor.u32 %v2873, 2147483648
      %v2875 = vsel %vm2792, %v2874, %v2873
      %v2876 = vsub.s32 4, %v2852
      %v2877 = vsel %vm2792, %v2876, %v2852
      %v2878 = vsel %vm2791, %v1728, %v2875
      %v2879 = vsel %vm2791, 0, %v2877
      %v2880 = vcosq.f32.pop %v2878
      %v2881 = vsinq.f32.pop %v2878
      %vm2882 = vweird.f32 %v1728
      %v2883 = vadd.s32 %v2879, 3
      %v2884 = vand.u32 %v2883, 3
      %vm2885 = vcmp.lt.s32.totalorder %v2884, 2
      %vm2886 = vcmp.eq.s32.totalorder %v2884, 0
      %v2887 = vxor.u32 %v2881, 2147483648
      %v2888 = vsel %vm2886, %v2880, %v2887
      %vm2889 = vcmp.eq.s32.totalorder %v2884, 2
      %v2890 = vxor.u32 %v2880, 2147483648
      %v2891 = vsel %vm2889, %v2890, %v2881
      %v2892 = vsel %vm2885, %v2888, %v2891
      %v2893 = vsel %vm2882, nan, %v2892
      %v2894 = vand.u32 2147483647, %v1729
      %vm2895 = vcmp.le.f32.partialorder %v2894, 0.7853982
      %vm2896 = vcmp.lt.s32.totalorder %v1729, 0
      %v2897 = vand.u32 %v1729, 2139095040
      %v2898 = vshrl.u32 %v2897, 23
      %v2899 = vsub.s32 %v2898, 127
      %v2900 = vand.u32 2147483647, %v1729
      %v2901 = vand.u32 %v2900, 8388607
      %v2902 = vor.u32 %v2901, 8388608
      %v2903 = vsub.s32 0, %v2902
      %v2904 = vadd.s32 %v2899, 1
      %vm2905 = vcmp.gt.s32.totalorder %v2904, 0
      %v2906 = vsel %vm2905, %v2904, 0
      %v2907 = vshrl.u32 %v2906, 5
      %v2908 = vand.u32 %v2906, 31
      %v2909 = vsub.s32 32, %v2908
      %v2910 = vshrl.u32 683565275, %v2909
      %v2911 = vshll.u32 683565275, %v2908
      %v2912 = vshrl.u32 2475754826, %v2909
      %v2913 = vor.u32 %v2911, %v2912
      %v2914 = vshll.u32 2475754826, %v2908
      %v2915 = vshrl.u32 2131351028, %v2909
      %v2916 = vor.u32 %v2914, %v2915
      %v2917 = vshll.u32 2131351028, %v2908
      %v2918 = vshrl.u32 2102212464, %v2909
      %v2919 = vor.u32 %v2917, %v2918
      %v2920 = vshll.u32 2102212464, %v2908
      %v2921 = vshrl.u32 920167782, %v2909
      %v2922 = vor.u32 %v2920, %v2921
      %v2923 = vshll.u32 920167782, %v2908
      %v2924 = vshrl.u32 1326507024, %v2909
      %v2925 = vor.u32 %v2923, %v2924
      %vm2926 = vcmp.lt.s32.totalorder %v2907, 1
      %vm2927 = vcmp.lt.s32.totalorder %v2907, 2
      %vm2928 = vcmp.lt.s32.totalorder %v2907, 3
      %vm2929 = vcmp.lt.s32.totalorder %v2907, 4
      %v2930 = vsel %vm2926, %v2910, %v2913
      %v2931 = vsel %vm2929, %v2919, 2102212464
      %v2932 = vsel %vm2928, %v2916, %v2931
      %v2933 = vsel %vm2927, %v2930, %v2932
      %v2934 = vsel %vm2926, %v2913, %v2916
      %v2935 = vsel %vm2929, %v2922, 920167782
      %v2936 = vsel %vm2928, %v2919, %v2935
      %v2937 = vsel %vm2927, %v2934, %v2936
      %v2938 = vsel %vm2926, %v2916, %v2919
      %v2939 = vsel %vm2929, %v2925, 1326507024
      %v2940 = vsel %vm2928, %v2922, %v2939
      %v2941 = vsel %vm2927, %v2938, %v2940
      %v2942 = vshll.u32 %v2902, 8
      %v2943 = vmul.u32.u64.compose %v2942, %v2941
      %v2944 = vextract.low.u32 %v2943
      %v2945 = vextract.high.u32 %v2943
      %v2946 = vmul.u32.u64.compose %v2942, %v2937
      %v2947 = vextract.low.u32 %v2946
      %v2948 = vextract.high.u32 %v2946
      %v2949 = vmul.u32 %v2942, %v2933
      %v2950 = vadd.s32 %v2945, %v2947
      %vm2951 = vc.u32 %v2945, %v2947
      %v2952 = vadd.s32 %v2948, 1
      %v2953 = vsel %vm2951, %v2952, %v2948
      %v2954 = vadd.s32 %v2949, %v2953
      %v2955 = vadd.s32 %v2954, 536870912
      %v2956 = vshrl.u32 %v2955, 30
      %v2957 = vshll.u32 %v2956, 30
      %v2958 = vsub.s32 %v2954, %v2957
      %vm2959 = vcmp.lt.s32.totalorder %v2958, 0
      %v2960 = vsub.s32 0, %v2958
      %v2961 = vsel %vm2959, %v2960, %v2958
      %v2962 = vclz %v2961
      %v2963 = vsub.s32 %v2962, 2
      %vm2964 = vcmp.gt.s32.totalorder 0, %v2963
      %v2965 = vsel %vm2964, 0, %v2963
      %v2966 = vsub.s32 32, %v2965
      %v2967 = vshll.u32 %v2958, %v2965
      %v2968 = vshrl.u32 %v2950, %v2966
      %v2969 = vor.u32 %v2967, %v2968
      %v2970 = vsub.s32 4294967266, %v2965
      %v2971 = vadd.s32 %v2970, 127
      %v2972 = vshll.u32 %v2971, 23
      %v2973 = vor.u32 4788187, %v2972
      %v2974 = vand.u32 2147483647, %v2973
      %v2976 = vcvt.s32.f32 %v2969
      %v2977 = vmul.f32 %v2976, %v2974
      %v2978 = vxor.u32 %v2977, 2147483648
      %v2979 = vsel %vm2896, %v2978, %v2977
      %v2980 = vsub.s32 4, %v2956
      %v2981 = vsel %vm2896, %v2980, %v2956
      %v2982 = vsel %vm2895, %v1729, %v2979
      %v2983 = vsel %vm2895, 0, %v2981
      %v2984 = vcosq.f32.pop %v2982
      %v2985 = vsinq.f32.pop %v2982
      %vm2986 = vweird.f32 %v1729
      %v2987 = vadd.s32 %v2983, 3
      %v2988 = vand.u32 %v2987, 3
      %vm2989 = vcmp.lt.s32.totalorder %v2988, 2
      %vm2990 = vcmp.eq.s32.totalorder %v2988, 0
      %v2991 = vxor.u32 %v2985, 2147483648
      %v2992 = vsel %vm2990, %v2984, %v2991
      %vm2993 = vcmp.eq.s32.totalorder %v2988, 2
      %v2994 = vxor.u32 %v2984, 2147483648
      %v2995 = vsel %vm2993, %v2994, %v2985
      %v2996 = vsel %vm2989, %v2992, %v2995
      %v2997 = vsel %vm2986, nan, %v2996
      %v2998 = vand.u32 2147483647, %v1730
      %vm2999 = vcmp.le.f32.partialorder %v2998, 0.7853982
      %vm3000 = vcmp.lt.s32.totalorder %v1730, 0
      %v3001 = vand.u32 %v1730, 2139095040
      %v3002 = vshrl.u32 %v3001, 23
      %v3003 = vsub.s32 %v3002, 127
      %v3004 = vand.u32 2147483647, %v1730
      %v3005 = vand.u32 %v3004, 8388607
      %v3006 = vor.u32 %v3005, 8388608
      %v3007 = vsub.s32 0, %v3006
      %v3008 = vadd.s32 %v3003, 1
      %vm3009 = vcmp.gt.s32.totalorder %v3008, 0
      %v3010 = vsel %vm3009, %v3008, 0
      %v3011 = vshrl.u32 %v3010, 5
      %v3012 = vand.u32 %v3010, 31
      %v3013 = vsub.s32 32, %v3012
      %v3014 = vshrl.u32 683565275, %v3013
      %v3015 = vshll.u32 683565275, %v3012
      %v3016 = vshrl.u32 2475754826, %v3013
      %v3017 = vor.u32 %v3015, %v3016
      %v3018 = vshll.u32 2475754826, %v3012
      %v3019 = vshrl.u32 2131351028, %v3013
      %v3020 = vor.u32 %v3018, %v3019
      %v3021 = vshll.u32 2131351028, %v3012
      %v3022 = vshrl.u32 2102212464, %v3013
      %v3023 = vor.u32 %v3021, %v3022
      %v3024 = vshll.u32 2102212464, %v3012
      %v3025 = vshrl.u32 920167782, %v3013
      %v3026 = vor.u32 %v3024, %v3025
      %v3027 = vshll.u32 920167782, %v3012
      %v3028 = vshrl.u32 1326507024, %v3013
      %v3029 = vor.u32 %v3027, %v3028
      %vm3030 = vcmp.lt.s32.totalorder %v3011, 1
      %vm3031 = vcmp.lt.s32.totalorder %v3011, 2
      %vm3032 = vcmp.lt.s32.totalorder %v3011, 3
      %vm3033 = vcmp.lt.s32.totalorder %v3011, 4
      %v3034 = vsel %vm3030, %v3014, %v3017
      %v3035 = vsel %vm3033, %v3023, 2102212464
      %v3036 = vsel %vm3032, %v3020, %v3035
      %v3037 = vsel %vm3031, %v3034, %v3036
      %v3038 = vsel %vm3030, %v3017, %v3020
      %v3039 = vsel %vm3033, %v3026, 920167782
      %v3040 = vsel %vm3032, %v3023, %v3039
      %v3041 = vsel %vm3031, %v3038, %v3040
      %v3042 = vsel %vm3030, %v3020, %v3023
      %v3043 = vsel %vm3033, %v3029, 1326507024
      %v3044 = vsel %vm3032, %v3026, %v3043
      %v3045 = vsel %vm3031, %v3042, %v3044
      %v3046 = vshll.u32 %v3006, 8
      %v3047 = vmul.u32.u64.compose %v3046, %v3045
      %v3048 = vextract.low.u32 %v3047
      %v3049 = vextract.high.u32 %v3047
      %v3050 = vmul.u32.u64.compose %v3046, %v3041
      %v3051 = vextract.low.u32 %v3050
      %v3052 = vextract.high.u32 %v3050
      %v3053 = vmul.u32 %v3046, %v3037
      %v3054 = vadd.s32 %v3049, %v3051
      %vm3055 = vc.u32 %v3049, %v3051
      %v3056 = vadd.s32 %v3052, 1
      %v3057 = vsel %vm3055, %v3056, %v3052
      %v3058 = vadd.s32 %v3053, %v3057
      %v3059 = vadd.s32 %v3058, 536870912
      %v3060 = vshrl.u32 %v3059, 30
      %v3061 = vshll.u32 %v3060, 30
      %v3062 = vsub.s32 %v3058, %v3061
      %vm3063 = vcmp.lt.s32.totalorder %v3062, 0
      %v3064 = vsub.s32 0, %v3062
      %v3065 = vsel %vm3063, %v3064, %v3062
      %v3066 = vclz %v3065
      %v3067 = vsub.s32 %v3066, 2
      %vm3068 = vcmp.gt.s32.totalorder 0, %v3067
      %v3069 = vsel %vm3068, 0, %v3067
      %v3070 = vsub.s32 32, %v3069
      %v3071 = vshll.u32 %v3062, %v3069
      %v3072 = vshrl.u32 %v3054, %v3070
      %v3073 = vor.u32 %v3071, %v3072
      %v3074 = vsub.s32 4294967266, %v3069
      %v3075 = vadd.s32 %v3074, 127
      %v3076 = vshll.u32 %v3075, 23
      %v3077 = vor.u32 4788187, %v3076
      %v3078 = vand.u32 2147483647, %v3077
      %v3080 = vcvt.s32.f32 %v3073
      %v3081 = vmul.f32 %v3080, %v3078
      %v3082 = vxor.u32 %v3081, 2147483648
      %v3083 = vsel %vm3000, %v3082, %v3081
      %v3084 = vsub.s32 4, %v3060
      %v3085 = vsel %vm3000, %v3084, %v3060
      %v3086 = vsel %vm2999, %v1730, %v3083
      %v3087 = vsel %vm2999, 0, %v3085
      %v3088 = vcosq.f32.pop %v3086
      %v3089 = vsinq.f32.pop %v3086
      %vm3090 = vweird.f32 %v1730
      %v3091 = vadd.s32 %v3087, 3
      %v3092 = vand.u32 %v3091, 3
      %vm3093 = vcmp.lt.s32.totalorder %v3092, 2
      %vm3094 = vcmp.eq.s32.totalorder %v3092, 0
      %v3095 = vxor.u32 %v3089, 2147483648
      %v3096 = vsel %vm3094, %v3088, %v3095
      %vm3097 = vcmp.eq.s32.totalorder %v3092, 2
      %v3098 = vxor.u32 %v3088, 2147483648
      %v3099 = vsel %vm3097, %v3098, %v3089
      %v3100 = vsel %vm3093, %v3096, %v3099
      %v3101 = vsel %vm3090, nan, %v3100
      %v3102 = vand.u32 2147483647, %v1731
      %vm3103 = vcmp.le.f32.partialorder %v3102, 0.7853982
      %vm3104 = vcmp.lt.s32.totalorder %v1731, 0
      %v3105 = vand.u32 %v1731, 2139095040
      %v3106 = vshrl.u32 %v3105, 23
      %v3107 = vsub.s32 %v3106, 127
      %v3108 = vand.u32 2147483647, %v1731
      %v3109 = vand.u32 %v3108, 8388607
      %v3110 = vor.u32 %v3109, 8388608
      %v3111 = vsub.s32 0, %v3110
      %v3112 = vadd.s32 %v3107, 1
      %vm3113 = vcmp.gt.s32.totalorder %v3112, 0
      %v3114 = vsel %vm3113, %v3112, 0
      %v3115 = vshrl.u32 %v3114, 5
      %v3116 = vand.u32 %v3114, 31
      %v3117 = vsub.s32 32, %v3116
      %v3118 = vshrl.u32 683565275, %v3117
      %v3119 = vshll.u32 683565275, %v3116
      %v3120 = vshrl.u32 2475754826, %v3117
      %v3121 = vor.u32 %v3119, %v3120
      %v3122 = vshll.u32 2475754826, %v3116
      %v3123 = vshrl.u32 2131351028, %v3117
      %v3124 = vor.u32 %v3122, %v3123
      %v3125 = vshll.u32 2131351028, %v3116
      %v3126 = vshrl.u32 2102212464, %v3117
      %v3127 = vor.u32 %v3125, %v3126
      %v3128 = vshll.u32 2102212464, %v3116
      %v3129 = vshrl.u32 920167782, %v3117
      %v3130 = vor.u32 %v3128, %v3129
      %v3131 = vshll.u32 920167782, %v3116
      %v3132 = vshrl.u32 1326507024, %v3117
      %v3133 = vor.u32 %v3131, %v3132
      %vm3134 = vcmp.lt.s32.totalorder %v3115, 1
      %vm3135 = vcmp.lt.s32.totalorder %v3115, 2
      %vm3136 = vcmp.lt.s32.totalorder %v3115, 3
      %vm3137 = vcmp.lt.s32.totalorder %v3115, 4
      %v3138 = vsel %vm3134, %v3118, %v3121
      %v3139 = vsel %vm3137, %v3127, 2102212464
      %v3140 = vsel %vm3136, %v3124, %v3139
      %v3141 = vsel %vm3135, %v3138, %v3140
      %v3142 = vsel %vm3134, %v3121, %v3124
      %v3143 = vsel %vm3137, %v3130, 920167782
      %v3144 = vsel %vm3136, %v3127, %v3143
      %v3145 = vsel %vm3135, %v3142, %v3144
      %v3146 = vsel %vm3134, %v3124, %v3127
      %v3147 = vsel %vm3137, %v3133, 1326507024
      %v3148 = vsel %vm3136, %v3130, %v3147
      %v3149 = vsel %vm3135, %v3146, %v3148
      %v3150 = vshll.u32 %v3110, 8
      %v3151 = vmul.u32.u64.compose %v3150, %v3149
      %v3152 = vextract.low.u32 %v3151
      %v3153 = vextract.high.u32 %v3151
      %v3154 = vmul.u32.u64.compose %v3150, %v3145
      %v3155 = vextract.low.u32 %v3154
      %v3156 = vextract.high.u32 %v3154
      %v3157 = vmul.u32 %v3150, %v3141
      %v3158 = vadd.s32 %v3153, %v3155
      %vm3159 = vc.u32 %v3153, %v3155
      %v3160 = vadd.s32 %v3156, 1
      %v3161 = vsel %vm3159, %v3160, %v3156
      %v3162 = vadd.s32 %v3157, %v3161
      %v3163 = vadd.s32 %v3162, 536870912
      %v3164 = vshrl.u32 %v3163, 30
      %v3165 = vshll.u32 %v3164, 30
      %v3166 = vsub.s32 %v3162, %v3165
      %vm3167 = vcmp.lt.s32.totalorder %v3166, 0
      %v3168 = vsub.s32 0, %v3166
      %v3169 = vsel %vm3167, %v3168, %v3166
      %v3170 = vclz %v3169
      %v3171 = vsub.s32 %v3170, 2
      %vm3172 = vcmp.gt.s32.totalorder 0, %v3171
      %v3173 = vsel %vm3172, 0, %v3171
      %v3174 = vsub.s32 32, %v3173
      %v3175 = vshll.u32 %v3166, %v3173
      %v3176 = vshrl.u32 %v3158, %v3174
      %v3177 = vor.u32 %v3175, %v3176
      %v3178 = vsub.s32 4294967266, %v3173
      %v3179 = vadd.s32 %v3178, 127
      %v3180 = vshll.u32 %v3179, 23
      %v3181 = vor.u32 4788187, %v3180
      %v3182 = vand.u32 2147483647, %v3181
      %v3184 = vcvt.s32.f32 %v3177
      %v3185 = vmul.f32 %v3184, %v3182
      %v3186 = vxor.u32 %v3185, 2147483648
      %v3187 = vsel %vm3104, %v3186, %v3185
      %v3188 = vsub.s32 4, %v3164
      %v3189 = vsel %vm3104, %v3188, %v3164
      %v3190 = vsel %vm3103, %v1731, %v3187
      %v3191 = vsel %vm3103, 0, %v3189
      %v3192 = vcosq.f32.pop %v3190
      %v3193 = vsinq.f32.pop %v3190
      %vm3194 = vweird.f32 %v1731
      %v3195 = vadd.s32 %v3191, 3
      %v3196 = vand.u32 %v3195, 3
      %vm3197 = vcmp.lt.s32.totalorder %v3196, 2
      %vm3198 = vcmp.eq.s32.totalorder %v3196, 0
      %v3199 = vxor.u32 %v3193, 2147483648
      %v3200 = vsel %vm3198, %v3192, %v3199
      %vm3201 = vcmp.eq.s32.totalorder %v3196, 2
      %v3202 = vxor.u32 %v3192, 2147483648
      %v3203 = vsel %vm3201, %v3202, %v3193
      %v3204 = vsel %vm3197, %v3200, %v3203
      %v3205 = vsel %vm3194, nan, %v3204
      %v3206 = vand.u32 2147483647, %v1732
      %vm3207 = vcmp.le.f32.partialorder %v3206, 0.7853982
      %vm3208 = vcmp.lt.s32.totalorder %v1732, 0
      %v3209 = vand.u32 %v1732, 2139095040
      %v3210 = vshrl.u32 %v3209, 23
      %v3211 = vsub.s32 %v3210, 127
      %v3212 = vand.u32 2147483647, %v1732
      %v3213 = vand.u32 %v3212, 8388607
      %v3214 = vor.u32 %v3213, 8388608
      %v3215 = vsub.s32 0, %v3214
      %v3216 = vadd.s32 %v3211, 1
      %vm3217 = vcmp.gt.s32.totalorder %v3216, 0
      %v3218 = vsel %vm3217, %v3216, 0
      %v3219 = vshrl.u32 %v3218, 5
      %v3220 = vand.u32 %v3218, 31
      %v3221 = vsub.s32 32, %v3220
      %v3222 = vshrl.u32 683565275, %v3221
      %v3223 = vshll.u32 683565275, %v3220
      %v3224 = vshrl.u32 2475754826, %v3221
      %v3225 = vor.u32 %v3223, %v3224
      %v3226 = vshll.u32 2475754826, %v3220
      %v3227 = vshrl.u32 2131351028, %v3221
      %v3228 = vor.u32 %v3226, %v3227
      %v3229 = vshll.u32 2131351028, %v3220
      %v3230 = vshrl.u32 2102212464, %v3221
      %v3231 = vor.u32 %v3229, %v3230
      %v3232 = vshll.u32 2102212464, %v3220
      %v3233 = vshrl.u32 920167782, %v3221
      %v3234 = vor.u32 %v3232, %v3233
      %v3235 = vshll.u32 920167782, %v3220
      %v3236 = vshrl.u32 1326507024, %v3221
      %v3237 = vor.u32 %v3235, %v3236
      %vm3238 = vcmp.lt.s32.totalorder %v3219, 1
      %vm3239 = vcmp.lt.s32.totalorder %v3219, 2
      %vm3240 = vcmp.lt.s32.totalorder %v3219, 3
      %vm3241 = vcmp.lt.s32.totalorder %v3219, 4
      %v3242 = vsel %vm3238, %v3222, %v3225
      %v3243 = vsel %vm3241, %v3231, 2102212464
      %v3244 = vsel %vm3240, %v3228, %v3243
      %v3245 = vsel %vm3239, %v3242, %v3244
      %v3246 = vsel %vm3238, %v3225, %v3228
      %v3247 = vsel %vm3241, %v3234, 920167782
      %v3248 = vsel %vm3240, %v3231, %v3247
      %v3249 = vsel %vm3239, %v3246, %v3248
      %v3250 = vsel %vm3238, %v3228, %v3231
      %v3251 = vsel %vm3241, %v3237, 1326507024
      %v3252 = vsel %vm3240, %v3234, %v3251
      %v3253 = vsel %vm3239, %v3250, %v3252
      %v3254 = vshll.u32 %v3214, 8
      %v3255 = vmul.u32.u64.compose %v3254, %v3253
      %v3256 = vextract.low.u32 %v3255
      %v3257 = vextract.high.u32 %v3255
      %v3258 = vmul.u32.u64.compose %v3254, %v3249
      %v3259 = vextract.low.u32 %v3258
      %v3260 = vextract.high.u32 %v3258
      %v3261 = vmul.u32 %v3254, %v3245
      %v3262 = vadd.s32 %v3257, %v3259
      %vm3263 = vc.u32 %v3257, %v3259
      %v3264 = vadd.s32 %v3260, 1
      %v3265 = vsel %vm3263, %v3264, %v3260
      %v3266 = vadd.s32 %v3261, %v3265
      %v3267 = vadd.s32 %v3266, 536870912
      %v3268 = vshrl.u32 %v3267, 30
      %v3269 = vshll.u32 %v3268, 30
      %v3270 = vsub.s32 %v3266, %v3269
      %vm3271 = vcmp.lt.s32.totalorder %v3270, 0
      %v3272 = vsub.s32 0, %v3270
      %v3273 = vsel %vm3271, %v3272, %v3270
      %v3274 = vclz %v3273
      %v3275 = vsub.s32 %v3274, 2
      %vm3276 = vcmp.gt.s32.totalorder 0, %v3275
      %v3277 = vsel %vm3276, 0, %v3275
      %v3278 = vsub.s32 32, %v3277
      %v3279 = vshll.u32 %v3270, %v3277
      %v3280 = vshrl.u32 %v3262, %v3278
      %v3281 = vor.u32 %v3279, %v3280
      %v3282 = vsub.s32 4294967266, %v3277
      %v3283 = vadd.s32 %v3282, 127
      %v3284 = vshll.u32 %v3283, 23
      %v3285 = vor.u32 4788187, %v3284
      %v3286 = vand.u32 2147483647, %v3285
      %v3288 = vcvt.s32.f32 %v3281
      %v3289 = vmul.f32 %v3288, %v3286
      %v3290 = vxor.u32 %v3289, 2147483648
      %v3291 = vsel %vm3208, %v3290, %v3289
      %v3292 = vsub.s32 4, %v3268
      %v3293 = vsel %vm3208, %v3292, %v3268
      %v3294 = vsel %vm3207, %v1732, %v3291
      %v3295 = vsel %vm3207, 0, %v3293
      %v3296 = vcosq.f32.pop %v3294
      %v3297 = vsinq.f32.pop %v3294
      %vm3298 = vweird.f32 %v1732
      %v3299 = vadd.s32 %v3295, 3
      %v3300 = vand.u32 %v3299, 3
      %vm3301 = vcmp.lt.s32.totalorder %v3300, 2
      %vm3302 = vcmp.eq.s32.totalorder %v3300, 0
      %v3303 = vxor.u32 %v3297, 2147483648
      %v3304 = vsel %vm3302, %v3296, %v3303
      %vm3305 = vcmp.eq.s32.totalorder %v3300, 2
      %v3306 = vxor.u32 %v3296, 2147483648
      %v3307 = vsel %vm3305, %v3306, %v3297
      %v3308 = vsel %vm3301, %v3304, %v3307
      %v3309 = vsel %vm3298, nan, %v3308
      %v3310 = vand.u32 2147483647, %v1733
      %vm3311 = vcmp.le.f32.partialorder %v3310, 0.7853982
      %vm3312 = vcmp.lt.s32.totalorder %v1733, 0
      %v3313 = vand.u32 %v1733, 2139095040
      %v3314 = vshrl.u32 %v3313, 23
      %v3315 = vsub.s32 %v3314, 127
      %v3316 = vand.u32 2147483647, %v1733
      %v3317 = vand.u32 %v3316, 8388607
      %v3318 = vor.u32 %v3317, 8388608
      %v3319 = vsub.s32 0, %v3318
      %v3320 = vadd.s32 %v3315, 1
      %vm3321 = vcmp.gt.s32.totalorder %v3320, 0
      %v3322 = vsel %vm3321, %v3320, 0
      %v3323 = vshrl.u32 %v3322, 5
      %v3324 = vand.u32 %v3322, 31
      %v3325 = vsub.s32 32, %v3324
      %v3326 = vshrl.u32 683565275, %v3325
      %v3327 = vshll.u32 683565275, %v3324
      %v3328 = vshrl.u32 2475754826, %v3325
      %v3329 = vor.u32 %v3327, %v3328
      %v3330 = vshll.u32 2475754826, %v3324
      %v3331 = vshrl.u32 2131351028, %v3325
      %v3332 = vor.u32 %v3330, %v3331
      %v3333 = vshll.u32 2131351028, %v3324
      %v3334 = vshrl.u32 2102212464, %v3325
      %v3335 = vor.u32 %v3333, %v3334
      %v3336 = vshll.u32 2102212464, %v3324
      %v3337 = vshrl.u32 920167782, %v3325
      %v3338 = vor.u32 %v3336, %v3337
      %v3339 = vshll.u32 920167782, %v3324
      %v3340 = vshrl.u32 1326507024, %v3325
      %v3341 = vor.u32 %v3339, %v3340
      %vm3342 = vcmp.lt.s32.totalorder %v3323, 1
      %vm3343 = vcmp.lt.s32.totalorder %v3323, 2
      %vm3344 = vcmp.lt.s32.totalorder %v3323, 3
      %vm3345 = vcmp.lt.s32.totalorder %v3323, 4
      %v3346 = vsel %vm3342, %v3326, %v3329
      %v3347 = vsel %vm3345, %v3335, 2102212464
      %v3348 = vsel %vm3344, %v3332, %v3347
      %v3349 = vsel %vm3343, %v3346, %v3348
      %v3350 = vsel %vm3342, %v3329, %v3332
      %v3351 = vsel %vm3345, %v3338, 920167782
      %v3352 = vsel %vm3344, %v3335, %v3351
      %v3353 = vsel %vm3343, %v3350, %v3352
      %v3354 = vsel %vm3342, %v3332, %v3335
      %v3355 = vsel %vm3345, %v3341, 1326507024
      %v3356 = vsel %vm3344, %v3338, %v3355
      %v3357 = vsel %vm3343, %v3354, %v3356
      %v3358 = vshll.u32 %v3318, 8
      %v3359 = vmul.u32.u64.compose %v3358, %v3357
      %v3360 = vextract.low.u32 %v3359
      %v3361 = vextract.high.u32 %v3359
      %v3362 = vmul.u32.u64.compose %v3358, %v3353
      %v3363 = vextract.low.u32 %v3362
      %v3364 = vextract.high.u32 %v3362
      %v3365 = vmul.u32 %v3358, %v3349
      %v3366 = vadd.s32 %v3361, %v3363
      %vm3367 = vc.u32 %v3361, %v3363
      %v3368 = vadd.s32 %v3364, 1
      %v3369 = vsel %vm3367, %v3368, %v3364
      %v3370 = vadd.s32 %v3365, %v3369
      %v3371 = vadd.s32 %v3370, 536870912
      %v3372 = vshrl.u32 %v3371, 30
      %v3373 = vshll.u32 %v3372, 30
      %v3374 = vsub.s32 %v3370, %v3373
      %vm3375 = vcmp.lt.s32.totalorder %v3374, 0
      %v3376 = vsub.s32 0, %v3374
      %v3377 = vsel %vm3375, %v3376, %v3374
      %v3378 = vclz %v3377
      %v3379 = vsub.s32 %v3378, 2
      %vm3380 = vcmp.gt.s32.totalorder 0, %v3379
      %v3381 = vsel %vm3380, 0, %v3379
      %v3382 = vsub.s32 32, %v3381
      %v3383 = vshll.u32 %v3374, %v3381
      %v3384 = vshrl.u32 %v3366, %v3382
      %v3385 = vor.u32 %v3383, %v3384
      %v3386 = vsub.s32 4294967266, %v3381
      %v3387 = vadd.s32 %v3386, 127
      %v3388 = vshll.u32 %v3387, 23
      %v3389 = vor.u32 4788187, %v3388
      %v3390 = vand.u32 2147483647, %v3389
      %v3392 = vcvt.s32.f32 %v3385
      %v3393 = vmul.f32 %v3392, %v3390
      %v3394 = vxor.u32 %v3393, 2147483648
      %v3395 = vsel %vm3312, %v3394, %v3393
      %v3396 = vsub.s32 4, %v3372
      %v3397 = vsel %vm3312, %v3396, %v3372
      %v3398 = vsel %vm3311, %v1733, %v3395
      %v3399 = vsel %vm3311, 0, %v3397
      %v3400 = vcosq.f32.pop %v3398
      %v3401 = vsinq.f32.pop %v3398
      %vm3402 = vweird.f32 %v1733
      %v3403 = vadd.s32 %v3399, 3
      %v3404 = vand.u32 %v3403, 3
      %vm3405 = vcmp.lt.s32.totalorder %v3404, 2
      %vm3406 = vcmp.eq.s32.totalorder %v3404, 0
      %v3407 = vxor.u32 %v3401, 2147483648
      %v3408 = vsel %vm3406, %v3400, %v3407
      %vm3409 = vcmp.eq.s32.totalorder %v3404, 2
      %v3410 = vxor.u32 %v3400, 2147483648
      %v3411 = vsel %vm3409, %v3410, %v3401
      %v3412 = vsel %vm3405, %v3408, %v3411
      %v3413 = vsel %vm3402, nan, %v3412
      %v3414 = vand.u32 2147483647, %v1734
      %vm3415 = vcmp.le.f32.partialorder %v3414, 0.7853982
      %vm3416 = vcmp.lt.s32.totalorder %v1734, 0
      %v3417 = vand.u32 %v1734, 2139095040
      %v3418 = vshrl.u32 %v3417, 23
      %v3419 = vsub.s32 %v3418, 127
      %v3420 = vand.u32 2147483647, %v1734
      %v3421 = vand.u32 %v3420, 8388607
      %v3422 = vor.u32 %v3421, 8388608
      %v3423 = vsub.s32 0, %v3422
      %v3424 = vadd.s32 %v3419, 1
      %vm3425 = vcmp.gt.s32.totalorder %v3424, 0
      %v3426 = vsel %vm3425, %v3424, 0
      %v3427 = vshrl.u32 %v3426, 5
      %v3428 = vand.u32 %v3426, 31
      %v3429 = vsub.s32 32, %v3428
      %v3430 = vshrl.u32 683565275, %v3429
      %v3431 = vshll.u32 683565275, %v3428
      %v3432 = vshrl.u32 2475754826, %v3429
      %v3433 = vor.u32 %v3431, %v3432
      %v3434 = vshll.u32 2475754826, %v3428
      %v3435 = vshrl.u32 2131351028, %v3429
      %v3436 = vor.u32 %v3434, %v3435
      %v3437 = vshll.u32 2131351028, %v3428
      %v3438 = vshrl.u32 2102212464, %v3429
      %v3439 = vor.u32 %v3437, %v3438
      %v3440 = vshll.u32 2102212464, %v3428
      %v3441 = vshrl.u32 920167782, %v3429
      %v3442 = vor.u32 %v3440, %v3441
      %v3443 = vshll.u32 920167782, %v3428
      %v3444 = vshrl.u32 1326507024, %v3429
      %v3445 = vor.u32 %v3443, %v3444
      %vm3446 = vcmp.lt.s32.totalorder %v3427, 1
      %vm3447 = vcmp.lt.s32.totalorder %v3427, 2
      %vm3448 = vcmp.lt.s32.totalorder %v3427, 3
      %vm3449 = vcmp.lt.s32.totalorder %v3427, 4
      %v3450 = vsel %vm3446, %v3430, %v3433
      %v3451 = vsel %vm3449, %v3439, 2102212464
      %v3452 = vsel %vm3448, %v3436, %v3451
      %v3453 = vsel %vm3447, %v3450, %v3452
      %v3454 = vsel %vm3446, %v3433, %v3436
      %v3455 = vsel %vm3449, %v3442, 920167782
      %v3456 = vsel %vm3448, %v3439, %v3455
      %v3457 = vsel %vm3447, %v3454, %v3456
      %v3458 = vsel %vm3446, %v3436, %v3439
      %v3459 = vsel %vm3449, %v3445, 1326507024
      %v3460 = vsel %vm3448, %v3442, %v3459
      %v3461 = vsel %vm3447, %v3458, %v3460
      %v3462 = vshll.u32 %v3422, 8
      %v3463 = vmul.u32.u64.compose %v3462, %v3461
      %v3464 = vextract.low.u32 %v3463
      %v3465 = vextract.high.u32 %v3463
      %v3466 = vmul.u32.u64.compose %v3462, %v3457
      %v3467 = vextract.low.u32 %v3466
      %v3468 = vextract.high.u32 %v3466
      %v3469 = vmul.u32 %v3462, %v3453
      %v3470 = vadd.s32 %v3465, %v3467
      %vm3471 = vc.u32 %v3465, %v3467
      %v3472 = vadd.s32 %v3468, 1
      %v3473 = vsel %vm3471, %v3472, %v3468
      %v3474 = vadd.s32 %v3469, %v3473
      %v3475 = vadd.s32 %v3474, 536870912
      %v3476 = vshrl.u32 %v3475, 30
      %v3477 = vshll.u32 %v3476, 30
      %v3478 = vsub.s32 %v3474, %v3477
      %vm3479 = vcmp.lt.s32.totalorder %v3478, 0
      %v3480 = vsub.s32 0, %v3478
      %v3481 = vsel %vm3479, %v3480, %v3478
      %v3482 = vclz %v3481
      %v3483 = vsub.s32 %v3482, 2
      %vm3484 = vcmp.gt.s32.totalorder 0, %v3483
      %v3485 = vsel %vm3484, 0, %v3483
      %v3486 = vsub.s32 32, %v3485
      %v3487 = vshll.u32 %v3478, %v3485
      %v3488 = vshrl.u32 %v3470, %v3486
      %v3489 = vor.u32 %v3487, %v3488
      %v3490 = vsub.s32 4294967266, %v3485
      %v3491 = vadd.s32 %v3490, 127
      %v3492 = vshll.u32 %v3491, 23
      %v3493 = vor.u32 4788187, %v3492
      %v3494 = vand.u32 2147483647, %v3493
      %v3496 = vcvt.s32.f32 %v3489
      %v3497 = vmul.f32 %v3496, %v3494
      %v3498 = vxor.u32 %v3497, 2147483648
      %v3499 = vsel %vm3416, %v3498, %v3497
      %v3500 = vsub.s32 4, %v3476
      %v3501 = vsel %vm3416, %v3500, %v3476
      %v3502 = vsel %vm3415, %v1734, %v3499
      %v3503 = vsel %vm3415, 0, %v3501
      %v3504 = vcosq.f32.pop %v3502
      %v3505 = vsinq.f32.pop %v3502
      %vm3506 = vweird.f32 %v1734
      %v3507 = vadd.s32 %v3503, 3
      %v3508 = vand.u32 %v3507, 3
      %vm3509 = vcmp.lt.s32.totalorder %v3508, 2
      %vm3510 = vcmp.eq.s32.totalorder %v3508, 0
      %v3511 = vxor.u32 %v3505, 2147483648
      %v3512 = vsel %vm3510, %v3504, %v3511
      %vm3513 = vcmp.eq.s32.totalorder %v3508, 2
      %v3514 = vxor.u32 %v3504, 2147483648
      %v3515 = vsel %vm3513, %v3514, %v3505
      %v3516 = vsel %vm3509, %v3512, %v3515
      %v3517 = vsel %vm3506, nan, %v3516
      %v3518 = vand.u32 2147483647, %v1735
      %vm3519 = vcmp.le.f32.partialorder %v3518, 0.7853982
      %vm3520 = vcmp.lt.s32.totalorder %v1735, 0
      %v3521 = vand.u32 %v1735, 2139095040
      %v3522 = vshrl.u32 %v3521, 23
      %v3523 = vsub.s32 %v3522, 127
      %v3524 = vand.u32 2147483647, %v1735
      %v3525 = vand.u32 %v3524, 8388607
      %v3526 = vor.u32 %v3525, 8388608
      %v3527 = vsub.s32 0, %v3526
      %v3528 = vadd.s32 %v3523, 1
      %vm3529 = vcmp.gt.s32.totalorder %v3528, 0
      %v3530 = vsel %vm3529, %v3528, 0
      %v3531 = vshrl.u32 %v3530, 5
      %v3532 = vand.u32 %v3530, 31
      %v3533 = vsub.s32 32, %v3532
      %v3534 = vshrl.u32 683565275, %v3533
      %v3535 = vshll.u32 683565275, %v3532
      %v3536 = vshrl.u32 2475754826, %v3533
      %v3537 = vor.u32 %v3535, %v3536
      %v3538 = vshll.u32 2475754826, %v3532
      %v3539 = vshrl.u32 2131351028, %v3533
      %v3540 = vor.u32 %v3538, %v3539
      %v3541 = vshll.u32 2131351028, %v3532
      %v3542 = vshrl.u32 2102212464, %v3533
      %v3543 = vor.u32 %v3541, %v3542
      %v3544 = vshll.u32 2102212464, %v3532
      %v3545 = vshrl.u32 920167782, %v3533
      %v3546 = vor.u32 %v3544, %v3545
      %v3547 = vshll.u32 920167782, %v3532
      %v3548 = vshrl.u32 1326507024, %v3533
      %v3549 = vor.u32 %v3547, %v3548
      %vm3550 = vcmp.lt.s32.totalorder %v3531, 1
      %vm3551 = vcmp.lt.s32.totalorder %v3531, 2
      %vm3552 = vcmp.lt.s32.totalorder %v3531, 3
      %vm3553 = vcmp.lt.s32.totalorder %v3531, 4
      %v3554 = vsel %vm3550, %v3534, %v3537
      %v3555 = vsel %vm3553, %v3543, 2102212464
      %v3556 = vsel %vm3552, %v3540, %v3555
      %v3557 = vsel %vm3551, %v3554, %v3556
      %v3558 = vsel %vm3550, %v3537, %v3540
      %v3559 = vsel %vm3553, %v3546, 920167782
      %v3560 = vsel %vm3552, %v3543, %v3559
      %v3561 = vsel %vm3551, %v3558, %v3560
      %v3562 = vsel %vm3550, %v3540, %v3543
      %v3563 = vsel %vm3553, %v3549, 1326507024
      %v3564 = vsel %vm3552, %v3546, %v3563
      %v3565 = vsel %vm3551, %v3562, %v3564
      %v3566 = vshll.u32 %v3526, 8
      %v3567 = vmul.u32.u64.compose %v3566, %v3565
      %v3568 = vextract.low.u32 %v3567
      %v3569 = vextract.high.u32 %v3567
      %v3570 = vmul.u32.u64.compose %v3566, %v3561
      %v3571 = vextract.low.u32 %v3570
      %v3572 = vextract.high.u32 %v3570
      %v3573 = vmul.u32 %v3566, %v3557
      %v3574 = vadd.s32 %v3569, %v3571
      %vm3575 = vc.u32 %v3569, %v3571
      %v3576 = vadd.s32 %v3572, 1
      %v3577 = vsel %vm3575, %v3576, %v3572
      %v3578 = vadd.s32 %v3573, %v3577
      %v3579 = vadd.s32 %v3578, 536870912
      %v3580 = vshrl.u32 %v3579, 30
      %v3581 = vshll.u32 %v3580, 30
      %v3582 = vsub.s32 %v3578, %v3581
      %vm3583 = vcmp.lt.s32.totalorder %v3582, 0
      %v3584 = vsub.s32 0, %v3582
      %v3585 = vsel %vm3583, %v3584, %v3582
      %v3586 = vclz %v3585
      %v3587 = vsub.s32 %v3586, 2
      %vm3588 = vcmp.gt.s32.totalorder 0, %v3587
      %v3589 = vsel %vm3588, 0, %v3587
      %v3590 = vsub.s32 32, %v3589
      %v3591 = vshll.u32 %v3582, %v3589
      %v3592 = vshrl.u32 %v3574, %v3590
      %v3593 = vor.u32 %v3591, %v3592
      %v3594 = vsub.s32 4294967266, %v3589
      %v3595 = vadd.s32 %v3594, 127
      %v3596 = vshll.u32 %v3595, 23
      %v3597 = vor.u32 4788187, %v3596
      %v3598 = vand.u32 2147483647, %v3597
      %v3600 = vcvt.s32.f32 %v3593
      %v3601 = vmul.f32 %v3600, %v3598
      %v3602 = vxor.u32 %v3601, 2147483648
      %v3603 = vsel %vm3520, %v3602, %v3601
      %v3604 = vsub.s32 4, %v3580
      %v3605 = vsel %vm3520, %v3604, %v3580
      %v3606 = vsel %vm3519, %v1735, %v3603
      %v3607 = vsel %vm3519, 0, %v3605
      %v3608 = vcosq.f32.pop %v3606
      %v3609 = vsinq.f32.pop %v3606
      %vm3610 = vweird.f32 %v1735
      %v3611 = vadd.s32 %v3607, 3
      %v3612 = vand.u32 %v3611, 3
      %vm3613 = vcmp.lt.s32.totalorder %v3612, 2
      %vm3614 = vcmp.eq.s32.totalorder %v3612, 0
      %v3615 = vxor.u32 %v3609, 2147483648
      %v3616 = vsel %vm3614, %v3608, %v3615
      %vm3617 = vcmp.eq.s32.totalorder %v3612, 2
      %v3618 = vxor.u32 %v3608, 2147483648
      %v3619 = vsel %vm3617, %v3618, %v3609
      %v3620 = vsel %vm3613, %v3616, %v3619
      %v3621 = vsel %vm3610, nan, %v3620
      %v3622 = vand.u32 2147483647, %v1736
      %vm3623 = vcmp.le.f32.partialorder %v3622, 0.7853982
      %vm3624 = vcmp.lt.s32.totalorder %v1736, 0
      %v3625 = vand.u32 %v1736, 2139095040
      %v3626 = vshrl.u32 %v3625, 23
      %v3627 = vsub.s32 %v3626, 127
      %v3628 = vand.u32 2147483647, %v1736
      %v3629 = vand.u32 %v3628, 8388607
      %v3630 = vor.u32 %v3629, 8388608
      %v3631 = vsub.s32 0, %v3630
      %v3632 = vadd.s32 %v3627, 1
      %vm3633 = vcmp.gt.s32.totalorder %v3632, 0
      %v3634 = vsel %vm3633, %v3632, 0
      %v3635 = vshrl.u32 %v3634, 5
      %v3636 = vand.u32 %v3634, 31
      %v3637 = vsub.s32 32, %v3636
      %v3638 = vshrl.u32 683565275, %v3637
      %v3639 = vshll.u32 683565275, %v3636
      %v3640 = vshrl.u32 2475754826, %v3637
      %v3641 = vor.u32 %v3639, %v3640
      %v3642 = vshll.u32 2475754826, %v3636
      %v3643 = vshrl.u32 2131351028, %v3637
      %v3644 = vor.u32 %v3642, %v3643
      %v3645 = vshll.u32 2131351028, %v3636
      %v3646 = vshrl.u32 2102212464, %v3637
      %v3647 = vor.u32 %v3645, %v3646
      %v3648 = vshll.u32 2102212464, %v3636
      %v3649 = vshrl.u32 920167782, %v3637
      %v3650 = vor.u32 %v3648, %v3649
      %v3651 = vshll.u32 920167782, %v3636
      %v3652 = vshrl.u32 1326507024, %v3637
      %v3653 = vor.u32 %v3651, %v3652
      %vm3654 = vcmp.lt.s32.totalorder %v3635, 1
      %vm3655 = vcmp.lt.s32.totalorder %v3635, 2
      %vm3656 = vcmp.lt.s32.totalorder %v3635, 3
      %vm3657 = vcmp.lt.s32.totalorder %v3635, 4
      %v3658 = vsel %vm3654, %v3638, %v3641
      %v3659 = vsel %vm3657, %v3647, 2102212464
      %v3660 = vsel %vm3656, %v3644, %v3659
      %v3661 = vsel %vm3655, %v3658, %v3660
      %v3662 = vsel %vm3654, %v3641, %v3644
      %v3663 = vsel %vm3657, %v3650, 920167782
      %v3664 = vsel %vm3656, %v3647, %v3663
      %v3665 = vsel %vm3655, %v3662, %v3664
      %v3666 = vsel %vm3654, %v3644, %v3647
      %v3667 = vsel %vm3657, %v3653, 1326507024
      %v3668 = vsel %vm3656, %v3650, %v3667
      %v3669 = vsel %vm3655, %v3666, %v3668
      %v3670 = vshll.u32 %v3630, 8
      %v3671 = vmul.u32.u64.compose %v3670, %v3669
      %v3672 = vextract.low.u32 %v3671
      %v3673 = vextract.high.u32 %v3671
      %v3674 = vmul.u32.u64.compose %v3670, %v3665
      %v3675 = vextract.low.u32 %v3674
      %v3676 = vextract.high.u32 %v3674
      %v3677 = vmul.u32 %v3670, %v3661
      %v3678 = vadd.s32 %v3673, %v3675
      %vm3679 = vc.u32 %v3673, %v3675
      %v3680 = vadd.s32 %v3676, 1
      %v3681 = vsel %vm3679, %v3680, %v3676
      %v3682 = vadd.s32 %v3677, %v3681
      %v3683 = vadd.s32 %v3682, 536870912
      %v3684 = vshrl.u32 %v3683, 30
      %v3685 = vshll.u32 %v3684, 30
      %v3686 = vsub.s32 %v3682, %v3685
      %vm3687 = vcmp.lt.s32.totalorder %v3686, 0
      %v3688 = vsub.s32 0, %v3686
      %v3689 = vsel %vm3687, %v3688, %v3686
      %v3690 = vclz %v3689
      %v3691 = vsub.s32 %v3690, 2
      %vm3692 = vcmp.gt.s32.totalorder 0, %v3691
      %v3693 = vsel %vm3692, 0, %v3691
      %v3694 = vsub.s32 32, %v3693
      %v3695 = vshll.u32 %v3686, %v3693
      %v3696 = vshrl.u32 %v3678, %v3694
      %v3697 = vor.u32 %v3695, %v3696
      %v3698 = vsub.s32 4294967266, %v3693
      %v3699 = vadd.s32 %v3698, 127
      %v3700 = vshll.u32 %v3699, 23
      %v3701 = vor.u32 4788187, %v3700
      %v3702 = vand.u32 2147483647, %v3701
      %v3704 = vcvt.s32.f32 %v3697
      %v3705 = vmul.f32 %v3704, %v3702
      %v3706 = vxor.u32 %v3705, 2147483648
      %v3707 = vsel %vm3624, %v3706, %v3705
      %v3708 = vsub.s32 4, %v3684
      %v3709 = vsel %vm3624, %v3708, %v3684
      %v3710 = vsel %vm3623, %v1736, %v3707
      %v3711 = vsel %vm3623, 0, %v3709
      %v3712 = vcosq.f32.pop %v3710
      %v3713 = vsinq.f32.pop %v3710
      %vm3714 = vweird.f32 %v1736
      %v3715 = vadd.s32 %v3711, 3
      %v3716 = vand.u32 %v3715, 3
      %vm3717 = vcmp.lt.s32.totalorder %v3716, 2
      %vm3718 = vcmp.eq.s32.totalorder %v3716, 0
      %v3719 = vxor.u32 %v3713, 2147483648
      %v3720 = vsel %vm3718, %v3712, %v3719
      %vm3721 = vcmp.eq.s32.totalorder %v3716, 2
      %v3722 = vxor.u32 %v3712, 2147483648
      %v3723 = vsel %vm3721, %v3722, %v3713
      %v3724 = vsel %vm3717, %v3720, %v3723
      %v3725 = vsel %vm3714, nan, %v3724
      %v3726 = vand.u32 2147483647, %v1737
      %vm3727 = vcmp.le.f32.partialorder %v3726, 0.7853982
      %vm3728 = vcmp.lt.s32.totalorder %v1737, 0
      %v3729 = vand.u32 %v1737, 2139095040
      %v3730 = vshrl.u32 %v3729, 23
      %v3731 = vsub.s32 %v3730, 127
      %v3732 = vand.u32 2147483647, %v1737
      %v3733 = vand.u32 %v3732, 8388607
      %v3734 = vor.u32 %v3733, 8388608
      %v3735 = vsub.s32 0, %v3734
      %v3736 = vadd.s32 %v3731, 1
      %vm3737 = vcmp.gt.s32.totalorder %v3736, 0
      %v3738 = vsel %vm3737, %v3736, 0
      %v3739 = vshrl.u32 %v3738, 5
      %v3740 = vand.u32 %v3738, 31
      %v3741 = vsub.s32 32, %v3740
      %v3742 = vshrl.u32 683565275, %v3741
      %v3743 = vshll.u32 683565275, %v3740
      %v3744 = vshrl.u32 2475754826, %v3741
      %v3745 = vor.u32 %v3743, %v3744
      %v3746 = vshll.u32 2475754826, %v3740
      %v3747 = vshrl.u32 2131351028, %v3741
      %v3748 = vor.u32 %v3746, %v3747
      %v3749 = vshll.u32 2131351028, %v3740
      %v3750 = vshrl.u32 2102212464, %v3741
      %v3751 = vor.u32 %v3749, %v3750
      %v3752 = vshll.u32 2102212464, %v3740
      %v3753 = vshrl.u32 920167782, %v3741
      %v3754 = vor.u32 %v3752, %v3753
      %v3755 = vshll.u32 920167782, %v3740
      %v3756 = vshrl.u32 1326507024, %v3741
      %v3757 = vor.u32 %v3755, %v3756
      %vm3758 = vcmp.lt.s32.totalorder %v3739, 1
      %vm3759 = vcmp.lt.s32.totalorder %v3739, 2
      %vm3760 = vcmp.lt.s32.totalorder %v3739, 3
      %vm3761 = vcmp.lt.s32.totalorder %v3739, 4
      %v3762 = vsel %vm3758, %v3742, %v3745
      %v3763 = vsel %vm3761, %v3751, 2102212464
      %v3764 = vsel %vm3760, %v3748, %v3763
      %v3765 = vsel %vm3759, %v3762, %v3764
      %v3766 = vsel %vm3758, %v3745, %v3748
      %v3767 = vsel %vm3761, %v3754, 920167782
      %v3768 = vsel %vm3760, %v3751, %v3767
      %v3769 = vsel %vm3759, %v3766, %v3768
      %v3770 = vsel %vm3758, %v3748, %v3751
      %v3771 = vsel %vm3761, %v3757, 1326507024
      %v3772 = vsel %vm3760, %v3754, %v3771
      %v3773 = vsel %vm3759, %v3770, %v3772
      %v3774 = vshll.u32 %v3734, 8
      %v3775 = vmul.u32.u64.compose %v3774, %v3773
      %v3776 = vextract.low.u32 %v3775
      %v3777 = vextract.high.u32 %v3775
      %v3778 = vmul.u32.u64.compose %v3774, %v3769
      %v3779 = vextract.low.u32 %v3778
      %v3780 = vextract.high.u32 %v3778
      %v3781 = vmul.u32 %v3774, %v3765
      %v3782 = vadd.s32 %v3777, %v3779
      %vm3783 = vc.u32 %v3777, %v3779
      %v3784 = vadd.s32 %v3780, 1
      %v3785 = vsel %vm3783, %v3784, %v3780
      %v3786 = vadd.s32 %v3781, %v3785
      %v3787 = vadd.s32 %v3786, 536870912
      %v3788 = vshrl.u32 %v3787, 30
      %v3789 = vshll.u32 %v3788, 30
      %v3790 = vsub.s32 %v3786, %v3789
      %vm3791 = vcmp.lt.s32.totalorder %v3790, 0
      %v3792 = vsub.s32 0, %v3790
      %v3793 = vsel %vm3791, %v3792, %v3790
      %v3794 = vclz %v3793
      %v3795 = vsub.s32 %v3794, 2
      %vm3796 = vcmp.gt.s32.totalorder 0, %v3795
      %v3797 = vsel %vm3796, 0, %v3795
      %v3798 = vsub.s32 32, %v3797
      %v3799 = vshll.u32 %v3790, %v3797
      %v3800 = vshrl.u32 %v3782, %v3798
      %v3801 = vor.u32 %v3799, %v3800
      %v3802 = vsub.s32 4294967266, %v3797
      %v3803 = vadd.s32 %v3802, 127
      %v3804 = vshll.u32 %v3803, 23
      %v3805 = vor.u32 4788187, %v3804
      %v3806 = vand.u32 2147483647, %v3805
      %v3808 = vcvt.s32.f32 %v3801
      %v3809 = vmul.f32 %v3808, %v3806
      %v3810 = vxor.u32 %v3809, 2147483648
      %v3811 = vsel %vm3728, %v3810, %v3809
      %v3812 = vsub.s32 4, %v3788
      %v3813 = vsel %vm3728, %v3812, %v3788
      %v3814 = vsel %vm3727, %v1737, %v3811
      %v3815 = vsel %vm3727, 0, %v3813
      %v3816 = vcosq.f32.pop %v3814
      %v3817 = vsinq.f32.pop %v3814
      %vm3818 = vweird.f32 %v1737
      %v3819 = vadd.s32 %v3815, 3
      %v3820 = vand.u32 %v3819, 3
      %vm3821 = vcmp.lt.s32.totalorder %v3820, 2
      %vm3822 = vcmp.eq.s32.totalorder %v3820, 0
      %v3823 = vxor.u32 %v3817, 2147483648
      %v3824 = vsel %vm3822, %v3816, %v3823
      %vm3825 = vcmp.eq.s32.totalorder %v3820, 2
      %v3826 = vxor.u32 %v3816, 2147483648
      %v3827 = vsel %vm3825, %v3826, %v3817
      %v3828 = vsel %vm3821, %v3824, %v3827
      %v3829 = vsel %vm3818, nan, %v3828
      %v3830 = vand.u32 2147483647, %v1738
      %vm3831 = vcmp.le.f32.partialorder %v3830, 0.7853982
      %vm3832 = vcmp.lt.s32.totalorder %v1738, 0
      %v3833 = vand.u32 %v1738, 2139095040
      %v3834 = vshrl.u32 %v3833, 23
      %v3835 = vsub.s32 %v3834, 127
      %v3836 = vand.u32 2147483647, %v1738
      %v3837 = vand.u32 %v3836, 8388607
      %v3838 = vor.u32 %v3837, 8388608
      %v3839 = vsub.s32 0, %v3838
      %v3840 = vadd.s32 %v3835, 1
      %vm3841 = vcmp.gt.s32.totalorder %v3840, 0
      %v3842 = vsel %vm3841, %v3840, 0
      %v3843 = vshrl.u32 %v3842, 5
      %v3844 = vand.u32 %v3842, 31
      %v3845 = vsub.s32 32, %v3844
      %v3846 = vshrl.u32 683565275, %v3845
      %v3847 = vshll.u32 683565275, %v3844
      %v3848 = vshrl.u32 2475754826, %v3845
      %v3849 = vor.u32 %v3847, %v3848
      %v3850 = vshll.u32 2475754826, %v3844
      %v3851 = vshrl.u32 2131351028, %v3845
      %v3852 = vor.u32 %v3850, %v3851
      %v3853 = vshll.u32 2131351028, %v3844
      %v3854 = vshrl.u32 2102212464, %v3845
      %v3855 = vor.u32 %v3853, %v3854
      %v3856 = vshll.u32 2102212464, %v3844
      %v3857 = vshrl.u32 920167782, %v3845
      %v3858 = vor.u32 %v3856, %v3857
      %v3859 = vshll.u32 920167782, %v3844
      %v3860 = vshrl.u32 1326507024, %v3845
      %v3861 = vor.u32 %v3859, %v3860
      %vm3862 = vcmp.lt.s32.totalorder %v3843, 1
      %vm3863 = vcmp.lt.s32.totalorder %v3843, 2
      %vm3864 = vcmp.lt.s32.totalorder %v3843, 3
      %vm3865 = vcmp.lt.s32.totalorder %v3843, 4
      %v3866 = vsel %vm3862, %v3846, %v3849
      %v3867 = vsel %vm3865, %v3855, 2102212464
      %v3868 = vsel %vm3864, %v3852, %v3867
      %v3869 = vsel %vm3863, %v3866, %v3868
      %v3870 = vsel %vm3862, %v3849, %v3852
      %v3871 = vsel %vm3865, %v3858, 920167782
      %v3872 = vsel %vm3864, %v3855, %v3871
      %v3873 = vsel %vm3863, %v3870, %v3872
      %v3874 = vsel %vm3862, %v3852, %v3855
      %v3875 = vsel %vm3865, %v3861, 1326507024
      %v3876 = vsel %vm3864, %v3858, %v3875
      %v3877 = vsel %vm3863, %v3874, %v3876
      %v3878 = vshll.u32 %v3838, 8
      %v3879 = vmul.u32.u64.compose %v3878, %v3877
      %v3880 = vextract.low.u32 %v3879
      %v3881 = vextract.high.u32 %v3879
      %v3882 = vmul.u32.u64.compose %v3878, %v3873
      %v3883 = vextract.low.u32 %v3882
      %v3884 = vextract.high.u32 %v3882
      %v3885 = vmul.u32 %v3878, %v3869
      %v3886 = vadd.s32 %v3881, %v3883
      %vm3887 = vc.u32 %v3881, %v3883
      %v3888 = vadd.s32 %v3884, 1
      %v3889 = vsel %vm3887, %v3888, %v3884
      %v3890 = vadd.s32 %v3885, %v3889
      %v3891 = vadd.s32 %v3890, 536870912
      %v3892 = vshrl.u32 %v3891, 30
      %v3893 = vshll.u32 %v3892, 30
      %v3894 = vsub.s32 %v3890, %v3893
      %vm3895 = vcmp.lt.s32.totalorder %v3894, 0
      %v3896 = vsub.s32 0, %v3894
      %v3897 = vsel %vm3895, %v3896, %v3894
      %v3898 = vclz %v3897
      %v3899 = vsub.s32 %v3898, 2
      %vm3900 = vcmp.gt.s32.totalorder 0, %v3899
      %v3901 = vsel %vm3900, 0, %v3899
      %v3902 = vsub.s32 32, %v3901
      %v3903 = vshll.u32 %v3894, %v3901
      %v3904 = vshrl.u32 %v3886, %v3902
      %v3905 = vor.u32 %v3903, %v3904
      %v3906 = vsub.s32 4294967266, %v3901
      %v3907 = vadd.s32 %v3906, 127
      %v3908 = vshll.u32 %v3907, 23
      %v3909 = vor.u32 4788187, %v3908
      %v3910 = vand.u32 2147483647, %v3909
      %v3912 = vcvt.s32.f32 %v3905
      %v3913 = vmul.f32 %v3912, %v3910
      %v3914 = vxor.u32 %v3913, 2147483648
      %v3915 = vsel %vm3832, %v3914, %v3913
      %v3916 = vsub.s32 4, %v3892
      %v3917 = vsel %vm3832, %v3916, %v3892
      %v3918 = vsel %vm3831, %v1738, %v3915
      %v3919 = vsel %vm3831, 0, %v3917
      %v3920 = vcosq.f32.pop %v3918
      %v3921 = vsinq.f32.pop %v3918
      %vm3922 = vweird.f32 %v1738
      %v3923 = vadd.s32 %v3919, 3
      %v3924 = vand.u32 %v3923, 3
      %vm3925 = vcmp.lt.s32.totalorder %v3924, 2
      %vm3926 = vcmp.eq.s32.totalorder %v3924, 0
      %v3927 = vxor.u32 %v3921, 2147483648
      %v3928 = vsel %vm3926, %v3920, %v3927
      %vm3929 = vcmp.eq.s32.totalorder %v3924, 2
      %v3930 = vxor.u32 %v3920, 2147483648
      %v3931 = vsel %vm3929, %v3930, %v3921
      %v3932 = vsel %vm3925, %v3928, %v3931
      %v3933 = vsel %vm3922, nan, %v3932
      %v3934 = vand.u32 2147483647, %v1739
      %vm3935 = vcmp.le.f32.partialorder %v3934, 0.7853982
      %vm3936 = vcmp.lt.s32.totalorder %v1739, 0
      %v3937 = vand.u32 %v1739, 2139095040
      %v3938 = vshrl.u32 %v3937, 23
      %v3939 = vsub.s32 %v3938, 127
      %v3940 = vand.u32 2147483647, %v1739
      %v3941 = vand.u32 %v3940, 8388607
      %v3942 = vor.u32 %v3941, 8388608
      %v3943 = vsub.s32 0, %v3942
      %v3944 = vadd.s32 %v3939, 1
      %vm3945 = vcmp.gt.s32.totalorder %v3944, 0
      %v3946 = vsel %vm3945, %v3944, 0
      %v3947 = vshrl.u32 %v3946, 5
      %v3948 = vand.u32 %v3946, 31
      %v3949 = vsub.s32 32, %v3948
      %v3950 = vshrl.u32 683565275, %v3949
      %v3951 = vshll.u32 683565275, %v3948
      %v3952 = vshrl.u32 2475754826, %v3949
      %v3953 = vor.u32 %v3951, %v3952
      %v3954 = vshll.u32 2475754826, %v3948
      %v3955 = vshrl.u32 2131351028, %v3949
      %v3956 = vor.u32 %v3954, %v3955
      %v3957 = vshll.u32 2131351028, %v3948
      %v3958 = vshrl.u32 2102212464, %v3949
      %v3959 = vor.u32 %v3957, %v3958
      %v3960 = vshll.u32 2102212464, %v3948
      %v3961 = vshrl.u32 920167782, %v3949
      %v3962 = vor.u32 %v3960, %v3961
      %v3963 = vshll.u32 920167782, %v3948
      %v3964 = vshrl.u32 1326507024, %v3949
      %v3965 = vor.u32 %v3963, %v3964
      %vm3966 = vcmp.lt.s32.totalorder %v3947, 1
      %vm3967 = vcmp.lt.s32.totalorder %v3947, 2
      %vm3968 = vcmp.lt.s32.totalorder %v3947, 3
      %vm3969 = vcmp.lt.s32.totalorder %v3947, 4
      %v3970 = vsel %vm3966, %v3950, %v3953
      %v3971 = vsel %vm3969, %v3959, 2102212464
      %v3972 = vsel %vm3968, %v3956, %v3971
      %v3973 = vsel %vm3967, %v3970, %v3972
      %v3974 = vsel %vm3966, %v3953, %v3956
      %v3975 = vsel %vm3969, %v3962, 920167782
      %v3976 = vsel %vm3968, %v3959, %v3975
      %v3977 = vsel %vm3967, %v3974, %v3976
      %v3978 = vsel %vm3966, %v3956, %v3959
      %v3979 = vsel %vm3969, %v3965, 1326507024
      %v3980 = vsel %vm3968, %v3962, %v3979
      %v3981 = vsel %vm3967, %v3978, %v3980
      %v3982 = vshll.u32 %v3942, 8
      %v3983 = vmul.u32.u64.compose %v3982, %v3981
      %v3984 = vextract.low.u32 %v3983
      %v3985 = vextract.high.u32 %v3983
      %v3986 = vmul.u32.u64.compose %v3982, %v3977
      %v3987 = vextract.low.u32 %v3986
      %v3988 = vextract.high.u32 %v3986
      %v3989 = vmul.u32 %v3982, %v3973
      %v3990 = vadd.s32 %v3985, %v3987
      %vm3991 = vc.u32 %v3985, %v3987
      %v3992 = vadd.s32 %v3988, 1
      %v3993 = vsel %vm3991, %v3992, %v3988
      %v3994 = vadd.s32 %v3989, %v3993
      %v3995 = vadd.s32 %v3994, 536870912
      %v3996 = vshrl.u32 %v3995, 30
      %v3997 = vshll.u32 %v3996, 30
      %v3998 = vsub.s32 %v3994, %v3997
      %vm3999 = vcmp.lt.s32.totalorder %v3998, 0
      %v4000 = vsub.s32 0, %v3998
      %v4001 = vsel %vm3999, %v4000, %v3998
      %v4002 = vclz %v4001
      %v4003 = vsub.s32 %v4002, 2
      %vm4004 = vcmp.gt.s32.totalorder 0, %v4003
      %v4005 = vsel %vm4004, 0, %v4003
      %v4006 = vsub.s32 32, %v4005
      %v4007 = vshll.u32 %v3998, %v4005
      %v4008 = vshrl.u32 %v3990, %v4006
      %v4009 = vor.u32 %v4007, %v4008
      %v4010 = vsub.s32 4294967266, %v4005
      %v4011 = vadd.s32 %v4010, 127
      %v4012 = vshll.u32 %v4011, 23
      %v4013 = vor.u32 4788187, %v4012
      %v4014 = vand.u32 2147483647, %v4013
      %v4016 = vcvt.s32.f32 %v4009
      %v4017 = vmul.f32 %v4016, %v4014
      %v4018 = vxor.u32 %v4017, 2147483648
      %v4019 = vsel %vm3936, %v4018, %v4017
      %v4020 = vsub.s32 4, %v3996
      %v4021 = vsel %vm3936, %v4020, %v3996
      %v4022 = vsel %vm3935, %v1739, %v4019
      %v4023 = vsel %vm3935, 0, %v4021
      %v4024 = vcosq.f32.pop %v4022
      %v4025 = vsinq.f32.pop %v4022
      %vm4026 = vweird.f32 %v1739
      %v4027 = vadd.s32 %v4023, 3
      %v4028 = vand.u32 %v4027, 3
      %vm4029 = vcmp.lt.s32.totalorder %v4028, 2
      %vm4030 = vcmp.eq.s32.totalorder %v4028, 0
      %v4031 = vxor.u32 %v4025, 2147483648
      %v4032 = vsel %vm4030, %v4024, %v4031
      %vm4033 = vcmp.eq.s32.totalorder %v4028, 2
      %v4034 = vxor.u32 %v4024, 2147483648
      %v4035 = vsel %vm4033, %v4034, %v4025
      %v4036 = vsel %vm4029, %v4032, %v4035
      %v4037 = vsel %vm4026, nan, %v4036
      %v4038 = vand.u32 2147483647, %v1740
      %vm4039 = vcmp.le.f32.partialorder %v4038, 0.7853982
      %vm4040 = vcmp.lt.s32.totalorder %v1740, 0
      %v4041 = vand.u32 %v1740, 2139095040
      %v4042 = vshrl.u32 %v4041, 23
      %v4043 = vsub.s32 %v4042, 127
      %v4044 = vand.u32 2147483647, %v1740
      %v4045 = vand.u32 %v4044, 8388607
      %v4046 = vor.u32 %v4045, 8388608
      %v4047 = vsub.s32 0, %v4046
      %v4048 = vadd.s32 %v4043, 1
      %vm4049 = vcmp.gt.s32.totalorder %v4048, 0
      %v4050 = vsel %vm4049, %v4048, 0
      %v4051 = vshrl.u32 %v4050, 5
      %v4052 = vand.u32 %v4050, 31
      %v4053 = vsub.s32 32, %v4052
      %v4054 = vshrl.u32 683565275, %v4053
      %v4055 = vshll.u32 683565275, %v4052
      %v4056 = vshrl.u32 2475754826, %v4053
      %v4057 = vor.u32 %v4055, %v4056
      %v4058 = vshll.u32 2475754826, %v4052
      %v4059 = vshrl.u32 2131351028, %v4053
      %v4060 = vor.u32 %v4058, %v4059
      %v4061 = vshll.u32 2131351028, %v4052
      %v4062 = vshrl.u32 2102212464, %v4053
      %v4063 = vor.u32 %v4061, %v4062
      %v4064 = vshll.u32 2102212464, %v4052
      %v4065 = vshrl.u32 920167782, %v4053
      %v4066 = vor.u32 %v4064, %v4065
      %v4067 = vshll.u32 920167782, %v4052
      %v4068 = vshrl.u32 1326507024, %v4053
      %v4069 = vor.u32 %v4067, %v4068
      %vm4070 = vcmp.lt.s32.totalorder %v4051, 1
      %vm4071 = vcmp.lt.s32.totalorder %v4051, 2
      %vm4072 = vcmp.lt.s32.totalorder %v4051, 3
      %vm4073 = vcmp.lt.s32.totalorder %v4051, 4
      %v4074 = vsel %vm4070, %v4054, %v4057
      %v4075 = vsel %vm4073, %v4063, 2102212464
      %v4076 = vsel %vm4072, %v4060, %v4075
      %v4077 = vsel %vm4071, %v4074, %v4076
      %v4078 = vsel %vm4070, %v4057, %v4060
      %v4079 = vsel %vm4073, %v4066, 920167782
      %v4080 = vsel %vm4072, %v4063, %v4079
      %v4081 = vsel %vm4071, %v4078, %v4080
      %v4082 = vsel %vm4070, %v4060, %v4063
      %v4083 = vsel %vm4073, %v4069, 1326507024
      %v4084 = vsel %vm4072, %v4066, %v4083
      %v4085 = vsel %vm4071, %v4082, %v4084
      %v4086 = vshll.u32 %v4046, 8
      %v4087 = vmul.u32.u64.compose %v4086, %v4085
      %v4088 = vextract.low.u32 %v4087
      %v4089 = vextract.high.u32 %v4087
      %v4090 = vmul.u32.u64.compose %v4086, %v4081
      %v4091 = vextract.low.u32 %v4090
      %v4092 = vextract.high.u32 %v4090
      %v4093 = vmul.u32 %v4086, %v4077
      %v4094 = vadd.s32 %v4089, %v4091
      %vm4095 = vc.u32 %v4089, %v4091
      %v4096 = vadd.s32 %v4092, 1
      %v4097 = vsel %vm4095, %v4096, %v4092
      %v4098 = vadd.s32 %v4093, %v4097
      %v4099 = vadd.s32 %v4098, 536870912
      %v4100 = vshrl.u32 %v4099, 30
      %v4101 = vshll.u32 %v4100, 30
      %v4102 = vsub.s32 %v4098, %v4101
      %vm4103 = vcmp.lt.s32.totalorder %v4102, 0
      %v4104 = vsub.s32 0, %v4102
      %v4105 = vsel %vm4103, %v4104, %v4102
      %v4106 = vclz %v4105
      %v4107 = vsub.s32 %v4106, 2
      %vm4108 = vcmp.gt.s32.totalorder 0, %v4107
      %v4109 = vsel %vm4108, 0, %v4107
      %v4110 = vsub.s32 32, %v4109
      %v4111 = vshll.u32 %v4102, %v4109
      %v4112 = vshrl.u32 %v4094, %v4110
      %v4113 = vor.u32 %v4111, %v4112
      %v4114 = vsub.s32 4294967266, %v4109
      %v4115 = vadd.s32 %v4114, 127
      %v4116 = vshll.u32 %v4115, 23
      %v4117 = vor.u32 4788187, %v4116
      %v4118 = vand.u32 2147483647, %v4117
      %v4120 = vcvt.s32.f32 %v4113
      %v4121 = vmul.f32 %v4120, %v4118
      %v4122 = vxor.u32 %v4121, 2147483648
      %v4123 = vsel %vm4040, %v4122, %v4121
      %v4124 = vsub.s32 4, %v4100
      %v4125 = vsel %vm4040, %v4124, %v4100
      %v4126 = vsel %vm4039, %v1740, %v4123
      %v4127 = vsel %vm4039, 0, %v4125
      %v4128 = vcosq.f32.pop %v4126
      %v4129 = vsinq.f32.pop %v4126
      %vm4130 = vweird.f32 %v1740
      %v4131 = vadd.s32 %v4127, 3
      %v4132 = vand.u32 %v4131, 3
      %vm4133 = vcmp.lt.s32.totalorder %v4132, 2
      %vm4134 = vcmp.eq.s32.totalorder %v4132, 0
      %v4135 = vxor.u32 %v4129, 2147483648
      %v4136 = vsel %vm4134, %v4128, %v4135
      %vm4137 = vcmp.eq.s32.totalorder %v4132, 2
      %v4138 = vxor.u32 %v4128, 2147483648
      %v4139 = vsel %vm4137, %v4138, %v4129
      %v4140 = vsel %vm4133, %v4136, %v4139
      %v4141 = vsel %vm4130, nan, %v4140
      %v4142 = vand.u32 2147483647, %v1741
      %vm4143 = vcmp.le.f32.partialorder %v4142, 0.7853982
      %vm4144 = vcmp.lt.s32.totalorder %v1741, 0
      %v4145 = vand.u32 %v1741, 2139095040
      %v4146 = vshrl.u32 %v4145, 23
      %v4147 = vsub.s32 %v4146, 127
      %v4148 = vand.u32 2147483647, %v1741
      %v4149 = vand.u32 %v4148, 8388607
      %v4150 = vor.u32 %v4149, 8388608
      %v4151 = vsub.s32 0, %v4150
      %v4152 = vadd.s32 %v4147, 1
      %vm4153 = vcmp.gt.s32.totalorder %v4152, 0
      %v4154 = vsel %vm4153, %v4152, 0
      %v4155 = vshrl.u32 %v4154, 5
      %v4156 = vand.u32 %v4154, 31
      %v4157 = vsub.s32 32, %v4156
      %v4158 = vshrl.u32 683565275, %v4157
      %v4159 = vshll.u32 683565275, %v4156
      %v4160 = vshrl.u32 2475754826, %v4157
      %v4161 = vor.u32 %v4159, %v4160
      %v4162 = vshll.u32 2475754826, %v4156
      %v4163 = vshrl.u32 2131351028, %v4157
      %v4164 = vor.u32 %v4162, %v4163
      %v4165 = vshll.u32 2131351028, %v4156
      %v4166 = vshrl.u32 2102212464, %v4157
      %v4167 = vor.u32 %v4165, %v4166
      %v4168 = vshll.u32 2102212464, %v4156
      %v4169 = vshrl.u32 920167782, %v4157
      %v4170 = vor.u32 %v4168, %v4169
      %v4171 = vshll.u32 920167782, %v4156
      %v4172 = vshrl.u32 1326507024, %v4157
      %v4173 = vor.u32 %v4171, %v4172
      %vm4174 = vcmp.lt.s32.totalorder %v4155, 1
      %vm4175 = vcmp.lt.s32.totalorder %v4155, 2
      %vm4176 = vcmp.lt.s32.totalorder %v4155, 3
      %vm4177 = vcmp.lt.s32.totalorder %v4155, 4
      %v4178 = vsel %vm4174, %v4158, %v4161
      %v4179 = vsel %vm4177, %v4167, 2102212464
      %v4180 = vsel %vm4176, %v4164, %v4179
      %v4181 = vsel %vm4175, %v4178, %v4180
      %v4182 = vsel %vm4174, %v4161, %v4164
      %v4183 = vsel %vm4177, %v4170, 920167782
      %v4184 = vsel %vm4176, %v4167, %v4183
      %v4185 = vsel %vm4175, %v4182, %v4184
      %v4186 = vsel %vm4174, %v4164, %v4167
      %v4187 = vsel %vm4177, %v4173, 1326507024
      %v4188 = vsel %vm4176, %v4170, %v4187
      %v4189 = vsel %vm4175, %v4186, %v4188
      %v4190 = vshll.u32 %v4150, 8
      %v4191 = vmul.u32.u64.compose %v4190, %v4189
      %v4192 = vextract.low.u32 %v4191
      %v4193 = vextract.high.u32 %v4191
      %v4194 = vmul.u32.u64.compose %v4190, %v4185
      %v4195 = vextract.low.u32 %v4194
      %v4196 = vextract.high.u32 %v4194
      %v4197 = vmul.u32 %v4190, %v4181
      %v4198 = vadd.s32 %v4193, %v4195
      %vm4199 = vc.u32 %v4193, %v4195
      %v4200 = vadd.s32 %v4196, 1
      %v4201 = vsel %vm4199, %v4200, %v4196
      %v4202 = vadd.s32 %v4197, %v4201
      %v4203 = vadd.s32 %v4202, 536870912
      %v4204 = vshrl.u32 %v4203, 30
      %v4205 = vshll.u32 %v4204, 30
      %v4206 = vsub.s32 %v4202, %v4205
      %vm4207 = vcmp.lt.s32.totalorder %v4206, 0
      %v4208 = vsub.s32 0, %v4206
      %v4209 = vsel %vm4207, %v4208, %v4206
      %v4210 = vclz %v4209
      %v4211 = vsub.s32 %v4210, 2
      %vm4212 = vcmp.gt.s32.totalorder 0, %v4211
      %v4213 = vsel %vm4212, 0, %v4211
      %v4214 = vsub.s32 32, %v4213
      %v4215 = vshll.u32 %v4206, %v4213
      %v4216 = vshrl.u32 %v4198, %v4214
      %v4217 = vor.u32 %v4215, %v4216
      %v4218 = vsub.s32 4294967266, %v4213
      %v4219 = vadd.s32 %v4218, 127
      %v4220 = vshll.u32 %v4219, 23
      %v4221 = vor.u32 4788187, %v4220
      %v4222 = vand.u32 2147483647, %v4221
      %v4224 = vcvt.s32.f32 %v4217
      %v4225 = vmul.f32 %v4224, %v4222
      %v4226 = vxor.u32 %v4225, 2147483648
      %v4227 = vsel %vm4144, %v4226, %v4225
      %v4228 = vsub.s32 4, %v4204
      %v4229 = vsel %vm4144, %v4228, %v4204
      %v4230 = vsel %vm4143, %v1741, %v4227
      %v4231 = vsel %vm4143, 0, %v4229
      %v4232 = vcosq.f32.pop %v4230
      %v4233 = vsinq.f32.pop %v4230
      %vm4234 = vweird.f32 %v1741
      %v4235 = vadd.s32 %v4231, 3
      %v4236 = vand.u32 %v4235, 3
      %vm4237 = vcmp.lt.s32.totalorder %v4236, 2
      %vm4238 = vcmp.eq.s32.totalorder %v4236, 0
      %v4239 = vxor.u32 %v4233, 2147483648
      %v4240 = vsel %vm4238, %v4232, %v4239
      %vm4241 = vcmp.eq.s32.totalorder %v4236, 2
      %v4242 = vxor.u32 %v4232, 2147483648
      %v4243 = vsel %vm4241, %v4242, %v4233
      %v4244 = vsel %vm4237, %v4240, %v4243
      %v4245 = vsel %vm4234, nan, %v4244
      %v4246 = vand.u32 2147483647, %v1742
      %vm4247 = vcmp.le.f32.partialorder %v4246, 0.7853982
      %vm4248 = vcmp.lt.s32.totalorder %v1742, 0
      %v4249 = vand.u32 %v1742, 2139095040
      %v4250 = vshrl.u32 %v4249, 23
      %v4251 = vsub.s32 %v4250, 127
      %v4252 = vand.u32 2147483647, %v1742
      %v4253 = vand.u32 %v4252, 8388607
      %v4254 = vor.u32 %v4253, 8388608
      %v4255 = vsub.s32 0, %v4254
      %v4256 = vadd.s32 %v4251, 1
      %vm4257 = vcmp.gt.s32.totalorder %v4256, 0
      %v4258 = vsel %vm4257, %v4256, 0
      %v4259 = vshrl.u32 %v4258, 5
      %v4260 = vand.u32 %v4258, 31
      %v4261 = vsub.s32 32, %v4260
      %v4262 = vshrl.u32 683565275, %v4261
      %v4263 = vshll.u32 683565275, %v4260
      %v4264 = vshrl.u32 2475754826, %v4261
      %v4265 = vor.u32 %v4263, %v4264
      %v4266 = vshll.u32 2475754826, %v4260
      %v4267 = vshrl.u32 2131351028, %v4261
      %v4268 = vor.u32 %v4266, %v4267
      %v4269 = vshll.u32 2131351028, %v4260
      %v4270 = vshrl.u32 2102212464, %v4261
      %v4271 = vor.u32 %v4269, %v4270
      %v4272 = vshll.u32 2102212464, %v4260
      %v4273 = vshrl.u32 920167782, %v4261
      %v4274 = vor.u32 %v4272, %v4273
      %v4275 = vshll.u32 920167782, %v4260
      %v4276 = vshrl.u32 1326507024, %v4261
      %v4277 = vor.u32 %v4275, %v4276
      %vm4278 = vcmp.lt.s32.totalorder %v4259, 1
      %vm4279 = vcmp.lt.s32.totalorder %v4259, 2
      %vm4280 = vcmp.lt.s32.totalorder %v4259, 3
      %vm4281 = vcmp.lt.s32.totalorder %v4259, 4
      %v4282 = vsel %vm4278, %v4262, %v4265
      %v4283 = vsel %vm4281, %v4271, 2102212464
      %v4284 = vsel %vm4280, %v4268, %v4283
      %v4285 = vsel %vm4279, %v4282, %v4284
      %v4286 = vsel %vm4278, %v4265, %v4268
      %v4287 = vsel %vm4281, %v4274, 920167782
      %v4288 = vsel %vm4280, %v4271, %v4287
      %v4289 = vsel %vm4279, %v4286, %v4288
      %v4290 = vsel %vm4278, %v4268, %v4271
      %v4291 = vsel %vm4281, %v4277, 1326507024
      %v4292 = vsel %vm4280, %v4274, %v4291
      %v4293 = vsel %vm4279, %v4290, %v4292
      %v4294 = vshll.u32 %v4254, 8
      %v4295 = vmul.u32.u64.compose %v4294, %v4293
      %v4296 = vextract.low.u32 %v4295
      %v4297 = vextract.high.u32 %v4295
      %v4298 = vmul.u32.u64.compose %v4294, %v4289
      %v4299 = vextract.low.u32 %v4298
      %v4300 = vextract.high.u32 %v4298
      %v4301 = vmul.u32 %v4294, %v4285
      %v4302 = vadd.s32 %v4297, %v4299
      %vm4303 = vc.u32 %v4297, %v4299
      %v4304 = vadd.s32 %v4300, 1
      %v4305 = vsel %vm4303, %v4304, %v4300
      %v4306 = vadd.s32 %v4301, %v4305
      %v4307 = vadd.s32 %v4306, 536870912
      %v4308 = vshrl.u32 %v4307, 30
      %v4309 = vshll.u32 %v4308, 30
      %v4310 = vsub.s32 %v4306, %v4309
      %vm4311 = vcmp.lt.s32.totalorder %v4310, 0
      %v4312 = vsub.s32 0, %v4310
      %v4313 = vsel %vm4311, %v4312, %v4310
      %v4314 = vclz %v4313
      %v4315 = vsub.s32 %v4314, 2
      %vm4316 = vcmp.gt.s32.totalorder 0, %v4315
      %v4317 = vsel %vm4316, 0, %v4315
      %v4318 = vsub.s32 32, %v4317
      %v4319 = vshll.u32 %v4310, %v4317
      %v4320 = vshrl.u32 %v4302, %v4318
      %v4321 = vor.u32 %v4319, %v4320
      %v4322 = vsub.s32 4294967266, %v4317
      %v4323 = vadd.s32 %v4322, 127
      %v4324 = vshll.u32 %v4323, 23
      %v4325 = vor.u32 4788187, %v4324
      %v4326 = vand.u32 2147483647, %v4325
      %v4328 = vcvt.s32.f32 %v4321
      %v4329 = vmul.f32 %v4328, %v4326
      %v4330 = vxor.u32 %v4329, 2147483648
      %v4331 = vsel %vm4248, %v4330, %v4329
      %v4332 = vsub.s32 4, %v4308
      %v4333 = vsel %vm4248, %v4332, %v4308
      %v4334 = vsel %vm4247, %v1742, %v4331
      %v4335 = vsel %vm4247, 0, %v4333
      %v4336 = vcosq.f32.pop %v4334
      %v4337 = vsinq.f32.pop %v4334
      %vm4338 = vweird.f32 %v1742
      %v4339 = vadd.s32 %v4335, 3
      %v4340 = vand.u32 %v4339, 3
      %vm4341 = vcmp.lt.s32.totalorder %v4340, 2
      %vm4342 = vcmp.eq.s32.totalorder %v4340, 0
      %v4343 = vxor.u32 %v4337, 2147483648
      %v4344 = vsel %vm4342, %v4336, %v4343
      %vm4345 = vcmp.eq.s32.totalorder %v4340, 2
      %v4346 = vxor.u32 %v4336, 2147483648
      %v4347 = vsel %vm4345, %v4346, %v4337
      %v4348 = vsel %vm4341, %v4344, %v4347
      %v4349 = vsel %vm4338, nan, %v4348
      %v4350 = vand.u32 2147483647, %v1743
      %vm4351 = vcmp.le.f32.partialorder %v4350, 0.7853982
      %vm4352 = vcmp.lt.s32.totalorder %v1743, 0
      %v4353 = vand.u32 %v1743, 2139095040
      %v4354 = vshrl.u32 %v4353, 23
      %v4355 = vsub.s32 %v4354, 127
      %v4356 = vand.u32 2147483647, %v1743
      %v4357 = vand.u32 %v4356, 8388607
      %v4358 = vor.u32 %v4357, 8388608
      %v4359 = vsub.s32 0, %v4358
      %v4360 = vadd.s32 %v4355, 1
      %vm4361 = vcmp.gt.s32.totalorder %v4360, 0
      %v4362 = vsel %vm4361, %v4360, 0
      %v4363 = vshrl.u32 %v4362, 5
      %v4364 = vand.u32 %v4362, 31
      %v4365 = vsub.s32 32, %v4364
      %v4366 = vshrl.u32 683565275, %v4365
      %v4367 = vshll.u32 683565275, %v4364
      %v4368 = vshrl.u32 2475754826, %v4365
      %v4369 = vor.u32 %v4367, %v4368
      %v4370 = vshll.u32 2475754826, %v4364
      %v4371 = vshrl.u32 2131351028, %v4365
      %v4372 = vor.u32 %v4370, %v4371
      %v4373 = vshll.u32 2131351028, %v4364
      %v4374 = vshrl.u32 2102212464, %v4365
      %v4375 = vor.u32 %v4373, %v4374
      %v4376 = vshll.u32 2102212464, %v4364
      %v4377 = vshrl.u32 920167782, %v4365
      %v4378 = vor.u32 %v4376, %v4377
      %v4379 = vshll.u32 920167782, %v4364
      %v4380 = vshrl.u32 1326507024, %v4365
      %v4381 = vor.u32 %v4379, %v4380
      %vm4382 = vcmp.lt.s32.totalorder %v4363, 1
      %vm4383 = vcmp.lt.s32.totalorder %v4363, 2
      %vm4384 = vcmp.lt.s32.totalorder %v4363, 3
      %vm4385 = vcmp.lt.s32.totalorder %v4363, 4
      %v4386 = vsel %vm4382, %v4366, %v4369
      %v4387 = vsel %vm4385, %v4375, 2102212464
      %v4388 = vsel %vm4384, %v4372, %v4387
      %v4389 = vsel %vm4383, %v4386, %v4388
      %v4390 = vsel %vm4382, %v4369, %v4372
      %v4391 = vsel %vm4385, %v4378, 920167782
      %v4392 = vsel %vm4384, %v4375, %v4391
      %v4393 = vsel %vm4383, %v4390, %v4392
      %v4394 = vsel %vm4382, %v4372, %v4375
      %v4395 = vsel %vm4385, %v4381, 1326507024
      %v4396 = vsel %vm4384, %v4378, %v4395
      %v4397 = vsel %vm4383, %v4394, %v4396
      %v4398 = vshll.u32 %v4358, 8
      %v4399 = vmul.u32.u64.compose %v4398, %v4397
      %v4400 = vextract.low.u32 %v4399
      %v4401 = vextract.high.u32 %v4399
      %v4402 = vmul.u32.u64.compose %v4398, %v4393
      %v4403 = vextract.low.u32 %v4402
      %v4404 = vextract.high.u32 %v4402
      %v4405 = vmul.u32 %v4398, %v4389
      %v4406 = vadd.s32 %v4401, %v4403
      %vm4407 = vc.u32 %v4401, %v4403
      %v4408 = vadd.s32 %v4404, 1
      %v4409 = vsel %vm4407, %v4408, %v4404
      %v4410 = vadd.s32 %v4405, %v4409
      %v4411 = vadd.s32 %v4410, 536870912
      %v4412 = vshrl.u32 %v4411, 30
      %v4413 = vshll.u32 %v4412, 30
      %v4414 = vsub.s32 %v4410, %v4413
      %vm4415 = vcmp.lt.s32.totalorder %v4414, 0
      %v4416 = vsub.s32 0, %v4414
      %v4417 = vsel %vm4415, %v4416, %v4414
      %v4418 = vclz %v4417
      %v4419 = vsub.s32 %v4418, 2
      %vm4420 = vcmp.gt.s32.totalorder 0, %v4419
      %v4421 = vsel %vm4420, 0, %v4419
      %v4422 = vsub.s32 32, %v4421
      %v4423 = vshll.u32 %v4414, %v4421
      %v4424 = vshrl.u32 %v4406, %v4422
      %v4425 = vor.u32 %v4423, %v4424
      %v4426 = vsub.s32 4294967266, %v4421
      %v4427 = vadd.s32 %v4426, 127
      %v4428 = vshll.u32 %v4427, 23
      %v4429 = vor.u32 4788187, %v4428
      %v4430 = vand.u32 2147483647, %v4429
      %v4432 = vcvt.s32.f32 %v4425
      %v4433 = vmul.f32 %v4432, %v4430
      %v4434 = vxor.u32 %v4433, 2147483648
      %v4435 = vsel %vm4352, %v4434, %v4433
      %v4436 = vsub.s32 4, %v4412
      %v4437 = vsel %vm4352, %v4436, %v4412
      %v4438 = vsel %vm4351, %v1743, %v4435
      %v4439 = vsel %vm4351, 0, %v4437
      %v4440 = vcosq.f32.pop %v4438
      %v4441 = vsinq.f32.pop %v4438
      %vm4442 = vweird.f32 %v1743
      %v4443 = vadd.s32 %v4439, 3
      %v4444 = vand.u32 %v4443, 3
      %vm4445 = vcmp.lt.s32.totalorder %v4444, 2
      %vm4446 = vcmp.eq.s32.totalorder %v4444, 0
      %v4447 = vxor.u32 %v4441, 2147483648
      %v4448 = vsel %vm4446, %v4440, %v4447
      %vm4449 = vcmp.eq.s32.totalorder %v4444, 2
      %v4450 = vxor.u32 %v4440, 2147483648
      %v4451 = vsel %vm4449, %v4450, %v4441
      %v4452 = vsel %vm4445, %v4448, %v4451
      %v4453 = vsel %vm4442, nan, %v4452
      %v4454 = vand.u32 2147483647, %v1744
      %vm4455 = vcmp.le.f32.partialorder %v4454, 0.7853982
      %vm4456 = vcmp.lt.s32.totalorder %v1744, 0
      %v4457 = vand.u32 %v1744, 2139095040
      %v4458 = vshrl.u32 %v4457, 23
      %v4459 = vsub.s32 %v4458, 127
      %v4460 = vand.u32 2147483647, %v1744
      %v4461 = vand.u32 %v4460, 8388607
      %v4462 = vor.u32 %v4461, 8388608
      %v4463 = vsub.s32 0, %v4462
      %v4464 = vadd.s32 %v4459, 1
      %vm4465 = vcmp.gt.s32.totalorder %v4464, 0
      %v4466 = vsel %vm4465, %v4464, 0
      %v4467 = vshrl.u32 %v4466, 5
      %v4468 = vand.u32 %v4466, 31
      %v4469 = vsub.s32 32, %v4468
      %v4470 = vshrl.u32 683565275, %v4469
      %v4471 = vshll.u32 683565275, %v4468
      %v4472 = vshrl.u32 2475754826, %v4469
      %v4473 = vor.u32 %v4471, %v4472
      %v4474 = vshll.u32 2475754826, %v4468
      %v4475 = vshrl.u32 2131351028, %v4469
      %v4476 = vor.u32 %v4474, %v4475
      %v4477 = vshll.u32 2131351028, %v4468
      %v4478 = vshrl.u32 2102212464, %v4469
      %v4479 = vor.u32 %v4477, %v4478
      %v4480 = vshll.u32 2102212464, %v4468
      %v4481 = vshrl.u32 920167782, %v4469
      %v4482 = vor.u32 %v4480, %v4481
      %v4483 = vshll.u32 920167782, %v4468
      %v4484 = vshrl.u32 1326507024, %v4469
      %v4485 = vor.u32 %v4483, %v4484
      %vm4486 = vcmp.lt.s32.totalorder %v4467, 1
      %vm4487 = vcmp.lt.s32.totalorder %v4467, 2
      %vm4488 = vcmp.lt.s32.totalorder %v4467, 3
      %vm4489 = vcmp.lt.s32.totalorder %v4467, 4
      %v4490 = vsel %vm4486, %v4470, %v4473
      %v4491 = vsel %vm4489, %v4479, 2102212464
      %v4492 = vsel %vm4488, %v4476, %v4491
      %v4493 = vsel %vm4487, %v4490, %v4492
      %v4494 = vsel %vm4486, %v4473, %v4476
      %v4495 = vsel %vm4489, %v4482, 920167782
      %v4496 = vsel %vm4488, %v4479, %v4495
      %v4497 = vsel %vm4487, %v4494, %v4496
      %v4498 = vsel %vm4486, %v4476, %v4479
      %v4499 = vsel %vm4489, %v4485, 1326507024
      %v4500 = vsel %vm4488, %v4482, %v4499
      %v4501 = vsel %vm4487, %v4498, %v4500
      %v4502 = vshll.u32 %v4462, 8
      %v4503 = vmul.u32.u64.compose %v4502, %v4501
      %v4504 = vextract.low.u32 %v4503
      %v4505 = vextract.high.u32 %v4503
      %v4506 = vmul.u32.u64.compose %v4502, %v4497
      %v4507 = vextract.low.u32 %v4506
      %v4508 = vextract.high.u32 %v4506
      %v4509 = vmul.u32 %v4502, %v4493
      %v4510 = vadd.s32 %v4505, %v4507
      %vm4511 = vc.u32 %v4505, %v4507
      %v4512 = vadd.s32 %v4508, 1
      %v4513 = vsel %vm4511, %v4512, %v4508
      %v4514 = vadd.s32 %v4509, %v4513
      %v4515 = vadd.s32 %v4514, 536870912
      %v4516 = vshrl.u32 %v4515, 30
      %v4517 = vshll.u32 %v4516, 30
      %v4518 = vsub.s32 %v4514, %v4517
      %vm4519 = vcmp.lt.s32.totalorder %v4518, 0
      %v4520 = vsub.s32 0, %v4518
      %v4521 = vsel %vm4519, %v4520, %v4518
      %v4522 = vclz %v4521
      %v4523 = vsub.s32 %v4522, 2
      %vm4524 = vcmp.gt.s32.totalorder 0, %v4523
      %v4525 = vsel %vm4524, 0, %v4523
      %v4526 = vsub.s32 32, %v4525
      %v4527 = vshll.u32 %v4518, %v4525
      %v4528 = vshrl.u32 %v4510, %v4526
      %v4529 = vor.u32 %v4527, %v4528
      %v4530 = vsub.s32 4294967266, %v4525
      %v4531 = vadd.s32 %v4530, 127
      %v4532 = vshll.u32 %v4531, 23
      %v4533 = vor.u32 4788187, %v4532
      %v4534 = vand.u32 2147483647, %v4533
      %v4536 = vcvt.s32.f32 %v4529
      %v4537 = vmul.f32 %v4536, %v4534
      %v4538 = vxor.u32 %v4537, 2147483648
      %v4539 = vsel %vm4456, %v4538, %v4537
      %v4540 = vsub.s32 4, %v4516
      %v4541 = vsel %vm4456, %v4540, %v4516
      %v4542 = vsel %vm4455, %v1744, %v4539
      %v4543 = vsel %vm4455, 0, %v4541
      %v4544 = vcosq.f32.pop %v4542
      %v4545 = vsinq.f32.pop %v4542
      %vm4546 = vweird.f32 %v1744
      %v4547 = vadd.s32 %v4543, 3
      %v4548 = vand.u32 %v4547, 3
      %vm4549 = vcmp.lt.s32.totalorder %v4548, 2
      %vm4550 = vcmp.eq.s32.totalorder %v4548, 0
      %v4551 = vxor.u32 %v4545, 2147483648
      %v4552 = vsel %vm4550, %v4544, %v4551
      %vm4553 = vcmp.eq.s32.totalorder %v4548, 2
      %v4554 = vxor.u32 %v4544, 2147483648
      %v4555 = vsel %vm4553, %v4554, %v4545
      %v4556 = vsel %vm4549, %v4552, %v4555
      %v4557 = vsel %vm4546, nan, %v4556
      %v4558 = vand.u32 2147483647, %v1745
      %vm4559 = vcmp.le.f32.partialorder %v4558, 0.7853982
      %vm4560 = vcmp.lt.s32.totalorder %v1745, 0
      %v4561 = vand.u32 %v1745, 2139095040
      %v4562 = vshrl.u32 %v4561, 23
      %v4563 = vsub.s32 %v4562, 127
      %v4564 = vand.u32 2147483647, %v1745
      %v4565 = vand.u32 %v4564, 8388607
      %v4566 = vor.u32 %v4565, 8388608
      %v4567 = vsub.s32 0, %v4566
      %v4568 = vadd.s32 %v4563, 1
      %vm4569 = vcmp.gt.s32.totalorder %v4568, 0
      %v4570 = vsel %vm4569, %v4568, 0
      %v4571 = vshrl.u32 %v4570, 5
      %v4572 = vand.u32 %v4570, 31
      %v4573 = vsub.s32 32, %v4572
      %v4574 = vshrl.u32 683565275, %v4573
      %v4575 = vshll.u32 683565275, %v4572
      %v4576 = vshrl.u32 2475754826, %v4573
      %v4577 = vor.u32 %v4575, %v4576
      %v4578 = vshll.u32 2475754826, %v4572
      %v4579 = vshrl.u32 2131351028, %v4573
      %v4580 = vor.u32 %v4578, %v4579
      %v4581 = vshll.u32 2131351028, %v4572
      %v4582 = vshrl.u32 2102212464, %v4573
      %v4583 = vor.u32 %v4581, %v4582
      %v4584 = vshll.u32 2102212464, %v4572
      %v4585 = vshrl.u32 920167782, %v4573
      %v4586 = vor.u32 %v4584, %v4585
      %v4587 = vshll.u32 920167782, %v4572
      %v4588 = vshrl.u32 1326507024, %v4573
      %v4589 = vor.u32 %v4587, %v4588
      %vm4590 = vcmp.lt.s32.totalorder %v4571, 1
      %vm4591 = vcmp.lt.s32.totalorder %v4571, 2
      %vm4592 = vcmp.lt.s32.totalorder %v4571, 3
      %vm4593 = vcmp.lt.s32.totalorder %v4571, 4
      %v4594 = vsel %vm4590, %v4574, %v4577
      %v4595 = vsel %vm4593, %v4583, 2102212464
      %v4596 = vsel %vm4592, %v4580, %v4595
      %v4597 = vsel %vm4591, %v4594, %v4596
      %v4598 = vsel %vm4590, %v4577, %v4580
      %v4599 = vsel %vm4593, %v4586, 920167782
      %v4600 = vsel %vm4592, %v4583, %v4599
      %v4601 = vsel %vm4591, %v4598, %v4600
      %v4602 = vsel %vm4590, %v4580, %v4583
      %v4603 = vsel %vm4593, %v4589, 1326507024
      %v4604 = vsel %vm4592, %v4586, %v4603
      %v4605 = vsel %vm4591, %v4602, %v4604
      %v4606 = vshll.u32 %v4566, 8
      %v4607 = vmul.u32.u64.compose %v4606, %v4605
      %v4608 = vextract.low.u32 %v4607
      %v4609 = vextract.high.u32 %v4607
      %v4610 = vmul.u32.u64.compose %v4606, %v4601
      %v4611 = vextract.low.u32 %v4610
      %v4612 = vextract.high.u32 %v4610
      %v4613 = vmul.u32 %v4606, %v4597
      %v4614 = vadd.s32 %v4609, %v4611
      %vm4615 = vc.u32 %v4609, %v4611
      %v4616 = vadd.s32 %v4612, 1
      %v4617 = vsel %vm4615, %v4616, %v4612
      %v4618 = vadd.s32 %v4613, %v4617
      %v4619 = vadd.s32 %v4618, 536870912
      %v4620 = vshrl.u32 %v4619, 30
      %v4621 = vshll.u32 %v4620, 30
      %v4622 = vsub.s32 %v4618, %v4621
      %vm4623 = vcmp.lt.s32.totalorder %v4622, 0
      %v4624 = vsub.s32 0, %v4622
      %v4625 = vsel %vm4623, %v4624, %v4622
      %v4626 = vclz %v4625
      %v4627 = vsub.s32 %v4626, 2
      %vm4628 = vcmp.gt.s32.totalorder 0, %v4627
      %v4629 = vsel %vm4628, 0, %v4627
      %v4630 = vsub.s32 32, %v4629
      %v4631 = vshll.u32 %v4622, %v4629
      %v4632 = vshrl.u32 %v4614, %v4630
      %v4633 = vor.u32 %v4631, %v4632
      %v4634 = vsub.s32 4294967266, %v4629
      %v4635 = vadd.s32 %v4634, 127
      %v4636 = vshll.u32 %v4635, 23
      %v4637 = vor.u32 4788187, %v4636
      %v4638 = vand.u32 2147483647, %v4637
      %v4640 = vcvt.s32.f32 %v4633
      %v4641 = vmul.f32 %v4640, %v4638
      %v4642 = vxor.u32 %v4641, 2147483648
      %v4643 = vsel %vm4560, %v4642, %v4641
      %v4644 = vsub.s32 4, %v4620
      %v4645 = vsel %vm4560, %v4644, %v4620
      %v4646 = vsel %vm4559, %v1745, %v4643
      %v4647 = vsel %vm4559, 0, %v4645
      %v4648 = vcosq.f32.pop %v4646
      %v4649 = vsinq.f32.pop %v4646
      %vm4650 = vweird.f32 %v1745
      %v4651 = vadd.s32 %v4647, 3
      %v4652 = vand.u32 %v4651, 3
      %vm4653 = vcmp.lt.s32.totalorder %v4652, 2
      %vm4654 = vcmp.eq.s32.totalorder %v4652, 0
      %v4655 = vxor.u32 %v4649, 2147483648
      %v4656 = vsel %vm4654, %v4648, %v4655
      %vm4657 = vcmp.eq.s32.totalorder %v4652, 2
      %v4658 = vxor.u32 %v4648, 2147483648
      %v4659 = vsel %vm4657, %v4658, %v4649
      %v4660 = vsel %vm4653, %v4656, %v4659
      %v4661 = vsel %vm4650, nan, %v4660
      %v4662 = vand.u32 2147483647, %v1746
      %vm4663 = vcmp.le.f32.partialorder %v4662, 0.7853982
      %vm4664 = vcmp.lt.s32.totalorder %v1746, 0
      %v4665 = vand.u32 %v1746, 2139095040
      %v4666 = vshrl.u32 %v4665, 23
      %v4667 = vsub.s32 %v4666, 127
      %v4668 = vand.u32 2147483647, %v1746
      %v4669 = vand.u32 %v4668, 8388607
      %v4670 = vor.u32 %v4669, 8388608
      %v4671 = vsub.s32 0, %v4670
      %v4672 = vadd.s32 %v4667, 1
      %vm4673 = vcmp.gt.s32.totalorder %v4672, 0
      %v4674 = vsel %vm4673, %v4672, 0
      %v4675 = vshrl.u32 %v4674, 5
      %v4676 = vand.u32 %v4674, 31
      %v4677 = vsub.s32 32, %v4676
      %v4678 = vshrl.u32 683565275, %v4677
      %v4679 = vshll.u32 683565275, %v4676
      %v4680 = vshrl.u32 2475754826, %v4677
      %v4681 = vor.u32 %v4679, %v4680
      %v4682 = vshll.u32 2475754826, %v4676
      %v4683 = vshrl.u32 2131351028, %v4677
      %v4684 = vor.u32 %v4682, %v4683
      %v4685 = vshll.u32 2131351028, %v4676
      %v4686 = vshrl.u32 2102212464, %v4677
      %v4687 = vor.u32 %v4685, %v4686
      %v4688 = vshll.u32 2102212464, %v4676
      %v4689 = vshrl.u32 920167782, %v4677
      %v4690 = vor.u32 %v4688, %v4689
      %v4691 = vshll.u32 920167782, %v4676
      %v4692 = vshrl.u32 1326507024, %v4677
      %v4693 = vor.u32 %v4691, %v4692
      %vm4694 = vcmp.lt.s32.totalorder %v4675, 1
      %vm4695 = vcmp.lt.s32.totalorder %v4675, 2
      %vm4696 = vcmp.lt.s32.totalorder %v4675, 3
      %vm4697 = vcmp.lt.s32.totalorder %v4675, 4
      %v4698 = vsel %vm4694, %v4678, %v4681
      %v4699 = vsel %vm4697, %v4687, 2102212464
      %v4700 = vsel %vm4696, %v4684, %v4699
      %v4701 = vsel %vm4695, %v4698, %v4700
      %v4702 = vsel %vm4694, %v4681, %v4684
      %v4703 = vsel %vm4697, %v4690, 920167782
      %v4704 = vsel %vm4696, %v4687, %v4703
      %v4705 = vsel %vm4695, %v4702, %v4704
      %v4706 = vsel %vm4694, %v4684, %v4687
      %v4707 = vsel %vm4697, %v4693, 1326507024
      %v4708 = vsel %vm4696, %v4690, %v4707
      %v4709 = vsel %vm4695, %v4706, %v4708
      %v4710 = vshll.u32 %v4670, 8
      %v4711 = vmul.u32.u64.compose %v4710, %v4709
      %v4712 = vextract.low.u32 %v4711
      %v4713 = vextract.high.u32 %v4711
      %v4714 = vmul.u32.u64.compose %v4710, %v4705
      %v4715 = vextract.low.u32 %v4714
      %v4716 = vextract.high.u32 %v4714
      %v4717 = vmul.u32 %v4710, %v4701
      %v4718 = vadd.s32 %v4713, %v4715
      %vm4719 = vc.u32 %v4713, %v4715
      %v4720 = vadd.s32 %v4716, 1
      %v4721 = vsel %vm4719, %v4720, %v4716
      %v4722 = vadd.s32 %v4717, %v4721
      %v4723 = vadd.s32 %v4722, 536870912
      %v4724 = vshrl.u32 %v4723, 30
      %v4725 = vshll.u32 %v4724, 30
      %v4726 = vsub.s32 %v4722, %v4725
      %vm4727 = vcmp.lt.s32.totalorder %v4726, 0
      %v4728 = vsub.s32 0, %v4726
      %v4729 = vsel %vm4727, %v4728, %v4726
      %v4730 = vclz %v4729
      %v4731 = vsub.s32 %v4730, 2
      %vm4732 = vcmp.gt.s32.totalorder 0, %v4731
      %v4733 = vsel %vm4732, 0, %v4731
      %v4734 = vsub.s32 32, %v4733
      %v4735 = vshll.u32 %v4726, %v4733
      %v4736 = vshrl.u32 %v4718, %v4734
      %v4737 = vor.u32 %v4735, %v4736
      %v4738 = vsub.s32 4294967266, %v4733
      %v4739 = vadd.s32 %v4738, 127
      %v4740 = vshll.u32 %v4739, 23
      %v4741 = vor.u32 4788187, %v4740
      %v4742 = vand.u32 2147483647, %v4741
      %v4744 = vcvt.s32.f32 %v4737
      %v4745 = vmul.f32 %v4744, %v4742
      %v4746 = vxor.u32 %v4745, 2147483648
      %v4747 = vsel %vm4664, %v4746, %v4745
      %v4748 = vsub.s32 4, %v4724
      %v4749 = vsel %vm4664, %v4748, %v4724
      %v4750 = vsel %vm4663, %v1746, %v4747
      %v4751 = vsel %vm4663, 0, %v4749
      %v4752 = vcosq.f32.pop %v4750
      %v4753 = vsinq.f32.pop %v4750
      %vm4754 = vweird.f32 %v1746
      %v4755 = vadd.s32 %v4751, 3
      %v4756 = vand.u32 %v4755, 3
      %vm4757 = vcmp.lt.s32.totalorder %v4756, 2
      %vm4758 = vcmp.eq.s32.totalorder %v4756, 0
      %v4759 = vxor.u32 %v4753, 2147483648
      %v4760 = vsel %vm4758, %v4752, %v4759
      %vm4761 = vcmp.eq.s32.totalorder %v4756, 2
      %v4762 = vxor.u32 %v4752, 2147483648
      %v4763 = vsel %vm4761, %v4762, %v4753
      %v4764 = vsel %vm4757, %v4760, %v4763
      %v4765 = vsel %vm4754, nan, %v4764
      %v4766 = vand.u32 2147483647, %v1747
      %vm4767 = vcmp.le.f32.partialorder %v4766, 0.7853982
      %vm4768 = vcmp.lt.s32.totalorder %v1747, 0
      %v4769 = vand.u32 %v1747, 2139095040
      %v4770 = vshrl.u32 %v4769, 23
      %v4771 = vsub.s32 %v4770, 127
      %v4772 = vand.u32 2147483647, %v1747
      %v4773 = vand.u32 %v4772, 8388607
      %v4774 = vor.u32 %v4773, 8388608
      %v4775 = vsub.s32 0, %v4774
      %v4776 = vadd.s32 %v4771, 1
      %vm4777 = vcmp.gt.s32.totalorder %v4776, 0
      %v4778 = vsel %vm4777, %v4776, 0
      %v4779 = vshrl.u32 %v4778, 5
      %v4780 = vand.u32 %v4778, 31
      %v4781 = vsub.s32 32, %v4780
      %v4782 = vshrl.u32 683565275, %v4781
      %v4783 = vshll.u32 683565275, %v4780
      %v4784 = vshrl.u32 2475754826, %v4781
      %v4785 = vor.u32 %v4783, %v4784
      %v4786 = vshll.u32 2475754826, %v4780
      %v4787 = vshrl.u32 2131351028, %v4781
      %v4788 = vor.u32 %v4786, %v4787
      %v4789 = vshll.u32 2131351028, %v4780
      %v4790 = vshrl.u32 2102212464, %v4781
      %v4791 = vor.u32 %v4789, %v4790
      %v4792 = vshll.u32 2102212464, %v4780
      %v4793 = vshrl.u32 920167782, %v4781
      %v4794 = vor.u32 %v4792, %v4793
      %v4795 = vshll.u32 920167782, %v4780
      %v4796 = vshrl.u32 1326507024, %v4781
      %v4797 = vor.u32 %v4795, %v4796
      %vm4798 = vcmp.lt.s32.totalorder %v4779, 1
      %vm4799 = vcmp.lt.s32.totalorder %v4779, 2
      %vm4800 = vcmp.lt.s32.totalorder %v4779, 3
      %vm4801 = vcmp.lt.s32.totalorder %v4779, 4
      %v4802 = vsel %vm4798, %v4782, %v4785
      %v4803 = vsel %vm4801, %v4791, 2102212464
      %v4804 = vsel %vm4800, %v4788, %v4803
      %v4805 = vsel %vm4799, %v4802, %v4804
      %v4806 = vsel %vm4798, %v4785, %v4788
      %v4807 = vsel %vm4801, %v4794, 920167782
      %v4808 = vsel %vm4800, %v4791, %v4807
      %v4809 = vsel %vm4799, %v4806, %v4808
      %v4810 = vsel %vm4798, %v4788, %v4791
      %v4811 = vsel %vm4801, %v4797, 1326507024
      %v4812 = vsel %vm4800, %v4794, %v4811
      %v4813 = vsel %vm4799, %v4810, %v4812
      %v4814 = vshll.u32 %v4774, 8
      %v4815 = vmul.u32.u64.compose %v4814, %v4813
      %v4816 = vextract.low.u32 %v4815
      %v4817 = vextract.high.u32 %v4815
      %v4818 = vmul.u32.u64.compose %v4814, %v4809
      %v4819 = vextract.low.u32 %v4818
      %v4820 = vextract.high.u32 %v4818
      %v4821 = vmul.u32 %v4814, %v4805
      %v4822 = vadd.s32 %v4817, %v4819
      %vm4823 = vc.u32 %v4817, %v4819
      %v4824 = vadd.s32 %v4820, 1
      %v4825 = vsel %vm4823, %v4824, %v4820
      %v4826 = vadd.s32 %v4821, %v4825
      %v4827 = vadd.s32 %v4826, 536870912
      %v4828 = vshrl.u32 %v4827, 30
      %v4829 = vshll.u32 %v4828, 30
      %v4830 = vsub.s32 %v4826, %v4829
      %vm4831 = vcmp.lt.s32.totalorder %v4830, 0
      %v4832 = vsub.s32 0, %v4830
      %v4833 = vsel %vm4831, %v4832, %v4830
      %v4834 = vclz %v4833
      %v4835 = vsub.s32 %v4834, 2
      %vm4836 = vcmp.gt.s32.totalorder 0, %v4835
      %v4837 = vsel %vm4836, 0, %v4835
      %v4838 = vsub.s32 32, %v4837
      %v4839 = vshll.u32 %v4830, %v4837
      %v4840 = vshrl.u32 %v4822, %v4838
      %v4841 = vor.u32 %v4839, %v4840
      %v4842 = vsub.s32 4294967266, %v4837
      %v4843 = vadd.s32 %v4842, 127
      %v4844 = vshll.u32 %v4843, 23
      %v4845 = vor.u32 4788187, %v4844
      %v4846 = vand.u32 2147483647, %v4845
      %v4848 = vcvt.s32.f32 %v4841
      %v4849 = vmul.f32 %v4848, %v4846
      %v4850 = vxor.u32 %v4849, 2147483648
      %v4851 = vsel %vm4768, %v4850, %v4849
      %v4852 = vsub.s32 4, %v4828
      %v4853 = vsel %vm4768, %v4852, %v4828
      %v4854 = vsel %vm4767, %v1747, %v4851
      %v4855 = vsel %vm4767, 0, %v4853
      %v4856 = vcosq.f32.pop %v4854
      %v4857 = vsinq.f32.pop %v4854
      %vm4858 = vweird.f32 %v1747
      %v4859 = vadd.s32 %v4855, 3
      %v4860 = vand.u32 %v4859, 3
      %vm4861 = vcmp.lt.s32.totalorder %v4860, 2
      %vm4862 = vcmp.eq.s32.totalorder %v4860, 0
      %v4863 = vxor.u32 %v4857, 2147483648
      %v4864 = vsel %vm4862, %v4856, %v4863
      %vm4865 = vcmp.eq.s32.totalorder %v4860, 2
      %v4866 = vxor.u32 %v4856, 2147483648
      %v4867 = vsel %vm4865, %v4866, %v4857
      %v4868 = vsel %vm4861, %v4864, %v4867
      %v4869 = vsel %vm4858, nan, %v4868
      %v4870 = vand.u32 2147483647, %v1748
      %vm4871 = vcmp.le.f32.partialorder %v4870, 0.7853982
      %vm4872 = vcmp.lt.s32.totalorder %v1748, 0
      %v4873 = vand.u32 %v1748, 2139095040
      %v4874 = vshrl.u32 %v4873, 23
      %v4875 = vsub.s32 %v4874, 127
      %v4876 = vand.u32 2147483647, %v1748
      %v4877 = vand.u32 %v4876, 8388607
      %v4878 = vor.u32 %v4877, 8388608
      %v4879 = vsub.s32 0, %v4878
      %v4880 = vadd.s32 %v4875, 1
      %vm4881 = vcmp.gt.s32.totalorder %v4880, 0
      %v4882 = vsel %vm4881, %v4880, 0
      %v4883 = vshrl.u32 %v4882, 5
      %v4884 = vand.u32 %v4882, 31
      %v4885 = vsub.s32 32, %v4884
      %v4886 = vshrl.u32 683565275, %v4885
      %v4887 = vshll.u32 683565275, %v4884
      %v4888 = vshrl.u32 2475754826, %v4885
      %v4889 = vor.u32 %v4887, %v4888
      %v4890 = vshll.u32 2475754826, %v4884
      %v4891 = vshrl.u32 2131351028, %v4885
      %v4892 = vor.u32 %v4890, %v4891
      %v4893 = vshll.u32 2131351028, %v4884
      %v4894 = vshrl.u32 2102212464, %v4885
      %v4895 = vor.u32 %v4893, %v4894
      %v4896 = vshll.u32 2102212464, %v4884
      %v4897 = vshrl.u32 920167782, %v4885
      %v4898 = vor.u32 %v4896, %v4897
      %v4899 = vshll.u32 920167782, %v4884
      %v4900 = vshrl.u32 1326507024, %v4885
      %v4901 = vor.u32 %v4899, %v4900
      %vm4902 = vcmp.lt.s32.totalorder %v4883, 1
      %vm4903 = vcmp.lt.s32.totalorder %v4883, 2
      %vm4904 = vcmp.lt.s32.totalorder %v4883, 3
      %vm4905 = vcmp.lt.s32.totalorder %v4883, 4
      %v4906 = vsel %vm4902, %v4886, %v4889
      %v4907 = vsel %vm4905, %v4895, 2102212464
      %v4908 = vsel %vm4904, %v4892, %v4907
      %v4909 = vsel %vm4903, %v4906, %v4908
      %v4910 = vsel %vm4902, %v4889, %v4892
      %v4911 = vsel %vm4905, %v4898, 920167782
      %v4912 = vsel %vm4904, %v4895, %v4911
      %v4913 = vsel %vm4903, %v4910, %v4912
      %v4914 = vsel %vm4902, %v4892, %v4895
      %v4915 = vsel %vm4905, %v4901, 1326507024
      %v4916 = vsel %vm4904, %v4898, %v4915
      %v4917 = vsel %vm4903, %v4914, %v4916
      %v4918 = vshll.u32 %v4878, 8
      %v4919 = vmul.u32.u64.compose %v4918, %v4917
      %v4920 = vextract.low.u32 %v4919
      %v4921 = vextract.high.u32 %v4919
      %v4922 = vmul.u32.u64.compose %v4918, %v4913
      %v4923 = vextract.low.u32 %v4922
      %v4924 = vextract.high.u32 %v4922
      %v4925 = vmul.u32 %v4918, %v4909
      %v4926 = vadd.s32 %v4921, %v4923
      %vm4927 = vc.u32 %v4921, %v4923
      %v4928 = vadd.s32 %v4924, 1
      %v4929 = vsel %vm4927, %v4928, %v4924
      %v4930 = vadd.s32 %v4925, %v4929
      %v4931 = vadd.s32 %v4930, 536870912
      %v4932 = vshrl.u32 %v4931, 30
      %v4933 = vshll.u32 %v4932, 30
      %v4934 = vsub.s32 %v4930, %v4933
      %vm4935 = vcmp.lt.s32.totalorder %v4934, 0
      %v4936 = vsub.s32 0, %v4934
      %v4937 = vsel %vm4935, %v4936, %v4934
      %v4938 = vclz %v4937
      %v4939 = vsub.s32 %v4938, 2
      %vm4940 = vcmp.gt.s32.totalorder 0, %v4939
      %v4941 = vsel %vm4940, 0, %v4939
      %v4942 = vsub.s32 32, %v4941
      %v4943 = vshll.u32 %v4934, %v4941
      %v4944 = vshrl.u32 %v4926, %v4942
      %v4945 = vor.u32 %v4943, %v4944
      %v4946 = vsub.s32 4294967266, %v4941
      %v4947 = vadd.s32 %v4946, 127
      %v4948 = vshll.u32 %v4947, 23
      %v4949 = vor.u32 4788187, %v4948
      %v4950 = vand.u32 2147483647, %v4949
      %v4952 = vcvt.s32.f32 %v4945
      %v4953 = vmul.f32 %v4952, %v4950
      %v4954 = vxor.u32 %v4953, 2147483648
      %v4955 = vsel %vm4872, %v4954, %v4953
      %v4956 = vsub.s32 4, %v4932
      %v4957 = vsel %vm4872, %v4956, %v4932
      %v4958 = vsel %vm4871, %v1748, %v4955
      %v4959 = vsel %vm4871, 0, %v4957
      %v4960 = vcosq.f32.pop %v4958
      %v4961 = vsinq.f32.pop %v4958
      %vm4962 = vweird.f32 %v1748
      %v4963 = vadd.s32 %v4959, 3
      %v4964 = vand.u32 %v4963, 3
      %vm4965 = vcmp.lt.s32.totalorder %v4964, 2
      %vm4966 = vcmp.eq.s32.totalorder %v4964, 0
      %v4967 = vxor.u32 %v4961, 2147483648
      %v4968 = vsel %vm4966, %v4960, %v4967
      %vm4969 = vcmp.eq.s32.totalorder %v4964, 2
      %v4970 = vxor.u32 %v4960, 2147483648
      %v4971 = vsel %vm4969, %v4970, %v4961
      %v4972 = vsel %vm4965, %v4968, %v4971
      %v4973 = vsel %vm4962, nan, %v4972
      %v4974 = vand.u32 2147483647, %v1749
      %vm4975 = vcmp.le.f32.partialorder %v4974, 0.7853982
      %vm4976 = vcmp.lt.s32.totalorder %v1749, 0
      %v4977 = vand.u32 %v1749, 2139095040
      %v4978 = vshrl.u32 %v4977, 23
      %v4979 = vsub.s32 %v4978, 127
      %v4980 = vand.u32 2147483647, %v1749
      %v4981 = vand.u32 %v4980, 8388607
      %v4982 = vor.u32 %v4981, 8388608
      %v4983 = vsub.s32 0, %v4982
      %v4984 = vadd.s32 %v4979, 1
      %vm4985 = vcmp.gt.s32.totalorder %v4984, 0
      %v4986 = vsel %vm4985, %v4984, 0
      %v4987 = vshrl.u32 %v4986, 5
      %v4988 = vand.u32 %v4986, 31
      %v4989 = vsub.s32 32, %v4988
      %v4990 = vshrl.u32 683565275, %v4989
      %v4991 = vshll.u32 683565275, %v4988
      %v4992 = vshrl.u32 2475754826, %v4989
      %v4993 = vor.u32 %v4991, %v4992
      %v4994 = vshll.u32 2475754826, %v4988
      %v4995 = vshrl.u32 2131351028, %v4989
      %v4996 = vor.u32 %v4994, %v4995
      %v4997 = vshll.u32 2131351028, %v4988
      %v4998 = vshrl.u32 2102212464, %v4989
      %v4999 = vor.u32 %v4997, %v4998
      %v5000 = vshll.u32 2102212464, %v4988
      %v5001 = vshrl.u32 920167782, %v4989
      %v5002 = vor.u32 %v5000, %v5001
      %v5003 = vshll.u32 920167782, %v4988
      %v5004 = vshrl.u32 1326507024, %v4989
      %v5005 = vor.u32 %v5003, %v5004
      %vm5006 = vcmp.lt.s32.totalorder %v4987, 1
      %vm5007 = vcmp.lt.s32.totalorder %v4987, 2
      %vm5008 = vcmp.lt.s32.totalorder %v4987, 3
      %vm5009 = vcmp.lt.s32.totalorder %v4987, 4
      %v5010 = vsel %vm5006, %v4990, %v4993
      %v5011 = vsel %vm5009, %v4999, 2102212464
      %v5012 = vsel %vm5008, %v4996, %v5011
      %v5013 = vsel %vm5007, %v5010, %v5012
      %v5014 = vsel %vm5006, %v4993, %v4996
      %v5015 = vsel %vm5009, %v5002, 920167782
      %v5016 = vsel %vm5008, %v4999, %v5015
      %v5017 = vsel %vm5007, %v5014, %v5016
      %v5018 = vsel %vm5006, %v4996, %v4999
      %v5019 = vsel %vm5009, %v5005, 1326507024
      %v5020 = vsel %vm5008, %v5002, %v5019
      %v5021 = vsel %vm5007, %v5018, %v5020
      %v5022 = vshll.u32 %v4982, 8
      %v5023 = vmul.u32.u64.compose %v5022, %v5021
      %v5024 = vextract.low.u32 %v5023
      %v5025 = vextract.high.u32 %v5023
      %v5026 = vmul.u32.u64.compose %v5022, %v5017
      %v5027 = vextract.low.u32 %v5026
      %v5028 = vextract.high.u32 %v5026
      %v5029 = vmul.u32 %v5022, %v5013
      %v5030 = vadd.s32 %v5025, %v5027
      %vm5031 = vc.u32 %v5025, %v5027
      %v5032 = vadd.s32 %v5028, 1
      %v5033 = vsel %vm5031, %v5032, %v5028
      %v5034 = vadd.s32 %v5029, %v5033
      %v5035 = vadd.s32 %v5034, 536870912
      %v5036 = vshrl.u32 %v5035, 30
      %v5037 = vshll.u32 %v5036, 30
      %v5038 = vsub.s32 %v5034, %v5037
      %vm5039 = vcmp.lt.s32.totalorder %v5038, 0
      %v5040 = vsub.s32 0, %v5038
      %v5041 = vsel %vm5039, %v5040, %v5038
      %v5042 = vclz %v5041
      %v5043 = vsub.s32 %v5042, 2
      %vm5044 = vcmp.gt.s32.totalorder 0, %v5043
      %v5045 = vsel %vm5044, 0, %v5043
      %v5046 = vsub.s32 32, %v5045
      %v5047 = vshll.u32 %v5038, %v5045
      %v5048 = vshrl.u32 %v5030, %v5046
      %v5049 = vor.u32 %v5047, %v5048
      %v5050 = vsub.s32 4294967266, %v5045
      %v5051 = vadd.s32 %v5050, 127
      %v5052 = vshll.u32 %v5051, 23
      %v5053 = vor.u32 4788187, %v5052
      %v5054 = vand.u32 2147483647, %v5053
      %v5056 = vcvt.s32.f32 %v5049
      %v5057 = vmul.f32 %v5056, %v5054
      %v5058 = vxor.u32 %v5057, 2147483648
      %v5059 = vsel %vm4976, %v5058, %v5057
      %v5060 = vsub.s32 4, %v5036
      %v5061 = vsel %vm4976, %v5060, %v5036
      %v5062 = vsel %vm4975, %v1749, %v5059
      %v5063 = vsel %vm4975, 0, %v5061
      %v5064 = vcosq.f32.pop %v5062
      %v5065 = vsinq.f32.pop %v5062
      %vm5066 = vweird.f32 %v1749
      %v5067 = vadd.s32 %v5063, 3
      %v5068 = vand.u32 %v5067, 3
      %vm5069 = vcmp.lt.s32.totalorder %v5068, 2
      %vm5070 = vcmp.eq.s32.totalorder %v5068, 0
      %v5071 = vxor.u32 %v5065, 2147483648
      %v5072 = vsel %vm5070, %v5064, %v5071
      %vm5073 = vcmp.eq.s32.totalorder %v5068, 2
      %v5074 = vxor.u32 %v5064, 2147483648
      %v5075 = vsel %vm5073, %v5074, %v5065
      %v5076 = vsel %vm5069, %v5072, %v5075
      %v5077 = vsel %vm5066, nan, %v5076
      %v5078 = vsel %vm1710, %v1676, %v1853
      %v5079 = vsel %vm1710, %v1677, %v1957
      %v5080 = vsel %vm1710, %v1678, %v2061
      %v5081 = vsel %vm1710, %v1679, %v2165
      %v5082 = vsel %vm1710, %v1680, %v2269
      %v5083 = vsel %vm1710, %v1681, %v2373
      %v5084 = vsel %vm1710, %v1682, %v2477
      %v5085 = vsel %vm1710, %v1683, %v2581
      %v5086 = vsel %vm1710, %v1684, %v2685
      %v5087 = vsel %vm1710, %v1685, %v2789
      %v5088 = vsel %vm1710, %v1686, %v2893
      %v5089 = vsel %vm1710, %v1687, %v2997
      %v5090 = vsel %vm1710, %v1688, %v3101
      %v5091 = vsel %vm1710, %v1689, %v3205
      %v5092 = vsel %vm1710, %v1690, %v3309
      %v5093 = vsel %vm1710, %v1691, %v3413
      %v5094 = vsel %vm1710, %v1692, %v3517
      %v5095 = vsel %vm1710, %v1693, %v3621
      %v5096 = vsel %vm1710, %v1694, %v3725
      %v5097 = vsel %vm1710, %v1695, %v3829
      %v5098 = vsel %vm1710, %v1696, %v3933
      %v5099 = vsel %vm1710, %v1697, %v4037
      %v5100 = vsel %vm1710, %v1698, %v4141
      %v5101 = vsel %vm1710, %v1699, %v4245
      %v5102 = vsel %vm1710, %v1700, %v4349
      %v5103 = vsel %vm1710, %v1701, %v4453
      %v5104 = vsel %vm1710, %v1702, %v4557
      %v5105 = vsel %vm1710, %v1703, %v4661
      %v5106 = vsel %vm1710, %v1704, %v4765
      %v5107 = vsel %vm1710, %v1705, %v4869
      %v5108 = vsel %vm1710, %v1706, %v4973
      %v5109 = vsel %vm1710, %v1707, %v5077
      %v5110 = vpack.c.bf16 %v5079, %v5078
      %v5111 = vpack.c.bf16 %v5081, %v5080
      %v5112 = vpack.c.bf16 %v5083, %v5082
      %v5113 = vpack.c.bf16 %v5085, %v5084
      %v5114 = vpack.c.bf16 %v5087, %v5086
      %v5115 = vpack.c.bf16 %v5089, %v5088
      %v5116 = vpack.c.bf16 %v5091, %v5090
      %v5117 = vpack.c.bf16 %v5093, %v5092
      %v5118 = vpack.c.bf16 %v5095, %v5094
      %v5119 = vpack.c.bf16 %v5097, %v5096
      %v5120 = vpack.c.bf16 %v5099, %v5098
      %v5121 = vpack.c.bf16 %v5101, %v5100
      %v5122 = vpack.c.bf16 %v5103, %v5102
      %v5123 = vpack.c.bf16 %v5105, %v5104
      %v5124 = vpack.c.bf16 %v5107, %v5106
      %v5125 = vpack.c.bf16 %v5109, %v5108
      %v5126 = vld [vmem:[%s3] sm:$0xff]
      %v5127 = vld [vmem:[%s3 + $0x8] sm:$0xff]
      %v5128 = vld [vmem:[%s3 + $0x10] sm:$0xff]
      %v5129 = vld [vmem:[%s3 + $0x18] sm:$0xff]
      %v5130 = vld [vmem:[%s3 + $0x20] sm:$0xff]
      %v5131 = vld [vmem:[%s3 + $0x28] sm:$0xff]
      %v5132 = vld [vmem:[%s3 + $0x30] sm:$0xff]
      %v5133 = vld [vmem:[%s3 + $0x38] sm:$0xff]
      %v5134 = vld [vmem:[%s3 + $0x40] sm:$0xff]
      %v5135 = vld [vmem:[%s3 + $0x48] sm:$0xff]
      %v5136 = vld [vmem:[%s3 + $0x50] sm:$0xff]
      %v5137 = vld [vmem:[%s3 + $0x58] sm:$0xff]
      %v5138 = vld [vmem:[%s4] sm:$0x3]
      %v5140 = vlaneseq
      %v5141 = vshrl.u32 %v5140, 7
      %v5142 = vsub.s32 0, %v5141
      %v5143 = vrot.slane %v5138, %v5142
      %v5144 = vlaneseq
      %v5145 = vshrl.u32 %v5144, 7
      %v5146 = vsub.s32 1, %v5145
      %v5147 = vrot.slane %v5138, %v5146
      %v5162 = vunpack.c.l.b16 %v5126
      %v5163 = vunpack.c.h.b16 %v5126
      %v5164 = vunpack.c.l.b16 %v5127
      %v5165 = vunpack.c.h.b16 %v5127
      %v5166 = vunpack.c.l.b16 %v5128
      %v5167 = vunpack.c.h.b16 %v5128
      %v5168 = vunpack.c.l.b16 %v5129
      %v5169 = vunpack.c.h.b16 %v5129
      %v5170 = vunpack.c.l.b16 %v5130
      %v5171 = vunpack.c.h.b16 %v5130
      %v5172 = vunpack.c.l.b16 %v5131
      %v5173 = vunpack.c.h.b16 %v5131
      %v5174 = vunpack.c.l.b16 %v5132
      %v5175 = vunpack.c.h.b16 %v5132
      %v5176 = vunpack.c.l.b16 %v5133
      %v5177 = vunpack.c.h.b16 %v5133
      %v5178 = vunpack.c.l.b16 %v5134
      %v5179 = vunpack.c.h.b16 %v5134
      %v5180 = vunpack.c.l.b16 %v5135
      %v5181 = vunpack.c.h.b16 %v5135
      %v5182 = vunpack.c.l.b16 %v5136
      %v5183 = vunpack.c.h.b16 %v5136
      %v5184 = vunpack.c.l.b16 %v5137
      %v5185 = vunpack.c.h.b16 %v5137
      %v5186 = vpack.c.b16 %v5164, %v5162
      %v5187 = vpack.c.b16 %v5165, %v5163
      %v5188 = vpack.c.b16 %v5168, %v5166
      %v5189 = vpack.c.b16 %v5169, %v5167
      %v5190 = vpack.c.b16 %v5172, %v5170
      %v5191 = vpack.c.b16 %v5173, %v5171
      %v5192 = vpack.c.b16 %v5176, %v5174
      %v5193 = vpack.c.b16 %v5177, %v5175
      %v5194 = vpack.c.b16 %v5180, %v5178
      %v5195 = vpack.c.b16 %v5181, %v5179
      %v5196 = vpack.c.b16 %v5184, %v5182
      %v5197 = vpack.c.b16 %v5185, %v5183
      %vm5210 = vcmask 785408
      %v5212 = vsel %vm5210, %v5110, 0
      %v5215 = vsel %vm5210, %v5111, 0
      %v5218 = vsel %vm5210, %v5112, 0
      %v5221 = vsel %vm5210, %v5113, 0
      %v5224 = vsel %vm5210, %v5114, 0
      %v5227 = vsel %vm5210, %v5115, 0
      %v5230 = vsel %vm5210, %v5116, 0
      %v5233 = vsel %vm5210, %v5117, 0
      %v5236 = vsel %vm5210, %v5118, 0
      %v5239 = vsel %vm5210, %v5119, 0
      %v5242 = vsel %vm5210, %v5120, 0
      %v5245 = vsel %vm5210, %v5121, 0
      %v5248 = vsel %vm5210, %v5122, 0
      %v5251 = vsel %vm5210, %v5123, 0
      %v5254 = vsel %vm5210, %v5124, 0
      %v5257 = vsel %vm5210, %v5125, 0
      %5259 = vmatprep.subr.bf16.mxu0 %v5187
      %5260 = vmatpush1.bf16.msra.mxu0 %v5186
      %5261 = vmatprep.subr.bf16.mxu0 %v5189
      %5262 = vmatpush1.bf16.msra.mxu0 %v5188
      %5263 = vmatprep.subr.bf16.mxu0 %v5191
      %5264 = vmatpush1.bf16.msra.mxu0 %v5190
      %5265 = vmatprep.subr.bf16.mxu0 %v5193
      %5266 = vmatpush1.bf16.msra.mxu0 %v5192
      %5267 = vmatprep.subr.bf16.mxu0 %v5195
      %5268 = vmatpush1.bf16.msra.mxu0 %v5194
      %5269 = vmatprep.subr.bf16.mxu0 %v5197
      %5270 = vmatpush1.bf16.msra.mxu0 %v5196
      %5271 = vmatprep.subr.bf16.mxu0 0
      %5272 = vmatpush1.bf16.msra.mxu0 0
      %5273 = vmatprep.subr.bf16.mxu0 0
      %5274 = vmatpush1.bf16.msra.mxu0 0
      %5275 = vmatprep.subr.bf16.mxu0 0
      %5276 = vmatpush1.bf16.msra.mxu0 0
      %5277 = vmatprep.subr.bf16.mxu0 0
      %5278 = vmatpush1.bf16.msra.mxu0 0
      %5279 = vmatprep.subr.bf16.mxu0 0
      %5280 = vmatpush1.bf16.msra.mxu0 0
      %5281 = vmatprep.subr.bf16.mxu0 0
      %5282 = vmatpush1.bf16.msra.mxu0 0
      %5283 = vmatprep.subr.bf16.mxu0 0
      %5284 = vmatpush1.bf16.msra.mxu0 0
      %5285 = vmatprep.subr.bf16.mxu0 0
      %5286 = vmatpush1.bf16.msra.mxu0 0
      %5287 = vmatprep.subr.bf16.mxu0 0
      %5288 = vmatpush1.bf16.msra.mxu0 0
      %5289 = vmatprep.subr.bf16.mxu0 0
      %5290 = vmatpush1.bf16.msra.mxu0 0
      %5291 = vmatprep.mubr.bf16.mxu0 0
      %5292 = vmatmul.mubr.bf16.gmra.mrb[0].mxu0 %v5212
      %v5293 = vpop.f32.mrb[0].mxu0
      %v5294 = vadd.f32 %v5143, %v5293
      %v5295 = vpop.f32.mrb[0].mxu0
      %v5296 = vadd.f32 %v5147, %v5295
      %v5297 = vpop.f32.mrb[0].mxu0
      %v5298 = vadd.f32 %v5143, %v5297
      %v5299 = vpop.f32.mrb[0].mxu0
      %v5300 = vadd.f32 %v5147, %v5299
      %5301 = vmatprep.mubr.bf16.mxu0 0
      %5302 = vmatmul.mubr.bf16.gmra.mrb[0].mxu0 %v5215
      %v5303 = vpop.f32.mrb[0].mxu0
      %v5304 = vadd.f32 %v5143, %v5303
      %v5305 = vpop.f32.mrb[0].mxu0
      %v5306 = vadd.f32 %v5147, %v5305
      %v5307 = vpop.f32.mrb[0].mxu0
      %v5308 = vadd.f32 %v5143, %v5307
      %v5309 = vpop.f32.mrb[0].mxu0
      %v5310 = vadd.f32 %v5147, %v5309
      %5311 = vmatprep.mubr.bf16.mxu0 0
      %5312 = vmatmul.mubr.bf16.gmra.mrb[0].mxu0 %v5218
      %v5313 = vpop.f32.mrb[0].mxu0
      %v5314 = vadd.f32 %v5143, %v5313
      %v5315 = vpop.f32.mrb[0].mxu0
      %v5316 = vadd.f32 %v5147, %v5315
      %v5317 = vpop.f32.mrb[0].mxu0
      %v5318 = vadd.f32 %v5143, %v5317
      %v5319 = vpop.f32.mrb[0].mxu0
      %v5320 = vadd.f32 %v5147, %v5319
      %5321 = vmatprep.mubr.bf16.mxu0 0
      %5322 = vmatmul.mubr.bf16.gmra.mrb[0].mxu0 %v5221
      %v5323 = vpop.f32.mrb[0].mxu0
      %v5324 = vadd.f32 %v5143, %v5323
      %v5325 = vpop.f32.mrb[0].mxu0
      %v5326 = vadd.f32 %v5147, %v5325
      %v5327 = vpop.f32.mrb[0].mxu0
      %v5328 = vadd.f32 %v5143, %v5327
      %v5329 = vpop.f32.mrb[0].mxu0
      %v5330 = vadd.f32 %v5147, %v5329
      %5331 = vmatprep.mubr.bf16.mxu0 0
      %5332 = vmatmul.mubr.bf16.gmra.mrb[0].mxu0 %v5224
      %v5333 = vpop.f32.mrb[0].mxu0
      %v5334 = vadd.f32 %v5143, %v5333
      %v5335 = vpop.f32.mrb[0].mxu0
      %v5336 = vadd.f32 %v5147, %v5335
      %v5337 = vpop.f32.mrb[0].mxu0
      %v5338 = vadd.f32 %v5143, %v5337
      %v5339 = vpop.f32.mrb[0].mxu0
      %v5340 = vadd.f32 %v5147, %v5339
      %5341 = vmatprep.mubr.bf16.mxu0 0
      %5342 = vmatmul.mubr.bf16.gmra.mrb[0].mxu0 %v5227
      %v5343 = vpop.f32.mrb[0].mxu0
      %v5344 = vadd.f32 %v5143, %v5343
      %v5345 = vpop.f32.mrb[0].mxu0
      %v5346 = vadd.f32 %v5147, %v5345
      %v5347 = vpop.f32.mrb[0].mxu0
      %v5348 = vadd.f32 %v5143, %v5347
      %v5349 = vpop.f32.mrb[0].mxu0
      %v5350 = vadd.f32 %v5147, %v5349
      %5351 = vmatprep.mubr.bf16.mxu0 0
      %5352 = vmatmul.mubr.bf16.gmra.mrb[0].mxu0 %v5230
      %v5353 = vpop.f32.mrb[0].mxu0
      %v5354 = vadd.f32 %v5143, %v5353
      %v5355 = vpop.f32.mrb[0].mxu0
      %v5356 = vadd.f32 %v5147, %v5355
      %v5357 = vpop.f32.mrb[0].mxu0
      %v5358 = vadd.f32 %v5143, %v5357
      %v5359 = vpop.f32.mrb[0].mxu0
      %v5360 = vadd.f32 %v5147, %v5359
      %5361 = vmatprep.mubr.bf16.mxu0 0
      %5362 = vmatmul.mubr.bf16.gmra.mrb[0].mxu0 %v5233
      %v5363 = vpop.f32.mrb[0].mxu0
      %v5364 = vadd.f32 %v5143, %v5363
      %v5365 = vpop.f32.mrb[0].mxu0
      %v5366 = vadd.f32 %v5147, %v5365
      %v5367 = vpop.f32.mrb[0].mxu0
      %v5368 = vadd.f32 %v5143, %v5367
      %v5369 = vpop.f32.mrb[0].mxu0
      %v5370 = vadd.f32 %v5147, %v5369
      %5371 = vmatprep.mubr.bf16.mxu0 0
      %5372 = vmatmul.mubr.bf16.gmra.mrb[0].mxu0 %v5236
      %v5373 = vpop.f32.mrb[0].mxu0
      %v5374 = vadd.f32 %v5143, %v5373
      %v5375 = vpop.f32.mrb[0].mxu0
      %v5376 = vadd.f32 %v5147, %v5375
      %v5377 = vpop.f32.mrb[0].mxu0
      %v5378 = vadd.f32 %v5143, %v5377
      %v5379 = vpop.f32.mrb[0].mxu0
      %v5380 = vadd.f32 %v5147, %v5379
      %5381 = vmatprep.mubr.bf16.mxu0 0
      %5382 = vmatmul.mubr.bf16.gmra.mrb[0].mxu0 %v5239
      %v5383 = vpop.f32.mrb[0].mxu0
      %v5384 = vadd.f32 %v5143, %v5383
      %v5385 = vpop.f32.mrb[0].mxu0
      %v5386 = vadd.f32 %v5147, %v5385
      %v5387 = vpop.f32.mrb[0].mxu0
      %v5388 = vadd.f32 %v5143, %v5387
      %v5389 = vpop.f32.mrb[0].mxu0
      %v5390 = vadd.f32 %v5147, %v5389
      %5391 = vmatprep.mubr.bf16.mxu0 0
      %5392 = vmatmul.mubr.bf16.gmra.mrb[0].mxu0 %v5242
      %v5393 = vpop.f32.mrb[0].mxu0
      %v5394 = vadd.f32 %v5143, %v5393
      %v5395 = vpop.f32.mrb[0].mxu0
      %v5396 = vadd.f32 %v5147, %v5395
      %v5397 = vpop.f32.mrb[0].mxu0
      %v5398 = vadd.f32 %v5143, %v5397
      %v5399 = vpop.f32.mrb[0].mxu0
      %v5400 = vadd.f32 %v5147, %v5399
      %5401 = vmatprep.mubr.bf16.mxu0 0
      %5402 = vmatmul.mubr.bf16.gmra.mrb[0].mxu0 %v5245
      %v5403 = vpop.f32.mrb[0].mxu0
      %v5404 = vadd.f32 %v5143, %v5403
      %v5405 = vpop.f32.mrb[0].mxu0
      %v5406 = vadd.f32 %v5147, %v5405
      %v5407 = vpop.f32.mrb[0].mxu0
      %v5408 = vadd.f32 %v5143, %v5407
      %v5409 = vpop.f32.mrb[0].mxu0
      %v5410 = vadd.f32 %v5147, %v5409
      %5411 = vmatprep.mubr.bf16.mxu0 0
      %5412 = vmatmul.mubr.bf16.gmra.mrb[0].mxu0 %v5248
      %v5413 = vpop.f32.mrb[0].mxu0
      %v5414 = vadd.f32 %v5143, %v5413
      %v5415 = vpop.f32.mrb[0].mxu0
      %v5416 = vadd.f32 %v5147, %v5415
      %v5417 = vpop.f32.mrb[0].mxu0
      %v5418 = vadd.f32 %v5143, %v5417
      %v5419 = vpop.f32.mrb[0].mxu0
      %v5420 = vadd.f32 %v5147, %v5419
      %5421 = vmatprep.mubr.bf16.mxu0 0
      %5422 = vmatmul.mubr.bf16.gmra.mrb[0].mxu0 %v5251
      %v5423 = vpop.f32.mrb[0].mxu0
      %v5424 = vadd.f32 %v5143, %v5423
      %v5425 = vpop.f32.mrb[0].mxu0
      %v5426 = vadd.f32 %v5147, %v5425
      %v5427 = vpop.f32.mrb[0].mxu0
      %v5428 = vadd.f32 %v5143, %v5427
      %v5429 = vpop.f32.mrb[0].mxu0
      %v5430 = vadd.f32 %v5147, %v5429
      %5431 = vmatprep.mubr.bf16.mxu0 0
      %5432 = vmatmul.mubr.bf16.gmra.mrb[0].mxu0 %v5254
      %v5433 = vpop.f32.mrb[0].mxu0
      %v5434 = vadd.f32 %v5143, %v5433
      %v5435 = vpop.f32.mrb[0].mxu0
      %v5436 = vadd.f32 %v5147, %v5435
      %v5437 = vpop.f32.mrb[0].mxu0
      %v5438 = vadd.f32 %v5143, %v5437
      %v5439 = vpop.f32.mrb[0].mxu0
      %v5440 = vadd.f32 %v5147, %v5439
      %5441 = vmatprep.mubr.bf16.mxu0 0
      %5442 = vmatmul.mubr.bf16.gmra.mrb[0].mxu0 %v5257
      %v5443 = vpop.f32.mrb[0].mxu0
      %v5444 = vadd.f32 %v5143, %v5443
      %v5445 = vpop.f32.mrb[0].mxu0
      %v5446 = vadd.f32 %v5147, %v5445
      %v5447 = vpop.f32.mrb[0].mxu0
      %v5448 = vadd.f32 %v5143, %v5447
      %v5449 = vpop.f32.mrb[0].mxu0
      %v5450 = vadd.f32 %v5147, %v5449
      %5451 = vdwg.mxu0
      %v5452 = vmax.f32 %v5294, 0.0
      %v5453 = vmax.f32 %v5296, 0.0
      %v5454 = vmax.f32 %v5298, 0.0
      %v5455 = vmax.f32 %v5300, 0.0
      %v5456 = vmax.f32 %v5304, 0.0
      %v5457 = vmax.f32 %v5306, 0.0
      %v5458 = vmax.f32 %v5308, 0.0
      %v5459 = vmax.f32 %v5310, 0.0
      %v5460 = vmax.f32 %v5314, 0.0
      %v5461 = vmax.f32 %v5316, 0.0
      %v5462 = vmax.f32 %v5318, 0.0
      %v5463 = vmax.f32 %v5320, 0.0
      %v5464 = vmax.f32 %v5324, 0.0
      %v5465 = vmax.f32 %v5326, 0.0
      %v5466 = vmax.f32 %v5328, 0.0
      %v5467 = vmax.f32 %v5330, 0.0
      %v5468 = vmax.f32 %v5334, 0.0
      %v5469 = vmax.f32 %v5336, 0.0
      %v5470 = vmax.f32 %v5338, 0.0
      %v5471 = vmax.f32 %v5340, 0.0
      %v5472 = vmax.f32 %v5344, 0.0
      %v5473 = vmax.f32 %v5346, 0.0
      %v5474 = vmax.f32 %v5348, 0.0
      %v5475 = vmax.f32 %v5350, 0.0
      %v5476 = vmax.f32 %v5354, 0.0
      %v5477 = vmax.f32 %v5356, 0.0
      %v5478 = vmax.f32 %v5358, 0.0
      %v5479 = vmax.f32 %v5360, 0.0
      %v5480 = vmax.f32 %v5364, 0.0
      %v5481 = vmax.f32 %v5366, 0.0
      %v5482 = vmax.f32 %v5368, 0.0
      %v5483 = vmax.f32 %v5370, 0.0
      %v5484 = vmax.f32 %v5374, 0.0
      %v5485 = vmax.f32 %v5376, 0.0
      %v5486 = vmax.f32 %v5378, 0.0
      %v5487 = vmax.f32 %v5380, 0.0
      %v5488 = vmax.f32 %v5384, 0.0
      %v5489 = vmax.f32 %v5386, 0.0
      %v5490 = vmax.f32 %v5388, 0.0
      %v5491 = vmax.f32 %v5390, 0.0
      %v5492 = vmax.f32 %v5394, 0.0
      %v5493 = vmax.f32 %v5396, 0.0
      %v5494 = vmax.f32 %v5398, 0.0
      %v5495 = vmax.f32 %v5400, 0.0
      %v5496 = vmax.f32 %v5404, 0.0
      %v5497 = vmax.f32 %v5406, 0.0
      %v5498 = vmax.f32 %v5408, 0.0
      %v5499 = vmax.f32 %v5410, 0.0
      %v5500 = vmax.f32 %v5414, 0.0
      %v5501 = vmax.f32 %v5416, 0.0
      %v5502 = vmax.f32 %v5418, 0.0
      %v5503 = vmax.f32 %v5420, 0.0
      %v5504 = vmax.f32 %v5424, 0.0
      %v5505 = vmax.f32 %v5426, 0.0
      %v5506 = vmax.f32 %v5428, 0.0
      %v5507 = vmax.f32 %v5430, 0.0
      %v5508 = vmax.f32 %v5434, 0.0
      %v5509 = vmax.f32 %v5436, 0.0
      %v5510 = vmax.f32 %v5438, 0.0
      %v5511 = vmax.f32 %v5440, 0.0
      %v5512 = vmax.f32 %v5444, 0.0
      %v5513 = vmax.f32 %v5446, 0.0
      %v5514 = vmax.f32 %v5448, 0.0
      %v5515 = vmax.f32 %v5450, 0.0
      %v5516 = vpack.c.bf16 %v5454, %v5452
      %v5517 = vpack.c.bf16 %v5455, %v5453
      %v5518 = vpack.c.bf16 %v5458, %v5456
      %v5519 = vpack.c.bf16 %v5459, %v5457
      %v5520 = vpack.c.bf16 %v5462, %v5460
      %v5521 = vpack.c.bf16 %v5463, %v5461
      %v5522 = vpack.c.bf16 %v5466, %v5464
      %v5523 = vpack.c.bf16 %v5467, %v5465
      %v5524 = vpack.c.bf16 %v5470, %v5468
      %v5525 = vpack.c.bf16 %v5471, %v5469
      %v5526 = vpack.c.bf16 %v5474, %v5472
      %v5527 = vpack.c.bf16 %v5475, %v5473
      %v5528 = vpack.c.bf16 %v5478, %v5476
      %v5529 = vpack.c.bf16 %v5479, %v5477
      %v5530 = vpack.c.bf16 %v5482, %v5480
      %v5531 = vpack.c.bf16 %v5483, %v5481
      %v5532 = vpack.c.bf16 %v5486, %v5484
      %v5533 = vpack.c.bf16 %v5487, %v5485
      %v5534 = vpack.c.bf16 %v5490, %v5488
      %v5535 = vpack.c.bf16 %v5491, %v5489
      %v5536 = vpack.c.bf16 %v5494, %v5492
      %v5537 = vpack.c.bf16 %v5495, %v5493
      %v5538 = vpack.c.bf16 %v5498, %v5496
      %v5539 = vpack.c.bf16 %v5499, %v5497
      %v5540 = vpack.c.bf16 %v5502, %v5500
      %v5541 = vpack.c.bf16 %v5503, %v5501
      %v5542 = vpack.c.bf16 %v5506, %v5504
      %v5543 = vpack.c.bf16 %v5507, %v5505
      %v5544 = vpack.c.bf16 %v5510, %v5508
      %v5545 = vpack.c.bf16 %v5511, %v5509
      %v5546 = vpack.c.bf16 %v5514, %v5512
      %v5547 = vpack.c.bf16 %v5515, %v5513
      %v5548 = vld [vmem:[%s5] sm:$0xff]
      %v5549 = vld [vmem:[%s5 + $0x8] sm:$0xff]
      %v5550 = vld [vmem:[%s5 + $0x10] sm:$0xff]
      %v5551 = vld [vmem:[%s5 + $0x18] sm:$0xff]
      %v5552 = vld [vmem:[%s5 + $0x20] sm:$0xff]
      %v5553 = vld [vmem:[%s5 + $0x28] sm:$0xff]
      %v5554 = vld [vmem:[%s5 + $0x30] sm:$0xff]
      %v5555 = vld [vmem:[%s5 + $0x38] sm:$0xff]
      %v5556 = vld [vmem:[%s5 + $0x40] sm:$0xff]
      %v5557 = vld [vmem:[%s5 + $0x48] sm:$0xff]
      %v5558 = vld [vmem:[%s5 + $0x50] sm:$0xff]
      %v5559 = vld [vmem:[%s5 + $0x58] sm:$0xff]
      %v5560 = vld [vmem:[%s5 + $0x60] sm:$0xff]
      %v5561 = vld [vmem:[%s5 + $0x68] sm:$0xff]
      %v5562 = vld [vmem:[%s5 + $0x70] sm:$0xff]
      %v5563 = vld [vmem:[%s5 + $0x78] sm:$0xff]
      %v5564 = vld [vmem:[%s5 + $0x80] sm:$0xff]
      %v5565 = vld [vmem:[%s5 + $0x88] sm:$0xff]
      %v5566 = vld [vmem:[%s5 + $0x90] sm:$0xff]
      %v5567 = vld [vmem:[%s5 + $0x98] sm:$0xff]
      %v5568 = vld [vmem:[%s5 + $0xa0] sm:$0xff]
      %v5569 = vld [vmem:[%s5 + $0xa8] sm:$0xff]
      %v5570 = vld [vmem:[%s5 + $0xb0] sm:$0xff]
      %v5571 = vld [vmem:[%s5 + $0xb8] sm:$0xff]
      %v5572 = vld [vmem:[%s5 + $0xc0] sm:$0xff]
      %v5573 = vld [vmem:[%s5 + $0xc8] sm:$0xff]
      %v5574 = vld [vmem:[%s5 + $0xd0] sm:$0xff]
      %v5575 = vld [vmem:[%s5 + $0xd8] sm:$0xff]
      %v5576 = vld [vmem:[%s5 + $0xe0] sm:$0xff]
      %v5577 = vld [vmem:[%s5 + $0xe8] sm:$0xff]
      %v5578 = vld [vmem:[%s5 + $0xf0] sm:$0xff]
      %v5579 = vld [vmem:[%s5 + $0xf8] sm:$0xff]
      %v5580 = vld [vmem:[%s6] sm:$0x3]
      %v5582 = vlaneseq
      %v5583 = vshrl.u32 %v5582, 7
      %v5584 = vsub.s32 0, %v5583
      %v5585 = vrot.slane %v5580, %v5584
      %v5586 = vlaneseq
      %v5587 = vshrl.u32 %v5586, 7
      %v5588 = vsub.s32 1, %v5587
      %v5589 = vrot.slane %v5580, %v5588
      %v5624 = vunpack.c.l.b16 %v5548
      %v5625 = vunpack.c.h.b16 %v5548
      %v5626 = vunpack.c.l.b16 %v5549
      %v5627 = vunpack.c.h.b16 %v5549
      %v5628 = vunpack.c.l.b16 %v5550
      %v5629 = vunpack.c.h.b16 %v5550
      %v5630 = vunpack.c.l.b16 %v5551
      %v5631 = vunpack.c.h.b16 %v5551
      %v5632 = vunpack.c.l.b16 %v5552
      %v5633 = vunpack.c.h.b16 %v5552
      %v5634 = vunpack.c.l.b16 %v5553
      %v5635 = vunpack.c.h.b16 %v5553
      %v5636 = vunpack.c.l.b16 %v5554
      %v5637 = vunpack.c.h.b16 %v5554
      %v5638 = vunpack.c.l.b16 %v5555
      %v5639 = vunpack.c.h.b16 %v5555
      %v5640 = vunpack.c.l.b16 %v5556
      %v5641 = vunpack.c.h.b16 %v5556
      %v5642 = vunpack.c.l.b16 %v5557
      %v5643 = vunpack.c.h.b16 %v5557
      %v5644 = vunpack.c.l.b16 %v5558
      %v5645 = vunpack.c.h.b16 %v5558
      %v5646 = vunpack.c.l.b16 %v5559
      %v5647 = vunpack.c.h.b16 %v5559
      %v5648 = vunpack.c.l.b16 %v5560
      %v5649 = vunpack.c.h.b16 %v5560
      %v5650 = vunpack.c.l.b16 %v5561
      %v5651 = vunpack.c.h.b16 %v5561
      %v5652 = vunpack.c.l.b16 %v5562
      %v5653 = vunpack.c.h.b16 %v5562
      %v5654 = vunpack.c.l.b16 %v5563
      %v5655 = vunpack.c.h.b16 %v5563
      %v5656 = vunpack.c.l.b16 %v5564
      %v5657 = vunpack.c.h.b16 %v5564
      %v5658 = vunpack.c.l.b16 %v5565
      %v5659 = vunpack.c.h.b16 %v5565
      %v5660 = vunpack.c.l.b16 %v5566
      %v5661 = vunpack.c.h.b16 %v5566
      %v5662 = vunpack.c.l.b16 %v5567
      %v5663 = vunpack.c.h.b16 %v5567
      %v5664 = vunpack.c.l.b16 %v5568
      %v5665 = vunpack.c.h.b16 %v5568
      %v5666 = vunpack.c.l.b16 %v5569
      %v5667 = vunpack.c.h.b16 %v5569
      %v5668 = vunpack.c.l.b16 %v5570
      %v5669 = vunpack.c.h.b16 %v5570
      %v5670 = vunpack.c.l.b16 %v5571
      %v5671 = vunpack.c.h.b16 %v5571
      %v5672 = vunpack.c.l.b16 %v5572
      %v5673 = vunpack.c.h.b16 %v5572
      %v5674 = vunpack.c.l.b16 %v5573
      %v5675 = vunpack.c.h.b16 %v5573
      %v5676 = vunpack.c.l.b16 %v5574
      %v5677 = vunpack.c.h.b16 %v5574
      %v5678 = vunpack.c.l.b16 %v5575
      %v5679 = vunpack.c.h.b16 %v5575
      %v5680 = vunpack.c.l.b16 %v5576
      %v5681 = vunpack.c.h.b16 %v5576
      %v5682 = vunpack.c.l.b16 %v5577
      %v5683 = vunpack.c.h.b16 %v5577
      %v5684 = vunpack.c.l.b16 %v5578
      %v5685 = vunpack.c.h.b16 %v5578
      %v5686 = vunpack.c.l.b16 %v5579
      %v5687 = vunpack.c.h.b16 %v5579
      %v5688 = vpack.c.b16 %v5626, %v5624
      %v5689 = vpack.c.b16 %v5627, %v5625
      %v5690 = vpack.c.b16 %v5630, %v5628
      %v5691 = vpack.c.b16 %v5631, %v5629
      %v5692 = vpack.c.b16 %v5634, %v5632
      %v5693 = vpack.c.b16 %v5635, %v5633
      %v5694 = vpack.c.b16 %v5638, %v5636
      %v5695 = vpack.c.b16 %v5639, %v5637
      %v5696 = vpack.c.b16 %v5642, %v5640
      %v5697 = vpack.c.b16 %v5643, %v5641
      %v5698 = vpack.c.b16 %v5646, %v5644
      %v5699 = vpack.c.b16 %v5647, %v5645
      %v5700 = vpack.c.b16 %v5650, %v5648
      %v5701 = vpack.c.b16 %v5651, %v5649
      %v5702 = vpack.c.b16 %v5654, %v5652
      %v5703 = vpack.c.b16 %v5655, %v5653
      %v5704 = vpack.c.b16 %v5658, %v5656
      %v5705 = vpack.c.b16 %v5659, %v5657
      %v5706 = vpack.c.b16 %v5662, %v5660
      %v5707 = vpack.c.b16 %v5663, %v5661
      %v5708 = vpack.c.b16 %v5666, %v5664
      %v5709 = vpack.c.b16 %v5667, %v5665
      %v5710 = vpack.c.b16 %v5670, %v5668
      %v5711 = vpack.c.b16 %v5671, %v5669
      %v5712 = vpack.c.b16 %v5674, %v5672
      %v5713 = vpack.c.b16 %v5675, %v5673
      %v5714 = vpack.c.b16 %v5678, %v5676
      %v5715 = vpack.c.b16 %v5679, %v5677
      %v5716 = vpack.c.b16 %v5682, %v5680
      %v5717 = vpack.c.b16 %v5683, %v5681
      %v5718 = vpack.c.b16 %v5686, %v5684
      %v5719 = vpack.c.b16 %v5687, %v5685
      %5752 = vmatprep.subr.bf16.mxu0 %v5689
      %5753 = vmatpush1.bf16.msra.mxu0 %v5688
      %5754 = vmatprep.subr.bf16.mxu0 %v5691
      %5755 = vmatpush1.bf16.msra.mxu0 %v5690
      %5756 = vmatprep.subr.bf16.mxu0 %v5693
      %5757 = vmatpush1.bf16.msra.mxu0 %v5692
      %5758 = vmatprep.subr.bf16.mxu0 %v5695
      %5759 = vmatpush1.bf16.msra.mxu0 %v5694
      %5760 = vmatprep.subr.bf16.mxu0 %v5697
      %5761 = vmatpush1.bf16.msra.mxu0 %v5696
      %5762 = vmatprep.subr.bf16.mxu0 %v5699
      %5763 = vmatpush1.bf16.msra.mxu0 %v5698
      %5764 = vmatprep.subr.bf16.mxu0 %v5701
      %5765 = vmatpush1.bf16.msra.mxu0 %v5700
      %5766 = vmatprep.subr.bf16.mxu0 %v5703
      %5767 = vmatpush1.bf16.msra.mxu0 %v5702
      %5768 = vmatprep.subr.bf16.mxu0 %v5705
      %5769 = vmatpush1.bf16.msra.mxu0 %v5704
      %5770 = vmatprep.subr.bf16.mxu0 %v5707
      %5771 = vmatpush1.bf16.msra.mxu0 %v5706
      %5772 = vmatprep.subr.bf16.mxu0 %v5709
      %5773 = vmatpush1.bf16.msra.mxu0 %v5708
      %5774 = vmatprep.subr.bf16.mxu0 %v5711
      %5775 = vmatpush1.bf16.msra.mxu0 %v5710
      %5776 = vmatprep.subr.bf16.mxu0 %v5713
      %5777 = vmatpush1.bf16.msra.mxu0 %v5712
      %5778 = vmatprep.subr.bf16.mxu0 %v5715
      %5779 = vmatpush1.bf16.msra.mxu0 %v5714
      %5780 = vmatprep.subr.bf16.mxu0 %v5717
      %5781 = vmatpush1.bf16.msra.mxu0 %v5716
      %5782 = vmatprep.subr.bf16.mxu0 %v5719
      %5783 = vmatpush1.bf16.msra.mxu0 %v5718
      %5784 = vmatprep.mubr.bf16.mxu0 %v5517
      %5785 = vmatmul.mubr.bf16.gmra.mrb[0].mxu0 %v5516
      %v5786 = vpop.f32.mrb[0].mxu0
      %v5787 = vadd.f32 %v5585, %v5786
      %v5788 = vpop.f32.mrb[0].mxu0
      %v5789 = vadd.f32 %v5589, %v5788
      %v5790 = vpop.f32.mrb[0].mxu0
      %v5791 = vadd.f32 %v5585, %v5790
      %v5792 = vpop.f32.mrb[0].mxu0
      %v5793 = vadd.f32 %v5589, %v5792
      %5794 = vmatprep.mubr.bf16.mxu0 %v5519
      %5795 = vmatmul.mubr.bf16.gmra.mrb[0].mxu0 %v5518
      %v5796 = vpop.f32.mrb[0].mxu0
      %v5797 = vadd.f32 %v5585, %v5796
      %v5798 = vpop.f32.mrb[0].mxu0
      %v5799 = vadd.f32 %v5589, %v5798
      %v5800 = vpop.f32.mrb[0].mxu0
      %v5801 = vadd.f32 %v5585, %v5800
      %v5802 = vpop.f32.mrb[0].mxu0
      %v5803 = vadd.f32 %v5589, %v5802
      %5804 = vmatprep.mubr.bf16.mxu0 %v5521
      %5805 = vmatmul.mubr.bf16.gmra.mrb[0].mxu0 %v5520
      %v5806 = vpop.f32.mrb[0].mxu0
      %v5807 = vadd.f32 %v5585, %v5806
      %v5808 = vpop.f32.mrb[0].mxu0
      %v5809 = vadd.f32 %v5589, %v5808
      %v5810 = vpop.f32.mrb[0].mxu0
      %v5811 = vadd.f32 %v5585, %v5810
      %v5812 = vpop.f32.mrb[0].mxu0
      %v5813 = vadd.f32 %v5589, %v5812
      %5814 = vmatprep.mubr.bf16.mxu0 %v5523
      %5815 = vmatmul.mubr.bf16.gmra.mrb[0].mxu0 %v5522
      %v5816 = vpop.f32.mrb[0].mxu0
      %v5817 = vadd.f32 %v5585, %v5816
      %v5818 = vpop.f32.mrb[0].mxu0
      %v5819 = vadd.f32 %v5589, %v5818
      %v5820 = vpop.f32.mrb[0].mxu0
      %v5821 = vadd.f32 %v5585, %v5820
      %v5822 = vpop.f32.mrb[0].mxu0
      %v5823 = vadd.f32 %v5589, %v5822
      %5824 = vmatprep.mubr.bf16.mxu0 %v5525
      %5825 = vmatmul.mubr.bf16.gmra.mrb[0].mxu0 %v5524
      %v5826 = vpop.f32.mrb[0].mxu0
      %v5827 = vadd.f32 %v5585, %v5826
      %v5828 = vpop.f32.mrb[0].mxu0
      %v5829 = vadd.f32 %v5589, %v5828
      %v5830 = vpop.f32.mrb[0].mxu0
      %v5831 = vadd.f32 %v5585, %v5830
      %v5832 = vpop.f32.mrb[0].mxu0
      %v5833 = vadd.f32 %v5589, %v5832
      %5834 = vmatprep.mubr.bf16.mxu0 %v5527
      %5835 = vmatmul.mubr.bf16.gmra.mrb[0].mxu0 %v5526
      %v5836 = vpop.f32.mrb[0].mxu0
      %v5837 = vadd.f32 %v5585, %v5836
      %v5838 = vpop.f32.mrb[0].mxu0
      %v5839 = vadd.f32 %v5589, %v5838
      %v5840 = vpop.f32.mrb[0].mxu0
      %v5841 = vadd.f32 %v5585, %v5840
      %v5842 = vpop.f32.mrb[0].mxu0
      %v5843 = vadd.f32 %v5589, %v5842
      %5844 = vmatprep.mubr.bf16.mxu0 %v5529
      %5845 = vmatmul.mubr.bf16.gmra.mrb[0].mxu0 %v5528
      %v5846 = vpop.f32.mrb[0].mxu0
      %v5847 = vadd.f32 %v5585, %v5846
      %v5848 = vpop.f32.mrb[0].mxu0
      %v5849 = vadd.f32 %v5589, %v5848
      %v5850 = vpop.f32.mrb[0].mxu0
      %v5851 = vadd.f32 %v5585, %v5850
      %v5852 = vpop.f32.mrb[0].mxu0
      %v5853 = vadd.f32 %v5589, %v5852
      %5854 = vmatprep.mubr.bf16.mxu0 %v5531
      %5855 = vmatmul.mubr.bf16.gmra.mrb[0].mxu0 %v5530
      %v5856 = vpop.f32.mrb[0].mxu0
      %v5857 = vadd.f32 %v5585, %v5856
      %v5858 = vpop.f32.mrb[0].mxu0
      %v5859 = vadd.f32 %v5589, %v5858
      %v5860 = vpop.f32.mrb[0].mxu0
      %v5861 = vadd.f32 %v5585, %v5860
      %v5862 = vpop.f32.mrb[0].mxu0
      %v5863 = vadd.f32 %v5589, %v5862
      %5864 = vmatprep.mubr.bf16.mxu0 %v5533
      %5865 = vmatmul.mubr.bf16.gmra.mrb[0].mxu0 %v5532
      %v5866 = vpop.f32.mrb[0].mxu0
      %v5867 = vadd.f32 %v5585, %v5866
      %v5868 = vpop.f32.mrb[0].mxu0
      %v5869 = vadd.f32 %v5589, %v5868
      %v5870 = vpop.f32.mrb[0].mxu0
      %v5871 = vadd.f32 %v5585, %v5870
      %v5872 = vpop.f32.mrb[0].mxu0
      %v5873 = vadd.f32 %v5589, %v5872
      %5874 = vmatprep.mubr.bf16.mxu0 %v5535
      %5875 = vmatmul.mubr.bf16.gmra.mrb[0].mxu0 %v5534
      %v5876 = vpop.f32.mrb[0].mxu0
      %v5877 = vadd.f32 %v5585, %v5876
      %v5878 = vpop.f32.mrb[0].mxu0
      %v5879 = vadd.f32 %v5589, %v5878
      %v5880 = vpop.f32.mrb[0].mxu0
      %v5881 = vadd.f32 %v5585, %v5880
      %v5882 = vpop.f32.mrb[0].mxu0
      %v5883 = vadd.f32 %v5589, %v5882
      %5884 = vmatprep.mubr.bf16.mxu0 %v5537
      %5885 = vmatmul.mubr.bf16.gmra.mrb[0].mxu0 %v5536
      %v5886 = vpop.f32.mrb[0].mxu0
      %v5887 = vadd.f32 %v5585, %v5886
      %v5888 = vpop.f32.mrb[0].mxu0
      %v5889 = vadd.f32 %v5589, %v5888
      %v5890 = vpop.f32.mrb[0].mxu0
      %v5891 = vadd.f32 %v5585, %v5890
      %v5892 = vpop.f32.mrb[0].mxu0
      %v5893 = vadd.f32 %v5589, %v5892
      %5894 = vmatprep.mubr.bf16.mxu0 %v5539
      %5895 = vmatmul.mubr.bf16.gmra.mrb[0].mxu0 %v5538
      %v5896 = vpop.f32.mrb[0].mxu0
      %v5897 = vadd.f32 %v5585, %v5896
      %v5898 = vpop.f32.mrb[0].mxu0
      %v5899 = vadd.f32 %v5589, %v5898
      %v5900 = vpop.f32.mrb[0].mxu0
      %v5901 = vadd.f32 %v5585, %v5900
      %v5902 = vpop.f32.mrb[0].mxu0
      %v5903 = vadd.f32 %v5589, %v5902
      %5904 = vmatprep.mubr.bf16.mxu0 %v5541
      %5905 = vmatmul.mubr.bf16.gmra.mrb[0].mxu0 %v5540
      %v5906 = vpop.f32.mrb[0].mxu0
      %v5907 = vadd.f32 %v5585, %v5906
      %v5908 = vpop.f32.mrb[0].mxu0
      %v5909 = vadd.f32 %v5589, %v5908
      %v5910 = vpop.f32.mrb[0].mxu0
      %v5911 = vadd.f32 %v5585, %v5910
      %v5912 = vpop.f32.mrb[0].mxu0
      %v5913 = vadd.f32 %v5589, %v5912
      %5914 = vmatprep.mubr.bf16.mxu0 %v5543
      %5915 = vmatmul.mubr.bf16.gmra.mrb[0].mxu0 %v5542
      %v5916 = vpop.f32.mrb[0].mxu0
      %v5917 = vadd.f32 %v5585, %v5916
      %v5918 = vpop.f32.mrb[0].mxu0
      %v5919 = vadd.f32 %v5589, %v5918
      %v5920 = vpop.f32.mrb[0].mxu0
      %v5921 = vadd.f32 %v5585, %v5920
      %v5922 = vpop.f32.mrb[0].mxu0
      %v5923 = vadd.f32 %v5589, %v5922
      %5924 = vmatprep.mubr.bf16.mxu0 %v5545
      %5925 = vmatmul.mubr.bf16.gmra.mrb[0].mxu0 %v5544
      %v5926 = vpop.f32.mrb[0].mxu0
      %v5927 = vadd.f32 %v5585, %v5926
      %v5928 = vpop.f32.mrb[0].mxu0
      %v5929 = vadd.f32 %v5589, %v5928
      %v5930 = vpop.f32.mrb[0].mxu0
      %v5931 = vadd.f32 %v5585, %v5930
      %v5932 = vpop.f32.mrb[0].mxu0
      %v5933 = vadd.f32 %v5589, %v5932
      %5934 = vmatprep.mubr.bf16.mxu0 %v5547
      %5935 = vmatmul.mubr.bf16.gmra.mrb[0].mxu0 %v5546
      %v5936 = vpop.f32.mrb[0].mxu0
      %v5937 = vadd.f32 %v5585, %v5936
      %v5938 = vpop.f32.mrb[0].mxu0
      %v5939 = vadd.f32 %v5589, %v5938
      %v5940 = vpop.f32.mrb[0].mxu0
      %v5941 = vadd.f32 %v5585, %v5940
      %v5942 = vpop.f32.mrb[0].mxu0
      %v5943 = vadd.f32 %v5589, %v5942
      %5944 = vdwg.mxu0
      %v5945 = vmax.f32 %v5787, 0.0
      %v5946 = vmax.f32 %v5789, 0.0
      %v5947 = vmax.f32 %v5791, 0.0
      %v5948 = vmax.f32 %v5793, 0.0
      %v5949 = vmax.f32 %v5797, 0.0
      %v5950 = vmax.f32 %v5799, 0.0
      %v5951 = vmax.f32 %v5801, 0.0
      %v5952 = vmax.f32 %v5803, 0.0
      %v5953 = vmax.f32 %v5807, 0.0
      %v5954 = vmax.f32 %v5809, 0.0
      %v5955 = vmax.f32 %v5811, 0.0
      %v5956 = vmax.f32 %v5813, 0.0
      %v5957 = vmax.f32 %v5817, 0.0
      %v5958 = vmax.f32 %v5819, 0.0
      %v5959 = vmax.f32 %v5821, 0.0
      %v5960 = vmax.f32 %v5823, 0.0
      %v5961 = vmax.f32 %v5827, 0.0
      %v5962 = vmax.f32 %v5829, 0.0
      %v5963 = vmax.f32 %v5831, 0.0
      %v5964 = vmax.f32 %v5833, 0.0
      %v5965 = vmax.f32 %v5837, 0.0
      %v5966 = vmax.f32 %v5839, 0.0
      %v5967 = vmax.f32 %v5841, 0.0
      %v5968 = vmax.f32 %v5843, 0.0
      %v5969 = vmax.f32 %v5847, 0.0
      %v5970 = vmax.f32 %v5849, 0.0
      %v5971 = vmax.f32 %v5851, 0.0
      %v5972 = vmax.f32 %v5853, 0.0
      %v5973 = vmax.f32 %v5857, 0.0
      %v5974 = vmax.f32 %v5859, 0.0
      %v5975 = vmax.f32 %v5861, 0.0
      %v5976 = vmax.f32 %v5863, 0.0
      %v5977 = vmax.f32 %v5867, 0.0
      %v5978 = vmax.f32 %v5869, 0.0
      %v5979 = vmax.f32 %v5871, 0.0
      %v5980 = vmax.f32 %v5873, 0.0
      %v5981 = vmax.f32 %v5877, 0.0
      %v5982 = vmax.f32 %v5879, 0.0
      %v5983 = vmax.f32 %v5881, 0.0
      %v5984 = vmax.f32 %v5883, 0.0
      %v5985 = vmax.f32 %v5887, 0.0
      %v5986 = vmax.f32 %v5889, 0.0
      %v5987 = vmax.f32 %v5891, 0.0
      %v5988 = vmax.f32 %v5893, 0.0
      %v5989 = vmax.f32 %v5897, 0.0
      %v5990 = vmax.f32 %v5899, 0.0
      %v5991 = vmax.f32 %v5901, 0.0
      %v5992 = vmax.f32 %v5903, 0.0
      %v5993 = vmax.f32 %v5907, 0.0
      %v5994 = vmax.f32 %v5909, 0.0
      %v5995 = vmax.f32 %v5911, 0.0
      %v5996 = vmax.f32 %v5913, 0.0
      %v5997 = vmax.f32 %v5917, 0.0
      %v5998 = vmax.f32 %v5919, 0.0
      %v5999 = vmax.f32 %v5921, 0.0
      %v6000 = vmax.f32 %v5923, 0.0
      %v6001 = vmax.f32 %v5927, 0.0
      %v6002 = vmax.f32 %v5929, 0.0
      %v6003 = vmax.f32 %v5931, 0.0
      %v6004 = vmax.f32 %v5933, 0.0
      %v6005 = vmax.f32 %v5937, 0.0
      %v6006 = vmax.f32 %v5939, 0.0
      %v6007 = vmax.f32 %v5941, 0.0
      %v6008 = vmax.f32 %v5943, 0.0
      %v6009 = vpack.c.bf16 %v5947, %v5945
      %v6010 = vpack.c.bf16 %v5948, %v5946
      %v6011 = vpack.c.bf16 %v5951, %v5949
      %v6012 = vpack.c.bf16 %v5952, %v5950
      %v6013 = vpack.c.bf16 %v5955, %v5953
      %v6014 = vpack.c.bf16 %v5956, %v5954
      %v6015 = vpack.c.bf16 %v5959, %v5957
      %v6016 = vpack.c.bf16 %v5960, %v5958
      %v6017 = vpack.c.bf16 %v5963, %v5961
      %v6018 = vpack.c.bf16 %v5964, %v5962
      %v6019 = vpack.c.bf16 %v5967, %v5965
      %v6020 = vpack.c.bf16 %v5968, %v5966
      %v6021 = vpack.c.bf16 %v5971, %v5969
      %v6022 = vpack.c.bf16 %v5972, %v5970
      %v6023 = vpack.c.bf16 %v5975, %v5973
      %v6024 = vpack.c.bf16 %v5976, %v5974
      %v6025 = vpack.c.bf16 %v5979, %v5977
      %v6026 = vpack.c.bf16 %v5980, %v5978
      %v6027 = vpack.c.bf16 %v5983, %v5981
      %v6028 = vpack.c.bf16 %v5984, %v5982
      %v6029 = vpack.c.bf16 %v5987, %v5985
      %v6030 = vpack.c.bf16 %v5988, %v5986
      %v6031 = vpack.c.bf16 %v5991, %v5989
      %v6032 = vpack.c.bf16 %v5992, %v5990
      %v6033 = vpack.c.bf16 %v5995, %v5993
      %v6034 = vpack.c.bf16 %v5996, %v5994
      %v6035 = vpack.c.bf16 %v5999, %v5997
      %v6036 = vpack.c.bf16 %v6000, %v5998
      %v6037 = vpack.c.bf16 %v6003, %v6001
      %v6038 = vpack.c.bf16 %v6004, %v6002
      %v6039 = vpack.c.bf16 %v6007, %v6005
      %v6040 = vpack.c.bf16 %v6008, %v6006
      %v6041 = vld [vmem:[%s7] sm:$0xff]
      %v6042 = vld [vmem:[%s7 + $0x8] sm:$0xff]
      %v6043 = vld [vmem:[%s7 + $0x10] sm:$0xff]
      %v6044 = vld [vmem:[%s7 + $0x18] sm:$0xff]
      %v6045 = vld [vmem:[%s7 + $0x20] sm:$0xff]
      %v6046 = vld [vmem:[%s7 + $0x28] sm:$0xff]
      %v6047 = vld [vmem:[%s7 + $0x30] sm:$0xff]
      %v6048 = vld [vmem:[%s7 + $0x38] sm:$0xff]
      %v6049 = vld [vmem:[%s7 + $0x40] sm:$0xff]
      %v6050 = vld [vmem:[%s7 + $0x48] sm:$0xff]
      %v6051 = vld [vmem:[%s7 + $0x50] sm:$0xff]
      %v6052 = vld [vmem:[%s7 + $0x58] sm:$0xff]
      %v6053 = vld [vmem:[%s7 + $0x60] sm:$0xff]
      %v6054 = vld [vmem:[%s7 + $0x68] sm:$0xff]
      %v6055 = vld [vmem:[%s7 + $0x70] sm:$0xff]
      %v6056 = vld [vmem:[%s7 + $0x78] sm:$0xff]
      %v6057 = vld [vmem:[%s7 + $0x80] sm:$0xff]
      %v6058 = vld [vmem:[%s7 + $0x88] sm:$0xff]
      %v6059 = vld [vmem:[%s7 + $0x90] sm:$0xff]
      %v6060 = vld [vmem:[%s7 + $0x98] sm:$0xff]
      %v6061 = vld [vmem:[%s7 + $0xa0] sm:$0xff]
      %v6062 = vld [vmem:[%s7 + $0xa8] sm:$0xff]
      %v6063 = vld [vmem:[%s7 + $0xb0] sm:$0xff]
      %v6064 = vld [vmem:[%s7 + $0xb8] sm:$0xff]
      %v6065 = vld [vmem:[%s7 + $0xc0] sm:$0xff]
      %v6066 = vld [vmem:[%s7 + $0xc8] sm:$0xff]
      %v6067 = vld [vmem:[%s7 + $0xd0] sm:$0xff]
      %v6068 = vld [vmem:[%s7 + $0xd8] sm:$0xff]
      %v6069 = vld [vmem:[%s7 + $0xe0] sm:$0xff]
      %v6070 = vld [vmem:[%s7 + $0xe8] sm:$0xff]
      %v6071 = vld [vmem:[%s7 + $0xf0] sm:$0xff]
      %v6072 = vld [vmem:[%s7 + $0xf8] sm:$0xff]
      %v6073 = vld [vmem:[%s8] sm:$0x3]
      %v6075 = vlaneseq
      %v6076 = vshrl.u32 %v6075, 7
      %v6077 = vsub.s32 0, %v6076
      %v6078 = vrot.slane %v6073, %v6077
      %v6079 = vlaneseq
      %v6080 = vshrl.u32 %v6079, 7
      %v6081 = vsub.s32 1, %v6080
      %v6082 = vrot.slane %v6073, %v6081
      %v6117 = vunpack.c.l.b16 %v6041
      %v6118 = vunpack.c.h.b16 %v6041
      %v6119 = vunpack.c.l.b16 %v6042
      %v6120 = vunpack.c.h.b16 %v6042
      %v6121 = vunpack.c.l.b16 %v6043
      %v6122 = vunpack.c.h.b16 %v6043
      %v6123 = vunpack.c.l.b16 %v6044
      %v6124 = vunpack.c.h.b16 %v6044
      %v6125 = vunpack.c.l.b16 %v6045
      %v6126 = vunpack.c.h.b16 %v6045
      %v6127 = vunpack.c.l.b16 %v6046
      %v6128 = vunpack.c.h.b16 %v6046
      %v6129 = vunpack.c.l.b16 %v6047
      %v6130 = vunpack.c.h.b16 %v6047
      %v6131 = vunpack.c.l.b16 %v6048
      %v6132 = vunpack.c.h.b16 %v6048
      %v6133 = vunpack.c.l.b16 %v6049
      %v6134 = vunpack.c.h.b16 %v6049
      %v6135 = vunpack.c.l.b16 %v6050
      %v6136 = vunpack.c.h.b16 %v6050
      %v6137 = vunpack.c.l.b16 %v6051
      %v6138 = vunpack.c.h.b16 %v6051
      %v6139 = vunpack.c.l.b16 %v6052
      %v6140 = vunpack.c.h.b16 %v6052
      %v6141 = vunpack.c.l.b16 %v6053
      %v6142 = vunpack.c.h.b16 %v6053
      %v6143 = vunpack.c.l.b16 %v6054
      %v6144 = vunpack.c.h.b16 %v6054
      %v6145 = vunpack.c.l.b16 %v6055
      %v6146 = vunpack.c.h.b16 %v6055
      %v6147 = vunpack.c.l.b16 %v6056
      %v6148 = vunpack.c.h.b16 %v6056
      %v6149 = vunpack.c.l.b16 %v6057
      %v6150 = vunpack.c.h.b16 %v6057
      %v6151 = vunpack.c.l.b16 %v6058
      %v6152 = vunpack.c.h.b16 %v6058
      %v6153 = vunpack.c.l.b16 %v6059
      %v6154 = vunpack.c.h.b16 %v6059
      %v6155 = vunpack.c.l.b16 %v6060
      %v6156 = vunpack.c.h.b16 %v6060
      %v6157 = vunpack.c.l.b16 %v6061
      %v6158 = vunpack.c.h.b16 %v6061
      %v6159 = vunpack.c.l.b16 %v6062
      %v6160 = vunpack.c.h.b16 %v6062
      %v6161 = vunpack.c.l.b16 %v6063
      %v6162 = vunpack.c.h.b16 %v6063
      %v6163 = vunpack.c.l.b16 %v6064
      %v6164 = vunpack.c.h.b16 %v6064
      %v6165 = vunpack.c.l.b16 %v6065
      %v6166 = vunpack.c.h.b16 %v6065
      %v6167 = vunpack.c.l.b16 %v6066
      %v6168 = vunpack.c.h.b16 %v6066
      %v6169 = vunpack.c.l.b16 %v6067
      %v6170 = vunpack.c.h.b16 %v6067
      %v6171 = vunpack.c.l.b16 %v6068
      %v6172 = vunpack.c.h.b16 %v6068
      %v6173 = vunpack.c.l.b16 %v6069
      %v6174 = vunpack.c.h.b16 %v6069
      %v6175 = vunpack.c.l.b16 %v6070
      %v6176 = vunpack.c.h.b16 %v6070
      %v6177 = vunpack.c.l.b16 %v6071
      %v6178 = vunpack.c.h.b16 %v6071
      %v6179 = vunpack.c.l.b16 %v6072
      %v6180 = vunpack.c.h.b16 %v6072
      %v6181 = vpack.c.b16 %v6119, %v6117
      %v6182 = vpack.c.b16 %v6120, %v6118
      %v6183 = vpack.c.b16 %v6123, %v6121
      %v6184 = vpack.c.b16 %v6124, %v6122
      %v6185 = vpack.c.b16 %v6127, %v6125
      %v6186 = vpack.c.b16 %v6128, %v6126
      %v6187 = vpack.c.b16 %v6131, %v6129
      %v6188 = vpack.c.b16 %v6132, %v6130
      %v6189 = vpack.c.b16 %v6135, %v6133
      %v6190 = vpack.c.b16 %v6136, %v6134
      %v6191 = vpack.c.b16 %v6139, %v6137
      %v6192 = vpack.c.b16 %v6140, %v6138
      %v6193 = vpack.c.b16 %v6143, %v6141
      %v6194 = vpack.c.b16 %v6144, %v6142
      %v6195 = vpack.c.b16 %v6147, %v6145
      %v6196 = vpack.c.b16 %v6148, %v6146
      %v6197 = vpack.c.b16 %v6151, %v6149
      %v6198 = vpack.c.b16 %v6152, %v6150
      %v6199 = vpack.c.b16 %v6155, %v6153
      %v6200 = vpack.c.b16 %v6156, %v6154
      %v6201 = vpack.c.b16 %v6159, %v6157
      %v6202 = vpack.c.b16 %v6160, %v6158
      %v6203 = vpack.c.b16 %v6163, %v6161
      %v6204 = vpack.c.b16 %v6164, %v6162
      %v6205 = vpack.c.b16 %v6167, %v6165
      %v6206 = vpack.c.b16 %v6168, %v6166
      %v6207 = vpack.c.b16 %v6171, %v6169
      %v6208 = vpack.c.b16 %v6172, %v6170
      %v6209 = vpack.c.b16 %v6175, %v6173
      %v6210 = vpack.c.b16 %v6176, %v6174
      %v6211 = vpack.c.b16 %v6179, %v6177
      %v6212 = vpack.c.b16 %v6180, %v6178
      %6245 = vmatprep.subr.bf16.mxu0 %v6182
      %6246 = vmatpush1.bf16.msra.mxu0 %v6181
      %6247 = vmatprep.subr.bf16.mxu0 %v6184
      %6248 = vmatpush1.bf16.msra.mxu0 %v6183
      %6249 = vmatprep.subr.bf16.mxu0 %v6186
      %6250 = vmatpush1.bf16.msra.mxu0 %v6185
      %6251 = vmatprep.subr.bf16.mxu0 %v6188
      %6252 = vmatpush1.bf16.msra.mxu0 %v6187
      %6253 = vmatprep.subr.bf16.mxu0 %v6190
      %6254 = vmatpush1.bf16.msra.mxu0 %v6189
      %6255 = vmatprep.subr.bf16.mxu0 %v6192
      %6256 = vmatpush1.bf16.msra.mxu0 %v6191
      %6257 = vmatprep.subr.bf16.mxu0 %v6194
      %6258 = vmatpush1.bf16.msra.mxu0 %v6193
      %6259 = vmatprep.subr.bf16.mxu0 %v6196
      %6260 = vmatpush1.bf16.msra.mxu0 %v6195
      %6261 = vmatprep.subr.bf16.mxu0 %v6198
      %6262 = vmatpush1.bf16.msra.mxu0 %v6197
      %6263 = vmatprep.subr.bf16.mxu0 %v6200
      %6264 = vmatpush1.bf16.msra.mxu0 %v6199
      %6265 = vmatprep.subr.bf16.mxu0 %v6202
      %6266 = vmatpush1.bf16.msra.mxu0 %v6201
      %6267 = vmatprep.subr.bf16.mxu0 %v6204
      %6268 = vmatpush1.bf16.msra.mxu0 %v6203
      %6269 = vmatprep.subr.bf16.mxu0 %v6206
      %6270 = vmatpush1.bf16.msra.mxu0 %v6205
      %6271 = vmatprep.subr.bf16.mxu0 %v6208
      %6272 = vmatpush1.bf16.msra.mxu0 %v6207
      %6273 = vmatprep.subr.bf16.mxu0 %v6210
      %6274 = vmatpush1.bf16.msra.mxu0 %v6209
      %6275 = vmatprep.subr.bf16.mxu0 %v6212
      %6276 = vmatpush1.bf16.msra.mxu0 %v6211
      %6277 = vmatprep.mubr.bf16.mxu0 %v6010
      %6278 = vmatmul.mubr.bf16.gmra.mrb[0].mxu0 %v6009
      %v6279 = vpop.f32.mrb[0].mxu0
      %v6280 = vadd.f32 %v6078, %v6279
      %v6281 = vpop.f32.mrb[0].mxu0
      %v6282 = vadd.f32 %v6082, %v6281
      %v6283 = vpop.f32.mrb[0].mxu0
      %v6284 = vadd.f32 %v6078, %v6283
      %v6285 = vpop.f32.mrb[0].mxu0
      %v6286 = vadd.f32 %v6082, %v6285
      %6287 = vmatprep.mubr.bf16.mxu0 %v6012
      %6288 = vmatmul.mubr.bf16.gmra.mrb[0].mxu0 %v6011
      %v6289 = vpop.f32.mrb[0].mxu0
      %v6290 = vadd.f32 %v6078, %v6289
      %v6291 = vpop.f32.mrb[0].mxu0
      %v6292 = vadd.f32 %v6082, %v6291
      %v6293 = vpop.f32.mrb[0].mxu0
      %v6294 = vadd.f32 %v6078, %v6293
      %v6295 = vpop.f32.mrb[0].mxu0
      %v6296 = vadd.f32 %v6082, %v6295
      %6297 = vmatprep.mubr.bf16.mxu0 %v6014
      %6298 = vmatmul.mubr.bf16.gmra.mrb[0].mxu0 %v6013
      %v6299 = vpop.f32.mrb[0].mxu0
      %v6300 = vadd.f32 %v6078, %v6299
      %v6301 = vpop.f32.mrb[0].mxu0
      %v6302 = vadd.f32 %v6082, %v6301
      %v6303 = vpop.f32.mrb[0].mxu0
      %v6304 = vadd.f32 %v6078, %v6303
      %v6305 = vpop.f32.mrb[0].mxu0
      %v6306 = vadd.f32 %v6082, %v6305
      %6307 = vmatprep.mubr.bf16.mxu0 %v6016
      %6308 = vmatmul.mubr.bf16.gmra.mrb[0].mxu0 %v6015
      %v6309 = vpop.f32.mrb[0].mxu0
      %v6310 = vadd.f32 %v6078, %v6309
      %v6311 = vpop.f32.mrb[0].mxu0
      %v6312 = vadd.f32 %v6082, %v6311
      %v6313 = vpop.f32.mrb[0].mxu0
      %v6314 = vadd.f32 %v6078, %v6313
      %v6315 = vpop.f32.mrb[0].mxu0
      %v6316 = vadd.f32 %v6082, %v6315
      %6317 = vmatprep.mubr.bf16.mxu0 %v6018
      %6318 = vmatmul.mubr.bf16.gmra.mrb[0].mxu0 %v6017
      %v6319 = vpop.f32.mrb[0].mxu0
      %v6320 = vadd.f32 %v6078, %v6319
      %v6321 = vpop.f32.mrb[0].mxu0
      %v6322 = vadd.f32 %v6082, %v6321
      %v6323 = vpop.f32.mrb[0].mxu0
      %v6324 = vadd.f32 %v6078, %v6323
      %v6325 = vpop.f32.mrb[0].mxu0
      %v6326 = vadd.f32 %v6082, %v6325
      %6327 = vmatprep.mubr.bf16.mxu0 %v6020
      %6328 = vmatmul.mubr.bf16.gmra.mrb[0].mxu0 %v6019
      %v6329 = vpop.f32.mrb[0].mxu0
      %v6330 = vadd.f32 %v6078, %v6329
      %v6331 = vpop.f32.mrb[0].mxu0
      %v6332 = vadd.f32 %v6082, %v6331
      %v6333 = vpop.f32.mrb[0].mxu0
      %v6334 = vadd.f32 %v6078, %v6333
      %v6335 = vpop.f32.mrb[0].mxu0
      %v6336 = vadd.f32 %v6082, %v6335
      %6337 = vmatprep.mubr.bf16.mxu0 %v6022
      %6338 = vmatmul.mubr.bf16.gmra.mrb[0].mxu0 %v6021
      %v6339 = vpop.f32.mrb[0].mxu0
      %v6340 = vadd.f32 %v6078, %v6339
      %v6341 = vpop.f32.mrb[0].mxu0
      %v6342 = vadd.f32 %v6082, %v6341
      %v6343 = vpop.f32.mrb[0].mxu0
      %v6344 = vadd.f32 %v6078, %v6343
      %v6345 = vpop.f32.mrb[0].mxu0
      %v6346 = vadd.f32 %v6082, %v6345
      %6347 = vmatprep.mubr.bf16.mxu0 %v6024
      %6348 = vmatmul.mubr.bf16.gmra.mrb[0].mxu0 %v6023
      %v6349 = vpop.f32.mrb[0].mxu0
      %v6350 = vadd.f32 %v6078, %v6349
      %v6351 = vpop.f32.mrb[0].mxu0
      %v6352 = vadd.f32 %v6082, %v6351
      %v6353 = vpop.f32.mrb[0].mxu0
      %v6354 = vadd.f32 %v6078, %v6353
      %v6355 = vpop.f32.mrb[0].mxu0
      %v6356 = vadd.f32 %v6082, %v6355
      %6357 = vmatprep.mubr.bf16.mxu0 %v6026
      %6358 = vmatmul.mubr.bf16.gmra.mrb[0].mxu0 %v6025
      %v6359 = vpop.f32.mrb[0].mxu0
      %v6360 = vadd.f32 %v6078, %v6359
      %v6361 = vpop.f32.mrb[0].mxu0
      %v6362 = vadd.f32 %v6082, %v6361
      %v6363 = vpop.f32.mrb[0].mxu0
      %v6364 = vadd.f32 %v6078, %v6363
      %v6365 = vpop.f32.mrb[0].mxu0
      %v6366 = vadd.f32 %v6082, %v6365
      %6367 = vmatprep.mubr.bf16.mxu0 %v6028
      %6368 = vmatmul.mubr.bf16.gmra.mrb[0].mxu0 %v6027
      %v6369 = vpop.f32.mrb[0].mxu0
      %v6370 = vadd.f32 %v6078, %v6369
      %v6371 = vpop.f32.mrb[0].mxu0
      %v6372 = vadd.f32 %v6082, %v6371
      %v6373 = vpop.f32.mrb[0].mxu0
      %v6374 = vadd.f32 %v6078, %v6373
      %v6375 = vpop.f32.mrb[0].mxu0
      %v6376 = vadd.f32 %v6082, %v6375
      %6377 = vmatprep.mubr.bf16.mxu0 %v6030
      %6378 = vmatmul.mubr.bf16.gmra.mrb[0].mxu0 %v6029
      %v6379 = vpop.f32.mrb[0].mxu0
      %v6380 = vadd.f32 %v6078, %v6379
      %v6381 = vpop.f32.mrb[0].mxu0
      %v6382 = vadd.f32 %v6082, %v6381
      %v6383 = vpop.f32.mrb[0].mxu0
      %v6384 = vadd.f32 %v6078, %v6383
      %v6385 = vpop.f32.mrb[0].mxu0
      %v6386 = vadd.f32 %v6082, %v6385
      %6387 = vmatprep.mubr.bf16.mxu0 %v6032
      %6388 = vmatmul.mubr.bf16.gmra.mrb[0].mxu0 %v6031
      %v6389 = vpop.f32.mrb[0].mxu0
      %v6390 = vadd.f32 %v6078, %v6389
      %v6391 = vpop.f32.mrb[0].mxu0
      %v6392 = vadd.f32 %v6082, %v6391
      %v6393 = vpop.f32.mrb[0].mxu0
      %v6394 = vadd.f32 %v6078, %v6393
      %v6395 = vpop.f32.mrb[0].mxu0
      %v6396 = vadd.f32 %v6082, %v6395
      %6397 = vmatprep.mubr.bf16.mxu0 %v6034
      %6398 = vmatmul.mubr.bf16.gmra.mrb[0].mxu0 %v6033
      %v6399 = vpop.f32.mrb[0].mxu0
      %v6400 = vadd.f32 %v6078, %v6399
      %v6401 = vpop.f32.mrb[0].mxu0
      %v6402 = vadd.f32 %v6082, %v6401
      %v6403 = vpop.f32.mrb[0].mxu0
      %v6404 = vadd.f32 %v6078, %v6403
      %v6405 = vpop.f32.mrb[0].mxu0
      %v6406 = vadd.f32 %v6082, %v6405
      %6407 = vmatprep.mubr.bf16.mxu0 %v6036
      %6408 = vmatmul.mubr.bf16.gmra.mrb[0].mxu0 %v6035
      %v6409 = vpop.f32.mrb[0].mxu0
      %v6410 = vadd.f32 %v6078, %v6409
      %v6411 = vpop.f32.mrb[0].mxu0
      %v6412 = vadd.f32 %v6082, %v6411
      %v6413 = vpop.f32.mrb[0].mxu0
      %v6414 = vadd.f32 %v6078, %v6413
      %v6415 = vpop.f32.mrb[0].mxu0
      %v6416 = vadd.f32 %v6082, %v6415
      %6417 = vmatprep.mubr.bf16.mxu0 %v6038
      %6418 = vmatmul.mubr.bf16.gmra.mrb[0].mxu0 %v6037
      %v6419 = vpop.f32.mrb[0].mxu0
      %v6420 = vadd.f32 %v6078, %v6419
      %v6421 = vpop.f32.mrb[0].mxu0
      %v6422 = vadd.f32 %v6082, %v6421
      %v6423 = vpop.f32.mrb[0].mxu0
      %v6424 = vadd.f32 %v6078, %v6423
      %v6425 = vpop.f32.mrb[0].mxu0
      %v6426 = vadd.f32 %v6082, %v6425
      %6427 = vmatprep.mubr.bf16.mxu0 %v6040
      %6428 = vmatmul.mubr.bf16.gmra.mrb[0].mxu0 %v6039
      %v6429 = vpop.f32.mrb[0].mxu0
      %v6430 = vadd.f32 %v6078, %v6429
      %v6431 = vpop.f32.mrb[0].mxu0
      %v6432 = vadd.f32 %v6082, %v6431
      %v6433 = vpop.f32.mrb[0].mxu0
      %v6434 = vadd.f32 %v6078, %v6433
      %v6435 = vpop.f32.mrb[0].mxu0
      %v6436 = vadd.f32 %v6082, %v6435
      %6437 = vdwg.mxu0
      %v6438 = vmax.f32 %v6280, 0.0
      %v6439 = vmax.f32 %v6282, 0.0
      %v6440 = vmax.f32 %v6284, 0.0
      %v6441 = vmax.f32 %v6286, 0.0
      %v6442 = vmax.f32 %v6290, 0.0
      %v6443 = vmax.f32 %v6292, 0.0
      %v6444 = vmax.f32 %v6294, 0.0
      %v6445 = vmax.f32 %v6296, 0.0
      %v6446 = vmax.f32 %v6300, 0.0
      %v6447 = vmax.f32 %v6302, 0.0
      %v6448 = vmax.f32 %v6304, 0.0
      %v6449 = vmax.f32 %v6306, 0.0
      %v6450 = vmax.f32 %v6310, 0.0
      %v6451 = vmax.f32 %v6312, 0.0
      %v6452 = vmax.f32 %v6314, 0.0
      %v6453 = vmax.f32 %v6316, 0.0
      %v6454 = vmax.f32 %v6320, 0.0
      %v6455 = vmax.f32 %v6322, 0.0
      %v6456 = vmax.f32 %v6324, 0.0
      %v6457 = vmax.f32 %v6326, 0.0
      %v6458 = vmax.f32 %v6330, 0.0
      %v6459 = vmax.f32 %v6332, 0.0
      %v6460 = vmax.f32 %v6334, 0.0
      %v6461 = vmax.f32 %v6336, 0.0
      %v6462 = vmax.f32 %v6340, 0.0
      %v6463 = vmax.f32 %v6342, 0.0
      %v6464 = vmax.f32 %v6344, 0.0
      %v6465 = vmax.f32 %v6346, 0.0
      %v6466 = vmax.f32 %v6350, 0.0
      %v6467 = vmax.f32 %v6352, 0.0
      %v6468 = vmax.f32 %v6354, 0.0
      %v6469 = vmax.f32 %v6356, 0.0
      %v6470 = vmax.f32 %v6360, 0.0
      %v6471 = vmax.f32 %v6362, 0.0
      %v6472 = vmax.f32 %v6364, 0.0
      %v6473 = vmax.f32 %v6366, 0.0
      %v6474 = vmax.f32 %v6370, 0.0
      %v6475 = vmax.f32 %v6372, 0.0
      %v6476 = vmax.f32 %v6374, 0.0
      %v6477 = vmax.f32 %v6376, 0.0
      %v6478 = vmax.f32 %v6380, 0.0
      %v6479 = vmax.f32 %v6382, 0.0
      %v6480 = vmax.f32 %v6384, 0.0
      %v6481 = vmax.f32 %v6386, 0.0
      %v6482 = vmax.f32 %v6390, 0.0
      %v6483 = vmax.f32 %v6392, 0.0
      %v6484 = vmax.f32 %v6394, 0.0
      %v6485 = vmax.f32 %v6396, 0.0
      %v6486 = vmax.f32 %v6400, 0.0
      %v6487 = vmax.f32 %v6402, 0.0
      %v6488 = vmax.f32 %v6404, 0.0
      %v6489 = vmax.f32 %v6406, 0.0
      %v6490 = vmax.f32 %v6410, 0.0
      %v6491 = vmax.f32 %v6412, 0.0
      %v6492 = vmax.f32 %v6414, 0.0
      %v6493 = vmax.f32 %v6416, 0.0
      %v6494 = vmax.f32 %v6420, 0.0
      %v6495 = vmax.f32 %v6422, 0.0
      %v6496 = vmax.f32 %v6424, 0.0
      %v6497 = vmax.f32 %v6426, 0.0
      %v6498 = vmax.f32 %v6430, 0.0
      %v6499 = vmax.f32 %v6432, 0.0
      %v6500 = vmax.f32 %v6434, 0.0
      %v6501 = vmax.f32 %v6436, 0.0
      %v6502 = vpack.c.bf16 %v6440, %v6438
      %v6503 = vpack.c.bf16 %v6441, %v6439
      %v6504 = vpack.c.bf16 %v6444, %v6442
      %v6505 = vpack.c.bf16 %v6445, %v6443
      %v6506 = vpack.c.bf16 %v6448, %v6446
      %v6507 = vpack.c.bf16 %v6449, %v6447
      %v6508 = vpack.c.bf16 %v6452, %v6450
      %v6509 = vpack.c.bf16 %v6453, %v6451
      %v6510 = vpack.c.bf16 %v6456, %v6454
      %v6511 = vpack.c.bf16 %v6457, %v6455
      %v6512 = vpack.c.bf16 %v6460, %v6458
      %v6513 = vpack.c.bf16 %v6461, %v6459
      %v6514 = vpack.c.bf16 %v6464, %v6462
      %v6515 = vpack.c.bf16 %v6465, %v6463
      %v6516 = vpack.c.bf16 %v6468, %v6466
      %v6517 = vpack.c.bf16 %v6469, %v6467
      %v6518 = vpack.c.bf16 %v6472, %v6470
      %v6519 = vpack.c.bf16 %v6473, %v6471
      %v6520 = vpack.c.bf16 %v6476, %v6474
      %v6521 = vpack.c.bf16 %v6477, %v6475
      %v6522 = vpack.c.bf16 %v6480, %v6478
      %v6523 = vpack.c.bf16 %v6481, %v6479
      %v6524 = vpack.c.bf16 %v6484, %v6482
      %v6525 = vpack.c.bf16 %v6485, %v6483
      %v6526 = vpack.c.bf16 %v6488, %v6486
      %v6527 = vpack.c.bf16 %v6489, %v6487
      %v6528 = vpack.c.bf16 %v6492, %v6490
      %v6529 = vpack.c.bf16 %v6493, %v6491
      %v6530 = vpack.c.bf16 %v6496, %v6494
      %v6531 = vpack.c.bf16 %v6497, %v6495
      %v6532 = vpack.c.bf16 %v6500, %v6498
      %v6533 = vpack.c.bf16 %v6501, %v6499
      %v6534 = vld [vmem:[%s10] sm:$0xf]
      %v6535 = vld [vmem:[%s10 + $0x4] sm:$0xf]
      %v6536 = vld [vmem:[%s10 + $0x8] sm:$0xf]
      %v6537 = vld [vmem:[%s10 + $0xc] sm:$0xf]
      %v6538 = vld [vmem:[%s10 + $0x10] sm:$0xf]
      %v6539 = vld [vmem:[%s10 + $0x14] sm:$0xf]
      %v6540 = vld [vmem:[%s10 + $0x18] sm:$0xf]
      %v6541 = vld [vmem:[%s10 + $0x1c] sm:$0xf]
      %v6542 = vld [vmem:[%s10 + $0x20] sm:$0xf]
      %v6543 = vld [vmem:[%s10 + $0x24] sm:$0xf]
      %v6544 = vld [vmem:[%s10 + $0x28] sm:$0xf]
      %v6545 = vld [vmem:[%s10 + $0x2c] sm:$0xf]
      %v6546 = vld [vmem:[%s10 + $0x30] sm:$0xf]
      %v6547 = vld [vmem:[%s10 + $0x34] sm:$0xf]
      %v6548 = vld [vmem:[%s10 + $0x38] sm:$0xf]
      %v6549 = vld [vmem:[%s10 + $0x3c] sm:$0xf]
      %v6550 = vld [vmem:[%s10 + $0x40] sm:$0xf]
      %v6551 = vld [vmem:[%s10 + $0x44] sm:$0xf]
      %v6552 = vld [vmem:[%s10 + $0x48] sm:$0xf]
      %v6553 = vld [vmem:[%s10 + $0x4c] sm:$0xf]
      %v6554 = vld [vmem:[%s10 + $0x50] sm:$0xf]
      %v6555 = vld [vmem:[%s10 + $0x54] sm:$0xf]
      %v6556 = vld [vmem:[%s10 + $0x58] sm:$0xf]
      %v6557 = vld [vmem:[%s10 + $0x5c] sm:$0xf]
      %v6558 = vld [vmem:[%s10 + $0x60] sm:$0xf]
      %v6559 = vld [vmem:[%s10 + $0x64] sm:$0xf]
      %v6560 = vld [vmem:[%s10 + $0x68] sm:$0xf]
      %v6561 = vld [vmem:[%s10 + $0x6c] sm:$0xf]
      %v6562 = vld [vmem:[%s10 + $0x70] sm:$0xf]
      %v6563 = vld [vmem:[%s10 + $0x74] sm:$0xf]
      %v6564 = vld [vmem:[%s10 + $0x78] sm:$0xf]
      %v6565 = vld [vmem:[%s10 + $0x7c] sm:$0xf]
      %v6566 = vld [vmem:[%s9] sm:$0xf]
      %v6567 = vld [vmem:[%s9 + $0x4] sm:$0xf]
      %v6568 = vld [vmem:[%s9 + $0x8] sm:$0xf]
      %v6569 = vld [vmem:[%s9 + $0xc] sm:$0xf]
      %v6570 = vld [vmem:[%s9 + $0x10] sm:$0xf]
      %v6571 = vld [vmem:[%s9 + $0x14] sm:$0xf]
      %v6572 = vld [vmem:[%s9 + $0x18] sm:$0xf]
      %v6573 = vld [vmem:[%s9 + $0x1c] sm:$0xf]
      %v6574 = vld [vmem:[%s9 + $0x20] sm:$0xf]
      %v6575 = vld [vmem:[%s9 + $0x24] sm:$0xf]
      %v6576 = vld [vmem:[%s9 + $0x28] sm:$0xf]
      %v6577 = vld [vmem:[%s9 + $0x2c] sm:$0xf]
      %v6590 = vunpack.c.l.b16 %v6566
      %v6591 = vunpack.c.l.b16 %v6567
      %v6592 = vunpack.c.l.b16 %v6568
      %v6593 = vunpack.c.l.b16 %v6569
      %v6594 = vunpack.c.l.b16 %v6570
      %v6595 = vunpack.c.l.b16 %v6571
      %v6596 = vunpack.c.l.b16 %v6572
      %v6597 = vunpack.c.l.b16 %v6573
      %v6598 = vunpack.c.l.b16 %v6574
      %v6599 = vunpack.c.l.b16 %v6575
      %v6600 = vunpack.c.l.b16 %v6576
      %v6601 = vunpack.c.l.b16 %v6577
      %v6602 = vpack.c.b16 %v6591, %v6590
      %v6603 = vpack.c.b16 %v6593, %v6592
      %v6604 = vpack.c.b16 %v6595, %v6594
      %v6605 = vpack.c.b16 %v6597, %v6596
      %v6606 = vpack.c.b16 %v6599, %v6598
      %v6607 = vpack.c.b16 %v6601, %v6600
      %6614 = vmatprep.subr.bf16.mxu0 0
      %6615 = vmatpush1.bf16.msra.mxu0 %v6602
      %6616 = vmatprep.subr.bf16.mxu0 0
      %6617 = vmatpush1.bf16.msra.mxu0 %v6603
      %6618 = vmatprep.subr.bf16.mxu0 0
      %6619 = vmatpush1.bf16.msra.mxu0 %v6604
      %6620 = vmatprep.subr.bf16.mxu0 0
      %6621 = vmatpush1.bf16.msra.mxu0 %v6605
      %6622 = vmatprep.subr.bf16.mxu0 0
      %6623 = vmatpush1.bf16.msra.mxu0 %v6606
      %6624 = vmatprep.subr.bf16.mxu0 0
      %6625 = vmatpush1.bf16.msra.mxu0 %v6607
      %6626 = vmatprep.subr.bf16.mxu0 0
      %6627 = vmatpush1.bf16.msra.mxu0 0
      %6628 = vmatprep.subr.bf16.mxu0 0
      %6629 = vmatpush1.bf16.msra.mxu0 0
      %6630 = vmatprep.subr.bf16.mxu0 0
      %6631 = vmatpush1.bf16.msra.mxu0 0
      %6632 = vmatprep.subr.bf16.mxu0 0
      %6633 = vmatpush1.bf16.msra.mxu0 0
      %6634 = vmatprep.subr.bf16.mxu0 0
      %6635 = vmatpush1.bf16.msra.mxu0 0
      %6636 = vmatprep.subr.bf16.mxu0 0
      %6637 = vmatpush1.bf16.msra.mxu0 0
      %6638 = vmatprep.subr.bf16.mxu0 0
      %6639 = vmatpush1.bf16.msra.mxu0 0
      %6640 = vmatprep.subr.bf16.mxu0 0
      %6641 = vmatpush1.bf16.msra.mxu0 0
      %6642 = vmatprep.subr.bf16.mxu0 0
      %6643 = vmatpush1.bf16.msra.mxu0 0
      %6644 = vmatprep.subr.bf16.mxu0 0
      %6645 = vmatpush1.bf16.msra.mxu0 0
      %6646 = vmatprep.mubr.bf16.mxu0 0
      %6647 = vmatmul.mubr.bf16.gmra.mrb[0].mxu0 %v5212
      %v6648 = vpop.f32.mrb[0].mxu0
      %v6649 = vadd.f32 0.0, %v6648
      %v6650 = vpop.f32.mrb[0].mxu0
      %v6651 = vpop.f32.mrb[0].mxu0
      %v6652 = vadd.f32 0.0, %v6651
      %v6653 = vpop.f32.mrb[0].mxu0
      %6654 = vmatprep.mubr.bf16.mxu0 0
      %6655 = vmatmul.mubr.bf16.gmra.mrb[0].mxu0 %v5215
      %v6656 = vpop.f32.mrb[0].mxu0
      %v6657 = vadd.f32 0.0, %v6656
      %v6658 = vpop.f32.mrb[0].mxu0
      %v6659 = vpop.f32.mrb[0].mxu0
      %v6660 = vadd.f32 0.0, %v6659
      %v6661 = vpop.f32.mrb[0].mxu0
      %6662 = vmatprep.mubr.bf16.mxu0 0
      %6663 = vmatmul.mubr.bf16.gmra.mrb[0].mxu0 %v5218
      %v6664 = vpop.f32.mrb[0].mxu0
      %v6665 = vadd.f32 0.0, %v6664
      %v6666 = vpop.f32.mrb[0].mxu0
      %v6667 = vpop.f32.mrb[0].mxu0
      %v6668 = vadd.f32 0.0, %v6667
      %v6669 = vpop.f32.mrb[0].mxu0
      %6670 = vmatprep.mubr.bf16.mxu0 0
      %6671 = vmatmul.mubr.bf16.gmra.mrb[0].mxu0 %v5221
      %v6672 = vpop.f32.mrb[0].mxu0
      %v6673 = vadd.f32 0.0, %v6672
      %v6674 = vpop.f32.mrb[0].mxu0
      %v6675 = vpop.f32.mrb[0].mxu0
      %v6676 = vadd.f32 0.0, %v6675
      %v6677 = vpop.f32.mrb[0].mxu0
      %6678 = vmatprep.mubr.bf16.mxu0 0
      %6679 = vmatmul.mubr.bf16.gmra.mrb[0].mxu0 %v5224
      %v6680 = vpop.f32.mrb[0].mxu0
      %v6681 = vadd.f32 0.0, %v6680
      %v6682 = vpop.f32.mrb[0].mxu0
      %v6683 = vpop.f32.mrb[0].mxu0
      %v6684 = vadd.f32 0.0, %v6683
      %v6685 = vpop.f32.mrb[0].mxu0
      %6686 = vmatprep.mubr.bf16.mxu0 0
      %6687 = vmatmul.mubr.bf16.gmra.mrb[0].mxu0 %v5227
      %v6688 = vpop.f32.mrb[0].mxu0
      %v6689 = vadd.f32 0.0, %v6688
      %v6690 = vpop.f32.mrb[0].mxu0
      %v6691 = vpop.f32.mrb[0].mxu0
      %v6692 = vadd.f32 0.0, %v6691
      %v6693 = vpop.f32.mrb[0].mxu0
      %6694 = vmatprep.mubr.bf16.mxu0 0
      %6695 = vmatmul.mubr.bf16.gmra.mrb[0].mxu0 %v5230
      %v6696 = vpop.f32.mrb[0].mxu0
      %v6697 = vadd.f32 0.0, %v6696
      %v6698 = vpop.f32.mrb[0].mxu0
      %v6699 = vpop.f32.mrb[0].mxu0
      %v6700 = vadd.f32 0.0, %v6699
      %v6701 = vpop.f32.mrb[0].mxu0
      %6702 = vmatprep.mubr.bf16.mxu0 0
      %6703 = vmatmul.mubr.bf16.gmra.mrb[0].mxu0 %v5233
      %v6704 = vpop.f32.mrb[0].mxu0
      %v6705 = vadd.f32 0.0, %v6704
      %v6706 = vpop.f32.mrb[0].mxu0
      %v6707 = vpop.f32.mrb[0].mxu0
      %v6708 = vadd.f32 0.0, %v6707
      %v6709 = vpop.f32.mrb[0].mxu0
      %6710 = vmatprep.mubr.bf16.mxu0 0
      %6711 = vmatmul.mubr.bf16.gmra.mrb[0].mxu0 %v5236
      %v6712 = vpop.f32.mrb[0].mxu0
      %v6713 = vadd.f32 0.0, %v6712
      %v6714 = vpop.f32.mrb[0].mxu0
      %v6715 = vpop.f32.mrb[0].mxu0
      %v6716 = vadd.f32 0.0, %v6715
      %v6717 = vpop.f32.mrb[0].mxu0
      %6718 = vmatprep.mubr.bf16.mxu0 0
      %6719 = vmatmul.mubr.bf16.gmra.mrb[0].mxu0 %v5239
      %v6720 = vpop.f32.mrb[0].mxu0
      %v6721 = vadd.f32 0.0, %v6720
      %v6722 = vpop.f32.mrb[0].mxu0
      %v6723 = vpop.f32.mrb[0].mxu0
      %v6724 = vadd.f32 0.0, %v6723
      %v6725 = vpop.f32.mrb[0].mxu0
      %6726 = vmatprep.mubr.bf16.mxu0 0
      %6727 = vmatmul.mubr.bf16.gmra.mrb[0].mxu0 %v5242
      %v6728 = vpop.f32.mrb[0].mxu0
      %v6729 = vadd.f32 0.0, %v6728
      %v6730 = vpop.f32.mrb[0].mxu0
      %v6731 = vpop.f32.mrb[0].mxu0
      %v6732 = vadd.f32 0.0, %v6731
      %v6733 = vpop.f32.mrb[0].mxu0
      %6734 = vmatprep.mubr.bf16.mxu0 0
      %6735 = vmatmul.mubr.bf16.gmra.mrb[0].mxu0 %v5245
      %v6736 = vpop.f32.mrb[0].mxu0
      %v6737 = vadd.f32 0.0, %v6736
      %v6738 = vpop.f32.mrb[0].mxu0
      %v6739 = vpop.f32.mrb[0].mxu0
      %v6740 = vadd.f32 0.0, %v6739
      %v6741 = vpop.f32.mrb[0].mxu0
      %6742 = vmatprep.mubr.bf16.mxu0 0
      %6743 = vmatmul.mubr.bf16.gmra.mrb[0].mxu0 %v5248
      %v6744 = vpop.f32.mrb[0].mxu0
      %v6745 = vadd.f32 0.0, %v6744
      %v6746 = vpop.f32.mrb[0].mxu0
      %v6747 = vpop.f32.mrb[0].mxu0
      %v6748 = vadd.f32 0.0, %v6747
      %v6749 = vpop.f32.mrb[0].mxu0
      %6750 = vmatprep.mubr.bf16.mxu0 0
      %6751 = vmatmul.mubr.bf16.gmra.mrb[0].mxu0 %v5251
      %v6752 = vpop.f32.mrb[0].mxu0
      %v6753 = vadd.f32 0.0, %v6752
      %v6754 = vpop.f32.mrb[0].mxu0
      %v6755 = vpop.f32.mrb[0].mxu0
      %v6756 = vadd.f32 0.0, %v6755
      %v6757 = vpop.f32.mrb[0].mxu0
      %6758 = vmatprep.mubr.bf16.mxu0 0
      %6759 = vmatmul.mubr.bf16.gmra.mrb[0].mxu0 %v5254
      %v6760 = vpop.f32.mrb[0].mxu0
      %v6761 = vadd.f32 0.0, %v6760
      %v6762 = vpop.f32.mrb[0].mxu0
      %v6763 = vpop.f32.mrb[0].mxu0
      %v6764 = vadd.f32 0.0, %v6763
      %v6765 = vpop.f32.mrb[0].mxu0
      %6766 = vmatprep.mubr.bf16.mxu0 0
      %6767 = vmatmul.mubr.bf16.gmra.mrb[0].mxu0 %v5257
      %v6768 = vpop.f32.mrb[0].mxu0
      %v6769 = vadd.f32 0.0, %v6768
      %v6770 = vpop.f32.mrb[0].mxu0
      %v6771 = vpop.f32.mrb[0].mxu0
      %v6772 = vadd.f32 0.0, %v6771
      %v6773 = vpop.f32.mrb[0].mxu0
      %6774 = vdwg.mxu0
      %v6807 = vunpack.c.l.b16 %v6534
      %v6808 = vunpack.c.l.b16 %v6535
      %v6809 = vunpack.c.l.b16 %v6536
      %v6810 = vunpack.c.l.b16 %v6537
      %v6811 = vunpack.c.l.b16 %v6538
      %v6812 = vunpack.c.l.b16 %v6539
      %v6813 = vunpack.c.l.b16 %v6540
      %v6814 = vunpack.c.l.b16 %v6541
      %v6815 = vunpack.c.l.b16 %v6542
      %v6816 = vunpack.c.l.b16 %v6543
      %v6817 = vunpack.c.l.b16 %v6544
      %v6818 = vunpack.c.l.b16 %v6545
      %v6819 = vunpack.c.l.b16 %v6546
      %v6820 = vunpack.c.l.b16 %v6547
      %v6821 = vunpack.c.l.b16 %v6548
      %v6822 = vunpack.c.l.b16 %v6549
      %v6823 = vunpack.c.l.b16 %v6550
      %v6824 = vunpack.c.l.b16 %v6551
      %v6825 = vunpack.c.l.b16 %v6552
      %v6826 = vunpack.c.l.b16 %v6553
      %v6827 = vunpack.c.l.b16 %v6554
      %v6828 = vunpack.c.l.b16 %v6555
      %v6829 = vunpack.c.l.b16 %v6556
      %v6830 = vunpack.c.l.b16 %v6557
      %v6831 = vunpack.c.l.b16 %v6558
      %v6832 = vunpack.c.l.b16 %v6559
      %v6833 = vunpack.c.l.b16 %v6560
      %v6834 = vunpack.c.l.b16 %v6561
      %v6835 = vunpack.c.l.b16 %v6562
      %v6836 = vunpack.c.l.b16 %v6563
      %v6837 = vunpack.c.l.b16 %v6564
      %v6838 = vunpack.c.l.b16 %v6565
      %v6839 = vpack.c.b16 %v6808, %v6807
      %v6840 = vpack.c.b16 %v6810, %v6809
      %v6841 = vpack.c.b16 %v6812, %v6811
      %v6842 = vpack.c.b16 %v6814, %v6813
      %v6843 = vpack.c.b16 %v6816, %v6815
      %v6844 = vpack.c.b16 %v6818, %v6817
      %v6845 = vpack.c.b16 %v6820, %v6819
      %v6846 = vpack.c.b16 %v6822, %v6821
      %v6847 = vpack.c.b16 %v6824, %v6823
      %v6848 = vpack.c.b16 %v6826, %v6825
      %v6849 = vpack.c.b16 %v6828, %v6827
      %v6850 = vpack.c.b16 %v6830, %v6829
      %v6851 = vpack.c.b16 %v6832, %v6831
      %v6852 = vpack.c.b16 %v6834, %v6833
      %v6853 = vpack.c.b16 %v6836, %v6835
      %v6854 = vpack.c.b16 %v6838, %v6837
      %6871 = vmatprep.subr.bf16.mxu0 0
      %6872 = vmatpush1.bf16.msra.mxu0 %v6839
      %6873 = vmatprep.subr.bf16.mxu0 0
      %6874 = vmatpush1.bf16.msra.mxu0 %v6840
      %6875 = vmatprep.subr.bf16.mxu0 0
      %6876 = vmatpush1.bf16.msra.mxu0 %v6841
      %6877 = vmatprep.subr.bf16.mxu0 0
      %6878 = vmatpush1.bf16.msra.mxu0 %v6842
      %6879 = vmatprep.subr.bf16.mxu0 0
      %6880 = vmatpush1.bf16.msra.mxu0 %v6843
      %6881 = vmatprep.subr.bf16.mxu0 0
      %6882 = vmatpush1.bf16.msra.mxu0 %v6844
      %6883 = vmatprep.subr.bf16.mxu0 0
      %6884 = vmatpush1.bf16.msra.mxu0 %v6845
      %6885 = vmatprep.subr.bf16.mxu0 0
      %6886 = vmatpush1.bf16.msra.mxu0 %v6846
      %6887 = vmatprep.subr.bf16.mxu0 0
      %6888 = vmatpush1.bf16.msra.mxu0 %v6847
      %6889 = vmatprep.subr.bf16.mxu0 0
      %6890 = vmatpush1.bf16.msra.mxu0 %v6848
      %6891 = vmatprep.subr.bf16.mxu0 0
      %6892 = vmatpush1.bf16.msra.mxu0 %v6849
      %6893 = vmatprep.subr.bf16.mxu0 0
      %6894 = vmatpush1.bf16.msra.mxu0 %v6850
      %6895 = vmatprep.subr.bf16.mxu0 0
      %6896 = vmatpush1.bf16.msra.mxu0 %v6851
      %6897 = vmatprep.subr.bf16.mxu0 0
      %6898 = vmatpush1.bf16.msra.mxu0 %v6852
      %6899 = vmatprep.subr.bf16.mxu0 0
      %6900 = vmatpush1.bf16.msra.mxu0 %v6853
      %6901 = vmatprep.subr.bf16.mxu0 0
      %6902 = vmatpush1.bf16.msra.mxu0 %v6854
      %6903 = vmatprep.mubr.bf16.mxu0 %v6503
      %6904 = vmatmul.mubr.bf16.gmra.mrb[0].mxu0 %v6502
      %v6905 = vpop.f32.mrb[0].mxu0
      %v6906 = vadd.f32 %v6649, %v6905
      %v6907 = vpop.f32.mrb[0].mxu0
      %v6908 = vpop.f32.mrb[0].mxu0
      %v6909 = vadd.f32 %v6652, %v6908
      %v6910 = vpop.f32.mrb[0].mxu0
      %6911 = vmatprep.mubr.bf16.mxu0 %v6505
      %6912 = vmatmul.mubr.bf16.gmra.mrb[0].mxu0 %v6504
      %v6913 = vpop.f32.mrb[0].mxu0
      %v6914 = vadd.f32 %v6657, %v6913
      %v6915 = vpop.f32.mrb[0].mxu0
      %v6916 = vpop.f32.mrb[0].mxu0
      %v6917 = vadd.f32 %v6660, %v6916
      %v6918 = vpop.f32.mrb[0].mxu0
      %6919 = vmatprep.mubr.bf16.mxu0 %v6507
      %6920 = vmatmul.mubr.bf16.gmra.mrb[0].mxu0 %v6506
      %v6921 = vpop.f32.mrb[0].mxu0
      %v6922 = vadd.f32 %v6665, %v6921
      %v6923 = vpop.f32.mrb[0].mxu0
      %v6924 = vpop.f32.mrb[0].mxu0
      %v6925 = vadd.f32 %v6668, %v6924
      %v6926 = vpop.f32.mrb[0].mxu0
      %6927 = vmatprep.mubr.bf16.mxu0 %v6509
      %6928 = vmatmul.mubr.bf16.gmra.mrb[0].mxu0 %v6508
      %v6929 = vpop.f32.mrb[0].mxu0
      %v6930 = vadd.f32 %v6673, %v6929
      %v6931 = vpop.f32.mrb[0].mxu0
      %v6932 = vpop.f32.mrb[0].mxu0
      %v6933 = vadd.f32 %v6676, %v6932
      %v6934 = vpop.f32.mrb[0].mxu0
      %6935 = vmatprep.mubr.bf16.mxu0 %v6511
      %6936 = vmatmul.mubr.bf16.gmra.mrb[0].mxu0 %v6510
      %v6937 = vpop.f32.mrb[0].mxu0
      %v6938 = vadd.f32 %v6681, %v6937
      %v6939 = vpop.f32.mrb[0].mxu0
      %v6940 = vpop.f32.mrb[0].mxu0
      %v6941 = vadd.f32 %v6684, %v6940
      %v6942 = vpop.f32.mrb[0].mxu0
      %6943 = vmatprep.mubr.bf16.mxu0 %v6513
      %6944 = vmatmul.mubr.bf16.gmra.mrb[0].mxu0 %v6512
      %v6945 = vpop.f32.mrb[0].mxu0
      %v6946 = vadd.f32 %v6689, %v6945
      %v6947 = vpop.f32.mrb[0].mxu0
      %v6948 = vpop.f32.mrb[0].mxu0
      %v6949 = vadd.f32 %v6692, %v6948
      %v6950 = vpop.f32.mrb[0].mxu0
      %6951 = vmatprep.mubr.bf16.mxu0 %v6515
      %6952 = vmatmul.mubr.bf16.gmra.mrb[0].mxu0 %v6514
      %v6953 = vpop.f32.mrb[0].mxu0
      %v6954 = vadd.f32 %v6697, %v6953
      %v6955 = vpop.f32.mrb[0].mxu0
      %v6956 = vpop.f32.mrb[0].mxu0
      %v6957 = vadd.f32 %v6700, %v6956
      %v6958 = vpop.f32.mrb[0].mxu0
      %6959 = vmatprep.mubr.bf16.mxu0 %v6517
      %6960 = vmatmul.mubr.bf16.gmra.mrb[0].mxu0 %v6516
      %v6961 = vpop.f32.mrb[0].mxu0
      %v6962 = vadd.f32 %v6705, %v6961
      %v6963 = vpop.f32.mrb[0].mxu0
      %v6964 = vpop.f32.mrb[0].mxu0
      %v6965 = vadd.f32 %v6708, %v6964
      %v6966 = vpop.f32.mrb[0].mxu0
      %6967 = vmatprep.mubr.bf16.mxu0 %v6519
      %6968 = vmatmul.mubr.bf16.gmra.mrb[0].mxu0 %v6518
      %v6969 = vpop.f32.mrb[0].mxu0
      %v6970 = vadd.f32 %v6713, %v6969
      %v6971 = vpop.f32.mrb[0].mxu0
      %v6972 = vpop.f32.mrb[0].mxu0
      %v6973 = vadd.f32 %v6716, %v6972
      %v6974 = vpop.f32.mrb[0].mxu0
      %6975 = vmatprep.mubr.bf16.mxu0 %v6521
      %6976 = vmatmul.mubr.bf16.gmra.mrb[0].mxu0 %v6520
      %v6977 = vpop.f32.mrb[0].mxu0
      %v6978 = vadd.f32 %v6721, %v6977
      %v6979 = vpop.f32.mrb[0].mxu0
      %v6980 = vpop.f32.mrb[0].mxu0
      %v6981 = vadd.f32 %v6724, %v6980
      %v6982 = vpop.f32.mrb[0].mxu0
      %6983 = vmatprep.mubr.bf16.mxu0 %v6523
      %6984 = vmatmul.mubr.bf16.gmra.mrb[0].mxu0 %v6522
      %v6985 = vpop.f32.mrb[0].mxu0
      %v6986 = vadd.f32 %v6729, %v6985
      %v6987 = vpop.f32.mrb[0].mxu0
      %v6988 = vpop.f32.mrb[0].mxu0
      %v6989 = vadd.f32 %v6732, %v6988
      %v6990 = vpop.f32.mrb[0].mxu0
      %6991 = vmatprep.mubr.bf16.mxu0 %v6525
      %6992 = vmatmul.mubr.bf16.gmra.mrb[0].mxu0 %v6524
      %v6993 = vpop.f32.mrb[0].mxu0
      %v6994 = vadd.f32 %v6737, %v6993
      %v6995 = vpop.f32.mrb[0].mxu0
      %v6996 = vpop.f32.mrb[0].mxu0
      %v6997 = vadd.f32 %v6740, %v6996
      %v6998 = vpop.f32.mrb[0].mxu0
      %6999 = vmatprep.mubr.bf16.mxu0 %v6527
      %7000 = vmatmul.mubr.bf16.gmra.mrb[0].mxu0 %v6526
      %v7001 = vpop.f32.mrb[0].mxu0
      %v7002 = vadd.f32 %v6745, %v7001
      %v7003 = vpop.f32.mrb[0].mxu0
      %v7004 = vpop.f32.mrb[0].mxu0
      %v7005 = vadd.f32 %v6748, %v7004
      %v7006 = vpop.f32.mrb[0].mxu0
      %7007 = vmatprep.mubr.bf16.mxu0 %v6529
      %7008 = vmatmul.mubr.bf16.gmra.mrb[0].mxu0 %v6528
      %v7009 = vpop.f32.mrb[0].mxu0
      %v7010 = vadd.f32 %v6753, %v7009
      %v7011 = vpop.f32.mrb[0].mxu0
      %v7012 = vpop.f32.mrb[0].mxu0
      %v7013 = vadd.f32 %v6756, %v7012
      %v7014 = vpop.f32.mrb[0].mxu0
      %7015 = vmatprep.mubr.bf16.mxu0 %v6531
      %7016 = vmatmul.mubr.bf16.gmra.mrb[0].mxu0 %v6530
      %v7017 = vpop.f32.mrb[0].mxu0
      %v7018 = vadd.f32 %v6761, %v7017
      %v7019 = vpop.f32.mrb[0].mxu0
      %v7020 = vpop.f32.mrb[0].mxu0
      %v7021 = vadd.f32 %v6764, %v7020
      %v7022 = vpop.f32.mrb[0].mxu0
      %7023 = vmatprep.mubr.bf16.mxu0 %v6533
      %7024 = vmatmul.mubr.bf16.gmra.mrb[0].mxu0 %v6532
      %v7025 = vpop.f32.mrb[0].mxu0
      %v7026 = vadd.f32 %v6769, %v7025
      %v7027 = vpop.f32.mrb[0].mxu0
      %v7028 = vpop.f32.mrb[0].mxu0
      %v7029 = vadd.f32 %v6772, %v7028
      %v7030 = vpop.f32.mrb[0].mxu0
      %7031 = vdwg.mxu0
      %v7032 = vld [vmem:[%s11] sm:$0x1]
      %v7034 = vlaneseq
      %v7035 = vshrl.u32 %v7034, 7
      %v7036 = vsub.s32 0, %v7035
      %v7037 = vrot.slane %v7032, %v7036
      %v7039 = vadd.f32 %v6906, %v7037
      %v7040 = vadd.f32 %v6909, %v7037
      %v7041 = vadd.f32 %v6914, %v7037
      %v7042 = vadd.f32 %v6917, %v7037
      %v7043 = vadd.f32 %v6922, %v7037
      %v7044 = vadd.f32 %v6925, %v7037
      %v7045 = vadd.f32 %v6930, %v7037
      %v7046 = vadd.f32 %v6933, %v7037
      %v7047 = vadd.f32 %v6938, %v7037
      %v7048 = vadd.f32 %v6941, %v7037
      %v7049 = vadd.f32 %v6946, %v7037
      %v7050 = vadd.f32 %v6949, %v7037
      %v7051 = vadd.f32 %v6954, %v7037
      %v7052 = vadd.f32 %v6957, %v7037
      %v7053 = vadd.f32 %v6962, %v7037
      %v7054 = vadd.f32 %v6965, %v7037
      %v7055 = vadd.f32 %v6970, %v7037
      %v7056 = vadd.f32 %v6973, %v7037
      %v7057 = vadd.f32 %v6978, %v7037
      %v7058 = vadd.f32 %v6981, %v7037
      %v7059 = vadd.f32 %v6986, %v7037
      %v7060 = vadd.f32 %v6989, %v7037
      %v7061 = vadd.f32 %v6994, %v7037
      %v7062 = vadd.f32 %v6997, %v7037
      %v7063 = vadd.f32 %v7002, %v7037
      %v7064 = vadd.f32 %v7005, %v7037
      %v7065 = vadd.f32 %v7010, %v7037
      %v7066 = vadd.f32 %v7013, %v7037
      %v7067 = vadd.f32 %v7018, %v7037
      %v7068 = vadd.f32 %v7021, %v7037
      %v7069 = vadd.f32 %v7026, %v7037
      %v7070 = vadd.f32 %v7029, %v7037
      %v7071 = vmax.f32 %v7039, 0.0
      %v7072 = vmax.f32 %v7040, 0.0
      %v7073 = vmax.f32 %v7041, 0.0
      %v7074 = vmax.f32 %v7042, 0.0
      %v7075 = vmax.f32 %v7043, 0.0
      %v7076 = vmax.f32 %v7044, 0.0
      %v7077 = vmax.f32 %v7045, 0.0
      %v7078 = vmax.f32 %v7046, 0.0
      %v7079 = vmax.f32 %v7047, 0.0
      %v7080 = vmax.f32 %v7048, 0.0
      %v7081 = vmax.f32 %v7049, 0.0
      %v7082 = vmax.f32 %v7050, 0.0
      %v7083 = vmax.f32 %v7051, 0.0
      %v7084 = vmax.f32 %v7052, 0.0
      %v7085 = vmax.f32 %v7053, 0.0
      %v7086 = vmax.f32 %v7054, 0.0
      %v7087 = vmax.f32 %v7055, 0.0
      %v7088 = vmax.f32 %v7056, 0.0
      %v7089 = vmax.f32 %v7057, 0.0
      %v7090 = vmax.f32 %v7058, 0.0
      %v7091 = vmax.f32 %v7059, 0.0
      %v7092 = vmax.f32 %v7060, 0.0
      %v7093 = vmax.f32 %v7061, 0.0
      %v7094 = vmax.f32 %v7062, 0.0
      %v7095 = vmax.f32 %v7063, 0.0
      %v7096 = vmax.f32 %v7064, 0.0
      %v7097 = vmax.f32 %v7065, 0.0
      %v7098 = vmax.f32 %v7066, 0.0
      %v7099 = vmax.f32 %v7067, 0.0
      %v7100 = vmax.f32 %v7068, 0.0
      %v7101 = vmax.f32 %v7069, 0.0
      %v7102 = vmax.f32 %v7070, 0.0
      %v7103 = vld [vmem:[%s13] sm:$0x7]
      %v7104 = vld [vmem:[%s12] sm:$0x3]
      %v7106 = vlaneseq
      %v7107 = vshrl.u32 %v7106, 7
      %v7108 = vsub.s32 0, %v7107
      %v7109 = vrot.slane %v7104, %v7108
      %v7110 = vlaneseq
      %v7111 = vshrl.u32 %v7110, 7
      %v7112 = vsub.s32 1, %v7111
      %v7113 = vrot.slane %v7104, %v7112
      %v7116 = vmul.f32 %v6438, %v7109
      %v7117 = vmul.f32 %v6439, %v7113
      %v7118 = vmul.f32 %v6440, %v7109
      %v7119 = vmul.f32 %v6441, %v7113
      %v7120 = vmul.f32 %v6442, %v7109
      %v7121 = vmul.f32 %v6443, %v7113
      %v7122 = vmul.f32 %v6444, %v7109
      %v7123 = vmul.f32 %v6445, %v7113
      %v7124 = vmul.f32 %v6446, %v7109
      %v7125 = vmul.f32 %v6447, %v7113
      %v7126 = vmul.f32 %v6448, %v7109
      %v7127 = vmul.f32 %v6449, %v7113
      %v7128 = vmul.f32 %v6450, %v7109
      %v7129 = vmul.f32 %v6451, %v7113
      %v7130 = vmul.f32 %v6452, %v7109
      %v7131 = vmul.f32 %v6453, %v7113
      %v7132 = vmul.f32 %v6454, %v7109
      %v7133 = vmul.f32 %v6455, %v7113
      %v7134 = vmul.f32 %v6456, %v7109
      %v7135 = vmul.f32 %v6457, %v7113
      %v7136 = vmul.f32 %v6458, %v7109
      %v7137 = vmul.f32 %v6459, %v7113
      %v7138 = vmul.f32 %v6460, %v7109
      %v7139 = vmul.f32 %v6461, %v7113
      %v7140 = vmul.f32 %v6462, %v7109
      %v7141 = vmul.f32 %v6463, %v7113
      %v7142 = vmul.f32 %v6464, %v7109
      %v7143 = vmul.f32 %v6465, %v7113
      %v7144 = vmul.f32 %v6466, %v7109
      %v7145 = vmul.f32 %v6467, %v7113
      %v7146 = vmul.f32 %v6468, %v7109
      %v7147 = vmul.f32 %v6469, %v7113
      %v7148 = vmul.f32 %v6470, %v7109
      %v7149 = vmul.f32 %v6471, %v7113
      %v7150 = vmul.f32 %v6472, %v7109
      %v7151 = vmul.f32 %v6473, %v7113
      %v7152 = vmul.f32 %v6474, %v7109
      %v7153 = vmul.f32 %v6475, %v7113
      %v7154 = vmul.f32 %v6476, %v7109
      %v7155 = vmul.f32 %v6477, %v7113
      %v7156 = vmul.f32 %v6478, %v7109
      %v7157 = vmul.f32 %v6479, %v7113
      %v7158 = vmul.f32 %v6480, %v7109
      %v7159 = vmul.f32 %v6481, %v7113
      %v7160 = vmul.f32 %v6482, %v7109
      %v7161 = vmul.f32 %v6483, %v7113
      %v7162 = vmul.f32 %v6484, %v7109
      %v7163 = vmul.f32 %v6485, %v7113
      %v7164 = vmul.f32 %v6486, %v7109
      %v7165 = vmul.f32 %v6487, %v7113
      %v7166 = vmul.f32 %v6488, %v7109
      %v7167 = vmul.f32 %v6489, %v7113
      %v7168 = vmul.f32 %v6490, %v7109
      %v7169 = vmul.f32 %v6491, %v7113
      %v7170 = vmul.f32 %v6492, %v7109
      %v7171 = vmul.f32 %v6493, %v7113
      %v7172 = vmul.f32 %v6494, %v7109
      %v7173 = vmul.f32 %v6495, %v7113
      %v7174 = vmul.f32 %v6496, %v7109
      %v7175 = vmul.f32 %v6497, %v7113
      %v7176 = vmul.f32 %v6498, %v7109
      %v7177 = vmul.f32 %v6499, %v7113
      %v7178 = vmul.f32 %v6500, %v7109
      %v7179 = vmul.f32 %v6501, %v7113
      %v7180 = vadd.f32 %v7116, %v7117
      %7181 = vadd.xlane.f32.xlu0 %v7180
      %v7182 = vpop.xlane.xlu0 %7181
      %v7183 = vadd.f32 %v7118, %v7119
      %7184 = vadd.xlane.f32.xlu0 %v7183
      %v7185 = vpop.xlane.xlu0 %7184
      %v7186 = vadd.f32 %v7120, %v7121
      %7187 = vadd.xlane.f32.xlu0 %v7186
      %v7188 = vpop.xlane.xlu0 %7187
      %v7189 = vadd.f32 %v7122, %v7123
      %7190 = vadd.xlane.f32.xlu0 %v7189
      %v7191 = vpop.xlane.xlu0 %7190
      %v7192 = vadd.f32 %v7124, %v7125
      %7193 = vadd.xlane.f32.xlu0 %v7192
      %v7194 = vpop.xlane.xlu0 %7193
      %v7195 = vadd.f32 %v7126, %v7127
      %7196 = vadd.xlane.f32.xlu0 %v7195
      %v7197 = vpop.xlane.xlu0 %7196
      %v7198 = vadd.f32 %v7128, %v7129
      %7199 = vadd.xlane.f32.xlu0 %v7198
      %v7200 = vpop.xlane.xlu0 %7199
      %v7201 = vadd.f32 %v7130, %v7131
      %7202 = vadd.xlane.f32.xlu0 %v7201
      %v7203 = vpop.xlane.xlu0 %7202
      %v7204 = vadd.f32 %v7132, %v7133
      %7205 = vadd.xlane.f32.xlu0 %v7204
      %v7206 = vpop.xlane.xlu0 %7205
      %v7207 = vadd.f32 %v7134, %v7135
      %7208 = vadd.xlane.f32.xlu0 %v7207
      %v7209 = vpop.xlane.xlu0 %7208
      %v7210 = vadd.f32 %v7136, %v7137
      %7211 = vadd.xlane.f32.xlu0 %v7210
      %v7212 = vpop.xlane.xlu0 %7211
      %v7213 = vadd.f32 %v7138, %v7139
      %7214 = vadd.xlane.f32.xlu0 %v7213
      %v7215 = vpop.xlane.xlu0 %7214
      %v7216 = vadd.f32 %v7140, %v7141
      %7217 = vadd.xlane.f32.xlu0 %v7216
      %v7218 = vpop.xlane.xlu0 %7217
      %v7219 = vadd.f32 %v7142, %v7143
      %7220 = vadd.xlane.f32.xlu0 %v7219
      %v7221 = vpop.xlane.xlu0 %7220
      %v7222 = vadd.f32 %v7144, %v7145
      %7223 = vadd.xlane.f32.xlu0 %v7222
      %v7224 = vpop.xlane.xlu0 %7223
      %v7225 = vadd.f32 %v7146, %v7147
      %7226 = vadd.xlane.f32.xlu0 %v7225
      %v7227 = vpop.xlane.xlu0 %7226
      %v7228 = vadd.f32 %v7148, %v7149
      %7229 = vadd.xlane.f32.xlu0 %v7228
      %v7230 = vpop.xlane.xlu0 %7229
      %v7231 = vadd.f32 %v7150, %v7151
      %7232 = vadd.xlane.f32.xlu0 %v7231
      %v7233 = vpop.xlane.xlu0 %7232
      %v7234 = vadd.f32 %v7152, %v7153
      %7235 = vadd.xlane.f32.xlu0 %v7234
      %v7236 = vpop.xlane.xlu0 %7235
      %v7237 = vadd.f32 %v7154, %v7155
      %7238 = vadd.xlane.f32.xlu0 %v7237
      %v7239 = vpop.xlane.xlu0 %7238
      %v7240 = vadd.f32 %v7156, %v7157
      %7241 = vadd.xlane.f32.xlu0 %v7240
      %v7242 = vpop.xlane.xlu0 %7241
      %v7243 = vadd.f32 %v7158, %v7159
      %7244 = vadd.xlane.f32.xlu0 %v7243
      %v7245 = vpop.xlane.xlu0 %7244
      %v7246 = vadd.f32 %v7160, %v7161
      %7247 = vadd.xlane.f32.xlu0 %v7246
      %v7248 = vpop.xlane.xlu0 %7247
      %v7249 = vadd.f32 %v7162, %v7163
      %7250 = vadd.xlane.f32.xlu0 %v7249
      %v7251 = vpop.xlane.xlu0 %7250
      %v7252 = vadd.f32 %v7164, %v7165
      %7253 = vadd.xlane.f32.xlu0 %v7252
      %v7254 = vpop.xlane.xlu0 %7253
      %v7255 = vadd.f32 %v7166, %v7167
      %7256 = vadd.xlane.f32.xlu0 %v7255
      %v7257 = vpop.xlane.xlu0 %7256
      %v7258 = vadd.f32 %v7168, %v7169
      %7259 = vadd.xlane.f32.xlu0 %v7258
      %v7260 = vpop.xlane.xlu0 %7259
      %v7261 = vadd.f32 %v7170, %v7171
      %7262 = vadd.xlane.f32.xlu0 %v7261
      %v7263 = vpop.xlane.xlu0 %7262
      %v7264 = vadd.f32 %v7172, %v7173
      %7265 = vadd.xlane.f32.xlu0 %v7264
      %v7266 = vpop.xlane.xlu0 %7265
      %v7267 = vadd.f32 %v7174, %v7175
      %7268 = vadd.xlane.f32.xlu0 %v7267
      %v7269 = vpop.xlane.xlu0 %7268
      %v7270 = vadd.f32 %v7176, %v7177
      %7271 = vadd.xlane.f32.xlu0 %v7270
      %v7272 = vpop.xlane.xlu0 %7271
      %v7273 = vadd.f32 %v7178, %v7179
      %7274 = vadd.xlane.f32.xlu0 %v7273
      %v7275 = vpop.xlane.xlu0 %7274
      %v7276 = vlaneseq
      %v7277 = vshrl.u32 %v7276, 7
      %v7278 = vsub.s32 0, %v7277
      %v7279 = vrot.slane %v7103, %v7278
      %v7280 = vmul.f32 %v7071, %v7279
      %v7281 = vmul.f32 %v7072, %v7279
      %v7282 = vmul.f32 %v7073, %v7279
      %v7283 = vmul.f32 %v7074, %v7279
      %v7284 = vmul.f32 %v7075, %v7279
      %v7285 = vmul.f32 %v7076, %v7279
      %v7286 = vmul.f32 %v7077, %v7279
      %v7287 = vmul.f32 %v7078, %v7279
      %v7288 = vmul.f32 %v7079, %v7279
      %v7289 = vmul.f32 %v7080, %v7279
      %v7290 = vmul.f32 %v7081, %v7279
      %v7291 = vmul.f32 %v7082, %v7279
      %v7292 = vmul.f32 %v7083, %v7279
      %v7293 = vmul.f32 %v7084, %v7279
      %v7294 = vmul.f32 %v7085, %v7279
      %v7295 = vmul.f32 %v7086, %v7279
      %v7296 = vmul.f32 %v7087, %v7279
      %v7297 = vmul.f32 %v7088, %v7279
      %v7298 = vmul.f32 %v7089, %v7279
      %v7299 = vmul.f32 %v7090, %v7279
      %v7300 = vmul.f32 %v7091, %v7279
      %v7301 = vmul.f32 %v7092, %v7279
      %v7302 = vmul.f32 %v7093, %v7279
      %v7303 = vmul.f32 %v7094, %v7279
      %v7304 = vmul.f32 %v7095, %v7279
      %v7305 = vmul.f32 %v7096, %v7279
      %v7306 = vmul.f32 %v7097, %v7279
      %v7307 = vmul.f32 %v7098, %v7279
      %v7308 = vmul.f32 %v7099, %v7279
      %v7309 = vmul.f32 %v7100, %v7279
      %v7310 = vmul.f32 %v7101, %v7279
      %v7311 = vmul.f32 %v7102, %v7279
      %7312 = vadd.xlane.f32.xlu0 %v7280
      %v7313 = vpop.xlane.xlu0 %7312
      %7314 = vadd.xlane.f32.xlu0 %v7281
      %v7315 = vpop.xlane.xlu0 %7314
      %7316 = vadd.xlane.f32.xlu0 %v7282
      %v7317 = vpop.xlane.xlu0 %7316
      %7318 = vadd.xlane.f32.xlu0 %v7283
      %v7319 = vpop.xlane.xlu0 %7318
      %7320 = vadd.xlane.f32.xlu0 %v7284
      %v7321 = vpop.xlane.xlu0 %7320
      %7322 = vadd.xlane.f32.xlu0 %v7285
      %v7323 = vpop.xlane.xlu0 %7322
      %7324 = vadd.xlane.f32.xlu0 %v7286
      %v7325 = vpop.xlane.xlu0 %7324
      %7326 = vadd.xlane.f32.xlu0 %v7287
      %v7327 = vpop.xlane.xlu0 %7326
      %7328 = vadd.xlane.f32.xlu0 %v7288
      %v7329 = vpop.xlane.xlu0 %7328
      %7330 = vadd.xlane.f32.xlu0 %v7289
      %v7331 = vpop.xlane.xlu0 %7330
      %7332 = vadd.xlane.f32.xlu0 %v7290
      %v7333 = vpop.xlane.xlu0 %7332
      %7334 = vadd.xlane.f32.xlu0 %v7291
      %v7335 = vpop.xlane.xlu0 %7334
      %7336 = vadd.xlane.f32.xlu0 %v7292
      %v7337 = vpop.xlane.xlu0 %7336
      %7338 = vadd.xlane.f32.xlu0 %v7293
      %v7339 = vpop.xlane.xlu0 %7338
      %7340 = vadd.xlane.f32.xlu0 %v7294
      %v7341 = vpop.xlane.xlu0 %7340
      %7342 = vadd.xlane.f32.xlu0 %v7295
      %v7343 = vpop.xlane.xlu0 %7342
      %7344 = vadd.xlane.f32.xlu0 %v7296
      %v7345 = vpop.xlane.xlu0 %7344
      %7346 = vadd.xlane.f32.xlu0 %v7297
      %v7347 = vpop.xlane.xlu0 %7346
      %7348 = vadd.xlane.f32.xlu0 %v7298
      %v7349 = vpop.xlane.xlu0 %7348
      %7350 = vadd.xlane.f32.xlu0 %v7299
      %v7351 = vpop.xlane.xlu0 %7350
      %7352 = vadd.xlane.f32.xlu0 %v7300
      %v7353 = vpop.xlane.xlu0 %7352
      %7354 = vadd.xlane.f32.xlu0 %v7301
      %v7355 = vpop.xlane.xlu0 %7354
      %7356 = vadd.xlane.f32.xlu0 %v7302
      %v7357 = vpop.xlane.xlu0 %7356
      %7358 = vadd.xlane.f32.xlu0 %v7303
      %v7359 = vpop.xlane.xlu0 %7358
      %7360 = vadd.xlane.f32.xlu0 %v7304
      %v7361 = vpop.xlane.xlu0 %7360
      %7362 = vadd.xlane.f32.xlu0 %v7305
      %v7363 = vpop.xlane.xlu0 %7362
      %7364 = vadd.xlane.f32.xlu0 %v7306
      %v7365 = vpop.xlane.xlu0 %7364
      %7366 = vadd.xlane.f32.xlu0 %v7307
      %v7367 = vpop.xlane.xlu0 %7366
      %7368 = vadd.xlane.f32.xlu0 %v7308
      %v7369 = vpop.xlane.xlu0 %7368
      %7370 = vadd.xlane.f32.xlu0 %v7309
      %v7371 = vpop.xlane.xlu0 %7370
      %7372 = vadd.xlane.f32.xlu0 %v7310
      %v7373 = vpop.xlane.xlu0 %7372
      %7374 = vadd.xlane.f32.xlu0 %v7311
      %v7375 = vpop.xlane.xlu0 %7374
      %v7376 = vlaneseq
      %v7377 = vshrl.u32 %v7376, 7
      %v7378 = vsub.s32 1, %v7377
      %v7379 = vrot.slane %v7103, %v7378
      %v7380 = vmul.f32 %v7071, %v7379
      %v7381 = vmul.f32 %v7072, %v7379
      %v7382 = vmul.f32 %v7073, %v7379
      %v7383 = vmul.f32 %v7074, %v7379
      %v7384 = vmul.f32 %v7075, %v7379
      %v7385 = vmul.f32 %v7076, %v7379
      %v7386 = vmul.f32 %v7077, %v7379
      %v7387 = vmul.f32 %v7078, %v7379
      %v7388 = vmul.f32 %v7079, %v7379
      %v7389 = vmul.f32 %v7080, %v7379
      %v7390 = vmul.f32 %v7081, %v7379
      %v7391 = vmul.f32 %v7082, %v7379
      %v7392 = vmul.f32 %v7083, %v7379
      %v7393 = vmul.f32 %v7084, %v7379
      %v7394 = vmul.f32 %v7085, %v7379
      %v7395 = vmul.f32 %v7086, %v7379
      %v7396 = vmul.f32 %v7087, %v7379
      %v7397 = vmul.f32 %v7088, %v7379
      %v7398 = vmul.f32 %v7089, %v7379
      %v7399 = vmul.f32 %v7090, %v7379
      %v7400 = vmul.f32 %v7091, %v7379
      %v7401 = vmul.f32 %v7092, %v7379
      %v7402 = vmul.f32 %v7093, %v7379
      %v7403 = vmul.f32 %v7094, %v7379
      %v7404 = vmul.f32 %v7095, %v7379
      %v7405 = vmul.f32 %v7096, %v7379
      %v7406 = vmul.f32 %v7097, %v7379
      %v7407 = vmul.f32 %v7098, %v7379
      %v7408 = vmul.f32 %v7099, %v7379
      %v7409 = vmul.f32 %v7100, %v7379
      %v7410 = vmul.f32 %v7101, %v7379
      %v7411 = vmul.f32 %v7102, %v7379
      %7412 = vadd.xlane.f32.xlu0 %v7380
      %v7413 = vpop.xlane.xlu0 %7412
      %7414 = vadd.xlane.f32.xlu0 %v7381
      %v7415 = vpop.xlane.xlu0 %7414
      %7416 = vadd.xlane.f32.xlu0 %v7382
      %v7417 = vpop.xlane.xlu0 %7416
      %7418 = vadd.xlane.f32.xlu0 %v7383
      %v7419 = vpop.xlane.xlu0 %7418
      %7420 = vadd.xlane.f32.xlu0 %v7384
      %v7421 = vpop.xlane.xlu0 %7420
      %7422 = vadd.xlane.f32.xlu0 %v7385
      %v7423 = vpop.xlane.xlu0 %7422
      %7424 = vadd.xlane.f32.xlu0 %v7386
      %v7425 = vpop.xlane.xlu0 %7424
      %7426 = vadd.xlane.f32.xlu0 %v7387
      %v7427 = vpop.xlane.xlu0 %7426
      %7428 = vadd.xlane.f32.xlu0 %v7388
      %v7429 = vpop.xlane.xlu0 %7428
      %7430 = vadd.xlane.f32.xlu0 %v7389
      %v7431 = vpop.xlane.xlu0 %7430
      %7432 = vadd.xlane.f32.xlu0 %v7390
      %v7433 = vpop.xlane.xlu0 %7432
      %7434 = vadd.xlane.f32.xlu0 %v7391
      %v7435 = vpop.xlane.xlu0 %7434
      %7436 = vadd.xlane.f32.xlu0 %v7392
      %v7437 = vpop.xlane.xlu0 %7436
      %7438 = vadd.xlane.f32.xlu0 %v7393
      %v7439 = vpop.xlane.xlu0 %7438
      %7440 = vadd.xlane.f32.xlu0 %v7394
      %v7441 = vpop.xlane.xlu0 %7440
      %7442 = vadd.xlane.f32.xlu0 %v7395
      %v7443 = vpop.xlane.xlu0 %7442
      %7444 = vadd.xlane.f32.xlu0 %v7396
      %v7445 = vpop.xlane.xlu0 %7444
      %7446 = vadd.xlane.f32.xlu0 %v7397
      %v7447 = vpop.xlane.xlu0 %7446
      %7448 = vadd.xlane.f32.xlu0 %v7398
      %v7449 = vpop.xlane.xlu0 %7448
      %7450 = vadd.xlane.f32.xlu0 %v7399
      %v7451 = vpop.xlane.xlu0 %7450
      %7452 = vadd.xlane.f32.xlu0 %v7400
      %v7453 = vpop.xlane.xlu0 %7452
      %7454 = vadd.xlane.f32.xlu0 %v7401
      %v7455 = vpop.xlane.xlu0 %7454
      %7456 = vadd.xlane.f32.xlu0 %v7402
      %v7457 = vpop.xlane.xlu0 %7456
      %7458 = vadd.xlane.f32.xlu0 %v7403
      %v7459 = vpop.xlane.xlu0 %7458
      %7460 = vadd.xlane.f32.xlu0 %v7404
      %v7461 = vpop.xlane.xlu0 %7460
      %7462 = vadd.xlane.f32.xlu0 %v7405
      %v7463 = vpop.xlane.xlu0 %7462
      %7464 = vadd.xlane.f32.xlu0 %v7406
      %v7465 = vpop.xlane.xlu0 %7464
      %7466 = vadd.xlane.f32.xlu0 %v7407
      %v7467 = vpop.xlane.xlu0 %7466
      %7468 = vadd.xlane.f32.xlu0 %v7408
      %v7469 = vpop.xlane.xlu0 %7468
      %7470 = vadd.xlane.f32.xlu0 %v7409
      %v7471 = vpop.xlane.xlu0 %7470
      %7472 = vadd.xlane.f32.xlu0 %v7410
      %v7473 = vpop.xlane.xlu0 %7472
      %7474 = vadd.xlane.f32.xlu0 %v7411
      %v7475 = vpop.xlane.xlu0 %7474
      %v7476 = vlaneseq
      %v7477 = vshrl.u32 %v7476, 7
      %v7478 = vsub.s32 2, %v7477
      %v7479 = vrot.slane %v7103, %v7478
      %v7480 = vmul.f32 %v7071, %v7479
      %v7481 = vmul.f32 %v7072, %v7479
      %v7482 = vmul.f32 %v7073, %v7479
      %v7483 = vmul.f32 %v7074, %v7479
      %v7484 = vmul.f32 %v7075, %v7479
      %v7485 = vmul.f32 %v7076, %v7479
      %v7486 = vmul.f32 %v7077, %v7479
      %v7487 = vmul.f32 %v7078, %v7479
      %v7488 = vmul.f32 %v7079, %v7479
      %v7489 = vmul.f32 %v7080, %v7479
      %v7490 = vmul.f32 %v7081, %v7479
      %v7491 = vmul.f32 %v7082, %v7479
      %v7492 = vmul.f32 %v7083, %v7479
      %v7493 = vmul.f32 %v7084, %v7479
      %v7494 = vmul.f32 %v7085, %v7479
      %v7495 = vmul.f32 %v7086, %v7479
      %v7496 = vmul.f32 %v7087, %v7479
      %v7497 = vmul.f32 %v7088, %v7479
      %v7498 = vmul.f32 %v7089, %v7479
      %v7499 = vmul.f32 %v7090, %v7479
      %v7500 = vmul.f32 %v7091, %v7479
      %v7501 = vmul.f32 %v7092, %v7479
      %v7502 = vmul.f32 %v7093, %v7479
      %v7503 = vmul.f32 %v7094, %v7479
      %v7504 = vmul.f32 %v7095, %v7479
      %v7505 = vmul.f32 %v7096, %v7479
      %v7506 = vmul.f32 %v7097, %v7479
      %v7507 = vmul.f32 %v7098, %v7479
      %v7508 = vmul.f32 %v7099, %v7479
      %v7509 = vmul.f32 %v7100, %v7479
      %v7510 = vmul.f32 %v7101, %v7479
      %v7511 = vmul.f32 %v7102, %v7479
      %7512 = vadd.xlane.f32.xlu0 %v7480
      %v7513 = vpop.xlane.xlu0 %7512
      %7514 = vadd.xlane.f32.xlu0 %v7481
      %v7515 = vpop.xlane.xlu0 %7514
      %7516 = vadd.xlane.f32.xlu0 %v7482
      %v7517 = vpop.xlane.xlu0 %7516
      %7518 = vadd.xlane.f32.xlu0 %v7483
      %v7519 = vpop.xlane.xlu0 %7518
      %7520 = vadd.xlane.f32.xlu0 %v7484
      %v7521 = vpop.xlane.xlu0 %7520
      %7522 = vadd.xlane.f32.xlu0 %v7485
      %v7523 = vpop.xlane.xlu0 %7522
      %7524 = vadd.xlane.f32.xlu0 %v7486
      %v7525 = vpop.xlane.xlu0 %7524
      %7526 = vadd.xlane.f32.xlu0 %v7487
      %v7527 = vpop.xlane.xlu0 %7526
      %7528 = vadd.xlane.f32.xlu0 %v7488
      %v7529 = vpop.xlane.xlu0 %7528
      %7530 = vadd.xlane.f32.xlu0 %v7489
      %v7531 = vpop.xlane.xlu0 %7530
      %7532 = vadd.xlane.f32.xlu0 %v7490
      %v7533 = vpop.xlane.xlu0 %7532
      %7534 = vadd.xlane.f32.xlu0 %v7491
      %v7535 = vpop.xlane.xlu0 %7534
      %7536 = vadd.xlane.f32.xlu0 %v7492
      %v7537 = vpop.xlane.xlu0 %7536
      %7538 = vadd.xlane.f32.xlu0 %v7493
      %v7539 = vpop.xlane.xlu0 %7538
      %7540 = vadd.xlane.f32.xlu0 %v7494
      %v7541 = vpop.xlane.xlu0 %7540
      %7542 = vadd.xlane.f32.xlu0 %v7495
      %v7543 = vpop.xlane.xlu0 %7542
      %7544 = vadd.xlane.f32.xlu0 %v7496
      %v7545 = vpop.xlane.xlu0 %7544
      %7546 = vadd.xlane.f32.xlu0 %v7497
      %v7547 = vpop.xlane.xlu0 %7546
      %7548 = vadd.xlane.f32.xlu0 %v7498
      %v7549 = vpop.xlane.xlu0 %7548
      %7550 = vadd.xlane.f32.xlu0 %v7499
      %v7551 = vpop.xlane.xlu0 %7550
      %7552 = vadd.xlane.f32.xlu0 %v7500
      %v7553 = vpop.xlane.xlu0 %7552
      %7554 = vadd.xlane.f32.xlu0 %v7501
      %v7555 = vpop.xlane.xlu0 %7554
      %7556 = vadd.xlane.f32.xlu0 %v7502
      %v7557 = vpop.xlane.xlu0 %7556
      %7558 = vadd.xlane.f32.xlu0 %v7503
      %v7559 = vpop.xlane.xlu0 %7558
      %7560 = vadd.xlane.f32.xlu0 %v7504
      %v7561 = vpop.xlane.xlu0 %7560
      %7562 = vadd.xlane.f32.xlu0 %v7505
      %v7563 = vpop.xlane.xlu0 %7562
      %7564 = vadd.xlane.f32.xlu0 %v7506
      %v7565 = vpop.xlane.xlu0 %7564
      %7566 = vadd.xlane.f32.xlu0 %v7507
      %v7567 = vpop.xlane.xlu0 %7566
      %7568 = vadd.xlane.f32.xlu0 %v7508
      %v7569 = vpop.xlane.xlu0 %7568
      %7570 = vadd.xlane.f32.xlu0 %v7509
      %v7571 = vpop.xlane.xlu0 %7570
      %7572 = vadd.xlane.f32.xlu0 %v7510
      %v7573 = vpop.xlane.xlu0 %7572
      %7574 = vadd.xlane.f32.xlu0 %v7511
      %v7575 = vpop.xlane.xlu0 %7574
      %vm7576 = vcmp.eq.s32.totalorder %v1709, 0
      %vm7577 = vcmp.eq.s32.totalorder %v1709, 1
      %vm7578 = vcmp.eq.s32.totalorder %v1709, 2
      %vm7579 = vcmp.eq.s32.totalorder %v1709, 3
      %v7580 = vsel %vm7579, %v7182, 0.0
      %v7581 = vsel %vm7579, %v7185, 0.0
      %v7582 = vsel %vm7579, %v7188, 0.0
      %v7583 = vsel %vm7579, %v7191, 0.0
      %v7584 = vsel %vm7579, %v7194, 0.0
      %v7585 = vsel %vm7579, %v7197, 0.0
      %v7586 = vsel %vm7579, %v7200, 0.0
      %v7587 = vsel %vm7579, %v7203, 0.0
      %v7588 = vsel %vm7579, %v7206, 0.0
      %v7589 = vsel %vm7579, %v7209, 0.0
      %v7590 = vsel %vm7579, %v7212, 0.0
      %v7591 = vsel %vm7579, %v7215, 0.0
      %v7592 = vsel %vm7579, %v7218, 0.0
      %v7593 = vsel %vm7579, %v7221, 0.0
      %v7594 = vsel %vm7579, %v7224, 0.0
      %v7595 = vsel %vm7579, %v7227, 0.0
      %v7596 = vsel %vm7579, %v7230, 0.0
      %v7597 = vsel %vm7579, %v7233, 0.0
      %v7598 = vsel %vm7579, %v7236, 0.0
      %v7599 = vsel %vm7579, %v7239, 0.0
      %v7600 = vsel %vm7579, %v7242, 0.0
      %v7601 = vsel %vm7579, %v7245, 0.0
      %v7602 = vsel %vm7579, %v7248, 0.0
      %v7603 = vsel %vm7579, %v7251, 0.0
      %v7604 = vsel %vm7579, %v7254, 0.0
      %v7605 = vsel %vm7579, %v7257, 0.0
      %v7606 = vsel %vm7579, %v7260, 0.0
      %v7607 = vsel %vm7579, %v7263, 0.0
      %v7608 = vsel %vm7579, %v7266, 0.0
      %v7609 = vsel %vm7579, %v7269, 0.0
      %v7610 = vsel %vm7579, %v7272, 0.0
      %v7611 = vsel %vm7579, %v7275, 0.0
      %v7612 = vsel %vm7578, %v7513, %v7580
      %v7613 = vsel %vm7578, %v7515, %v7581
      %v7614 = vsel %vm7578, %v7517, %v7582
      %v7615 = vsel %vm7578, %v7519, %v7583
      %v7616 = vsel %vm7578, %v7521, %v7584
      %v7617 = vsel %vm7578, %v7523, %v7585
      %v7618 = vsel %vm7578, %v7525, %v7586
      %v7619 = vsel %vm7578, %v7527, %v7587
      %v7620 = vsel %vm7578, %v7529, %v7588
      %v7621 = vsel %vm7578, %v7531, %v7589
      %v7622 = vsel %vm7578, %v7533, %v7590
      %v7623 = vsel %vm7578, %v7535, %v7591
      %v7624 = vsel %vm7578, %v7537, %v7592
      %v7625 = vsel %vm7578, %v7539, %v7593
      %v7626 = vsel %vm7578, %v7541, %v7594
      %v7627 = vsel %vm7578, %v7543, %v7595
      %v7628 = vsel %vm7578, %v7545, %v7596
      %v7629 = vsel %vm7578, %v7547, %v7597
      %v7630 = vsel %vm7578, %v7549, %v7598
      %v7631 = vsel %vm7578, %v7551, %v7599
      %v7632 = vsel %vm7578, %v7553, %v7600
      %v7633 = vsel %vm7578, %v7555, %v7601
      %v7634 = vsel %vm7578, %v7557, %v7602
      %v7635 = vsel %vm7578, %v7559, %v7603
      %v7636 = vsel %vm7578, %v7561, %v7604
      %v7637 = vsel %vm7578, %v7563, %v7605
      %v7638 = vsel %vm7578, %v7565, %v7606
      %v7639 = vsel %vm7578, %v7567, %v7607
      %v7640 = vsel %vm7578, %v7569, %v7608
      %v7641 = vsel %vm7578, %v7571, %v7609
      %v7642 = vsel %vm7578, %v7573, %v7610
      %v7643 = vsel %vm7578, %v7575, %v7611
      %v7644 = vsel %vm7577, %v7413, %v7612
      %v7645 = vsel %vm7577, %v7415, %v7613
      %v7646 = vsel %vm7577, %v7417, %v7614
      %v7647 = vsel %vm7577, %v7419, %v7615
      %v7648 = vsel %vm7577, %v7421, %v7616
      %v7649 = vsel %vm7577, %v7423, %v7617
      %v7650 = vsel %vm7577, %v7425, %v7618
      %v7651 = vsel %vm7577, %v7427, %v7619
      %v7652 = vsel %vm7577, %v7429, %v7620
      %v7653 = vsel %vm7577, %v7431, %v7621
      %v7654 = vsel %vm7577, %v7433, %v7622
      %v7655 = vsel %vm7577, %v7435, %v7623
      %v7656 = vsel %vm7577, %v7437, %v7624
      %v7657 = vsel %vm7577, %v7439, %v7625
      %v7658 = vsel %vm7577, %v7441, %v7626
      %v7659 = vsel %vm7577, %v7443, %v7627
      %v7660 = vsel %vm7577, %v7445, %v7628
      %v7661 = vsel %vm7577, %v7447, %v7629
      %v7662 = vsel %vm7577, %v7449, %v7630
      %v7663 = vsel %vm7577, %v7451, %v7631
      %v7664 = vsel %vm7577, %v7453, %v7632
      %v7665 = vsel %vm7577, %v7455, %v7633
      %v7666 = vsel %vm7577, %v7457, %v7634
      %v7667 = vsel %vm7577, %v7459, %v7635
      %v7668 = vsel %vm7577, %v7461, %v7636
      %v7669 = vsel %vm7577, %v7463, %v7637
      %v7670 = vsel %vm7577, %v7465, %v7638
      %v7671 = vsel %vm7577, %v7467, %v7639
      %v7672 = vsel %vm7577, %v7469, %v7640
      %v7673 = vsel %vm7577, %v7471, %v7641
      %v7674 = vsel %vm7577, %v7473, %v7642
      %v7675 = vsel %vm7577, %v7475, %v7643
      %v7676 = vsel %vm7576, %v7313, %v7644
      %v7677 = vsel %vm7576, %v7315, %v7645
      %v7678 = vsel %vm7576, %v7317, %v7646
      %v7679 = vsel %vm7576, %v7319, %v7647
      %v7680 = vsel %vm7576, %v7321, %v7648
      %v7681 = vsel %vm7576, %v7323, %v7649
      %v7682 = vsel %vm7576, %v7325, %v7650
      %v7683 = vsel %vm7576, %v7327, %v7651
      %v7684 = vsel %vm7576, %v7329, %v7652
      %v7685 = vsel %vm7576, %v7331, %v7653
      %v7686 = vsel %vm7576, %v7333, %v7654
      %v7687 = vsel %vm7576, %v7335, %v7655
      %v7688 = vsel %vm7576, %v7337, %v7656
      %v7689 = vsel %vm7576, %v7339, %v7657
      %v7690 = vsel %vm7576, %v7341, %v7658
      %v7691 = vsel %vm7576, %v7343, %v7659
      %v7692 = vsel %vm7576, %v7345, %v7660
      %v7693 = vsel %vm7576, %v7347, %v7661
      %v7694 = vsel %vm7576, %v7349, %v7662
      %v7695 = vsel %vm7576, %v7351, %v7663
      %v7696 = vsel %vm7576, %v7353, %v7664
      %v7697 = vsel %vm7576, %v7355, %v7665
      %v7698 = vsel %vm7576, %v7357, %v7666
      %v7699 = vsel %vm7576, %v7359, %v7667
      %v7700 = vsel %vm7576, %v7361, %v7668
      %v7701 = vsel %vm7576, %v7363, %v7669
      %v7702 = vsel %vm7576, %v7365, %v7670
      %v7703 = vsel %vm7576, %v7367, %v7671
      %v7704 = vsel %vm7576, %v7369, %v7672
      %v7705 = vsel %vm7576, %v7371, %v7673
      %v7706 = vsel %vm7576, %v7373, %v7674
      %v7707 = vsel %vm7576, %v7375, %v7675
      %v7708 = vld [vmem:[%s14] sm:$0x1]
      %v7710 = vlaneseq
      %v7711 = vshrl.u32 %v7710, 7
      %v7712 = vsub.s32 0, %v7711
      %v7713 = vrot.slane %v7708, %v7712
      %v7715 = vadd.f32 %v7676, %v7713
      %v7716 = vadd.f32 %v7677, %v7713
      %v7717 = vadd.f32 %v7678, %v7713
      %v7718 = vadd.f32 %v7679, %v7713
      %v7719 = vadd.f32 %v7680, %v7713
      %v7720 = vadd.f32 %v7681, %v7713
      %v7721 = vadd.f32 %v7682, %v7713
      %v7722 = vadd.f32 %v7683, %v7713
      %v7723 = vadd.f32 %v7684, %v7713
      %v7724 = vadd.f32 %v7685, %v7713
      %v7725 = vadd.f32 %v7686, %v7713
      %v7726 = vadd.f32 %v7687, %v7713
      %v7727 = vadd.f32 %v7688, %v7713
      %v7728 = vadd.f32 %v7689, %v7713
      %v7729 = vadd.f32 %v7690, %v7713
      %v7730 = vadd.f32 %v7691, %v7713
      %v7731 = vadd.f32 %v7692, %v7713
      %v7732 = vadd.f32 %v7693, %v7713
      %v7733 = vadd.f32 %v7694, %v7713
      %v7734 = vadd.f32 %v7695, %v7713
      %v7735 = vadd.f32 %v7696, %v7713
      %v7736 = vadd.f32 %v7697, %v7713
      %v7737 = vadd.f32 %v7698, %v7713
      %v7738 = vadd.f32 %v7699, %v7713
      %v7739 = vadd.f32 %v7700, %v7713
      %v7740 = vadd.f32 %v7701, %v7713
      %v7741 = vadd.f32 %v7702, %v7713
      %v7742 = vadd.f32 %v7703, %v7713
      %v7743 = vadd.f32 %v7704, %v7713
      %v7744 = vadd.f32 %v7705, %v7713
      %v7745 = vadd.f32 %v7706, %v7713
      %v7746 = vadd.f32 %v7707, %v7713
      %vm7747 = vcmp.lt.s32.totalorder %v1709, 3
      %v7748 = vxor.u32 %v7715, 2147483648
      %v7749 = vxor.u32 %v7716, 2147483648
      %v7750 = vxor.u32 %v7717, 2147483648
      %v7751 = vxor.u32 %v7718, 2147483648
      %v7752 = vxor.u32 %v7719, 2147483648
      %v7753 = vxor.u32 %v7720, 2147483648
      %v7754 = vxor.u32 %v7721, 2147483648
      %v7755 = vxor.u32 %v7722, 2147483648
      %v7756 = vxor.u32 %v7723, 2147483648
      %v7757 = vxor.u32 %v7724, 2147483648
      %v7758 = vxor.u32 %v7725, 2147483648
      %v7759 = vxor.u32 %v7726, 2147483648
      %v7760 = vxor.u32 %v7727, 2147483648
      %v7761 = vxor.u32 %v7728, 2147483648
      %v7762 = vxor.u32 %v7729, 2147483648
      %v7763 = vxor.u32 %v7730, 2147483648
      %v7764 = vxor.u32 %v7731, 2147483648
      %v7765 = vxor.u32 %v7732, 2147483648
      %v7766 = vxor.u32 %v7733, 2147483648
      %v7767 = vxor.u32 %v7734, 2147483648
      %v7768 = vxor.u32 %v7735, 2147483648
      %v7769 = vxor.u32 %v7736, 2147483648
      %v7770 = vxor.u32 %v7737, 2147483648
      %v7771 = vxor.u32 %v7738, 2147483648
      %v7772 = vxor.u32 %v7739, 2147483648
      %v7773 = vxor.u32 %v7740, 2147483648
      %v7774 = vxor.u32 %v7741, 2147483648
      %v7775 = vxor.u32 %v7742, 2147483648
      %v7776 = vxor.u32 %v7743, 2147483648
      %v7777 = vxor.u32 %v7744, 2147483648
      %v7778 = vxor.u32 %v7745, 2147483648
      %v7779 = vxor.u32 %v7746, 2147483648
      %v7780 = vmul.f32 %v7748, 1.442695
      %v7781 = vpow.pop %v7780
      %v7782 = vmul.f32 %v7749, 1.442695
      %v7783 = vpow.pop %v7782
      %v7784 = vmul.f32 %v7750, 1.442695
      %v7785 = vpow.pop %v7784
      %v7786 = vmul.f32 %v7751, 1.442695
      %v7787 = vpow.pop %v7786
      %v7788 = vmul.f32 %v7752, 1.442695
      %v7789 = vpow.pop %v7788
      %v7790 = vmul.f32 %v7753, 1.442695
      %v7791 = vpow.pop %v7790
      %v7792 = vmul.f32 %v7754, 1.442695
      %v7793 = vpow.pop %v7792
      %v7794 = vmul.f32 %v7755, 1.442695
      %v7795 = vpow.pop %v7794
      %v7796 = vmul.f32 %v7756, 1.442695
      %v7797 = vpow.pop %v7796
      %v7798 = vmul.f32 %v7757, 1.442695
      %v7799 = vpow.pop %v7798
      %v7800 = vmul.f32 %v7758, 1.442695
      %v7801 = vpow.pop %v7800
      %v7802 = vmul.f32 %v7759, 1.442695
      %v7803 = vpow.pop %v7802
      %v7804 = vmul.f32 %v7760, 1.442695
      %v7805 = vpow.pop %v7804
      %v7806 = vmul.f32 %v7761, 1.442695
      %v7807 = vpow.pop %v7806
      %v7808 = vmul.f32 %v7762, 1.442695
      %v7809 = vpow.pop %v7808
      %v7810 = vmul.f32 %v7763, 1.442695
      %v7811 = vpow.pop %v7810
      %v7812 = vmul.f32 %v7764, 1.442695
      %v7813 = vpow.pop %v7812
      %v7814 = vmul.f32 %v7765, 1.442695
      %v7815 = vpow.pop %v7814
      %v7816 = vmul.f32 %v7766, 1.442695
      %v7817 = vpow.pop %v7816
      %v7818 = vmul.f32 %v7767, 1.442695
      %v7819 = vpow.pop %v7818
      %v7820 = vmul.f32 %v7768, 1.442695
      %v7821 = vpow.pop %v7820
      %v7822 = vmul.f32 %v7769, 1.442695
      %v7823 = vpow.pop %v7822
      %v7824 = vmul.f32 %v7770, 1.442695
      %v7825 = vpow.pop %v7824
      %v7826 = vmul.f32 %v7771, 1.442695
      %v7827 = vpow.pop %v7826
      %v7828 = vmul.f32 %v7772, 1.442695
      %v7829 = vpow.pop %v7828
      %v7830 = vmul.f32 %v7773, 1.442695
      %v7831 = vpow.pop %v7830
      %v7832 = vmul.f32 %v7774, 1.442695
      %v7833 = vpow.pop %v7832
      %v7834 = vmul.f32 %v7775, 1.442695
      %v7835 = vpow.pop %v7834
      %v7836 = vmul.f32 %v7776, 1.442695
      %v7837 = vpow.pop %v7836
      %v7838 = vmul.f32 %v7777, 1.442695
      %v7839 = vpow.pop %v7838
      %v7840 = vmul.f32 %v7778, 1.442695
      %v7841 = vpow.pop %v7840
      %v7842 = vmul.f32 %v7779, 1.442695
      %v7843 = vpow.pop %v7842
      %v7844 = vadd.f32 %v7781, 1.0
      %v7845 = vadd.f32 %v7783, 1.0
      %v7846 = vadd.f32 %v7785, 1.0
      %v7847 = vadd.f32 %v7787, 1.0
      %v7848 = vadd.f32 %v7789, 1.0
      %v7849 = vadd.f32 %v7791, 1.0
      %v7850 = vadd.f32 %v7793, 1.0
      %v7851 = vadd.f32 %v7795, 1.0
      %v7852 = vadd.f32 %v7797, 1.0
      %v7853 = vadd.f32 %v7799, 1.0
      %v7854 = vadd.f32 %v7801, 1.0
      %v7855 = vadd.f32 %v7803, 1.0
      %v7856 = vadd.f32 %v7805, 1.0
      %v7857 = vadd.f32 %v7807, 1.0
      %v7858 = vadd.f32 %v7809, 1.0
      %v7859 = vadd.f32 %v7811, 1.0
      %v7860 = vadd.f32 %v7813, 1.0
      %v7861 = vadd.f32 %v7815, 1.0
      %v7862 = vadd.f32 %v7817, 1.0
      %v7863 = vadd.f32 %v7819, 1.0
      %v7864 = vadd.f32 %v7821, 1.0
      %v7865 = vadd.f32 %v7823, 1.0
      %v7866 = vadd.f32 %v7825, 1.0
      %v7867 = vadd.f32 %v7827, 1.0
      %v7868 = vadd.f32 %v7829, 1.0
      %v7869 = vadd.f32 %v7831, 1.0
      %v7870 = vadd.f32 %v7833, 1.0
      %v7871 = vadd.f32 %v7835, 1.0
      %v7872 = vadd.f32 %v7837, 1.0
      %v7873 = vadd.f32 %v7839, 1.0
      %v7874 = vadd.f32 %v7841, 1.0
      %v7875 = vadd.f32 %v7843, 1.0
      %v7876 = vrcp.pop %v7844
      %v7877 = vmul.f32 1.0, %v7876
      %v7878 = vrcp.pop %v7845
      %v7879 = vmul.f32 1.0, %v7878
      %v7880 = vrcp.pop %v7846
      %v7881 = vmul.f32 1.0, %v7880
      %v7882 = vrcp.pop %v7847
      %v7883 = vmul.f32 1.0, %v7882
      %v7884 = vrcp.pop %v7848
      %v7885 = vmul.f32 1.0, %v7884
      %v7886 = vrcp.pop %v7849
      %v7887 = vmul.f32 1.0, %v7886
      %v7888 = vrcp.pop %v7850
      %v7889 = vmul.f32 1.0, %v7888
      %v7890 = vrcp.pop %v7851
      %v7891 = vmul.f32 1.0, %v7890
      %v7892 = vrcp.pop %v7852
      %v7893 = vmul.f32 1.0, %v7892
      %v7894 = vrcp.pop %v7853
      %v7895 = vmul.f32 1.0, %v7894
      %v7896 = vrcp.pop %v7854
      %v7897 = vmul.f32 1.0, %v7896
      %v7898 = vrcp.pop %v7855
      %v7899 = vmul.f32 1.0, %v7898
      %v7900 = vrcp.pop %v7856
      %v7901 = vmul.f32 1.0, %v7900
      %v7902 = vrcp.pop %v7857
      %v7903 = vmul.f32 1.0, %v7902
      %v7904 = vrcp.pop %v7858
      %v7905 = vmul.f32 1.0, %v7904
      %v7906 = vrcp.pop %v7859
      %v7907 = vmul.f32 1.0, %v7906
      %v7908 = vrcp.pop %v7860
      %v7909 = vmul.f32 1.0, %v7908
      %v7910 = vrcp.pop %v7861
      %v7911 = vmul.f32 1.0, %v7910
      %v7912 = vrcp.pop %v7862
      %v7913 = vmul.f32 1.0, %v7912
      %v7914 = vrcp.pop %v7863
      %v7915 = vmul.f32 1.0, %v7914
      %v7916 = vrcp.pop %v7864
      %v7917 = vmul.f32 1.0, %v7916
      %v7918 = vrcp.pop %v7865
      %v7919 = vmul.f32 1.0, %v7918
      %v7920 = vrcp.pop %v7866
      %v7921 = vmul.f32 1.0, %v7920
      %v7922 = vrcp.pop %v7867
      %v7923 = vmul.f32 1.0, %v7922
      %v7924 = vrcp.pop %v7868
      %v7925 = vmul.f32 1.0, %v7924
      %v7926 = vrcp.pop %v7869
      %v7927 = vmul.f32 1.0, %v7926
      %v7928 = vrcp.pop %v7870
      %v7929 = vmul.f32 1.0, %v7928
      %v7930 = vrcp.pop %v7871
      %v7931 = vmul.f32 1.0, %v7930
      %v7932 = vrcp.pop %v7872
      %v7933 = vmul.f32 1.0, %v7932
      %v7934 = vrcp.pop %v7873
      %v7935 = vmul.f32 1.0, %v7934
      %v7936 = vrcp.pop %v7874
      %v7937 = vmul.f32 1.0, %v7936
      %v7938 = vrcp.pop %v7875
      %v7939 = vmul.f32 1.0, %v7938
      %v7940 = vsel %vm7747, %v7877, %v7715
      %v7941 = vsel %vm7747, %v7879, %v7716
      %v7942 = vsel %vm7747, %v7881, %v7717
      %v7943 = vsel %vm7747, %v7883, %v7718
      %v7944 = vsel %vm7747, %v7885, %v7719
      %v7945 = vsel %vm7747, %v7887, %v7720
      %v7946 = vsel %vm7747, %v7889, %v7721
      %v7947 = vsel %vm7747, %v7891, %v7722
      %v7948 = vsel %vm7747, %v7893, %v7723
      %v7949 = vsel %vm7747, %v7895, %v7724
      %v7950 = vsel %vm7747, %v7897, %v7725
      %v7951 = vsel %vm7747, %v7899, %v7726
      %v7952 = vsel %vm7747, %v7901, %v7727
      %v7953 = vsel %vm7747, %v7903, %v7728
      %v7954 = vsel %vm7747, %v7905, %v7729
      %v7955 = vsel %vm7747, %v7907, %v7730
      %v7956 = vsel %vm7747, %v7909, %v7731
      %v7957 = vsel %vm7747, %v7911, %v7732
      %v7958 = vsel %vm7747, %v7913, %v7733
      %v7959 = vsel %vm7747, %v7915, %v7734
      %v7960 = vsel %vm7747, %v7917, %v7735
      %v7961 = vsel %vm7747, %v7919, %v7736
      %v7962 = vsel %vm7747, %v7921, %v7737
      %v7963 = vsel %vm7747, %v7923, %v7738
      %v7964 = vsel %vm7747, %v7925, %v7739
      %v7965 = vsel %vm7747, %v7927, %v7740
      %v7966 = vsel %vm7747, %v7929, %v7741
      %v7967 = vsel %vm7747, %v7931, %v7742
      %v7968 = vsel %vm7747, %v7933, %v7743
      %v7969 = vsel %vm7747, %v7935, %v7744
      %v7970 = vsel %vm7747, %v7937, %v7745
      %v7971 = vsel %vm7747, %v7939, %v7746
      %vm7972 = vcmask 64512
      %7973 = vst.msk [vmem:[%s496] sm:$0xff] %vm7972, %v7940
      %7974 = vst.msk [vmem:[%s496 + $0x8] sm:$0xff] %vm7972, %v7941
      %7975 = vst.msk [vmem:[%s496 + $0x10] sm:$0xff] %vm7972, %v7942
      %7976 = vst.msk [vmem:[%s496 + $0x18] sm:$0xff] %vm7972, %v7943
      %7977 = vst.msk [vmem:[%s496 + $0x20] sm:$0xff] %vm7972, %v7944
      %7978 = vst.msk [vmem:[%s496 + $0x28] sm:$0xff] %vm7972, %v7945
      %7979 = vst.msk [vmem:[%s496 + $0x30] sm:$0xff] %vm7972, %v7946
      %7980 = vst.msk [vmem:[%s496 + $0x38] sm:$0xff] %vm7972, %v7947
      %7981 = vst.msk [vmem:[%s496 + $0x40] sm:$0xff] %vm7972, %v7948
      %7982 = vst.msk [vmem:[%s496 + $0x48] sm:$0xff] %vm7972, %v7949
      %7983 = vst.msk [vmem:[%s496 + $0x50] sm:$0xff] %vm7972, %v7950
      %7984 = vst.msk [vmem:[%s496 + $0x58] sm:$0xff] %vm7972, %v7951
      %7985 = vst.msk [vmem:[%s496 + $0x60] sm:$0xff] %vm7972, %v7952
      %7986 = vst.msk [vmem:[%s496 + $0x68] sm:$0xff] %vm7972, %v7953
      %7987 = vst.msk [vmem:[%s496 + $0x70] sm:$0xff] %vm7972, %v7954
      %7988 = vst.msk [vmem:[%s496 + $0x78] sm:$0xff] %vm7972, %v7955
      %7989 = vst.msk [vmem:[%s496 + $0x80] sm:$0xff] %vm7972, %v7956
      %7990 = vst.msk [vmem:[%s496 + $0x88] sm:$0xff] %vm7972, %v7957
      %7991 = vst.msk [vmem:[%s496 + $0x90] sm:$0xff] %vm7972, %v7958
      %7992 = vst.msk [vmem:[%s496 + $0x98] sm:$0xff] %vm7972, %v7959
      %7993 = vst.msk [vmem:[%s496 + $0xa0] sm:$0xff] %vm7972, %v7960
      %7994 = vst.msk [vmem:[%s496 + $0xa8] sm:$0xff] %vm7972, %v7961
      %7995 = vst.msk [vmem:[%s496 + $0xb0] sm:$0xff] %vm7972, %v7962
      %7996 = vst.msk [vmem:[%s496 + $0xb8] sm:$0xff] %vm7972, %v7963
      %7997 = vst.msk [vmem:[%s496 + $0xc0] sm:$0xff] %vm7972, %v7964
      %7998 = vst.msk [vmem:[%s496 + $0xc8] sm:$0xff] %vm7972, %v7965
      %7999 = vst.msk [vmem:[%s496 + $0xd0] sm:$0xff] %vm7972, %v7966
      %8000 = vst.msk [vmem:[%s496 + $0xd8] sm:$0xff] %vm7972, %v7967
      %8001 = vst.msk [vmem:[%s496 + $0xe0] sm:$0xff] %vm7972, %v7968
      %8002 = vst.msk [vmem:[%s496 + $0xe8] sm:$0xff] %vm7972, %v7969
      %8003 = vst.msk [vmem:[%s496 + $0xf0] sm:$0xff] %vm7972, %v7970
      %8004 = vst.msk [vmem:[%s496 + $0xf8] sm:$0xff] %vm7972, %v7971
      %s8005 = smul.u32 32, %s26
      %p8006 = scmp.lt.s32.totalorder %s8005, 127
      %s8007 = scalar_select %p8006, %s8005, 127
      %s8008 = smul.addr %s8007, 8
      %s8009 = scalar_lea.vmem %s15, %s8008
      // Predicated region
      $region81: #{tpu_custom_call.1} parent=79 // pred_check
        %p8010 = pneg %p364
      $region82: #{tpu_custom_call.1} parent=79 // pred_check_branch
        %8012 = sbr.rel (%p8010) target = $region84
      $region83: #{tpu_custom_call.1} parent=79 // pred_region
        %s8013 = smul.u32 32, %s26
      $region84: #{tpu_custom_call.1} parent=79 // pred_fallthru
        _
    $region80: #{tpu_custom_call.1} parent=5 // pred_fallthru
      _
    %p8014 = scmp.le.s32.totalorder 2, %s21
    // Predicated region
    $region85: #{tpu_custom_call.1} parent=5 // pred_check
      %p8015 = pneg %p8014
    $region86: #{tpu_custom_call.1} parent=5 // pred_check_branch
      %8017 = sbr.rel (%p8015) target = $region88
    $region87: #{tpu_custom_call.1} parent=5 // pred_region
      %s8018 = ssub.s32 %s21, 2
      // Predicated region
      $region89: #{tpu_custom_call.1} parent=87 // pred_check
        %p8019 = pneg %p370
      $region90: #{tpu_custom_call.1} parent=87 // pred_check_branch
        %8021 = sbr.rel (%p8019) target = $region92
      $region91: #{tpu_custom_call.1} parent=87 // pred_region
        %s8022 = smul.u32 32, %s27
        %p8023 = scmp.lt.s32.totalorder %s8022, 127
        %s8024 = scalar_select %p8023, %s8022, 127
        %s8025 = smul.addr %s8024, 8
        %s8026 = scalar_lea.vmem %s15, %s8025
      $region92: #{tpu_custom_call.1} parent=87 // pred_fallthru
        _
    $region88: #{tpu_custom_call.1} parent=5 // pred_fallthru
      _
  $region6: #{tpu_custom_call.1} parent=0 // loop_footer
    %s25 = sadd.s32 1, %s21
  $region7: #{tpu_custom_call.1} parent=0 // loop_footer_branch
    %20 = sbr.rel target = $region3
  $region8: #{tpu_custom_call.1} parent=0 // loop_exit
    _

</llo_original>
